<compile_context>
chip_gen: v7x
topology: tpu7x:2x2x1
jax: 0.10.0
libtpu: 0.0.40
codegen_flags: <defaults>
</compile_context>

<pallas_src>
import jax
import jax.numpy as jnp
from jax.experimental import pallas as pl
from jax.experimental.pallas import tpu as pltpu

IN_SIZE = 4                                # input_size  (gate-type one-hot width)
HIDDEN = 32                                # hidden_size
WINDOW = 8                                 # window_size (adjacency vector width)
OUT = 4                                    # output_size (gate types predicted by phi)
CONCAT = HIDDEN + IN_SIZE + WINDOW         # [h, node_features, adjacency] = 44
LOGITS_W = WINDOW + OUT + 1                # [theta | phi | psi] = 13
H1 = 32                                    # per-head fc1 width
H2 = 128                                   # per-head fc2 width
XW = 16                                    # packed [nf | adj | pad] carry width
UNIF_W = 16                                # packed uniforms [edge(8) | gate | stop | pad]
SLAB = 64                                  # packed per-step output lane width
# slab lane offsets: [theta(8) | phi(4) | psi(1) | stop(1) | edges(8) | nf(4) | h(32) | pad(6)]
_OF_THETA, _OF_PHI, _OF_PSI, _OF_STOP, _OF_EDGE, _OF_NF, _OF_H = 0, 8, 12, 13, 14, 22, 26
# TODO(synk): the original PyTorch code wires the head MLPs with `input_size` instead of
# the concat width (a latent shape bug that would crash at runtime); we use CONCAT.


# --------------------------------------------------------------------------------------
# Fused kernel: full AR generation loop in one invocation (per batch-block grid step).
# --------------------------------------------------------------------------------------
def _ar_graphrnn_kernel(
    x0_ref, h0_ref, u_ref,                             # initial state + packed uniforms
    w_ih_ref, w_hh_ref, b_rnn_ref,                     # graph-level RNN cell
    w1_h_ref, w1_x_ref, b1_ref,                        # fused fc1 of the 3 heads
    w2e_ref, w2n_ref, w2s_ref, b2_ref,                 # per-head fc2 (de-zeroed)
    w3_ref, b3_ref,                                    # fused block-structured fc3
    out_ref,                                           # (T, B, SLAB) packed outputs
):
    num_steps = u_ref.shape[0]
    batch = x0_ref.shape[0]

    def dot(a, b):
        return jnp.dot(a, b, preferred_element_type=jnp.float32)

    # ---- hoisted weight loads / pre-broadcast biases (stay in vregs across steps) ----
    w_ih = w_ih_ref[...]                               # (16, 32)
    w_hh = w_hh_ref[...]                               # (32, 32)
    w1_h = w1_h_ref[...]                               # (32, 96)
    w1_x = w1_x_ref[...]                               # (16, 96)
    b_rnn = jnp.broadcast_to(b_rnn_ref[...], (batch, HIDDEN))
    b1 = jnp.broadcast_to(b1_ref[...], (batch, 3 * H1))
    b2e = jnp.broadcast_to(b2_ref[:, 0 * H2:1 * H2], (batch, H2))
    b2n = jnp.broadcast_to(b2_ref[:, 1 * H2:2 * H2], (batch, H2))
    b2s = jnp.broadcast_to(b2_ref[:, 2 * H2:3 * H2], (batch, H2))
    b3 = jnp.broadcast_to(b3_ref[...], (batch, LOGITS_W))
    lane4 = jax.lax.broadcasted_iota(jnp.int32, (batch, OUT), 1)
    pad_row = jnp.zeros((batch, SLAB - (LOGITS_W + 1 + WINDOW + IN_SIZE + HIDDEN)),
                        jnp.float32)
    pad_x = jnp.zeros((batch, XW - IN_SIZE - WINDOW), jnp.float32)

    def step(t, carry):
        h_prev, x = carry                              # (B, 32), (B, 16) = [nf|adj|pad]
        u = u_ref[t]                                   # (B, 16) packed uniforms

        # graph-level RNN cell: tanh(x @ W_ih + h @ W_hh + (b_ih + b_hh))
        h_new = jnp.tanh(dot(x, w_ih) + dot(h_prev, w_hh) + b_rnn)

        # fused fc1 of the three heads on c = [h_new, nf, adj]
        z1 = jnp.maximum(dot(h_new, w1_h) + dot(x, w1_x) + b1, 0.0)        # (B, 96)
        # per-head fc2 on lane slices of z1 (no structurally-zero weight blocks)
        z2e = jnp.maximum(dot(z1[:, 0 * H1:1 * H1], w2e_ref[...]) + b2e, 0.0)
        z2n = jnp.maximum(dot(z1[:, 1 * H1:2 * H1], w2n_ref[...]) + b2n, 0.0)
        z2s = jnp.maximum(dot(z1[:, 2 * H1:3 * H1], w2s_ref[...]) + b2s, 0.0)
        z2 = jnp.concatenate([z2e, z2n, z2s], axis=1)                       # (B, 384)
        logits = dot(z2, w3_ref[...]) + b3                                  # (B, 13)

        # one sigmoid over the full logits vreg; theta/psi are slices of the result
        sig = jax.nn.sigmoid(logits)
        theta = sig[:, :WINDOW]                                             # (B, 8)
        psi = sig[:, WINDOW + OUT:]                                         # (B, 1)
        phi_logits = logits[:, WINDOW:WINDOW + OUT]                         # (B, 4)
        m = jnp.max(phi_logits, axis=1, keepdims=True)
        e = jnp.exp(phi_logits - m)
        s = jnp.sum(e, axis=1, keepdims=True)
        phi = e * pl.reciprocal(s, approx=True)                             # softmax

        # ---- sampling: inverse-CDF on the precomputed uniforms -----------------------
        u_e = u[:, :WINDOW]                                                 # (B, 8)
        u_g = u[:, WINDOW:WINDOW + 1]                                       # (B, 1)
        u_s = u[:, WINDOW + 1:WINDOW + 2]                                   # (B, 1)
        edges = (u_e < theta).astype(jnp.float32)          # torch.bernoulli(theta)
        # categorical (torch.multinomial(phi, 1)) via unnormalized inclusive cumsum:
        # compare u*sum(e) against cumsum(e) — 3 lane adds, no MXU on the serial chain.
        c0 = e[:, 0:1]
        c1 = c0 + e[:, 1:2]
        c2 = c1 + e[:, 2:3]
        ug = u_g * s
        idx = ((ug >= c0).astype(jnp.int32) + (ug >= c1).astype(jnp.int32)
               + (ug >= c2).astype(jnp.int32))
        idx = jnp.minimum(idx, OUT - 1)                    # keep the overflow clamp
        nf_new = (lane4 == idx).astype(jnp.float32)        # one-hot node features
        stop = (u_s < psi).astype(jnp.float32)             # torch.bernoulli(psi)

        # ---- ONE lane-dense packed store per step ------------------------------------
        row = jnp.concatenate(
            [theta, phi, psi, stop, edges, nf_new, h_new, pad_row], axis=1)  # (B, 64)
        out_ref[t] = row

        x_new = jnp.concatenate([nf_new, edges, pad_x], axis=1)             # (B, 16)
        return (h_new, x_new)

    # Short fixed trip-count: unroll for LLO scheduler visibility; state stays in vregs.
    jax.lax.fori_loop(0, num_steps, step,
                      (h0_ref[...], x0_ref[...]), unroll=True)


# --------------------------------------------------------------------------------------
# Wrapper: pack inputs, run the fused kernel (batch sharded over a parallel grid axis),
# unpack the output slab.
# --------------------------------------------------------------------------------------
def ar_graphrnn_generate(nf0, adj0, h0, u_edge, u_gate, u_stop, kparams, batch_block=8):
    T = u_edge.shape[0]
    B = nf0.shape[0]
    assert B % batch_block == 0

    x0 = jnp.concatenate(
        [nf0, adj0, jnp.zeros((B, XW - IN_SIZE - WINDOW), jnp.float32)], axis=1)
    u = jnp.concatenate(
        [u_edge, u_gate, u_stop,
         jnp.zeros((T, B, UNIF_W - WINDOW - 2), jnp.float32)], axis=-1)

    vmem = pl.BlockSpec(memory_space=pltpu.MemorySpace.VMEM)   # whole weight in VMEM
    in_specs = [
        pl.BlockSpec((batch_block, XW), lambda b: (b, 0)),
        pl.BlockSpec((batch_block, HIDDEN), lambda b: (b, 0)),
        pl.BlockSpec((T, batch_block, UNIF_W), lambda b: (0, b, 0)),
    ] + [vmem] * len(kparams)
    out_specs = pl.BlockSpec((T, batch_block, SLAB), lambda b: (0, b, 0))

    slab = pl.pallas_call(
        _ar_graphrnn_kernel,
        out_shape=jax.ShapeDtypeStruct((T, B, SLAB), jnp.float32),
        grid=(B // batch_block,),
        in_specs=in_specs,
        out_specs=out_specs,
        compiler_params=pltpu.CompilerParams(dimension_semantics=("parallel",)),
    )(x0, h0, u, *kparams)

    theta = slab[..., _OF_THETA:_OF_THETA + WINDOW]
    phi = slab[..., _OF_PHI:_OF_PHI + OUT]
    psi = slab[..., _OF_PSI:_OF_PSI + 1]
    stop = slab[..., _OF_STOP:_OF_STOP + 1]
    edges = slab[..., _OF_EDGE:_OF_EDGE + WINDOW]
    nf = slab[..., _OF_NF:_OF_NF + IN_SIZE]
    h = slab[..., _OF_H:_OF_H + HIDDEN]
    return theta, phi, psi, h, edges, nf, stop


# --------------------------------------------------------------------------------------
# Host-side parameter construction: PyTorch-layout params + pre-split/fused kernel slabs.
# --------------------------------------------------------------------------------------
def init_raw_params(key):
    """Deterministic synthetic parameters with the module's original shapes."""
    def lin(k, shape):
        return 0.1 * jax.random.normal(k, shape, dtype=jnp.float32)

    ks = iter(jax.random.split(key, 32))
    raw = {
        "w_ih": lin(next(ks), (IN_SIZE + WINDOW, HIDDEN)),   # (12, 32), transposed
        "b_ih": lin(next(ks), (1, HIDDEN)),
        "w_hh": lin(next(ks), (HIDDEN, HIDDEN)),
        "b_hh": lin(next(ks), (1, HIDDEN)),
    }
    for name, odim in (("edge", WINDOW), ("node", OUT), ("stop", 1)):
        raw[name] = (
            lin(next(ks), (CONCAT, H1)), lin(next(ks), (1, H1)),
            lin(next(ks), (H1, H2)), lin(next(ks), (1, H2)),
            lin(next(ks), (H2, odim)), lin(next(ks), (1, odim)),
        )
    return raw


def pack_params(raw):
    """Pre-split / pre-fuse the raw params into the kernel layout (trace-time, free)."""
    heads = [raw["edge"], raw["node"], raw["stop"]]

    # RNN input weight stacked for the packed [nf | adj | pad] carry; biases folded.
    w_ih = jnp.zeros((XW, HIDDEN), jnp.float32).at[:IN_SIZE + WINDOW].set(raw["w_ih"])
    b_rnn = raw["b_ih"] + raw["b_hh"]                                            # (1, 32)

    # fc1 of the three heads, split by the concat segments [h | (nf,adj)]
    w1_h = jnp.concatenate([h[0][:HIDDEN] for h in heads], axis=1)               # (32, 96)
    w1_x = jnp.zeros((XW, 3 * H1), jnp.float32).at[:IN_SIZE + WINDOW].set(
        jnp.concatenate([h[0][HIDDEN:] for h in heads], axis=1))                 # (16, 96)
    b1 = jnp.concatenate([h[1] for h in heads], axis=1)                          # (1, 96)

    # fc2: kept per-head (no zero blocks).
    w2_e, w2_n, w2_s = heads[0][2], heads[1][2], heads[2][2]                     # (32,128) each
    b2 = jnp.concatenate([h[3] for h in heads], axis=1)                          # (1, 384)

    # fc3: block-structured so theta/phi/psi logits land in one (B, 13) slab.
    w3 = jnp.zeros((3 * H2, LOGITS_W), jnp.float32)
    b3 = jnp.concatenate([h[5] for h in heads], axis=1)                          # (1, 13)
    col = 0
    for i, h in enumerate(heads):
        odim = h[4].shape[1]
        w3 = w3.at[i * H2:(i + 1) * H2, col:col + odim].set(h[4])
        col += odim

    # TODO(synk): on v6e/v7x w2/w3 could be stored bf16 with f32 accumulation to halve
    # the per-step weight vlds; kept f32 here to stay within the reference tolerance.
    return (w_ih, raw["w_hh"], b_rnn, w1_h, w1_x, b1, w2_e, w2_n, w2_s, b2, w3, b3)


# --------------------------------------------------------------------------------------
# Pure-JAX reference of a single GraphRNN step (original, unfused formulation).
# --------------------------------------------------------------------------------------
def _reference_step(nf, adj, h_prev, raw):
    P = jax.lax.Precision.HIGHEST
    x = jnp.concatenate([nf, adj], axis=1)
    h_new = jnp.tanh(jnp.dot(x, raw["w_ih"], precision=P) + raw["b_ih"]
                     + jnp.dot(h_prev, raw["w_hh"], precision=P) + raw["b_hh"])
    c = jnp.concatenate([h_new, nf, adj], axis=1)

    def mlp(p):
        w1, b1, w2, b2, w3, b3 = p
        z = jax.nn.relu(jnp.dot(c, w1, precision=P) + b1)
        z = jax.nn.relu(jnp.dot(z, w2, precision=P) + b2)
        return jnp.dot(z, w3, precision=P) + b3

    theta = jax.nn.sigmoid(mlp(raw["edge"]))
    phi = jax.nn.softmax(mlp(raw["node"]), axis=1)
    psi = jax.nn.sigmoid(mlp(raw["stop"]))
    return theta, phi, psi, h_new


if __name__ == "__main__":
    key = jax.random.PRNGKey(0)
    pkey, ukey = jax.random.split(key)

    B = 16          # batch of independent graphs; sharded across 2 TCs on v7x
    MAX_STEPS = 6   # TODO(synk): original uses a per-sample `while not stop` loop; we run
                    # a fixed number of steps and emit per-step stop flags for truncation.

    raw = init_raw_params(pkey)
    kparams = pack_params(raw)

    # TODO(synk): init_hidden_state(conditioning != None) is a no-op (`pass`) in the
    # original module, and at t == 0 it passes x=None into GraphRNN (undefined); we use
    # zero hidden state / zero node-features / zero adjacency as the substitutes.
    nf0 = jnp.zeros((B, IN_SIZE), jnp.float32)
    adj0 = jnp.zeros((B, WINDOW), jnp.float32)
    h0 = jnp.zeros((B, HIDDEN), jnp.float32)

    ek, gk, sk = jax.random.split(ukey, 3)
    u_edge = jax.random.uniform(ek, (MAX_STEPS, B, WINDOW), jnp.float32)
    u_gate = jax.random.uniform(gk, (MAX_STEPS, B, 1), jnp.float32)
    u_stop = jax.random.uniform(sk, (MAX_STEPS, B, 1), jnp.float32)

    generate = jax.jit(ar_graphrnn_generate)
    outs = jax.block_until_ready(
        generate(nf0, adj0, h0, u_edge, u_gate, u_stop, kparams))
    theta_t, phi_t, psi_t, h_t, edges_t, nf_t, stop_t = outs

    # ---- correctness check -------------------------------------------------------
    # Teacher-force a pure-JAX reference with the kernel's own recorded states: this
    # verifies every step's math AND the in-kernel state carry deterministically.
    nf_in = jnp.concatenate([nf0[None], nf_t[:-1]], axis=0)
    adj_in = jnp.concatenate([adj0[None], edges_t[:-1]], axis=0)
    h_in = jnp.concatenate([h0[None], h_t[:-1]], axis=0)
    r_theta, r_phi, r_psi, r_h = jax.vmap(
        lambda a, b, c: _reference_step(a, b, c, raw))(nf_in, adj_in, h_in)
    assert jnp.allclose(theta_t, r_theta, rtol=1e-3, atol=5e-4)
    # phi uses pl.reciprocal(approx=True) for the softmax denominator -> slightly looser.
    assert jnp.allclose(phi_t, r_phi, rtol=2e-3, atol=2e-3)
    assert jnp.allclose(psi_t, r_psi, rtol=1e-3, atol=5e-4)
    assert jnp.allclose(h_t, r_h, rtol=1e-3, atol=5e-4)

    # Sampled quantities are exact thresholdings of the kernel's own outputs.
    assert jnp.array_equal(edges_t, (u_edge < theta_t).astype(jnp.float32))
    assert jnp.array_equal(stop_t, (u_stop < psi_t).astype(jnp.float32))
    assert bool(jnp.all(jnp.sum(nf_t, axis=-1) == 1.0))          # valid one-hot rows
    assert bool(jnp.all((nf_t == 0.0) | (nf_t == 1.0)))

    print("KERNEL_OK")
</pallas_src>

<mosaic_0001>
module attributes {stable_mosaic.version = 11 : i64} {
  func.func @_ar_graphrnn_kernel(%arg0: i32, %arg1: memref<8x16xf32, #tpu.memory_space<vmem>>, %arg2: memref<8x32xf32, #tpu.memory_space<vmem>>, %arg3: memref<6x8x16xf32, #tpu.memory_space<vmem>>, %arg4: memref<16x32xf32, #tpu.memory_space<vmem>>, %arg5: memref<32x32xf32, #tpu.memory_space<vmem>>, %arg6: memref<1x32xf32, #tpu.memory_space<vmem>>, %arg7: memref<32x96xf32, #tpu.memory_space<vmem>>, %arg8: memref<16x96xf32, #tpu.memory_space<vmem>>, %arg9: memref<1x96xf32, #tpu.memory_space<vmem>>, %arg10: memref<32x128xf32, #tpu.memory_space<vmem>>, %arg11: memref<32x128xf32, #tpu.memory_space<vmem>>, %arg12: memref<32x128xf32, #tpu.memory_space<vmem>>, %arg13: memref<1x384xf32, #tpu.memory_space<vmem>>, %arg14: memref<384x13xf32, #tpu.memory_space<vmem>>, %arg15: memref<1x13xf32, #tpu.memory_space<vmem>>, %arg16: memref<6x8x64xf32, #tpu.memory_space<vmem>>) attributes {dimension_semantics = [#tpu.dimension_semantics<parallel>], iteration_bounds = array<i64: 2>, scalar_prefetch = 0 : i64, scratch_operands = 0 : i64, tpu.core_type = #tpu.core_type<tc>, window_params = [{transform_indices = @transform_0, window_bounds = array<i64: 8, 16>}, {transform_indices = @transform_1, window_bounds = array<i64: 8, 32>}, {transform_indices = @transform_2, window_bounds = array<i64: 6, 8, 16>}, {pipeline_mode = #tpu.pipeline_mode<synchronous>, transform_indices = @transform_3, window_bounds = array<i64: 16, 32>}, {pipeline_mode = #tpu.pipeline_mode<synchronous>, transform_indices = @transform_4, window_bounds = array<i64: 32, 32>}, {pipeline_mode = #tpu.pipeline_mode<synchronous>, transform_indices = @transform_5, window_bounds = array<i64: 1, 32>}, {pipeline_mode = #tpu.pipeline_mode<synchronous>, transform_indices = @transform_6, window_bounds = array<i64: 32, 96>}, {pipeline_mode = #tpu.pipeline_mode<synchronous>, transform_indices = @transform_7, window_bounds = array<i64: 16, 96>}, {pipeline_mode = #tpu.pipeline_mode<synchronous>, transform_indices = @transform_8, window_bounds = array<i64: 1, 96>}, {pipeline_mode = #tpu.pipeline_mode<synchronous>, transform_indices = @transform_9, window_bounds = array<i64: 32, 128>}, {pipeline_mode = #tpu.pipeline_mode<synchronous>, transform_indices = @transform_10, window_bounds = array<i64: 32, 128>}, {pipeline_mode = #tpu.pipeline_mode<synchronous>, transform_indices = @transform_11, window_bounds = array<i64: 32, 128>}, {pipeline_mode = #tpu.pipeline_mode<synchronous>, transform_indices = @transform_12, window_bounds = array<i64: 1, 384>}, {pipeline_mode = #tpu.pipeline_mode<synchronous>, transform_indices = @transform_13, window_bounds = array<i64: 384, 13>}, {pipeline_mode = #tpu.pipeline_mode<synchronous>, transform_indices = @transform_14, window_bounds = array<i64: 1, 13>}, {transform_indices = @transform_15, window_bounds = array<i64: 6, 8, 64>}]} {
    %c0 = arith.constant 0 : index
    %c0_0 = arith.constant 0 : index
    %0 = vector.load %arg4[%c0, %c0_0] : memref<16x32xf32, #tpu.memory_space<vmem>>, vector<16x32xf32>
    %c0_1 = arith.constant 0 : index
    %c0_2 = arith.constant 0 : index
    %1 = vector.load %arg5[%c0_1, %c0_2] : memref<32x32xf32, #tpu.memory_space<vmem>>, vector<32x32xf32>
    %c0_3 = arith.constant 0 : index
    %c0_4 = arith.constant 0 : index
    %2 = vector.load %arg7[%c0_3, %c0_4] : memref<32x96xf32, #tpu.memory_space<vmem>>, vector<32x96xf32>
    %c0_5 = arith.constant 0 : index
    %c0_6 = arith.constant 0 : index
    %3 = vector.load %arg8[%c0_5, %c0_6] : memref<16x96xf32, #tpu.memory_space<vmem>>, vector<16x96xf32>
    %c0_7 = arith.constant 0 : index
    %c0_8 = arith.constant 0 : index
    %4 = vector.load %arg6[%c0_7, %c0_8] : memref<1x32xf32, #tpu.memory_space<vmem>>, vector<1x32xf32>
    %5 = vector.shape_cast %4 : vector<1x32xf32> to vector<1x32xf32>
    %6 = vector.broadcast %5 : vector<1x32xf32> to vector<8x32xf32>
    %c0_9 = arith.constant 0 : index
    %c0_10 = arith.constant 0 : index
    %7 = vector.load %arg9[%c0_9, %c0_10] : memref<1x96xf32, #tpu.memory_space<vmem>>, vector<1x96xf32>
    %8 = vector.shape_cast %7 : vector<1x96xf32> to vector<1x96xf32>
    %9 = vector.broadcast %8 : vector<1x96xf32> to vector<8x96xf32>
    %c0_11 = arith.constant 0 : index
    %c0_12 = arith.constant 0 : index
    %10 = vector.load %arg13[%c0_11, %c0_12] : memref<1x384xf32, #tpu.memory_space<vmem>>, vector<1x128xf32>
    %11 = vector.shape_cast %10 : vector<1x128xf32> to vector<1x128xf32>
    %12 = vector.broadcast %11 : vector<1x128xf32> to vector<8x128xf32>
    %c0_13 = arith.constant 0 : index
    %c128 = arith.constant 128 : index
    %13 = vector.load %arg13[%c0_13, %c128] : memref<1x384xf32, #tpu.memory_space<vmem>>, vector<1x128xf32>
    %14 = vector.shape_cast %13 : vector<1x128xf32> to vector<1x128xf32>
    %15 = vector.broadcast %14 : vector<1x128xf32> to vector<8x128xf32>
    %c0_14 = arith.constant 0 : index
    %c256 = arith.constant 256 : index
    %16 = vector.load %arg13[%c0_14, %c256] : memref<1x384xf32, #tpu.memory_space<vmem>>, vector<1x128xf32>
    %17 = vector.shape_cast %16 : vector<1x128xf32> to vector<1x128xf32>
    %18 = vector.broadcast %17 : vector<1x128xf32> to vector<8x128xf32>
    %c0_15 = arith.constant 0 : index
    %c0_16 = arith.constant 0 : index
    %19 = vector.load %arg15[%c0_15, %c0_16] : memref<1x13xf32, #tpu.memory_space<vmem>>, vector<1x13xf32>
    %20 = vector.shape_cast %19 : vector<1x13xf32> to vector<1x13xf32>
    %21 = vector.broadcast %20 : vector<1x13xf32> to vector<8x13xf32>
    %22 = tpu.iota {dimensions = array<i32: 1>} : vector<8x4xi32>
    %cst = arith.constant 0.000000e+00 : f32
    %23 = vector.broadcast %cst : f32 to vector<8x6xf32>
    %cst_17 = arith.constant 0.000000e+00 : f32
    %24 = vector.broadcast %cst_17 : f32 to vector<8x4xf32>
    %c0_18 = arith.constant 0 : index
    %c0_19 = arith.constant 0 : index
    %25 = vector.load %arg2[%c0_18, %c0_19] : memref<8x32xf32, #tpu.memory_space<vmem>>, vector<8x32xf32>
    %c0_20 = arith.constant 0 : index
    %c0_21 = arith.constant 0 : index
    %26 = vector.load %arg1[%c0_20, %c0_21] : memref<8x16xf32, #tpu.memory_space<vmem>>, vector<8x16xf32>
    %c0_i32 = arith.constant 0 : i32
    %27 = arith.index_cast %c0_i32 : i32 to index
    %c0_22 = arith.constant 0 : index
    %c0_23 = arith.constant 0 : index
    %28 = vector.load %arg3[%27, %c0_22, %c0_23] : memref<6x8x16xf32, #tpu.memory_space<vmem>>, vector<1x8x16xf32>
    %29 = vector.shape_cast %28 : vector<1x8x16xf32> to vector<8x16xf32>
    %cst_24 = arith.constant dense<0.000000e+00> : vector<8x32xf32>
    %30 = tpu.matmul %26, %0, %cst_24 {dimension_numbers = #tpu.dot_dimension_numbers<[1], [0], [0], [1], [0, 0, 1, 1], [], []>} : vector<8x16xf32>, vector<16x32xf32>, vector<8x32xf32> -> vector<8x32xf32>
    %cst_25 = arith.constant dense<0.000000e+00> : vector<8x32xf32>
    %31 = tpu.matmul %25, %1, %cst_25 {dimension_numbers = #tpu.dot_dimension_numbers<[1], [0], [0], [1], [0, 0, 1, 1], [], []>} : vector<8x32xf32>, vector<32x32xf32>, vector<8x32xf32> -> vector<8x32xf32>
    %32 = arith.addf %30, %31 : vector<8x32xf32>
    %33 = arith.addf %32, %6 : vector<8x32xf32>
    %34 = math.tanh %33 : vector<8x32xf32>
    %cst_26 = arith.constant dense<0.000000e+00> : vector<8x96xf32>
    %35 = tpu.matmul %34, %2, %cst_26 {dimension_numbers = #tpu.dot_dimension_numbers<[1], [0], [0], [1], [0, 0, 1, 1], [], []>} : vector<8x32xf32>, vector<32x96xf32>, vector<8x96xf32> -> vector<8x96xf32>
    %cst_27 = arith.constant dense<0.000000e+00> : vector<8x96xf32>
    %36 = tpu.matmul %26, %3, %cst_27 {dimension_numbers = #tpu.dot_dimension_numbers<[1], [0], [0], [1], [0, 0, 1, 1], [], []>} : vector<8x16xf32>, vector<16x96xf32>, vector<8x96xf32> -> vector<8x96xf32>
    %37 = arith.addf %35, %36 : vector<8x96xf32>
    %38 = arith.addf %37, %9 : vector<8x96xf32>
    %cst_28 = arith.constant 0.000000e+00 : f32
    %39 = vector.broadcast %cst_28 : f32 to vector<8x96xf32>
    %40 = arith.maximumf %38, %39 : vector<8x96xf32>
    %41 = vector.extract_strided_slice %40 {offsets = [0, 0], sizes = [8, 32], strides = [1, 1]} : vector<8x96xf32> to vector<8x32xf32>
    %c0_29 = arith.constant 0 : index
    %c0_30 = arith.constant 0 : index
    %42 = vector.load %arg10[%c0_29, %c0_30] : memref<32x128xf32, #tpu.memory_space<vmem>>, vector<32x128xf32>
    %cst_31 = arith.constant dense<0.000000e+00> : vector<8x128xf32>
    %43 = tpu.matmul %41, %42, %cst_31 {dimension_numbers = #tpu.dot_dimension_numbers<[1], [0], [0], [1], [0, 0, 1, 1], [], []>} : vector<8x32xf32>, vector<32x128xf32>, vector<8x128xf32> -> vector<8x128xf32>
    %44 = arith.addf %43, %12 : vector<8x128xf32>
    %cst_32 = arith.constant 0.000000e+00 : f32
    %45 = vector.broadcast %cst_32 : f32 to vector<8x128xf32>
    %46 = arith.maximumf %44, %45 : vector<8x128xf32>
    %47 = vector.extract_strided_slice %40 {offsets = [0, 32], sizes = [8, 32], strides = [1, 1]} : vector<8x96xf32> to vector<8x32xf32>
    %c0_33 = arith.constant 0 : index
    %c0_34 = arith.constant 0 : index
    %48 = vector.load %arg11[%c0_33, %c0_34] : memref<32x128xf32, #tpu.memory_space<vmem>>, vector<32x128xf32>
    %cst_35 = arith.constant dense<0.000000e+00> : vector<8x128xf32>
    %49 = tpu.matmul %47, %48, %cst_35 {dimension_numbers = #tpu.dot_dimension_numbers<[1], [0], [0], [1], [0, 0, 1, 1], [], []>} : vector<8x32xf32>, vector<32x128xf32>, vector<8x128xf32> -> vector<8x128xf32>
    %50 = arith.addf %49, %15 : vector<8x128xf32>
    %cst_36 = arith.constant 0.000000e+00 : f32
    %51 = vector.broadcast %cst_36 : f32 to vector<8x128xf32>
    %52 = arith.maximumf %50, %51 : vector<8x128xf32>
    %53 = vector.extract_strided_slice %40 {offsets = [0, 64], sizes = [8, 32], strides = [1, 1]} : vector<8x96xf32> to vector<8x32xf32>
    %c0_37 = arith.constant 0 : index
    %c0_38 = arith.constant 0 : index
    %54 = vector.load %arg12[%c0_37, %c0_38] : memref<32x128xf32, #tpu.memory_space<vmem>>, vector<32x128xf32>
    %cst_39 = arith.constant dense<0.000000e+00> : vector<8x128xf32>
    %55 = tpu.matmul %53, %54, %cst_39 {dimension_numbers = #tpu.dot_dimension_numbers<[1], [0], [0], [1], [0, 0, 1, 1], [], []>} : vector<8x32xf32>, vector<32x128xf32>, vector<8x128xf32> -> vector<8x128xf32>
    %56 = arith.addf %55, %18 : vector<8x128xf32>
    %cst_40 = arith.constant 0.000000e+00 : f32
    %57 = vector.broadcast %cst_40 : f32 to vector<8x128xf32>
    %58 = arith.maximumf %56, %57 : vector<8x128xf32>
    %59 = tpu.concatenate %46, %52, %58 in 1 : vector<8x128xf32>, vector<8x128xf32>, vector<8x128xf32> -> vector<8x384xf32>
    %c0_41 = arith.constant 0 : index
    %c0_42 = arith.constant 0 : index
    %60 = vector.load %arg14[%c0_41, %c0_42] : memref<384x13xf32, #tpu.memory_space<vmem>>, vector<384x13xf32>
    %cst_43 = arith.constant dense<0.000000e+00> : vector<8x13xf32>
    %61 = tpu.matmul %59, %60, %cst_43 {dimension_numbers = #tpu.dot_dimension_numbers<[1], [0], [0], [1], [0, 0, 1, 1], [], []>} : vector<8x384xf32>, vector<384x13xf32>, vector<8x13xf32> -> vector<8x13xf32>
    %62 = arith.addf %61, %21 : vector<8x13xf32>
    %63 = arith.negf %62 : vector<8x13xf32>
    %64 = math.exp %63 : vector<8x13xf32>
    %cst_44 = arith.constant 1.000000e+00 : f32
    %65 = vector.broadcast %cst_44 : f32 to vector<8x13xf32>
    %66 = arith.addf %65, %64 : vector<8x13xf32>
    %67 = arith.divf %65, %66 : vector<8x13xf32>
    %68 = vector.extract_strided_slice %67 {offsets = [0, 0], sizes = [8, 8], strides = [1, 1]} : vector<8x13xf32> to vector<8x8xf32>
    %69 = vector.extract_strided_slice %67 {offsets = [0, 12], sizes = [8, 1], strides = [1, 1]} : vector<8x13xf32> to vector<8x1xf32>
    %70 = vector.extract_strided_slice %62 {offsets = [0, 8], sizes = [8, 4], strides = [1, 1]} : vector<8x13xf32> to vector<8x4xf32>
    %cst_45 = arith.constant dense<0xFF800000> : vector<8xf32>
    %71 = vector.multi_reduction <maximumf>, %70, %cst_45 [1] : vector<8x4xf32> to vector<8xf32>
    %72 = vector.shape_cast %71 : vector<8xf32> to vector<8x1xf32>
    %73 = vector.broadcast %72 : vector<8x1xf32> to vector<8x4xf32>
    %74 = arith.subf %70, %73 : vector<8x4xf32>
    %75 = math.exp %74 : vector<8x4xf32>
    %cst_46 = arith.constant dense<0.000000e+00> : vector<8xf32>
    %76 = vector.multi_reduction <add>, %75, %cst_46 [1] : vector<8x4xf32> to vector<8xf32>
    %77 = vector.shape_cast %76 : vector<8xf32> to vector<8x1xf32>
    %78 = tpu.reciprocal %77 {approx = true} : vector<8x1xf32> -> vector<8x1xf32>
    %79 = vector.broadcast %78 : vector<8x1xf32> to vector<8x4xf32>
    %80 = arith.mulf %75, %79 : vector<8x4xf32>
    %81 = vector.extract_strided_slice %29 {offsets = [0, 0], sizes = [8, 8], strides = [1, 1]} : vector<8x16xf32> to vector<8x8xf32>
    %82 = vector.extract_strided_slice %29 {offsets = [0, 8], sizes = [8, 1], strides = [1, 1]} : vector<8x16xf32> to vector<8x1xf32>
    %83 = vector.extract_strided_slice %29 {offsets = [0, 9], sizes = [8, 1], strides = [1, 1]} : vector<8x16xf32> to vector<8x1xf32>
    %84 = arith.cmpf olt, %81, %68 : vector<8x8xf32>
    %85 = arith.extui %84 : vector<8x8xi1> to vector<8x8xi32>
    %86 = arith.sitofp %85 : vector<8x8xi32> to vector<8x8xf32>
    %87 = vector.extract_strided_slice %75 {offsets = [0, 0], sizes = [8, 1], strides = [1, 1]} : vector<8x4xf32> to vector<8x1xf32>
    %88 = vector.extract_strided_slice %75 {offsets = [0, 1], sizes = [8, 1], strides = [1, 1]} : vector<8x4xf32> to vector<8x1xf32>
    %89 = arith.addf %87, %88 : vector<8x1xf32>
    %90 = vector.extract_strided_slice %75 {offsets = [0, 2], sizes = [8, 1], strides = [1, 1]} : vector<8x4xf32> to vector<8x1xf32>
    %91 = arith.addf %89, %90 : vector<8x1xf32>
    %92 = arith.mulf %82, %77 : vector<8x1xf32>
    %93 = arith.cmpf oge, %92, %87 : vector<8x1xf32>
    %94 = arith.extui %93 : vector<8x1xi1> to vector<8x1xi32>
    %95 = arith.cmpf oge, %92, %89 : vector<8x1xf32>
    %96 = arith.extui %95 : vector<8x1xi1> to vector<8x1xi32>
    %97 = arith.addi %94, %96 : vector<8x1xi32>
    %98 = arith.cmpf oge, %92, %91 : vector<8x1xf32>
    %99 = arith.extui %98 : vector<8x1xi1> to vector<8x1xi32>
    %100 = arith.addi %97, %99 : vector<8x1xi32>
    %c3_i32 = arith.constant 3 : i32
    %101 = vector.broadcast %c3_i32 : i32 to vector<8x1xi32>
    %102 = arith.minsi %100, %101 : vector<8x1xi32>
    %103 = vector.broadcast %102 : vector<8x1xi32> to vector<8x4xi32>
    %104 = arith.cmpi eq, %22, %103 : vector<8x4xi32>
    %105 = arith.extui %104 : vector<8x4xi1> to vector<8x4xi32>
    %106 = arith.sitofp %105 : vector<8x4xi32> to vector<8x4xf32>
    %107 = arith.cmpf olt, %83, %69 : vector<8x1xf32>
    %108 = arith.extui %107 : vector<8x1xi1> to vector<8x1xi32>
    %109 = arith.sitofp %108 : vector<8x1xi32> to vector<8x1xf32>
    %110 = tpu.concatenate %68, %80, %69, %109, %86, %106, %34, %23 in 1 : vector<8x8xf32>, vector<8x4xf32>, vector<8x1xf32>, vector<8x1xf32>, vector<8x8xf32>, vector<8x4xf32>, vector<8x32xf32>, vector<8x6xf32> -> vector<8x64xf32>
    %111 = arith.index_cast %c0_i32 : i32 to index
    %c0_47 = arith.constant 0 : index
    %c0_48 = arith.constant 0 : index
    %112 = vector.load %arg16[%111, %c0_47, %c0_48] : memref<6x8x64xf32, #tpu.memory_space<vmem>>, vector<1x8x64xf32>
    %113 = vector.shape_cast %112 : vector<1x8x64xf32> to vector<8x64xf32>
    %114 = vector.shape_cast %110 : vector<8x64xf32> to vector<1x8x64xf32>
    tpu.vector_store %arg16[%111, %c0_47, %c0_48], %114 {strides = array<i32>} : memref<6x8x64xf32, #tpu.memory_space<vmem>>, vector<1x8x64xf32>,
    %115 = tpu.concatenate %106, %86, %24 in 1 : vector<8x4xf32>, vector<8x8xf32>, vector<8x4xf32> -> vector<8x16xf32>
    %c1_i32 = arith.constant 1 : i32
    %116 = arith.index_cast %c1_i32 : i32 to index
    %c0_49 = arith.constant 0 : index
    %c0_50 = arith.constant 0 : index
    %117 = vector.load %arg3[%116, %c0_49, %c0_50] : memref<6x8x16xf32, #tpu.memory_space<vmem>>, vector<1x8x16xf32>
    %118 = vector.shape_cast %117 : vector<1x8x16xf32> to vector<8x16xf32>
    %cst_51 = arith.constant dense<0.000000e+00> : vector<8x32xf32>
    %119 = tpu.matmul %115, %0, %cst_51 {dimension_numbers = #tpu.dot_dimension_numbers<[1], [0], [0], [1], [0, 0, 1, 1], [], []>} : vector<8x16xf32>, vector<16x32xf32>, vector<8x32xf32> -> vector<8x32xf32>
    %cst_52 = arith.constant dense<0.000000e+00> : vector<8x32xf32>
    %120 = tpu.matmul %34, %1, %cst_52 {dimension_numbers = #tpu.dot_dimension_numbers<[1], [0], [0], [1], [0, 0, 1, 1], [], []>} : vector<8x32xf32>, vector<32x32xf32>, vector<8x32xf32> -> vector<8x32xf32>
    %121 = arith.addf %119, %120 : vector<8x32xf32>
    %122 = arith.addf %121, %6 : vector<8x32xf32>
    %123 = math.tanh %122 : vector<8x32xf32>
    %cst_53 = arith.constant dense<0.000000e+00> : vector<8x96xf32>
    %124 = tpu.matmul %123, %2, %cst_53 {dimension_numbers = #tpu.dot_dimension_numbers<[1], [0], [0], [1], [0, 0, 1, 1], [], []>} : vector<8x32xf32>, vector<32x96xf32>, vector<8x96xf32> -> vector<8x96xf32>
    %cst_54 = arith.constant dense<0.000000e+00> : vector<8x96xf32>
    %125 = tpu.matmul %115, %3, %cst_54 {dimension_numbers = #tpu.dot_dimension_numbers<[1], [0], [0], [1], [0, 0, 1, 1], [], []>} : vector<8x16xf32>, vector<16x96xf32>, vector<8x96xf32> -> vector<8x96xf32>
    %126 = arith.addf %124, %125 : vector<8x96xf32>
    %127 = arith.addf %126, %9 : vector<8x96xf32>
    %cst_55 = arith.constant 0.000000e+00 : f32
    %128 = vector.broadcast %cst_55 : f32 to vector<8x96xf32>
    %129 = arith.maximumf %127, %128 : vector<8x96xf32>
    %130 = vector.extract_strided_slice %129 {offsets = [0, 0], sizes = [8, 32], strides = [1, 1]} : vector<8x96xf32> to vector<8x32xf32>
    %c0_56 = arith.constant 0 : index
    %c0_57 = arith.constant 0 : index
    %131 = vector.load %arg10[%c0_56, %c0_57] : memref<32x128xf32, #tpu.memory_space<vmem>>, vector<32x128xf32>
    %cst_58 = arith.constant dense<0.000000e+00> : vector<8x128xf32>
    %132 = tpu.matmul %130, %131, %cst_58 {dimension_numbers = #tpu.dot_dimension_numbers<[1], [0], [0], [1], [0, 0, 1, 1], [], []>} : vector<8x32xf32>, vector<32x128xf32>, vector<8x128xf32> -> vector<8x128xf32>
    %133 = arith.addf %132, %12 : vector<8x128xf32>
    %cst_59 = arith.constant 0.000000e+00 : f32
    %134 = vector.broadcast %cst_59 : f32 to vector<8x128xf32>
    %135 = arith.maximumf %133, %134 : vector<8x128xf32>
    %136 = vector.extract_strided_slice %129 {offsets = [0, 32], sizes = [8, 32], strides = [1, 1]} : vector<8x96xf32> to vector<8x32xf32>
    %c0_60 = arith.constant 0 : index
    %c0_61 = arith.constant 0 : index
    %137 = vector.load %arg11[%c0_60, %c0_61] : memref<32x128xf32, #tpu.memory_space<vmem>>, vector<32x128xf32>
    %cst_62 = arith.constant dense<0.000000e+00> : vector<8x128xf32>
    %138 = tpu.matmul %136, %137, %cst_62 {dimension_numbers = #tpu.dot_dimension_numbers<[1], [0], [0], [1], [0, 0, 1, 1], [], []>} : vector<8x32xf32>, vector<32x128xf32>, vector<8x128xf32> -> vector<8x128xf32>
    %139 = arith.addf %138, %15 : vector<8x128xf32>
    %cst_63 = arith.constant 0.000000e+00 : f32
    %140 = vector.broadcast %cst_63 : f32 to vector<8x128xf32>
    %141 = arith.maximumf %139, %140 : vector<8x128xf32>
    %142 = vector.extract_strided_slice %129 {offsets = [0, 64], sizes = [8, 32], strides = [1, 1]} : vector<8x96xf32> to vector<8x32xf32>
    %c0_64 = arith.constant 0 : index
    %c0_65 = arith.constant 0 : index
    %143 = vector.load %arg12[%c0_64, %c0_65] : memref<32x128xf32, #tpu.memory_space<vmem>>, vector<32x128xf32>
    %cst_66 = arith.constant dense<0.000000e+00> : vector<8x128xf32>
    %144 = tpu.matmul %142, %143, %cst_66 {dimension_numbers = #tpu.dot_dimension_numbers<[1], [0], [0], [1], [0, 0, 1, 1], [], []>} : vector<8x32xf32>, vector<32x128xf32>, vector<8x128xf32> -> vector<8x128xf32>
    %145 = arith.addf %144, %18 : vector<8x128xf32>
    %cst_67 = arith.constant 0.000000e+00 : f32
    %146 = vector.broadcast %cst_67 : f32 to vector<8x128xf32>
    %147 = arith.maximumf %145, %146 : vector<8x128xf32>
    %148 = tpu.concatenate %135, %141, %147 in 1 : vector<8x128xf32>, vector<8x128xf32>, vector<8x128xf32> -> vector<8x384xf32>
    %c0_68 = arith.constant 0 : index
    %c0_69 = arith.constant 0 : index
    %149 = vector.load %arg14[%c0_68, %c0_69] : memref<384x13xf32, #tpu.memory_space<vmem>>, vector<384x13xf32>
    %cst_70 = arith.constant dense<0.000000e+00> : vector<8x13xf32>
    %150 = tpu.matmul %148, %149, %cst_70 {dimension_numbers = #tpu.dot_dimension_numbers<[1], [0], [0], [1], [0, 0, 1, 1], [], []>} : vector<8x384xf32>, vector<384x13xf32>, vector<8x13xf32> -> vector<8x13xf32>
    %151 = arith.addf %150, %21 : vector<8x13xf32>
    %152 = arith.negf %151 : vector<8x13xf32>
    %153 = math.exp %152 : vector<8x13xf32>
    %cst_71 = arith.constant 1.000000e+00 : f32
    %154 = vector.broadcast %cst_71 : f32 to vector<8x13xf32>
    %155 = arith.addf %154, %153 : vector<8x13xf32>
    %156 = arith.divf %154, %155 : vector<8x13xf32>
    %157 = vector.extract_strided_slice %156 {offsets = [0, 0], sizes = [8, 8], strides = [1, 1]} : vector<8x13xf32> to vector<8x8xf32>
    %158 = vector.extract_strided_slice %156 {offsets = [0, 12], sizes = [8, 1], strides = [1, 1]} : vector<8x13xf32> to vector<8x1xf32>
    %159 = vector.extract_strided_slice %151 {offsets = [0, 8], sizes = [8, 4], strides = [1, 1]} : vector<8x13xf32> to vector<8x4xf32>
    %cst_72 = arith.constant dense<0xFF800000> : vector<8xf32>
    %160 = vector.multi_reduction <maximumf>, %159, %cst_72 [1] : vector<8x4xf32> to vector<8xf32>
    %161 = vector.shape_cast %160 : vector<8xf32> to vector<8x1xf32>
    %162 = vector.broadcast %161 : vector<8x1xf32> to vector<8x4xf32>
    %163 = arith.subf %159, %162 : vector<8x4xf32>
    %164 = math.exp %163 : vector<8x4xf32>
    %cst_73 = arith.constant dense<0.000000e+00> : vector<8xf32>
    %165 = vector.multi_reduction <add>, %164, %cst_73 [1] : vector<8x4xf32> to vector<8xf32>
    %166 = vector.shape_cast %165 : vector<8xf32> to vector<8x1xf32>
    %167 = tpu.reciprocal %166 {approx = true} : vector<8x1xf32> -> vector<8x1xf32>
    %168 = vector.broadcast %167 : vector<8x1xf32> to vector<8x4xf32>
    %169 = arith.mulf %164, %168 : vector<8x4xf32>
    %170 = vector.extract_strided_slice %118 {offsets = [0, 0], sizes = [8, 8], strides = [1, 1]} : vector<8x16xf32> to vector<8x8xf32>
    %171 = vector.extract_strided_slice %118 {offsets = [0, 8], sizes = [8, 1], strides = [1, 1]} : vector<8x16xf32> to vector<8x1xf32>
    %172 = vector.extract_strided_slice %118 {offsets = [0, 9], sizes = [8, 1], strides = [1, 1]} : vector<8x16xf32> to vector<8x1xf32>
    %173 = arith.cmpf olt, %170, %157 : vector<8x8xf32>
    %174 = arith.extui %173 : vector<8x8xi1> to vector<8x8xi32>
    %175 = arith.sitofp %174 : vector<8x8xi32> to vector<8x8xf32>
    %176 = vector.extract_strided_slice %164 {offsets = [0, 0], sizes = [8, 1], strides = [1, 1]} : vector<8x4xf32> to vector<8x1xf32>
    %177 = vector.extract_strided_slice %164 {offsets = [0, 1], sizes = [8, 1], strides = [1, 1]} : vector<8x4xf32> to vector<8x1xf32>
    %178 = arith.addf %176, %177 : vector<8x1xf32>
    %179 = vector.extract_strided_slice %164 {offsets = [0, 2], sizes = [8, 1], strides = [1, 1]} : vector<8x4xf32> to vector<8x1xf32>
    %180 = arith.addf %178, %179 : vector<8x1xf32>
    %181 = arith.mulf %171, %166 : vector<8x1xf32>
    %182 = arith.cmpf oge, %181, %176 : vector<8x1xf32>
    %183 = arith.extui %182 : vector<8x1xi1> to vector<8x1xi32>
    %184 = arith.cmpf oge, %181, %178 : vector<8x1xf32>
    %185 = arith.extui %184 : vector<8x1xi1> to vector<8x1xi32>
    %186 = arith.addi %183, %185 : vector<8x1xi32>
    %187 = arith.cmpf oge, %181, %180 : vector<8x1xf32>
    %188 = arith.extui %187 : vector<8x1xi1> to vector<8x1xi32>
    %189 = arith.addi %186, %188 : vector<8x1xi32>
    %c3_i32_74 = arith.constant 3 : i32
    %190 = vector.broadcast %c3_i32_74 : i32 to vector<8x1xi32>
    %191 = arith.minsi %189, %190 : vector<8x1xi32>
    %192 = vector.broadcast %191 : vector<8x1xi32> to vector<8x4xi32>
    %193 = arith.cmpi eq, %22, %192 : vector<8x4xi32>
    %194 = arith.extui %193 : vector<8x4xi1> to vector<8x4xi32>
    %195 = arith.sitofp %194 : vector<8x4xi32> to vector<8x4xf32>
    %196 = arith.cmpf olt, %172, %158 : vector<8x1xf32>
    %197 = arith.extui %196 : vector<8x1xi1> to vector<8x1xi32>
    %198 = arith.sitofp %197 : vector<8x1xi32> to vector<8x1xf32>
    %199 = tpu.concatenate %157, %169, %158, %198, %175, %195, %123, %23 in 1 : vector<8x8xf32>, vector<8x4xf32>, vector<8x1xf32>, vector<8x1xf32>, vector<8x8xf32>, vector<8x4xf32>, vector<8x32xf32>, vector<8x6xf32> -> vector<8x64xf32>
    %200 = arith.index_cast %c1_i32 : i32 to index
    %c0_75 = arith.constant 0 : index
    %c0_76 = arith.constant 0 : index
    %201 = vector.load %arg16[%200, %c0_75, %c0_76] : memref<6x8x64xf32, #tpu.memory_space<vmem>>, vector<1x8x64xf32>
    %202 = vector.shape_cast %201 : vector<1x8x64xf32> to vector<8x64xf32>
    %203 = vector.shape_cast %199 : vector<8x64xf32> to vector<1x8x64xf32>
    tpu.vector_store %arg16[%200, %c0_75, %c0_76], %203 {strides = array<i32>} : memref<6x8x64xf32, #tpu.memory_space<vmem>>, vector<1x8x64xf32>,
    %204 = tpu.concatenate %195, %175, %24 in 1 : vector<8x4xf32>, vector<8x8xf32>, vector<8x4xf32> -> vector<8x16xf32>
    %c2_i32 = arith.constant 2 : i32
    %205 = arith.index_cast %c2_i32 : i32 to index
    %c0_77 = arith.constant 0 : index
    %c0_78 = arith.constant 0 : index
    %206 = vector.load %arg3[%205, %c0_77, %c0_78] : memref<6x8x16xf32, #tpu.memory_space<vmem>>, vector<1x8x16xf32>
    %207 = vector.shape_cast %206 : vector<1x8x16xf32> to vector<8x16xf32>
    %cst_79 = arith.constant dense<0.000000e+00> : vector<8x32xf32>
    %208 = tpu.matmul %204, %0, %cst_79 {dimension_numbers = #tpu.dot_dimension_numbers<[1], [0], [0], [1], [0, 0, 1, 1], [], []>} : vector<8x16xf32>, vector<16x32xf32>, vector<8x32xf32> -> vector<8x32xf32>
    %cst_80 = arith.constant dense<0.000000e+00> : vector<8x32xf32>
    %209 = tpu.matmul %123, %1, %cst_80 {dimension_numbers = #tpu.dot_dimension_numbers<[1], [0], [0], [1], [0, 0, 1, 1], [], []>} : vector<8x32xf32>, vector<32x32xf32>, vector<8x32xf32> -> vector<8x32xf32>
    %210 = arith.addf %208, %209 : vector<8x32xf32>
    %211 = arith.addf %210, %6 : vector<8x32xf32>
    %212 = math.tanh %211 : vector<8x32xf32>
    %cst_81 = arith.constant dense<0.000000e+00> : vector<8x96xf32>
    %213 = tpu.matmul %212, %2, %cst_81 {dimension_numbers = #tpu.dot_dimension_numbers<[1], [0], [0], [1], [0, 0, 1, 1], [], []>} : vector<8x32xf32>, vector<32x96xf32>, vector<8x96xf32> -> vector<8x96xf32>
    %cst_82 = arith.constant dense<0.000000e+00> : vector<8x96xf32>
    %214 = tpu.matmul %204, %3, %cst_82 {dimension_numbers = #tpu.dot_dimension_numbers<[1], [0], [0], [1], [0, 0, 1, 1], [], []>} : vector<8x16xf32>, vector<16x96xf32>, vector<8x96xf32> -> vector<8x96xf32>
    %215 = arith.addf %213, %214 : vector<8x96xf32>
    %216 = arith.addf %215, %9 : vector<8x96xf32>
    %cst_83 = arith.constant 0.000000e+00 : f32
    %217 = vector.broadcast %cst_83 : f32 to vector<8x96xf32>
    %218 = arith.maximumf %216, %217 : vector<8x96xf32>
    %219 = vector.extract_strided_slice %218 {offsets = [0, 0], sizes = [8, 32], strides = [1, 1]} : vector<8x96xf32> to vector<8x32xf32>
    %c0_84 = arith.constant 0 : index
    %c0_85 = arith.constant 0 : index
    %220 = vector.load %arg10[%c0_84, %c0_85] : memref<32x128xf32, #tpu.memory_space<vmem>>, vector<32x128xf32>
    %cst_86 = arith.constant dense<0.000000e+00> : vector<8x128xf32>
    %221 = tpu.matmul %219, %220, %cst_86 {dimension_numbers = #tpu.dot_dimension_numbers<[1], [0], [0], [1], [0, 0, 1, 1], [], []>} : vector<8x32xf32>, vector<32x128xf32>, vector<8x128xf32> -> vector<8x128xf32>
    %222 = arith.addf %221, %12 : vector<8x128xf32>
    %cst_87 = arith.constant 0.000000e+00 : f32
    %223 = vector.broadcast %cst_87 : f32 to vector<8x128xf32>
    %224 = arith.maximumf %222, %223 : vector<8x128xf32>
    %225 = vector.extract_strided_slice %218 {offsets = [0, 32], sizes = [8, 32], strides = [1, 1]} : vector<8x96xf32> to vector<8x32xf32>
    %c0_88 = arith.constant 0 : index
    %c0_89 = arith.constant 0 : index
    %226 = vector.load %arg11[%c0_88, %c0_89] : memref<32x128xf32, #tpu.memory_space<vmem>>, vector<32x128xf32>
    %cst_90 = arith.constant dense<0.000000e+00> : vector<8x128xf32>
    %227 = tpu.matmul %225, %226, %cst_90 {dimension_numbers = #tpu.dot_dimension_numbers<[1], [0], [0], [1], [0, 0, 1, 1], [], []>} : vector<8x32xf32>, vector<32x128xf32>, vector<8x128xf32> -> vector<8x128xf32>
    %228 = arith.addf %227, %15 : vector<8x128xf32>
    %cst_91 = arith.constant 0.000000e+00 : f32
    %229 = vector.broadcast %cst_91 : f32 to vector<8x128xf32>
    %230 = arith.maximumf %228, %229 : vector<8x128xf32>
    %231 = vector.extract_strided_slice %218 {offsets = [0, 64], sizes = [8, 32], strides = [1, 1]} : vector<8x96xf32> to vector<8x32xf32>
    %c0_92 = arith.constant 0 : index
    %c0_93 = arith.constant 0 : index
    %232 = vector.load %arg12[%c0_92, %c0_93] : memref<32x128xf32, #tpu.memory_space<vmem>>, vector<32x128xf32>
    %cst_94 = arith.constant dense<0.000000e+00> : vector<8x128xf32>
    %233 = tpu.matmul %231, %232, %cst_94 {dimension_numbers = #tpu.dot_dimension_numbers<[1], [0], [0], [1], [0, 0, 1, 1], [], []>} : vector<8x32xf32>, vector<32x128xf32>, vector<8x128xf32> -> vector<8x128xf32>
    %234 = arith.addf %233, %18 : vector<8x128xf32>
    %cst_95 = arith.constant 0.000000e+00 : f32
    %235 = vector.broadcast %cst_95 : f32 to vector<8x128xf32>
    %236 = arith.maximumf %234, %235 : vector<8x128xf32>
    %237 = tpu.concatenate %224, %230, %236 in 1 : vector<8x128xf32>, vector<8x128xf32>, vector<8x128xf32> -> vector<8x384xf32>
    %c0_96 = arith.constant 0 : index
    %c0_97 = arith.constant 0 : index
    %238 = vector.load %arg14[%c0_96, %c0_97] : memref<384x13xf32, #tpu.memory_space<vmem>>, vector<384x13xf32>
    %cst_98 = arith.constant dense<0.000000e+00> : vector<8x13xf32>
    %239 = tpu.matmul %237, %238, %cst_98 {dimension_numbers = #tpu.dot_dimension_numbers<[1], [0], [0], [1], [0, 0, 1, 1], [], []>} : vector<8x384xf32>, vector<384x13xf32>, vector<8x13xf32> -> vector<8x13xf32>
    %240 = arith.addf %239, %21 : vector<8x13xf32>
    %241 = arith.negf %240 : vector<8x13xf32>
    %242 = math.exp %241 : vector<8x13xf32>
    %cst_99 = arith.constant 1.000000e+00 : f32
    %243 = vector.broadcast %cst_99 : f32 to vector<8x13xf32>
    %244 = arith.addf %243, %242 : vector<8x13xf32>
    %245 = arith.divf %243, %244 : vector<8x13xf32>
    %246 = vector.extract_strided_slice %245 {offsets = [0, 0], sizes = [8, 8], strides = [1, 1]} : vector<8x13xf32> to vector<8x8xf32>
    %247 = vector.extract_strided_slice %245 {offsets = [0, 12], sizes = [8, 1], strides = [1, 1]} : vector<8x13xf32> to vector<8x1xf32>
    %248 = vector.extract_strided_slice %240 {offsets = [0, 8], sizes = [8, 4], strides = [1, 1]} : vector<8x13xf32> to vector<8x4xf32>
    %cst_100 = arith.constant dense<0xFF800000> : vector<8xf32>
    %249 = vector.multi_reduction <maximumf>, %248, %cst_100 [1] : vector<8x4xf32> to vector<8xf32>
    %250 = vector.shape_cast %249 : vector<8xf32> to vector<8x1xf32>
    %251 = vector.broadcast %250 : vector<8x1xf32> to vector<8x4xf32>
    %252 = arith.subf %248, %251 : vector<8x4xf32>
    %253 = math.exp %252 : vector<8x4xf32>
    %cst_101 = arith.constant dense<0.000000e+00> : vector<8xf32>
    %254 = vector.multi_reduction <add>, %253, %cst_101 [1] : vector<8x4xf32> to vector<8xf32>
    %255 = vector.shape_cast %254 : vector<8xf32> to vector<8x1xf32>
    %256 = tpu.reciprocal %255 {approx = true} : vector<8x1xf32> -> vector<8x1xf32>
    %257 = vector.broadcast %256 : vector<8x1xf32> to vector<8x4xf32>
    %258 = arith.mulf %253, %257 : vector<8x4xf32>
    %259 = vector.extract_strided_slice %207 {offsets = [0, 0], sizes = [8, 8], strides = [1, 1]} : vector<8x16xf32> to vector<8x8xf32>
    %260 = vector.extract_strided_slice %207 {offsets = [0, 8], sizes = [8, 1], strides = [1, 1]} : vector<8x16xf32> to vector<8x1xf32>
    %261 = vector.extract_strided_slice %207 {offsets = [0, 9], sizes = [8, 1], strides = [1, 1]} : vector<8x16xf32> to vector<8x1xf32>
    %262 = arith.cmpf olt, %259, %246 : vector<8x8xf32>
    %263 = arith.extui %262 : vector<8x8xi1> to vector<8x8xi32>
    %264 = arith.sitofp %263 : vector<8x8xi32> to vector<8x8xf32>
    %265 = vector.extract_strided_slice %253 {offsets = [0, 0], sizes = [8, 1], strides = [1, 1]} : vector<8x4xf32> to vector<8x1xf32>
    %266 = vector.extract_strided_slice %253 {offsets = [0, 1], sizes = [8, 1], strides = [1, 1]} : vector<8x4xf32> to vector<8x1xf32>
    %267 = arith.addf %265, %266 : vector<8x1xf32>
    %268 = vector.extract_strided_slice %253 {offsets = [0, 2], sizes = [8, 1], strides = [1, 1]} : vector<8x4xf32> to vector<8x1xf32>
    %269 = arith.addf %267, %268 : vector<8x1xf32>
    %270 = arith.mulf %260, %255 : vector<8x1xf32>
    %271 = arith.cmpf oge, %270, %265 : vector<8x1xf32>
    %272 = arith.extui %271 : vector<8x1xi1> to vector<8x1xi32>
    %273 = arith.cmpf oge, %270, %267 : vector<8x1xf32>
    %274 = arith.extui %273 : vector<8x1xi1> to vector<8x1xi32>
    %275 = arith.addi %272, %274 : vector<8x1xi32>
    %276 = arith.cmpf oge, %270, %269 : vector<8x1xf32>
    %277 = arith.extui %276 : vector<8x1xi1> to vector<8x1xi32>
    %278 = arith.addi %275, %277 : vector<8x1xi32>
    %c3_i32_102 = arith.constant 3 : i32
    %279 = vector.broadcast %c3_i32_102 : i32 to vector<8x1xi32>
    %280 = arith.minsi %278, %279 : vector<8x1xi32>
    %281 = vector.broadcast %280 : vector<8x1xi32> to vector<8x4xi32>
    %282 = arith.cmpi eq, %22, %281 : vector<8x4xi32>
    %283 = arith.extui %282 : vector<8x4xi1> to vector<8x4xi32>
    %284 = arith.sitofp %283 : vector<8x4xi32> to vector<8x4xf32>
    %285 = arith.cmpf olt, %261, %247 : vector<8x1xf32>
    %286 = arith.extui %285 : vector<8x1xi1> to vector<8x1xi32>
    %287 = arith.sitofp %286 : vector<8x1xi32> to vector<8x1xf32>
    %288 = tpu.concatenate %246, %258, %247, %287, %264, %284, %212, %23 in 1 : vector<8x8xf32>, vector<8x4xf32>, vector<8x1xf32>, vector<8x1xf32>, vector<8x8xf32>, vector<8x4xf32>, vector<8x32xf32>, vector<8x6xf32> -> vector<8x64xf32>
    %289 = arith.index_cast %c2_i32 : i32 to index
    %c0_103 = arith.constant 0 : index
    %c0_104 = arith.constant 0 : index
    %290 = vector.load %arg16[%289, %c0_103, %c0_104] : memref<6x8x64xf32, #tpu.memory_space<vmem>>, vector<1x8x64xf32>
    %291 = vector.shape_cast %290 : vector<1x8x64xf32> to vector<8x64xf32>
    %292 = vector.shape_cast %288 : vector<8x64xf32> to vector<1x8x64xf32>
    tpu.vector_store %arg16[%289, %c0_103, %c0_104], %292 {strides = array<i32>} : memref<6x8x64xf32, #tpu.memory_space<vmem>>, vector<1x8x64xf32>,
    %293 = tpu.concatenate %284, %264, %24 in 1 : vector<8x4xf32>, vector<8x8xf32>, vector<8x4xf32> -> vector<8x16xf32>
    %c3_i32_105 = arith.constant 3 : i32
    %294 = arith.index_cast %c3_i32_105 : i32 to index
    %c0_106 = arith.constant 0 : index
    %c0_107 = arith.constant 0 : index
    %295 = vector.load %arg3[%294, %c0_106, %c0_107] : memref<6x8x16xf32, #tpu.memory_space<vmem>>, vector<1x8x16xf32>
    %296 = vector.shape_cast %295 : vector<1x8x16xf32> to vector<8x16xf32>
    %cst_108 = arith.constant dense<0.000000e+00> : vector<8x32xf32>
    %297 = tpu.matmul %293, %0, %cst_108 {dimension_numbers = #tpu.dot_dimension_numbers<[1], [0], [0], [1], [0, 0, 1, 1], [], []>} : vector<8x16xf32>, vector<16x32xf32>, vector<8x32xf32> -> vector<8x32xf32>
    %cst_109 = arith.constant dense<0.000000e+00> : vector<8x32xf32>
    %298 = tpu.matmul %212, %1, %cst_109 {dimension_numbers = #tpu.dot_dimension_numbers<[1], [0], [0], [1], [0, 0, 1, 1], [], []>} : vector<8x32xf32>, vector<32x32xf32>, vector<8x32xf32> -> vector<8x32xf32>
    %299 = arith.addf %297, %298 : vector<8x32xf32>
    %300 = arith.addf %299, %6 : vector<8x32xf32>
    %301 = math.tanh %300 : vector<8x32xf32>
    %cst_110 = arith.constant dense<0.000000e+00> : vector<8x96xf32>
    %302 = tpu.matmul %301, %2, %cst_110 {dimension_numbers = #tpu.dot_dimension_numbers<[1], [0], [0], [1], [0, 0, 1, 1], [], []>} : vector<8x32xf32>, vector<32x96xf32>, vector<8x96xf32> -> vector<8x96xf32>
    %cst_111 = arith.constant dense<0.000000e+00> : vector<8x96xf32>
    %303 = tpu.matmul %293, %3, %cst_111 {dimension_numbers = #tpu.dot_dimension_numbers<[1], [0], [0], [1], [0, 0, 1, 1], [], []>} : vector<8x16xf32>, vector<16x96xf32>, vector<8x96xf32> -> vector<8x96xf32>
    %304 = arith.addf %302, %303 : vector<8x96xf32>
    %305 = arith.addf %304, %9 : vector<8x96xf32>
    %cst_112 = arith.constant 0.000000e+00 : f32
    %306 = vector.broadcast %cst_112 : f32 to vector<8x96xf32>
    %307 = arith.maximumf %305, %306 : vector<8x96xf32>
    %308 = vector.extract_strided_slice %307 {offsets = [0, 0], sizes = [8, 32], strides = [1, 1]} : vector<8x96xf32> to vector<8x32xf32>
    %c0_113 = arith.constant 0 : index
    %c0_114 = arith.constant 0 : index
    %309 = vector.load %arg10[%c0_113, %c0_114] : memref<32x128xf32, #tpu.memory_space<vmem>>, vector<32x128xf32>
    %cst_115 = arith.constant dense<0.000000e+00> : vector<8x128xf32>
    %310 = tpu.matmul %308, %309, %cst_115 {dimension_numbers = #tpu.dot_dimension_numbers<[1], [0], [0], [1], [0, 0, 1, 1], [], []>} : vector<8x32xf32>, vector<32x128xf32>, vector<8x128xf32> -> vector<8x128xf32>
    %311 = arith.addf %310, %12 : vector<8x128xf32>
    %cst_116 = arith.constant 0.000000e+00 : f32
    %312 = vector.broadcast %cst_116 : f32 to vector<8x128xf32>
    %313 = arith.maximumf %311, %312 : vector<8x128xf32>
    %314 = vector.extract_strided_slice %307 {offsets = [0, 32], sizes = [8, 32], strides = [1, 1]} : vector<8x96xf32> to vector<8x32xf32>
    %c0_117 = arith.constant 0 : index
    %c0_118 = arith.constant 0 : index
    %315 = vector.load %arg11[%c0_117, %c0_118] : memref<32x128xf32, #tpu.memory_space<vmem>>, vector<32x128xf32>
    %cst_119 = arith.constant dense<0.000000e+00> : vector<8x128xf32>
    %316 = tpu.matmul %314, %315, %cst_119 {dimension_numbers = #tpu.dot_dimension_numbers<[1], [0], [0], [1], [0, 0, 1, 1], [], []>} : vector<8x32xf32>, vector<32x128xf32>, vector<8x128xf32> -> vector<8x128xf32>
    %317 = arith.addf %316, %15 : vector<8x128xf32>
    %cst_120 = arith.constant 0.000000e+00 : f32
    %318 = vector.broadcast %cst_120 : f32 to vector<8x128xf32>
    %319 = arith.maximumf %317, %318 : vector<8x128xf32>
    %320 = vector.extract_strided_slice %307 {offsets = [0, 64], sizes = [8, 32], strides = [1, 1]} : vector<8x96xf32> to vector<8x32xf32>
    %c0_121 = arith.constant 0 : index
    %c0_122 = arith.constant 0 : index
    %321 = vector.load %arg12[%c0_121, %c0_122] : memref<32x128xf32, #tpu.memory_space<vmem>>, vector<32x128xf32>
    %cst_123 = arith.constant dense<0.000000e+00> : vector<8x128xf32>
    %322 = tpu.matmul %320, %321, %cst_123 {dimension_numbers = #tpu.dot_dimension_numbers<[1], [0], [0], [1], [0, 0, 1, 1], [], []>} : vector<8x32xf32>, vector<32x128xf32>, vector<8x128xf32> -> vector<8x128xf32>
    %323 = arith.addf %322, %18 : vector<8x128xf32>
    %cst_124 = arith.constant 0.000000e+00 : f32
    %324 = vector.broadcast %cst_124 : f32 to vector<8x128xf32>
    %325 = arith.maximumf %323, %324 : vector<8x128xf32>
    %326 = tpu.concatenate %313, %319, %325 in 1 : vector<8x128xf32>, vector<8x128xf32>, vector<8x128xf32> -> vector<8x384xf32>
    %c0_125 = arith.constant 0 : index
    %c0_126 = arith.constant 0 : index
    %327 = vector.load %arg14[%c0_125, %c0_126] : memref<384x13xf32, #tpu.memory_space<vmem>>, vector<384x13xf32>
    %cst_127 = arith.constant dense<0.000000e+00> : vector<8x13xf32>
    %328 = tpu.matmul %326, %327, %cst_127 {dimension_numbers = #tpu.dot_dimension_numbers<[1], [0], [0], [1], [0, 0, 1, 1], [], []>} : vector<8x384xf32>, vector<384x13xf32>, vector<8x13xf32> -> vector<8x13xf32>
    %329 = arith.addf %328, %21 : vector<8x13xf32>
    %330 = arith.negf %329 : vector<8x13xf32>
    %331 = math.exp %330 : vector<8x13xf32>
    %cst_128 = arith.constant 1.000000e+00 : f32
    %332 = vector.broadcast %cst_128 : f32 to vector<8x13xf32>
    %333 = arith.addf %332, %331 : vector<8x13xf32>
    %334 = arith.divf %332, %333 : vector<8x13xf32>
    %335 = vector.extract_strided_slice %334 {offsets = [0, 0], sizes = [8, 8], strides = [1, 1]} : vector<8x13xf32> to vector<8x8xf32>
    %336 = vector.extract_strided_slice %334 {offsets = [0, 12], sizes = [8, 1], strides = [1, 1]} : vector<8x13xf32> to vector<8x1xf32>
    %337 = vector.extract_strided_slice %329 {offsets = [0, 8], sizes = [8, 4], strides = [1, 1]} : vector<8x13xf32> to vector<8x4xf32>
    %cst_129 = arith.constant dense<0xFF800000> : vector<8xf32>
    %338 = vector.multi_reduction <maximumf>, %337, %cst_129 [1] : vector<8x4xf32> to vector<8xf32>
    %339 = vector.shape_cast %338 : vector<8xf32> to vector<8x1xf32>
    %340 = vector.broadcast %339 : vector<8x1xf32> to vector<8x4xf32>
    %341 = arith.subf %337, %340 : vector<8x4xf32>
    %342 = math.exp %341 : vector<8x4xf32>
    %cst_130 = arith.constant dense<0.000000e+00> : vector<8xf32>
    %343 = vector.multi_reduction <add>, %342, %cst_130 [1] : vector<8x4xf32> to vector<8xf32>
    %344 = vector.shape_cast %343 : vector<8xf32> to vector<8x1xf32>
    %345 = tpu.reciprocal %344 {approx = true} : vector<8x1xf32> -> vector<8x1xf32>
    %346 = vector.broadcast %345 : vector<8x1xf32> to vector<8x4xf32>
    %347 = arith.mulf %342, %346 : vector<8x4xf32>
    %348 = vector.extract_strided_slice %296 {offsets = [0, 0], sizes = [8, 8], strides = [1, 1]} : vector<8x16xf32> to vector<8x8xf32>
    %349 = vector.extract_strided_slice %296 {offsets = [0, 8], sizes = [8, 1], strides = [1, 1]} : vector<8x16xf32> to vector<8x1xf32>
    %350 = vector.extract_strided_slice %296 {offsets = [0, 9], sizes = [8, 1], strides = [1, 1]} : vector<8x16xf32> to vector<8x1xf32>
    %351 = arith.cmpf olt, %348, %335 : vector<8x8xf32>
    %352 = arith.extui %351 : vector<8x8xi1> to vector<8x8xi32>
    %353 = arith.sitofp %352 : vector<8x8xi32> to vector<8x8xf32>
    %354 = vector.extract_strided_slice %342 {offsets = [0, 0], sizes = [8, 1], strides = [1, 1]} : vector<8x4xf32> to vector<8x1xf32>
    %355 = vector.extract_strided_slice %342 {offsets = [0, 1], sizes = [8, 1], strides = [1, 1]} : vector<8x4xf32> to vector<8x1xf32>
    %356 = arith.addf %354, %355 : vector<8x1xf32>
    %357 = vector.extract_strided_slice %342 {offsets = [0, 2], sizes = [8, 1], strides = [1, 1]} : vector<8x4xf32> to vector<8x1xf32>
    %358 = arith.addf %356, %357 : vector<8x1xf32>
    %359 = arith.mulf %349, %344 : vector<8x1xf32>
    %360 = arith.cmpf oge, %359, %354 : vector<8x1xf32>
    %361 = arith.extui %360 : vector<8x1xi1> to vector<8x1xi32>
    %362 = arith.cmpf oge, %359, %356 : vector<8x1xf32>
    %363 = arith.extui %362 : vector<8x1xi1> to vector<8x1xi32>
    %364 = arith.addi %361, %363 : vector<8x1xi32>
    %365 = arith.cmpf oge, %359, %358 : vector<8x1xf32>
    %366 = arith.extui %365 : vector<8x1xi1> to vector<8x1xi32>
    %367 = arith.addi %364, %366 : vector<8x1xi32>
    %c3_i32_131 = arith.constant 3 : i32
    %368 = vector.broadcast %c3_i32_131 : i32 to vector<8x1xi32>
    %369 = arith.minsi %367, %368 : vector<8x1xi32>
    %370 = vector.broadcast %369 : vector<8x1xi32> to vector<8x4xi32>
    %371 = arith.cmpi eq, %22, %370 : vector<8x4xi32>
    %372 = arith.extui %371 : vector<8x4xi1> to vector<8x4xi32>
    %373 = arith.sitofp %372 : vector<8x4xi32> to vector<8x4xf32>
    %374 = arith.cmpf olt, %350, %336 : vector<8x1xf32>
    %375 = arith.extui %374 : vector<8x1xi1> to vector<8x1xi32>
    %376 = arith.sitofp %375 : vector<8x1xi32> to vector<8x1xf32>
    %377 = tpu.concatenate %335, %347, %336, %376, %353, %373, %301, %23 in 1 : vector<8x8xf32>, vector<8x4xf32>, vector<8x1xf32>, vector<8x1xf32>, vector<8x8xf32>, vector<8x4xf32>, vector<8x32xf32>, vector<8x6xf32> -> vector<8x64xf32>
    %378 = arith.index_cast %c3_i32_105 : i32 to index
    %c0_132 = arith.constant 0 : index
    %c0_133 = arith.constant 0 : index
    %379 = vector.load %arg16[%378, %c0_132, %c0_133] : memref<6x8x64xf32, #tpu.memory_space<vmem>>, vector<1x8x64xf32>
    %380 = vector.shape_cast %379 : vector<1x8x64xf32> to vector<8x64xf32>
    %381 = vector.shape_cast %377 : vector<8x64xf32> to vector<1x8x64xf32>
    tpu.vector_store %arg16[%378, %c0_132, %c0_133], %381 {strides = array<i32>} : memref<6x8x64xf32, #tpu.memory_space<vmem>>, vector<1x8x64xf32>,
    %382 = tpu.concatenate %373, %353, %24 in 1 : vector<8x4xf32>, vector<8x8xf32>, vector<8x4xf32> -> vector<8x16xf32>
    %c4_i32 = arith.constant 4 : i32
    %383 = arith.index_cast %c4_i32 : i32 to index
    %c0_134 = arith.constant 0 : index
    %c0_135 = arith.constant 0 : index
    %384 = vector.load %arg3[%383, %c0_134, %c0_135] : memref<6x8x16xf32, #tpu.memory_space<vmem>>, vector<1x8x16xf32>
    %385 = vector.shape_cast %384 : vector<1x8x16xf32> to vector<8x16xf32>
    %cst_136 = arith.constant dense<0.000000e+00> : vector<8x32xf32>
    %386 = tpu.matmul %382, %0, %cst_136 {dimension_numbers = #tpu.dot_dimension_numbers<[1], [0], [0], [1], [0, 0, 1, 1], [], []>} : vector<8x16xf32>, vector<16x32xf32>, vector<8x32xf32> -> vector<8x32xf32>
    %cst_137 = arith.constant dense<0.000000e+00> : vector<8x32xf32>
    %387 = tpu.matmul %301, %1, %cst_137 {dimension_numbers = #tpu.dot_dimension_numbers<[1], [0], [0], [1], [0, 0, 1, 1], [], []>} : vector<8x32xf32>, vector<32x32xf32>, vector<8x32xf32> -> vector<8x32xf32>
    %388 = arith.addf %386, %387 : vector<8x32xf32>
    %389 = arith.addf %388, %6 : vector<8x32xf32>
    %390 = math.tanh %389 : vector<8x32xf32>
    %cst_138 = arith.constant dense<0.000000e+00> : vector<8x96xf32>
    %391 = tpu.matmul %390, %2, %cst_138 {dimension_numbers = #tpu.dot_dimension_numbers<[1], [0], [0], [1], [0, 0, 1, 1], [], []>} : vector<8x32xf32>, vector<32x96xf32>, vector<8x96xf32> -> vector<8x96xf32>
    %cst_139 = arith.constant dense<0.000000e+00> : vector<8x96xf32>
    %392 = tpu.matmul %382, %3, %cst_139 {dimension_numbers = #tpu.dot_dimension_numbers<[1], [0], [0], [1], [0, 0, 1, 1], [], []>} : vector<8x16xf32>, vector<16x96xf32>, vector<8x96xf32> -> vector<8x96xf32>
    %393 = arith.addf %391, %392 : vector<8x96xf32>
    %394 = arith.addf %393, %9 : vector<8x96xf32>
    %cst_140 = arith.constant 0.000000e+00 : f32
    %395 = vector.broadcast %cst_140 : f32 to vector<8x96xf32>
    %396 = arith.maximumf %394, %395 : vector<8x96xf32>
    %397 = vector.extract_strided_slice %396 {offsets = [0, 0], sizes = [8, 32], strides = [1, 1]} : vector<8x96xf32> to vector<8x32xf32>
    %c0_141 = arith.constant 0 : index
    %c0_142 = arith.constant 0 : index
    %398 = vector.load %arg10[%c0_141, %c0_142] : memref<32x128xf32, #tpu.memory_space<vmem>>, vector<32x128xf32>
    %cst_143 = arith.constant dense<0.000000e+00> : vector<8x128xf32>
    %399 = tpu.matmul %397, %398, %cst_143 {dimension_numbers = #tpu.dot_dimension_numbers<[1], [0], [0], [1], [0, 0, 1, 1], [], []>} : vector<8x32xf32>, vector<32x128xf32>, vector<8x128xf32> -> vector<8x128xf32>
    %400 = arith.addf %399, %12 : vector<8x128xf32>
    %cst_144 = arith.constant 0.000000e+00 : f32
    %401 = vector.broadcast %cst_144 : f32 to vector<8x128xf32>
    %402 = arith.maximumf %400, %401 : vector<8x128xf32>
    %403 = vector.extract_strided_slice %396 {offsets = [0, 32], sizes = [8, 32], strides = [1, 1]} : vector<8x96xf32> to vector<8x32xf32>
    %c0_145 = arith.constant 0 : index
    %c0_146 = arith.constant 0 : index
    %404 = vector.load %arg11[%c0_145, %c0_146] : memref<32x128xf32, #tpu.memory_space<vmem>>, vector<32x128xf32>
    %cst_147 = arith.constant dense<0.000000e+00> : vector<8x128xf32>
    %405 = tpu.matmul %403, %404, %cst_147 {dimension_numbers = #tpu.dot_dimension_numbers<[1], [0], [0], [1], [0, 0, 1, 1], [], []>} : vector<8x32xf32>, vector<32x128xf32>, vector<8x128xf32> -> vector<8x128xf32>
    %406 = arith.addf %405, %15 : vector<8x128xf32>
    %cst_148 = arith.constant 0.000000e+00 : f32
    %407 = vector.broadcast %cst_148 : f32 to vector<8x128xf32>
    %408 = arith.maximumf %406, %407 : vector<8x128xf32>
    %409 = vector.extract_strided_slice %396 {offsets = [0, 64], sizes = [8, 32], strides = [1, 1]} : vector<8x96xf32> to vector<8x32xf32>
    %c0_149 = arith.constant 0 : index
    %c0_150 = arith.constant 0 : index
    %410 = vector.load %arg12[%c0_149, %c0_150] : memref<32x128xf32, #tpu.memory_space<vmem>>, vector<32x128xf32>
    %cst_151 = arith.constant dense<0.000000e+00> : vector<8x128xf32>
    %411 = tpu.matmul %409, %410, %cst_151 {dimension_numbers = #tpu.dot_dimension_numbers<[1], [0], [0], [1], [0, 0, 1, 1], [], []>} : vector<8x32xf32>, vector<32x128xf32>, vector<8x128xf32> -> vector<8x128xf32>
    %412 = arith.addf %411, %18 : vector<8x128xf32>
    %cst_152 = arith.constant 0.000000e+00 : f32
    %413 = vector.broadcast %cst_152 : f32 to vector<8x128xf32>
    %414 = arith.maximumf %412, %413 : vector<8x128xf32>
    %415 = tpu.concatenate %402, %408, %414 in 1 : vector<8x128xf32>, vector<8x128xf32>, vector<8x128xf32> -> vector<8x384xf32>
    %c0_153 = arith.constant 0 : index
    %c0_154 = arith.constant 0 : index
    %416 = vector.load %arg14[%c0_153, %c0_154] : memref<384x13xf32, #tpu.memory_space<vmem>>, vector<384x13xf32>
    %cst_155 = arith.constant dense<0.000000e+00> : vector<8x13xf32>
    %417 = tpu.matmul %415, %416, %cst_155 {dimension_numbers = #tpu.dot_dimension_numbers<[1], [0], [0], [1], [0, 0, 1, 1], [], []>} : vector<8x384xf32>, vector<384x13xf32>, vector<8x13xf32> -> vector<8x13xf32>
    %418 = arith.addf %417, %21 : vector<8x13xf32>
    %419 = arith.negf %418 : vector<8x13xf32>
    %420 = math.exp %419 : vector<8x13xf32>
    %cst_156 = arith.constant 1.000000e+00 : f32
    %421 = vector.broadcast %cst_156 : f32 to vector<8x13xf32>
    %422 = arith.addf %421, %420 : vector<8x13xf32>
    %423 = arith.divf %421, %422 : vector<8x13xf32>
    %424 = vector.extract_strided_slice %423 {offsets = [0, 0], sizes = [8, 8], strides = [1, 1]} : vector<8x13xf32> to vector<8x8xf32>
    %425 = vector.extract_strided_slice %423 {offsets = [0, 12], sizes = [8, 1], strides = [1, 1]} : vector<8x13xf32> to vector<8x1xf32>
    %426 = vector.extract_strided_slice %418 {offsets = [0, 8], sizes = [8, 4], strides = [1, 1]} : vector<8x13xf32> to vector<8x4xf32>
    %cst_157 = arith.constant dense<0xFF800000> : vector<8xf32>
    %427 = vector.multi_reduction <maximumf>, %426, %cst_157 [1] : vector<8x4xf32> to vector<8xf32>
    %428 = vector.shape_cast %427 : vector<8xf32> to vector<8x1xf32>
    %429 = vector.broadcast %428 : vector<8x1xf32> to vector<8x4xf32>
    %430 = arith.subf %426, %429 : vector<8x4xf32>
    %431 = math.exp %430 : vector<8x4xf32>
    %cst_158 = arith.constant dense<0.000000e+00> : vector<8xf32>
    %432 = vector.multi_reduction <add>, %431, %cst_158 [1] : vector<8x4xf32> to vector<8xf32>
    %433 = vector.shape_cast %432 : vector<8xf32> to vector<8x1xf32>
    %434 = tpu.reciprocal %433 {approx = true} : vector<8x1xf32> -> vector<8x1xf32>
    %435 = vector.broadcast %434 : vector<8x1xf32> to vector<8x4xf32>
    %436 = arith.mulf %431, %435 : vector<8x4xf32>
    %437 = vector.extract_strided_slice %385 {offsets = [0, 0], sizes = [8, 8], strides = [1, 1]} : vector<8x16xf32> to vector<8x8xf32>
    %438 = vector.extract_strided_slice %385 {offsets = [0, 8], sizes = [8, 1], strides = [1, 1]} : vector<8x16xf32> to vector<8x1xf32>
    %439 = vector.extract_strided_slice %385 {offsets = [0, 9], sizes = [8, 1], strides = [1, 1]} : vector<8x16xf32> to vector<8x1xf32>
    %440 = arith.cmpf olt, %437, %424 : vector<8x8xf32>
    %441 = arith.extui %440 : vector<8x8xi1> to vector<8x8xi32>
    %442 = arith.sitofp %441 : vector<8x8xi32> to vector<8x8xf32>
    %443 = vector.extract_strided_slice %431 {offsets = [0, 0], sizes = [8, 1], strides = [1, 1]} : vector<8x4xf32> to vector<8x1xf32>
    %444 = vector.extract_strided_slice %431 {offsets = [0, 1], sizes = [8, 1], strides = [1, 1]} : vector<8x4xf32> to vector<8x1xf32>
    %445 = arith.addf %443, %444 : vector<8x1xf32>
    %446 = vector.extract_strided_slice %431 {offsets = [0, 2], sizes = [8, 1], strides = [1, 1]} : vector<8x4xf32> to vector<8x1xf32>
    %447 = arith.addf %445, %446 : vector<8x1xf32>
    %448 = arith.mulf %438, %433 : vector<8x1xf32>
    %449 = arith.cmpf oge, %448, %443 : vector<8x1xf32>
    %450 = arith.extui %449 : vector<8x1xi1> to vector<8x1xi32>
    %451 = arith.cmpf oge, %448, %445 : vector<8x1xf32>
    %452 = arith.extui %451 : vector<8x1xi1> to vector<8x1xi32>
    %453 = arith.addi %450, %452 : vector<8x1xi32>
    %454 = arith.cmpf oge, %448, %447 : vector<8x1xf32>
    %455 = arith.extui %454 : vector<8x1xi1> to vector<8x1xi32>
    %456 = arith.addi %453, %455 : vector<8x1xi32>
    %c3_i32_159 = arith.constant 3 : i32
    %457 = vector.broadcast %c3_i32_159 : i32 to vector<8x1xi32>
    %458 = arith.minsi %456, %457 : vector<8x1xi32>
    %459 = vector.broadcast %458 : vector<8x1xi32> to vector<8x4xi32>
    %460 = arith.cmpi eq, %22, %459 : vector<8x4xi32>
    %461 = arith.extui %460 : vector<8x4xi1> to vector<8x4xi32>
    %462 = arith.sitofp %461 : vector<8x4xi32> to vector<8x4xf32>
    %463 = arith.cmpf olt, %439, %425 : vector<8x1xf32>
    %464 = arith.extui %463 : vector<8x1xi1> to vector<8x1xi32>
    %465 = arith.sitofp %464 : vector<8x1xi32> to vector<8x1xf32>
    %466 = tpu.concatenate %424, %436, %425, %465, %442, %462, %390, %23 in 1 : vector<8x8xf32>, vector<8x4xf32>, vector<8x1xf32>, vector<8x1xf32>, vector<8x8xf32>, vector<8x4xf32>, vector<8x32xf32>, vector<8x6xf32> -> vector<8x64xf32>
    %467 = arith.index_cast %c4_i32 : i32 to index
    %c0_160 = arith.constant 0 : index
    %c0_161 = arith.constant 0 : index
    %468 = vector.load %arg16[%467, %c0_160, %c0_161] : memref<6x8x64xf32, #tpu.memory_space<vmem>>, vector<1x8x64xf32>
    %469 = vector.shape_cast %468 : vector<1x8x64xf32> to vector<8x64xf32>
    %470 = vector.shape_cast %466 : vector<8x64xf32> to vector<1x8x64xf32>
    tpu.vector_store %arg16[%467, %c0_160, %c0_161], %470 {strides = array<i32>} : memref<6x8x64xf32, #tpu.memory_space<vmem>>, vector<1x8x64xf32>,
    %471 = tpu.concatenate %462, %442, %24 in 1 : vector<8x4xf32>, vector<8x8xf32>, vector<8x4xf32> -> vector<8x16xf32>
    %c5_i32 = arith.constant 5 : i32
    %472 = arith.index_cast %c5_i32 : i32 to index
    %c0_162 = arith.constant 0 : index
    %c0_163 = arith.constant 0 : index
    %473 = vector.load %arg3[%472, %c0_162, %c0_163] : memref<6x8x16xf32, #tpu.memory_space<vmem>>, vector<1x8x16xf32>
    %474 = vector.shape_cast %473 : vector<1x8x16xf32> to vector<8x16xf32>
    %cst_164 = arith.constant dense<0.000000e+00> : vector<8x32xf32>
    %475 = tpu.matmul %471, %0, %cst_164 {dimension_numbers = #tpu.dot_dimension_numbers<[1], [0], [0], [1], [0, 0, 1, 1], [], []>} : vector<8x16xf32>, vector<16x32xf32>, vector<8x32xf32> -> vector<8x32xf32>
    %cst_165 = arith.constant dense<0.000000e+00> : vector<8x32xf32>
    %476 = tpu.matmul %390, %1, %cst_165 {dimension_numbers = #tpu.dot_dimension_numbers<[1], [0], [0], [1], [0, 0, 1, 1], [], []>} : vector<8x32xf32>, vector<32x32xf32>, vector<8x32xf32> -> vector<8x32xf32>
    %477 = arith.addf %475, %476 : vector<8x32xf32>
    %478 = arith.addf %477, %6 : vector<8x32xf32>
    %479 = math.tanh %478 : vector<8x32xf32>
    %cst_166 = arith.constant dense<0.000000e+00> : vector<8x96xf32>
    %480 = tpu.matmul %479, %2, %cst_166 {dimension_numbers = #tpu.dot_dimension_numbers<[1], [0], [0], [1], [0, 0, 1, 1], [], []>} : vector<8x32xf32>, vector<32x96xf32>, vector<8x96xf32> -> vector<8x96xf32>
    %cst_167 = arith.constant dense<0.000000e+00> : vector<8x96xf32>
    %481 = tpu.matmul %471, %3, %cst_167 {dimension_numbers = #tpu.dot_dimension_numbers<[1], [0], [0], [1], [0, 0, 1, 1], [], []>} : vector<8x16xf32>, vector<16x96xf32>, vector<8x96xf32> -> vector<8x96xf32>
    %482 = arith.addf %480, %481 : vector<8x96xf32>
    %483 = arith.addf %482, %9 : vector<8x96xf32>
    %cst_168 = arith.constant 0.000000e+00 : f32
    %484 = vector.broadcast %cst_168 : f32 to vector<8x96xf32>
    %485 = arith.maximumf %483, %484 : vector<8x96xf32>
    %486 = vector.extract_strided_slice %485 {offsets = [0, 0], sizes = [8, 32], strides = [1, 1]} : vector<8x96xf32> to vector<8x32xf32>
    %c0_169 = arith.constant 0 : index
    %c0_170 = arith.constant 0 : index
    %487 = vector.load %arg10[%c0_169, %c0_170] : memref<32x128xf32, #tpu.memory_space<vmem>>, vector<32x128xf32>
    %cst_171 = arith.constant dense<0.000000e+00> : vector<8x128xf32>
    %488 = tpu.matmul %486, %487, %cst_171 {dimension_numbers = #tpu.dot_dimension_numbers<[1], [0], [0], [1], [0, 0, 1, 1], [], []>} : vector<8x32xf32>, vector<32x128xf32>, vector<8x128xf32> -> vector<8x128xf32>
    %489 = arith.addf %488, %12 : vector<8x128xf32>
    %cst_172 = arith.constant 0.000000e+00 : f32
    %490 = vector.broadcast %cst_172 : f32 to vector<8x128xf32>
    %491 = arith.maximumf %489, %490 : vector<8x128xf32>
    %492 = vector.extract_strided_slice %485 {offsets = [0, 32], sizes = [8, 32], strides = [1, 1]} : vector<8x96xf32> to vector<8x32xf32>
    %c0_173 = arith.constant 0 : index
    %c0_174 = arith.constant 0 : index
    %493 = vector.load %arg11[%c0_173, %c0_174] : memref<32x128xf32, #tpu.memory_space<vmem>>, vector<32x128xf32>
    %cst_175 = arith.constant dense<0.000000e+00> : vector<8x128xf32>
    %494 = tpu.matmul %492, %493, %cst_175 {dimension_numbers = #tpu.dot_dimension_numbers<[1], [0], [0], [1], [0, 0, 1, 1], [], []>} : vector<8x32xf32>, vector<32x128xf32>, vector<8x128xf32> -> vector<8x128xf32>
    %495 = arith.addf %494, %15 : vector<8x128xf32>
    %cst_176 = arith.constant 0.000000e+00 : f32
    %496 = vector.broadcast %cst_176 : f32 to vector<8x128xf32>
    %497 = arith.maximumf %495, %496 : vector<8x128xf32>
    %498 = vector.extract_strided_slice %485 {offsets = [0, 64], sizes = [8, 32], strides = [1, 1]} : vector<8x96xf32> to vector<8x32xf32>
    %c0_177 = arith.constant 0 : index
    %c0_178 = arith.constant 0 : index
    %499 = vector.load %arg12[%c0_177, %c0_178] : memref<32x128xf32, #tpu.memory_space<vmem>>, vector<32x128xf32>
    %cst_179 = arith.constant dense<0.000000e+00> : vector<8x128xf32>
    %500 = tpu.matmul %498, %499, %cst_179 {dimension_numbers = #tpu.dot_dimension_numbers<[1], [0], [0], [1], [0, 0, 1, 1], [], []>} : vector<8x32xf32>, vector<32x128xf32>, vector<8x128xf32> -> vector<8x128xf32>
    %501 = arith.addf %500, %18 : vector<8x128xf32>
    %cst_180 = arith.constant 0.000000e+00 : f32
    %502 = vector.broadcast %cst_180 : f32 to vector<8x128xf32>
    %503 = arith.maximumf %501, %502 : vector<8x128xf32>
    %504 = tpu.concatenate %491, %497, %503 in 1 : vector<8x128xf32>, vector<8x128xf32>, vector<8x128xf32> -> vector<8x384xf32>
    %c0_181 = arith.constant 0 : index
    %c0_182 = arith.constant 0 : index
    %505 = vector.load %arg14[%c0_181, %c0_182] : memref<384x13xf32, #tpu.memory_space<vmem>>, vector<384x13xf32>
    %cst_183 = arith.constant dense<0.000000e+00> : vector<8x13xf32>
    %506 = tpu.matmul %504, %505, %cst_183 {dimension_numbers = #tpu.dot_dimension_numbers<[1], [0], [0], [1], [0, 0, 1, 1], [], []>} : vector<8x384xf32>, vector<384x13xf32>, vector<8x13xf32> -> vector<8x13xf32>
    %507 = arith.addf %506, %21 : vector<8x13xf32>
    %508 = arith.negf %507 : vector<8x13xf32>
    %509 = math.exp %508 : vector<8x13xf32>
    %cst_184 = arith.constant 1.000000e+00 : f32
    %510 = vector.broadcast %cst_184 : f32 to vector<8x13xf32>
    %511 = arith.addf %510, %509 : vector<8x13xf32>
    %512 = arith.divf %510, %511 : vector<8x13xf32>
    %513 = vector.extract_strided_slice %512 {offsets = [0, 0], sizes = [8, 8], strides = [1, 1]} : vector<8x13xf32> to vector<8x8xf32>
    %514 = vector.extract_strided_slice %512 {offsets = [0, 12], sizes = [8, 1], strides = [1, 1]} : vector<8x13xf32> to vector<8x1xf32>
    %515 = vector.extract_strided_slice %507 {offsets = [0, 8], sizes = [8, 4], strides = [1, 1]} : vector<8x13xf32> to vector<8x4xf32>
    %cst_185 = arith.constant dense<0xFF800000> : vector<8xf32>
    %516 = vector.multi_reduction <maximumf>, %515, %cst_185 [1] : vector<8x4xf32> to vector<8xf32>
    %517 = vector.shape_cast %516 : vector<8xf32> to vector<8x1xf32>
    %518 = vector.broadcast %517 : vector<8x1xf32> to vector<8x4xf32>
    %519 = arith.subf %515, %518 : vector<8x4xf32>
    %520 = math.exp %519 : vector<8x4xf32>
    %cst_186 = arith.constant dense<0.000000e+00> : vector<8xf32>
    %521 = vector.multi_reduction <add>, %520, %cst_186 [1] : vector<8x4xf32> to vector<8xf32>
    %522 = vector.shape_cast %521 : vector<8xf32> to vector<8x1xf32>
    %523 = tpu.reciprocal %522 {approx = true} : vector<8x1xf32> -> vector<8x1xf32>
    %524 = vector.broadcast %523 : vector<8x1xf32> to vector<8x4xf32>
    %525 = arith.mulf %520, %524 : vector<8x4xf32>
    %526 = vector.extract_strided_slice %474 {offsets = [0, 0], sizes = [8, 8], strides = [1, 1]} : vector<8x16xf32> to vector<8x8xf32>
    %527 = vector.extract_strided_slice %474 {offsets = [0, 8], sizes = [8, 1], strides = [1, 1]} : vector<8x16xf32> to vector<8x1xf32>
    %528 = vector.extract_strided_slice %474 {offsets = [0, 9], sizes = [8, 1], strides = [1, 1]} : vector<8x16xf32> to vector<8x1xf32>
    %529 = arith.cmpf olt, %526, %513 : vector<8x8xf32>
    %530 = arith.extui %529 : vector<8x8xi1> to vector<8x8xi32>
    %531 = arith.sitofp %530 : vector<8x8xi32> to vector<8x8xf32>
    %532 = vector.extract_strided_slice %520 {offsets = [0, 0], sizes = [8, 1], strides = [1, 1]} : vector<8x4xf32> to vector<8x1xf32>
    %533 = vector.extract_strided_slice %520 {offsets = [0, 1], sizes = [8, 1], strides = [1, 1]} : vector<8x4xf32> to vector<8x1xf32>
    %534 = arith.addf %532, %533 : vector<8x1xf32>
    %535 = vector.extract_strided_slice %520 {offsets = [0, 2], sizes = [8, 1], strides = [1, 1]} : vector<8x4xf32> to vector<8x1xf32>
    %536 = arith.addf %534, %535 : vector<8x1xf32>
    %537 = arith.mulf %527, %522 : vector<8x1xf32>
    %538 = arith.cmpf oge, %537, %532 : vector<8x1xf32>
    %539 = arith.extui %538 : vector<8x1xi1> to vector<8x1xi32>
    %540 = arith.cmpf oge, %537, %534 : vector<8x1xf32>
    %541 = arith.extui %540 : vector<8x1xi1> to vector<8x1xi32>
    %542 = arith.addi %539, %541 : vector<8x1xi32>
    %543 = arith.cmpf oge, %537, %536 : vector<8x1xf32>
    %544 = arith.extui %543 : vector<8x1xi1> to vector<8x1xi32>
    %545 = arith.addi %542, %544 : vector<8x1xi32>
    %c3_i32_187 = arith.constant 3 : i32
    %546 = vector.broadcast %c3_i32_187 : i32 to vector<8x1xi32>
    %547 = arith.minsi %545, %546 : vector<8x1xi32>
    %548 = vector.broadcast %547 : vector<8x1xi32> to vector<8x4xi32>
    %549 = arith.cmpi eq, %22, %548 : vector<8x4xi32>
    %550 = arith.extui %549 : vector<8x4xi1> to vector<8x4xi32>
    %551 = arith.sitofp %550 : vector<8x4xi32> to vector<8x4xf32>
    %552 = arith.cmpf olt, %528, %514 : vector<8x1xf32>
    %553 = arith.extui %552 : vector<8x1xi1> to vector<8x1xi32>
    %554 = arith.sitofp %553 : vector<8x1xi32> to vector<8x1xf32>
    %555 = tpu.concatenate %513, %525, %514, %554, %531, %551, %479, %23 in 1 : vector<8x8xf32>, vector<8x4xf32>, vector<8x1xf32>, vector<8x1xf32>, vector<8x8xf32>, vector<8x4xf32>, vector<8x32xf32>, vector<8x6xf32> -> vector<8x64xf32>
    %556 = arith.index_cast %c5_i32 : i32 to index
    %c0_188 = arith.constant 0 : index
    %c0_189 = arith.constant 0 : index
    %557 = vector.load %arg16[%556, %c0_188, %c0_189] : memref<6x8x64xf32, #tpu.memory_space<vmem>>, vector<1x8x64xf32>
    %558 = vector.shape_cast %557 : vector<1x8x64xf32> to vector<8x64xf32>
    %559 = vector.shape_cast %555 : vector<8x64xf32> to vector<1x8x64xf32>
    tpu.vector_store %arg16[%556, %c0_188, %c0_189], %559 {strides = array<i32>} : memref<6x8x64xf32, #tpu.memory_space<vmem>>, vector<1x8x64xf32>,
    %560 = tpu.concatenate %551, %531, %24 in 1 : vector<8x4xf32>, vector<8x8xf32>, vector<8x4xf32> -> vector<8x16xf32>
    %c6_i32 = arith.constant 6 : i32
    return
  }
  func.func @transform_0(%arg0: i32) -> (i32, i32) {
    %c0_i32 = arith.constant 0 : i32
    %c0_i32_0 = arith.constant 0 : i32
    return %arg0, %c0_i32 : i32, i32
  }
  func.func @transform_1(%arg0: i32) -> (i32, i32) {
    %c0_i32 = arith.constant 0 : i32
    %c0_i32_0 = arith.constant 0 : i32
    return %arg0, %c0_i32 : i32, i32
  }
  func.func @transform_2(%arg0: i32) -> (i32, i32, i32) {
    %c0_i32 = arith.constant 0 : i32
    %c0_i32_0 = arith.constant 0 : i32
    %c0_i32_1 = arith.constant 0 : i32
    return %c0_i32, %arg0, %c0_i32_0 : i32, i32, i32
  }
  func.func @transform_3(%arg0: i32) -> (i32, i32) {
    %c0_i32 = arith.constant 0 : i32
    %c0_i32_0 = arith.constant 0 : i32
    %c0_i32_1 = arith.constant 0 : i32
    return %c0_i32, %c0_i32_0 : i32, i32
  }
  func.func @transform_4(%arg0: i32) -> (i32, i32) {
    %c0_i32 = arith.constant 0 : i32
    %c0_i32_0 = arith.constant 0 : i32
    %c0_i32_1 = arith.constant 0 : i32
    return %c0_i32, %c0_i32_0 : i32, i32
  }
  func.func @transform_5(%arg0: i32) -> (i32, i32) {
    %c0_i32 = arith.constant 0 : i32
    %c0_i32_0 = arith.constant 0 : i32
    %c0_i32_1 = arith.constant 0 : i32
    return %c0_i32, %c0_i32_0 : i32, i32
  }
  func.func @transform_6(%arg0: i32) -> (i32, i32) {
    %c0_i32 = arith.constant 0 : i32
    %c0_i32_0 = arith.constant 0 : i32
    %c0_i32_1 = arith.constant 0 : i32
    return %c0_i32, %c0_i32_0 : i32, i32
  }
  func.func @transform_7(%arg0: i32) -> (i32, i32) {
    %c0_i32 = arith.constant 0 : i32
    %c0_i32_0 = arith.constant 0 : i32
    %c0_i32_1 = arith.constant 0 : i32
    return %c0_i32, %c0_i32_0 : i32, i32
  }
  func.func @transform_8(%arg0: i32) -> (i32, i32) {
    %c0_i32 = arith.constant 0 : i32
    %c0_i32_0 = arith.constant 0 : i32
    %c0_i32_1 = arith.constant 0 : i32
    return %c0_i32, %c0_i32_0 : i32, i32
  }
  func.func @transform_9(%arg0: i32) -> (i32, i32) {
    %c0_i32 = arith.constant 0 : i32
    %c0_i32_0 = arith.constant 0 : i32
    %c0_i32_1 = arith.constant 0 : i32
    return %c0_i32, %c0_i32_0 : i32, i32
  }
  func.func @transform_10(%arg0: i32) -> (i32, i32) {
    %c0_i32 = arith.constant 0 : i32
    %c0_i32_0 = arith.constant 0 : i32
    %c0_i32_1 = arith.constant 0 : i32
    return %c0_i32, %c0_i32_0 : i32, i32
  }
  func.func @transform_11(%arg0: i32) -> (i32, i32) {
    %c0_i32 = arith.constant 0 : i32
    %c0_i32_0 = arith.constant 0 : i32
    %c0_i32_1 = arith.constant 0 : i32
    return %c0_i32, %c0_i32_0 : i32, i32
  }
  func.func @transform_12(%arg0: i32) -> (i32, i32) {
    %c0_i32 = arith.constant 0 : i32
    %c0_i32_0 = arith.constant 0 : i32
    %c0_i32_1 = arith.constant 0 : i32
    return %c0_i32, %c0_i32_0 : i32, i32
  }
  func.func @transform_13(%arg0: i32) -> (i32, i32) {
    %c0_i32 = arith.constant 0 : i32
    %c0_i32_0 = arith.constant 0 : i32
    %c0_i32_1 = arith.constant 0 : i32
    return %c0_i32, %c0_i32_0 : i32, i32
  }
  func.func @transform_14(%arg0: i32) -> (i32, i32) {
    %c0_i32 = arith.constant 0 : i32
    %c0_i32_0 = arith.constant 0 : i32
    %c0_i32_1 = arith.constant 0 : i32
    return %c0_i32, %c0_i32_0 : i32, i32
  }
  func.func @transform_15(%arg0: i32) -> (i32, i32, i32) {
    %c0_i32 = arith.constant 0 : i32
    %c0_i32_0 = arith.constant 0 : i32
    %c0_i32_1 = arith.constant 0 : i32
    return %c0_i32, %arg0, %c0_i32_0 : i32, i32, i32
  }
}

</mosaic_0001>

<llo_original>
// kernel: ar_graphrnn_generate.1
$region0: #{ar_graphrnn_generate.1}
  #allocation0 [shape = 'u32[]', space=smem, size = 0x4, offset = 0x4, fixed_abs, tag = 'smem constant byte address 0x4 - core index']
  #allocation1 [shape = 'u32[144,128]{1,0:T(1,128)}', space=vmem, size = 0x12000, scoped, tag = 'internal scratch']
  %s0 = inlined_call_operand.vmem [shape: f32[16,16], index: 0, kind: input, shape index: {}]
  %s1 = inlined_call_operand.vmem [shape: f32[16,32], index: 1, kind: input, shape index: {}]
  %s2 = inlined_call_operand.vmem [shape: f32[6,16,16], index: 2, kind: input, shape index: {}]
  %s3 = inlined_call_operand.vmem [shape: f32[16,32], index: 3, kind: input, shape index: {}]
  %s4 = inlined_call_operand.vmem [shape: f32[32,32], index: 4, kind: input, shape index: {}]
  %s5 = inlined_call_operand.vmem [shape: f32[1,32], index: 5, kind: input, shape index: {}]
  %s6 = inlined_call_operand.vmem [shape: f32[32,96], index: 6, kind: input, shape index: {}]
  %s7 = inlined_call_operand.vmem [shape: f32[16,96], index: 7, kind: input, shape index: {}]
  %s8 = inlined_call_operand.vmem [shape: f32[1,96], index: 8, kind: input, shape index: {}]
  %s9 = inlined_call_operand.vmem [shape: f32[32,128], index: 9, kind: input, shape index: {}]
  %s10 = inlined_call_operand.vmem [shape: f32[32,128], index: 10, kind: input, shape index: {}]
  %s11 = inlined_call_operand.vmem [shape: f32[32,128], index: 11, kind: input, shape index: {}]
  %s12 = inlined_call_operand.vmem [shape: f32[1,384], index: 12, kind: input, shape index: {}]
  %s13 = inlined_call_operand.vmem [shape: f32[384,13], index: 13, kind: input, shape index: {}]
  %s14 = inlined_call_operand.vmem [shape: f32[1,13], index: 14, kind: input, shape index: {}]
  %s15 = inlined_call_operand.vmem [shape: f32[6,16,64], index: 15, kind: output, shape index: {}]
  %s16 = sld [smem:[#allocation0]]
  $region165: #{ar_graphrnn_generate.1} parent=0
    _
  %s18 = ssub.s32 1, %s16
  %s19 = scalar_select 0, %s18, %s16
  $region1: #{ar_graphrnn_generate.1} parent=0
    #allocation2 [shape = 'u8[49152]{0}', space=vmem, size = 0xc000, scoped, tag = 'input window, operand 2']
    #allocation3 [shape = 'u8[49152]{0}', space=vmem, size = 0xc000, scoped, tag = 'output window, operand 0']
    loop: start=0, step=1, limit=4
    $region2: #{ar_graphrnn_generate.1} parent=1 // loop_pre_header
      _
    $region3: #{ar_graphrnn_generate.1} parent=1 // loop_header
      %s21 = sphi 0, %s25
      %p22 = scmp.ge.s32.totalorder %s21, 4
      %s31 = sphi 0, %s33
      %s34 = sphi 0, %s31
      %s35 = sphi 0, %s34
      %s51 = sphi 0, %s35
      %s57 = sphi 0, %s59
      %s60 = sphi 0, %s57
      %s61 = sphi 0, %s60
      %s77 = sphi 0, %s61
      %s83 = sphi 0, %s85
      %s86 = sphi 0, %s83
      %s87 = sphi 0, %s86
      %s103 = sphi 0, %s87
      %s107 = sphi 0, %s107
      %s109 = sphi 0, %s107
      %s110 = sphi 0, %s109
      %s124 = sphi 0, %s110
      %s128 = sphi 0, %s128
      %s130 = sphi 0, %s128
      %s131 = sphi 0, %s130
      %s145 = sphi 0, %s131
      %s149 = sphi 0, %s149
      %s151 = sphi 0, %s149
      %s152 = sphi 0, %s151
      %s166 = sphi 0, %s152
      %s170 = sphi 0, %s170
      %s172 = sphi 0, %s170
      %s173 = sphi 0, %s172
      %s187 = sphi 0, %s173
      %s191 = sphi 0, %s191
      %s193 = sphi 0, %s191
      %s194 = sphi 0, %s193
      %s208 = sphi 0, %s194
      %s212 = sphi 0, %s212
      %s214 = sphi 0, %s212
      %s215 = sphi 0, %s214
      %s229 = sphi 0, %s215
      %s233 = sphi 0, %s233
      %s235 = sphi 0, %s233
      %s236 = sphi 0, %s235
      %s250 = sphi 0, %s236
      %s254 = sphi 0, %s254
      %s256 = sphi 0, %s254
      %s257 = sphi 0, %s256
      %s271 = sphi 0, %s257
      %s275 = sphi 0, %s275
      %s277 = sphi 0, %s275
      %s278 = sphi 0, %s277
      %s292 = sphi 0, %s278
      %s296 = sphi 0, %s296
      %s298 = sphi 0, %s296
      %s299 = sphi 0, %s298
      %s313 = sphi 0, %s299
      %s317 = sphi 0, %s317
      %s319 = sphi 0, %s317
      %s320 = sphi 0, %s319
      %s334 = sphi 0, %s320
      %s338 = sphi 0, %s338
      %s340 = sphi 0, %s338
      %s341 = sphi 0, %s340
      %s355 = sphi 0, %s341
      %s361 = sphi 0, %s363
      %s364 = sphi 0, %s361
      %s365 = sphi 0, %s364
      %s381 = sphi 0, %s365
    $region4: #{ar_graphrnn_generate.1} parent=1 // loop_header_branch
      %24 = sbr.rel (%p22) target = $region8
    $region5: #{ar_graphrnn_generate.1} parent=1 // loop_body
      %s26 = ssub.s32 %s21, 1
      %s27 = ssub.s32 %s21, 2
      %s28 = sadd.s32 %s21, 1
      %s29 = ssub.s32 %s21, %s28
      %p30 = scmp.eq.s32.totalorder %s29, 0
      %s32 = sadd.s32 %s31, 1
      %s33 = scalar_select %p30, %s31, %s32
      %p36 = pneg %p30
      %p37 = scmp.eq.s32.totalorder %s21, 1
      %p38 = por %p36, %p37
      %p39 = scmp.ne.s32.totalorder %s31, %s34
      %p40 = scmp.eq.s32.totalorder %s21, 0
      %p41 = por %p39, %p40
      %p42 = scmp.ne.s32.totalorder %s31, %s34
      %p43 = scmp.eq.s32.totalorder %s26, 1
      %p44 = por %p42, %p43
      %p45 = scmp.ne.s32.totalorder %s34, %s35
      %p46 = scmp.eq.s32.totalorder %s26, 0
      %p47 = por %p45, %p46
      %p48 = scmp.ne.s32.totalorder %s34, %s35
      %p49 = scmp.eq.s32.totalorder %s27, 1
      %p50 = por %p48, %p49
      %p52 = scmp.ne.s32.totalorder %s35, %s51
      %p53 = scmp.eq.s32.totalorder %s27, 0
      %p54 = por %p52, %p53
      %s55 = ssub.s32 %s21, %s28
      %p56 = scmp.eq.s32.totalorder %s55, 0
      %s58 = sadd.s32 %s57, 1
      %s59 = scalar_select %p56, %s57, %s58
      %p62 = pneg %p56
      %p63 = scmp.eq.s32.totalorder %s21, 1
      %p64 = por %p62, %p63
      %p65 = scmp.ne.s32.totalorder %s57, %s60
      %p66 = scmp.eq.s32.totalorder %s21, 0
      %p67 = por %p65, %p66
      %p68 = scmp.ne.s32.totalorder %s57, %s60
      %p69 = scmp.eq.s32.totalorder %s26, 1
      %p70 = por %p68, %p69
      %p71 = scmp.ne.s32.totalorder %s60, %s61
      %p72 = scmp.eq.s32.totalorder %s26, 0
      %p73 = por %p71, %p72
      %p74 = scmp.ne.s32.totalorder %s60, %s61
      %p75 = scmp.eq.s32.totalorder %s27, 1
      %p76 = por %p74, %p75
      %p78 = scmp.ne.s32.totalorder %s61, %s77
      %p79 = scmp.eq.s32.totalorder %s27, 0
      %p80 = por %p78, %p79
      %s81 = ssub.s32 %s21, %s28
      %p82 = scmp.eq.s32.totalorder %s81, 0
      %s84 = sadd.s32 %s83, 1
      %s85 = scalar_select %p82, %s83, %s84
      %p88 = pneg %p82
      %p89 = scmp.eq.s32.totalorder %s21, 1
      %p90 = por %p88, %p89
      %p91 = scmp.ne.s32.totalorder %s83, %s86
      %p92 = scmp.eq.s32.totalorder %s21, 0
      %p93 = por %p91, %p92
      %p94 = scmp.ne.s32.totalorder %s83, %s86
      %p95 = scmp.eq.s32.totalorder %s26, 1
      %p96 = por %p94, %p95
      %p97 = scmp.ne.s32.totalorder %s86, %s87
      %p98 = scmp.eq.s32.totalorder %s26, 0
      %p99 = por %p97, %p98
      %p100 = scmp.ne.s32.totalorder %s86, %s87
      %p101 = scmp.eq.s32.totalorder %s27, 1
      %p102 = por %p100, %p101
      %p104 = scmp.ne.s32.totalorder %s87, %s103
      %p105 = scmp.eq.s32.totalorder %s27, 0
      %p106 = por %p104, %p105
      %s108 = sadd.s32 %s107, 1
      %p111 = scmp.eq.s32.totalorder %s21, 1
      %p112 = scmp.ne.s32.totalorder %s107, %s109
      %p113 = scmp.eq.s32.totalorder %s21, 0
      %p114 = por %p112, %p113
      %p115 = scmp.ne.s32.totalorder %s107, %s109
      %p116 = scmp.eq.s32.totalorder %s26, 1
      %p117 = por %p115, %p116
      %p118 = scmp.ne.s32.totalorder %s109, %s110
      %p119 = scmp.eq.s32.totalorder %s26, 0
      %p120 = por %p118, %p119
      %p121 = scmp.ne.s32.totalorder %s109, %s110
      %p122 = scmp.eq.s32.totalorder %s27, 1
      %p123 = por %p121, %p122
      %p125 = scmp.ne.s32.totalorder %s110, %s124
      %p126 = scmp.eq.s32.totalorder %s27, 0
      %p127 = por %p125, %p126
      %s129 = sadd.s32 %s128, 1
      %p132 = scmp.eq.s32.totalorder %s21, 1
      %p133 = scmp.ne.s32.totalorder %s128, %s130
      %p134 = scmp.eq.s32.totalorder %s21, 0
      %p135 = por %p133, %p134
      %p136 = scmp.ne.s32.totalorder %s128, %s130
      %p137 = scmp.eq.s32.totalorder %s26, 1
      %p138 = por %p136, %p137
      %p139 = scmp.ne.s32.totalorder %s130, %s131
      %p140 = scmp.eq.s32.totalorder %s26, 0
      %p141 = por %p139, %p140
      %p142 = scmp.ne.s32.totalorder %s130, %s131
      %p143 = scmp.eq.s32.totalorder %s27, 1
      %p144 = por %p142, %p143
      %p146 = scmp.ne.s32.totalorder %s131, %s145
      %p147 = scmp.eq.s32.totalorder %s27, 0
      %p148 = por %p146, %p147
      %s150 = sadd.s32 %s149, 1
      %p153 = scmp.eq.s32.totalorder %s21, 1
      %p154 = scmp.ne.s32.totalorder %s149, %s151
      %p155 = scmp.eq.s32.totalorder %s21, 0
      %p156 = por %p154, %p155
      %p157 = scmp.ne.s32.totalorder %s149, %s151
      %p158 = scmp.eq.s32.totalorder %s26, 1
      %p159 = por %p157, %p158
      %p160 = scmp.ne.s32.totalorder %s151, %s152
      %p161 = scmp.eq.s32.totalorder %s26, 0
      %p162 = por %p160, %p161
      %p163 = scmp.ne.s32.totalorder %s151, %s152
      %p164 = scmp.eq.s32.totalorder %s27, 1
      %p165 = por %p163, %p164
      %p167 = scmp.ne.s32.totalorder %s152, %s166
      %p168 = scmp.eq.s32.totalorder %s27, 0
      %p169 = por %p167, %p168
      %s171 = sadd.s32 %s170, 1
      %p174 = scmp.eq.s32.totalorder %s21, 1
      %p175 = scmp.ne.s32.totalorder %s170, %s172
      %p176 = scmp.eq.s32.totalorder %s21, 0
      %p177 = por %p175, %p176
      %p178 = scmp.ne.s32.totalorder %s170, %s172
      %p179 = scmp.eq.s32.totalorder %s26, 1
      %p180 = por %p178, %p179
      %p181 = scmp.ne.s32.totalorder %s172, %s173
      %p182 = scmp.eq.s32.totalorder %s26, 0
      %p183 = por %p181, %p182
      %p184 = scmp.ne.s32.totalorder %s172, %s173
      %p185 = scmp.eq.s32.totalorder %s27, 1
      %p186 = por %p184, %p185
      %p188 = scmp.ne.s32.totalorder %s173, %s187
      %p189 = scmp.eq.s32.totalorder %s27, 0
      %p190 = por %p188, %p189
      %s192 = sadd.s32 %s191, 1
      %p195 = scmp.eq.s32.totalorder %s21, 1
      %p196 = scmp.ne.s32.totalorder %s191, %s193
      %p197 = scmp.eq.s32.totalorder %s21, 0
      %p198 = por %p196, %p197
      %p199 = scmp.ne.s32.totalorder %s191, %s193
      %p200 = scmp.eq.s32.totalorder %s26, 1
      %p201 = por %p199, %p200
      %p202 = scmp.ne.s32.totalorder %s193, %s194
      %p203 = scmp.eq.s32.totalorder %s26, 0
      %p204 = por %p202, %p203
      %p205 = scmp.ne.s32.totalorder %s193, %s194
      %p206 = scmp.eq.s32.totalorder %s27, 1
      %p207 = por %p205, %p206
      %p209 = scmp.ne.s32.totalorder %s194, %s208
      %p210 = scmp.eq.s32.totalorder %s27, 0
      %p211 = por %p209, %p210
      %s213 = sadd.s32 %s212, 1
      %p216 = scmp.eq.s32.totalorder %s21, 1
      %p217 = scmp.ne.s32.totalorder %s212, %s214
      %p218 = scmp.eq.s32.totalorder %s21, 0
      %p219 = por %p217, %p218
      %p220 = scmp.ne.s32.totalorder %s212, %s214
      %p221 = scmp.eq.s32.totalorder %s26, 1
      %p222 = por %p220, %p221
      %p223 = scmp.ne.s32.totalorder %s214, %s215
      %p224 = scmp.eq.s32.totalorder %s26, 0
      %p225 = por %p223, %p224
      %p226 = scmp.ne.s32.totalorder %s214, %s215
      %p227 = scmp.eq.s32.totalorder %s27, 1
      %p228 = por %p226, %p227
      %p230 = scmp.ne.s32.totalorder %s215, %s229
      %p231 = scmp.eq.s32.totalorder %s27, 0
      %p232 = por %p230, %p231
      %s234 = sadd.s32 %s233, 1
      %p237 = scmp.eq.s32.totalorder %s21, 1
      %p238 = scmp.ne.s32.totalorder %s233, %s235
      %p239 = scmp.eq.s32.totalorder %s21, 0
      %p240 = por %p238, %p239
      %p241 = scmp.ne.s32.totalorder %s233, %s235
      %p242 = scmp.eq.s32.totalorder %s26, 1
      %p243 = por %p241, %p242
      %p244 = scmp.ne.s32.totalorder %s235, %s236
      %p245 = scmp.eq.s32.totalorder %s26, 0
      %p246 = por %p244, %p245
      %p247 = scmp.ne.s32.totalorder %s235, %s236
      %p248 = scmp.eq.s32.totalorder %s27, 1
      %p249 = por %p247, %p248
      %p251 = scmp.ne.s32.totalorder %s236, %s250
      %p252 = scmp.eq.s32.totalorder %s27, 0
      %p253 = por %p251, %p252
      %s255 = sadd.s32 %s254, 1
      %p258 = scmp.eq.s32.totalorder %s21, 1
      %p259 = scmp.ne.s32.totalorder %s254, %s256
      %p260 = scmp.eq.s32.totalorder %s21, 0
      %p261 = por %p259, %p260
      %p262 = scmp.ne.s32.totalorder %s254, %s256
      %p263 = scmp.eq.s32.totalorder %s26, 1
      %p264 = por %p262, %p263
      %p265 = scmp.ne.s32.totalorder %s256, %s257
      %p266 = scmp.eq.s32.totalorder %s26, 0
      %p267 = por %p265, %p266
      %p268 = scmp.ne.s32.totalorder %s256, %s257
      %p269 = scmp.eq.s32.totalorder %s27, 1
      %p270 = por %p268, %p269
      %p272 = scmp.ne.s32.totalorder %s257, %s271
      %p273 = scmp.eq.s32.totalorder %s27, 0
      %p274 = por %p272, %p273
      %s276 = sadd.s32 %s275, 1
      %p279 = scmp.eq.s32.totalorder %s21, 1
      %p280 = scmp.ne.s32.totalorder %s275, %s277
      %p281 = scmp.eq.s32.totalorder %s21, 0
      %p282 = por %p280, %p281
      %p283 = scmp.ne.s32.totalorder %s275, %s277
      %p284 = scmp.eq.s32.totalorder %s26, 1
      %p285 = por %p283, %p284
      %p286 = scmp.ne.s32.totalorder %s277, %s278
      %p287 = scmp.eq.s32.totalorder %s26, 0
      %p288 = por %p286, %p287
      %p289 = scmp.ne.s32.totalorder %s277, %s278
      %p290 = scmp.eq.s32.totalorder %s27, 1
      %p291 = por %p289, %p290
      %p293 = scmp.ne.s32.totalorder %s278, %s292
      %p294 = scmp.eq.s32.totalorder %s27, 0
      %p295 = por %p293, %p294
      %s297 = sadd.s32 %s296, 1
      %p300 = scmp.eq.s32.totalorder %s21, 1
      %p301 = scmp.ne.s32.totalorder %s296, %s298
      %p302 = scmp.eq.s32.totalorder %s21, 0
      %p303 = por %p301, %p302
      %p304 = scmp.ne.s32.totalorder %s296, %s298
      %p305 = scmp.eq.s32.totalorder %s26, 1
      %p306 = por %p304, %p305
      %p307 = scmp.ne.s32.totalorder %s298, %s299
      %p308 = scmp.eq.s32.totalorder %s26, 0
      %p309 = por %p307, %p308
      %p310 = scmp.ne.s32.totalorder %s298, %s299
      %p311 = scmp.eq.s32.totalorder %s27, 1
      %p312 = por %p310, %p311
      %p314 = scmp.ne.s32.totalorder %s299, %s313
      %p315 = scmp.eq.s32.totalorder %s27, 0
      %p316 = por %p314, %p315
      %s318 = sadd.s32 %s317, 1
      %p321 = scmp.eq.s32.totalorder %s21, 1
      %p322 = scmp.ne.s32.totalorder %s317, %s319
      %p323 = scmp.eq.s32.totalorder %s21, 0
      %p324 = por %p322, %p323
      %p325 = scmp.ne.s32.totalorder %s317, %s319
      %p326 = scmp.eq.s32.totalorder %s26, 1
      %p327 = por %p325, %p326
      %p328 = scmp.ne.s32.totalorder %s319, %s320
      %p329 = scmp.eq.s32.totalorder %s26, 0
      %p330 = por %p328, %p329
      %p331 = scmp.ne.s32.totalorder %s319, %s320
      %p332 = scmp.eq.s32.totalorder %s27, 1
      %p333 = por %p331, %p332
      %p335 = scmp.ne.s32.totalorder %s320, %s334
      %p336 = scmp.eq.s32.totalorder %s27, 0
      %p337 = por %p335, %p336
      %s339 = sadd.s32 %s338, 1
      %p342 = scmp.eq.s32.totalorder %s21, 1
      %p343 = scmp.ne.s32.totalorder %s338, %s340
      %p344 = scmp.eq.s32.totalorder %s21, 0
      %p345 = por %p343, %p344
      %p346 = scmp.ne.s32.totalorder %s338, %s340
      %p347 = scmp.eq.s32.totalorder %s26, 1
      %p348 = por %p346, %p347
      %p349 = scmp.ne.s32.totalorder %s340, %s341
      %p350 = scmp.eq.s32.totalorder %s26, 0
      %p351 = por %p349, %p350
      %p352 = scmp.ne.s32.totalorder %s340, %s341
      %p353 = scmp.eq.s32.totalorder %s27, 1
      %p354 = por %p352, %p353
      %p356 = scmp.ne.s32.totalorder %s341, %s355
      %p357 = scmp.eq.s32.totalorder %s27, 0
      %p358 = por %p356, %p357
      %s359 = ssub.s32 %s21, %s28
      %p360 = scmp.eq.s32.totalorder %s359, 0
      %s362 = sadd.s32 %s361, 1
      %s363 = scalar_select %p360, %s361, %s362
      %p366 = pneg %p360
      %p367 = scmp.eq.s32.totalorder %s21, 1
      %p368 = por %p366, %p367
      %p369 = scmp.ne.s32.totalorder %s361, %s364
      %p370 = scmp.eq.s32.totalorder %s21, 0
      %p371 = por %p369, %p370
      %p372 = scmp.ne.s32.totalorder %s361, %s364
      %p373 = scmp.eq.s32.totalorder %s26, 1
      %p374 = por %p372, %p373
      %p375 = scmp.ne.s32.totalorder %s364, %s365
      %p376 = scmp.eq.s32.totalorder %s26, 0
      %p377 = por %p375, %p376
      %p378 = scmp.ne.s32.totalorder %s364, %s365
      %p379 = scmp.eq.s32.totalorder %s27, 1
      %p380 = por %p378, %p379
      %p382 = scmp.ne.s32.totalorder %s365, %s381
      %p383 = scmp.eq.s32.totalorder %s27, 0
      %p384 = por %p382, %p383
      %p385 = scmp.le.s32.totalorder 1, %s21
      %p386 = scmp.lt.s32.totalorder %s21, 3
      %p387 = pnand %p385, %p386
      %p388 = pneg %p387
      // Predicated region
      $region9: #{ar_graphrnn_generate.1} parent=5 // pred_check
        _
      $region10: #{ar_graphrnn_generate.1} parent=5 // pred_check_branch
        %390 = sbr.rel (%p387) target = $region12
      $region11: #{ar_graphrnn_generate.1} parent=5 // pred_region
        %s391 = ssub.s32 %s21, 1
        // Predicated region
        $region13: #{ar_graphrnn_generate.1} parent=11 // pred_check
          %p392 = pneg %p120
        $region14: #{ar_graphrnn_generate.1} parent=11 // pred_check_branch
          %394 = sbr.rel (%p392) target = $region16
        $region15: #{ar_graphrnn_generate.1} parent=11 // pred_region
          _
        $region16: #{ar_graphrnn_generate.1} parent=11 // pred_fallthru
          _
        // Predicated region
        $region17: #{ar_graphrnn_generate.1} parent=11 // pred_check
          %p395 = pneg %p141
        $region18: #{ar_graphrnn_generate.1} parent=11 // pred_check_branch
          %397 = sbr.rel (%p395) target = $region20
        $region19: #{ar_graphrnn_generate.1} parent=11 // pred_region
          _
        $region20: #{ar_graphrnn_generate.1} parent=11 // pred_fallthru
          _
        // Predicated region
        $region21: #{ar_graphrnn_generate.1} parent=11 // pred_check
          %p398 = pneg %p162
        $region22: #{ar_graphrnn_generate.1} parent=11 // pred_check_branch
          %400 = sbr.rel (%p398) target = $region24
        $region23: #{ar_graphrnn_generate.1} parent=11 // pred_region
          _
        $region24: #{ar_graphrnn_generate.1} parent=11 // pred_fallthru
          _
        // Predicated region
        $region25: #{ar_graphrnn_generate.1} parent=11 // pred_check
          %p401 = pneg %p183
        $region26: #{ar_graphrnn_generate.1} parent=11 // pred_check_branch
          %403 = sbr.rel (%p401) target = $region28
        $region27: #{ar_graphrnn_generate.1} parent=11 // pred_region
          _
        $region28: #{ar_graphrnn_generate.1} parent=11 // pred_fallthru
          _
        // Predicated region
        $region29: #{ar_graphrnn_generate.1} parent=11 // pred_check
          %p404 = pneg %p204
        $region30: #{ar_graphrnn_generate.1} parent=11 // pred_check_branch
          %406 = sbr.rel (%p404) target = $region32
        $region31: #{ar_graphrnn_generate.1} parent=11 // pred_region
          _
        $region32: #{ar_graphrnn_generate.1} parent=11 // pred_fallthru
          _
        // Predicated region
        $region33: #{ar_graphrnn_generate.1} parent=11 // pred_check
          %p407 = pneg %p225
        $region34: #{ar_graphrnn_generate.1} parent=11 // pred_check_branch
          %409 = sbr.rel (%p407) target = $region36
        $region35: #{ar_graphrnn_generate.1} parent=11 // pred_region
          _
        $region36: #{ar_graphrnn_generate.1} parent=11 // pred_fallthru
          _
        // Predicated region
        $region37: #{ar_graphrnn_generate.1} parent=11 // pred_check
          %p410 = pneg %p246
        $region38: #{ar_graphrnn_generate.1} parent=11 // pred_check_branch
          %412 = sbr.rel (%p410) target = $region40
        $region39: #{ar_graphrnn_generate.1} parent=11 // pred_region
          _
        $region40: #{ar_graphrnn_generate.1} parent=11 // pred_fallthru
          _
        // Predicated region
        $region41: #{ar_graphrnn_generate.1} parent=11 // pred_check
          %p413 = pneg %p267
        $region42: #{ar_graphrnn_generate.1} parent=11 // pred_check_branch
          %415 = sbr.rel (%p413) target = $region44
        $region43: #{ar_graphrnn_generate.1} parent=11 // pred_region
          _
        $region44: #{ar_graphrnn_generate.1} parent=11 // pred_fallthru
          _
        // Predicated region
        $region45: #{ar_graphrnn_generate.1} parent=11 // pred_check
          %p416 = pneg %p288
        $region46: #{ar_graphrnn_generate.1} parent=11 // pred_check_branch
          %418 = sbr.rel (%p416) target = $region48
        $region47: #{ar_graphrnn_generate.1} parent=11 // pred_region
          _
        $region48: #{ar_graphrnn_generate.1} parent=11 // pred_fallthru
          _
        // Predicated region
        $region49: #{ar_graphrnn_generate.1} parent=11 // pred_check
          %p419 = pneg %p309
        $region50: #{ar_graphrnn_generate.1} parent=11 // pred_check_branch
          %421 = sbr.rel (%p419) target = $region52
        $region51: #{ar_graphrnn_generate.1} parent=11 // pred_region
          _
        $region52: #{ar_graphrnn_generate.1} parent=11 // pred_fallthru
          _
        // Predicated region
        $region53: #{ar_graphrnn_generate.1} parent=11 // pred_check
          %p422 = pneg %p330
        $region54: #{ar_graphrnn_generate.1} parent=11 // pred_check_branch
          %424 = sbr.rel (%p422) target = $region56
        $region55: #{ar_graphrnn_generate.1} parent=11 // pred_region
          _
        $region56: #{ar_graphrnn_generate.1} parent=11 // pred_fallthru
          _
        // Predicated region
        $region57: #{ar_graphrnn_generate.1} parent=11 // pred_check
          %p425 = pneg %p351
        $region58: #{ar_graphrnn_generate.1} parent=11 // pred_check_branch
          %427 = sbr.rel (%p425) target = $region60
        $region59: #{ar_graphrnn_generate.1} parent=11 // pred_region
          _
        $region60: #{ar_graphrnn_generate.1} parent=11 // pred_fallthru
          _
      $region12: #{ar_graphrnn_generate.1} parent=5 // pred_fallthru
        _
      %p428 = scmp.lt.s32.totalorder %s21, 2
      // Predicated region
      $region61: #{ar_graphrnn_generate.1} parent=5 // pred_check
        %p429 = pneg %p428
      $region62: #{ar_graphrnn_generate.1} parent=5 // pred_check_branch
        %431 = sbr.rel (%p429) target = $region64
      $region63: #{ar_graphrnn_generate.1} parent=5 // pred_region
        // Predicated region
        $region65: #{ar_graphrnn_generate.1} parent=63 // pred_check
          %p432 = pneg %p41
        $region66: #{ar_graphrnn_generate.1} parent=63 // pred_check_branch
          %434 = sbr.rel (%p432) target = $region68
        $region67: #{ar_graphrnn_generate.1} parent=63 // pred_region
          %p435 = scmp.lt.s32.totalorder %s21, 1
          %s436 = scalar_select %p435, %s21, 1
          %s437 = smul.addr %s436, 8
          %s438 = scalar_lea.vmem %s0, %s437
        $region68: #{ar_graphrnn_generate.1} parent=63 // pred_fallthru
          _
        // Predicated region
        $region69: #{ar_graphrnn_generate.1} parent=63 // pred_check
          %p439 = pneg %p67
        $region70: #{ar_graphrnn_generate.1} parent=63 // pred_check_branch
          %441 = sbr.rel (%p439) target = $region72
        $region71: #{ar_graphrnn_generate.1} parent=63 // pred_region
          %p442 = scmp.lt.s32.totalorder %s21, 1
          %s443 = scalar_select %p442, %s21, 1
          %s444 = smul.addr %s443, 8
          %s445 = scalar_lea.vmem %s1, %s444
        $region72: #{ar_graphrnn_generate.1} parent=63 // pred_fallthru
          _
        // Predicated region
        $region73: #{ar_graphrnn_generate.1} parent=63 // pred_check
          %p446 = pneg %p93
        $region74: #{ar_graphrnn_generate.1} parent=63 // pred_check_branch
          %448 = sbr.rel (%p446) target = $region76
        $region75: #{ar_graphrnn_generate.1} parent=63 // pred_region
          %s449 = sand.u32 %s83, 1
          %s450 = sand.u32 %s83, 1
          %s451 = smul.addr %s450, 48
          %s452 = scalar_lea.vmem [#allocation2], %s451
          %s453 = smul.addr %s21, 8
          %s454 = scalar_lea.vmem %s2, %s453
          // Predicated region
          $region77: #{ar_graphrnn_generate.1} parent=75 // pred_check
            _
          $region78: #{ar_graphrnn_generate.1} parent=75 // pred_check_branch
            %456 = sbr.rel (0) target = $region80
          $region79: #{ar_graphrnn_generate.1} parent=75 // pred_region
            // Predicated region
            $region81: #{ar_graphrnn_generate.1} parent=79 // pred_check
              _
            $region82: #{ar_graphrnn_generate.1} parent=79 // pred_check_branch
              %458 = sbr.rel (0) target = $region84
            $region83: #{ar_graphrnn_generate.1} parent=79 // pred_region
              // Predicated region
              $region96: #{ar_graphrnn_generate.1} parent=83 // pred_check
                _
              $region97: #{ar_graphrnn_generate.1} parent=83 // pred_check_branch
                %483 = sbr.rel (0) target = $region99
              $region98: #{ar_graphrnn_generate.1} parent=83 // pred_region
                loop: start=0, step=1, limit=1
                $region100: #{ar_graphrnn_generate.1} parent=98 // loop_pre_header
                  _
                $region101: #{ar_graphrnn_generate.1} parent=98 // loop_header
                  %s485 = sphi 0, %s489
                  %p486 = scmp.ge.s32.totalorder %s485, 1
                  %s490 = sphi %s454, %s454
                  %s491 = sphi %s452, %s452
                $region102: #{ar_graphrnn_generate.1} parent=98 // loop_header_branch
                  %488 = sbr.rel (%p486) target = $region106
                $region103: #{ar_graphrnn_generate.1} parent=98 // loop_body
                  %v492 = vld [vmem:[%s490] sm:$0xff]
                  %493 = vst [vmem:[%s491] sm:$0xff] %v492
                  %v494 = vld [vmem:[%s490 + $0x10] sm:$0xff]
                  %495 = vst [vmem:[%s491 + $0x8] sm:$0xff] %v494
                  %v496 = vld [vmem:[%s490 + $0x20] sm:$0xff]
                  %497 = vst [vmem:[%s491 + $0x10] sm:$0xff] %v496
                  %v498 = vld [vmem:[%s490 + $0x30] sm:$0xff]
                  %499 = vst [vmem:[%s491 + $0x18] sm:$0xff] %v498
                  %v500 = vld [vmem:[%s490 + $0x40] sm:$0xff]
                  %501 = vst [vmem:[%s491 + $0x20] sm:$0xff] %v500
                  %v502 = vld [vmem:[%s490 + $0x50] sm:$0xff]
                  %503 = vst [vmem:[%s491 + $0x28] sm:$0xff] %v502
                $region104: #{ar_graphrnn_generate.1} parent=98 // loop_footer
                  %s489 = sadd.s32 1, %s485
                $region105: #{ar_graphrnn_generate.1} parent=98 // loop_footer_branch
                  %484 = sbr.rel target = $region101
                $region106: #{ar_graphrnn_generate.1} parent=98 // loop_exit
                  _
              $region99: #{ar_graphrnn_generate.1} parent=83 // pred_fallthru
                _
              // Predicated region
              $region107: #{ar_graphrnn_generate.1} parent=83 // pred_check
                _
              $region108: #{ar_graphrnn_generate.1} parent=83 // pred_check_branch
                %505 = sbr.rel target = $region110
              $region109: #{ar_graphrnn_generate.1} parent=83 // pred_region
                _
              $region110: #{ar_graphrnn_generate.1} parent=83 // pred_fallthru
                _
            $region84: #{ar_graphrnn_generate.1} parent=79 // pred_fallthru
              _
            // Predicated region
            $region85: #{ar_graphrnn_generate.1} parent=79 // pred_check
              _
            $region86: #{ar_graphrnn_generate.1} parent=79 // pred_check_branch
              %460 = sbr.rel target = $region88
            $region87: #{ar_graphrnn_generate.1} parent=79 // pred_region
              loop: start=0, step=1, limit=1
              $region89: #{ar_graphrnn_generate.1} parent=87 // loop_pre_header
                _
              $region90: #{ar_graphrnn_generate.1} parent=87 // loop_header
                %s463 = sphi 0, %s467
                %p464 = scmp.ge.s32.totalorder %s463, 1
                %s468 = sphi %s454, %s454
                %s469 = sphi %s452, %s452
              $region91: #{ar_graphrnn_generate.1} parent=87 // loop_header_branch
                %466 = sbr.rel (%p464) target = $region95
              $region92: #{ar_graphrnn_generate.1} parent=87 // loop_body
                %v470 = vld [vmem:[%s468] sm:$0xff]
                %471 = vst [vmem:[%s469] sm:$0xff] %v470
                %v472 = vld [vmem:[%s468 + $0x10] sm:$0xff]
                %473 = vst [vmem:[%s469 + $0x8] sm:$0xff] %v472
                %v474 = vld [vmem:[%s468 + $0x20] sm:$0xff]
                %475 = vst [vmem:[%s469 + $0x10] sm:$0xff] %v474
                %v476 = vld [vmem:[%s468 + $0x30] sm:$0xff]
                %477 = vst [vmem:[%s469 + $0x18] sm:$0xff] %v476
                %v478 = vld [vmem:[%s468 + $0x40] sm:$0xff]
                %479 = vst [vmem:[%s469 + $0x20] sm:$0xff] %v478
                %v480 = vld [vmem:[%s468 + $0x50] sm:$0xff]
                %481 = vst [vmem:[%s469 + $0x28] sm:$0xff] %v480
              $region93: #{ar_graphrnn_generate.1} parent=87 // loop_footer
                %s467 = sadd.s32 1, %s463
              $region94: #{ar_graphrnn_generate.1} parent=87 // loop_footer_branch
                %462 = sbr.rel target = $region90
              $region95: #{ar_graphrnn_generate.1} parent=87 // loop_exit
                _
            $region88: #{ar_graphrnn_generate.1} parent=79 // pred_fallthru
              _
          $region80: #{ar_graphrnn_generate.1} parent=75 // pred_fallthru
            _
          %506 = vnop
        $region76: #{ar_graphrnn_generate.1} parent=63 // pred_fallthru
          _
      $region64: #{ar_graphrnn_generate.1} parent=5 // pred_fallthru
        _
      %p507 = scmp.le.s32.totalorder 1, %s21
      %p508 = scmp.lt.s32.totalorder %s21, 3
      %p509 = pnand %p507, %p508
      %p510 = pneg %p509
      // Predicated region
      $region111: #{ar_graphrnn_generate.1} parent=5 // pred_check
        _
      $region112: #{ar_graphrnn_generate.1} parent=5 // pred_check_branch
        %512 = sbr.rel (%p509) target = $region114
      $region113: #{ar_graphrnn_generate.1} parent=5 // pred_region
        %s513 = ssub.s32 %s21, 1
        %s514 = sand.u32 %s86, 1
        %s515 = sand.u32 %s86, 1
        %s516 = smul.addr %s515, 48
        %s517 = scalar_lea.vmem [#allocation2], %s516
        // Predicated region
        $region115: #{ar_graphrnn_generate.1} parent=113 // pred_check
          %p518 = pneg %p99
        $region116: #{ar_graphrnn_generate.1} parent=113 // pred_check_branch
          %520 = sbr.rel (%p518) target = $region118
        $region117: #{ar_graphrnn_generate.1} parent=113 // pred_region
          _
        $region118: #{ar_graphrnn_generate.1} parent=113 // pred_fallthru
          _
        %p521 = scmp.lt.s32.totalorder %s26, 1
        %s522 = scalar_select %p521, %s26, 1
        %s523 = smul.addr %s522, 8
        %s524 = scalar_lea.vmem %s0, %s523
        %p525 = pneg %p47
        %p526 = pneg %p44
        %p527 = scmp.lt.s32.totalorder %s26, 1
        %s528 = scalar_select %p527, %s26, 1
        %s529 = smul.addr %s528, 8
        %s530 = scalar_lea.vmem %s1, %s529
        %p531 = pneg %p73
        %p532 = pneg %p70
        %s533 = sand.u32 %s86, 1
        %s534 = sand.u32 %s86, 1
        %s535 = smul.addr %s534, 48
        %s536 = scalar_lea.vmem [#allocation2], %s535
        %p537 = pneg %p99
        %p538 = pneg %p96
        %p539 = pneg %p120
        %p540 = pneg %p117
        %p541 = pneg %p141
        %p542 = pneg %p138
        %p543 = pneg %p162
        %p544 = pneg %p159
        %p545 = pneg %p183
        %p546 = pneg %p180
        %p547 = pneg %p204
        %p548 = pneg %p201
        %p549 = pneg %p225
        %p550 = pneg %p222
        %p551 = pneg %p246
        %p552 = pneg %p243
        %p553 = pneg %p267
        %p554 = pneg %p264
        %p555 = pneg %p288
        %p556 = pneg %p285
        %p557 = pneg %p309
        %p558 = pneg %p306
        %p559 = pneg %p330
        %p560 = pneg %p327
        %p561 = pneg %p351
        %p562 = pneg %p348
        %p563 = pneg %p377
        %p564 = pneg %p374
        %s565 = sand.u32 %s364, 1
        %s566 = sand.u32 %s364, 1
        %s567 = smul.addr %s566, 48
        %s568 = scalar_lea.vmem [#allocation3], %s567
        %p569 = scmp.lt.s32.totalorder %s26, 1
        %s570 = scalar_select %p569, %s26, 1
        %s571 = smul.addr %s570, 8
        %s572 = scalar_lea.vmem %s0, %s571
        %p573 = scmp.lt.s32.totalorder %s26, 1
        %s574 = scalar_select %p573, %s26, 1
        %s575 = smul.addr %s574, 8
        %s576 = scalar_lea.vmem %s1, %s575
        %v577 = vld [vmem:[%s3] sm:$0xff]
        %v578 = vld [vmem:[%s3 + $0x8] sm:$0xff]
        %v579 = vld [vmem:[%s4] sm:$0xff]
        %v580 = vld [vmem:[%s4 + $0x8] sm:$0xff]
        %v581 = vld [vmem:[%s4 + $0x10] sm:$0xff]
        %v582 = vld [vmem:[%s4 + $0x18] sm:$0xff]
        %v583 = vld [vmem:[%s6] sm:$0xff]
        %v584 = vld [vmem:[%s6 + $0x8] sm:$0xff]
        %v585 = vld [vmem:[%s6 + $0x10] sm:$0xff]
        %v586 = vld [vmem:[%s6 + $0x18] sm:$0xff]
        %v587 = vld [vmem:[%s7] sm:$0xff]
        %v588 = vld [vmem:[%s7 + $0x8] sm:$0xff]
        %v589 = vld [vmem:[%s5] sm:$0x1]
        %v591 = vlaneseq
        %v592 = vshrl.u32 %v591, 7
        %v593 = vsub.s32 0, %v592
        %v594 = vrot.slane %v589, %v593
        %v596 = vld [vmem:[%s8] sm:$0x1]
        %v598 = vlaneseq
        %v599 = vshrl.u32 %v598, 7
        %v600 = vsub.s32 0, %v599
        %v601 = vrot.slane %v596, %v600
        %v603 = vld [vmem:[%s12] sm:$0x1]
        %v605 = vlaneseq
        %v606 = vshrl.u32 %v605, 7
        %v607 = vsub.s32 0, %v606
        %v608 = vrot.slane %v603, %v607
        %v610 = vld [vmem:[%s12 + $0x1] sm:$0x1]
        %v612 = vlaneseq
        %v613 = vshrl.u32 %v612, 7
        %v614 = vsub.s32 0, %v613
        %v615 = vrot.slane %v610, %v614
        %v617 = vld [vmem:[%s12 + $0x2] sm:$0x1]
        %v619 = vlaneseq
        %v620 = vshrl.u32 %v619, 7
        %v621 = vsub.s32 0, %v620
        %v622 = vrot.slane %v617, %v621
        %v624 = vld [vmem:[%s14] sm:$0x1]
        %v626 = vlaneseq
        %v627 = vshrl.u32 %v626, 7
        %v628 = vsub.s32 0, %v627
        %v629 = vrot.slane %v624, %v628
        %v631 = vlaneseq
        %v632 = vand.u32 %v631, 127
        %v633 = vld [vmem:[%s576] sm:$0xff]
        %v634 = vld [vmem:[%s572] sm:$0xff]
        %v635 = vld [vmem:[%s517] sm:$0xff]
        %vm636 = vcmask 261120
        %v638 = vsel %vm636, %v633, 0
        %640 = vmatprep.subr.mxu0 0.0
        %641 = vmatpush1.msra.mxu0 %v579
        %642 = vmatprep.subr.mxu0 0.0
        %643 = vmatpush1.msra.mxu0 %v580
        %644 = vmatprep.subr.mxu0 0.0
        %645 = vmatpush1.msra.mxu0 %v581
        %646 = vmatprep.subr.mxu0 0.0
        %647 = vmatpush1.msra.mxu0 %v582
        %648 = vmatprep.subr.mxu0 0.0
        %649 = vmatpush1.msra.mxu0 0.0
        %650 = vmatprep.subr.mxu0 0.0
        %651 = vmatpush1.msra.mxu0 0.0
        %652 = vmatprep.subr.mxu0 0.0
        %653 = vmatpush1.msra.mxu0 0.0
        %654 = vmatprep.subr.mxu0 0.0
        %655 = vmatpush1.msra.mxu0 0.0
        %656 = vmatprep.subr.mxu0 0.0
        %657 = vmatpush1.msra.mxu0 0.0
        %658 = vmatprep.subr.mxu0 0.0
        %659 = vmatpush1.msra.mxu0 0.0
        %660 = vmatprep.subr.mxu0 0.0
        %661 = vmatpush1.msra.mxu0 0.0
        %662 = vmatprep.subr.mxu0 0.0
        %663 = vmatpush1.msra.mxu0 0.0
        %664 = vmatprep.subr.mxu0 0.0
        %665 = vmatpush1.msra.mxu0 0.0
        %666 = vmatprep.subr.mxu0 0.0
        %667 = vmatpush1.msra.mxu0 0.0
        %668 = vmatprep.subr.mxu0 0.0
        %669 = vmatpush1.msra.mxu0 0.0
        %670 = vmatprep.subr.mxu0 0.0
        %671 = vmatpush1.msra.mxu0 0.0
        %672 = vmatprep.subr.mxu0 0.0
        %673 = vmatpush1.msra.mxu0 0.0
        %674 = vmatprep.subr.mxu0 0.0
        %675 = vmatpush1.msra.mxu0 0.0
        %676 = vmatprep.subr.mxu0 0.0
        %677 = vmatpush1.msra.mxu0 0.0
        %678 = vmatprep.subr.mxu0 0.0
        %679 = vmatpush1.msra.mxu0 0.0
        %680 = vmatprep.subr.mxu0 0.0
        %681 = vmatpush1.msra.mxu0 0.0
        %682 = vmatprep.subr.mxu0 0.0
        %683 = vmatpush1.msra.mxu0 0.0
        %684 = vmatprep.subr.mxu0 0.0
        %685 = vmatpush1.msra.mxu0 0.0
        %686 = vmatprep.subr.mxu0 0.0
        %687 = vmatpush1.msra.mxu0 0.0
        %688 = vmatprep.subr.mxu0 0.0
        %689 = vmatpush1.msra.mxu0 0.0
        %690 = vmatprep.subr.mxu0 0.0
        %691 = vmatpush1.msra.mxu0 0.0
        %692 = vmatprep.subr.mxu0 0.0
        %693 = vmatpush1.msra.mxu0 0.0
        %694 = vmatprep.subr.mxu0 0.0
        %695 = vmatpush1.msra.mxu0 0.0
        %696 = vmatprep.subr.mxu0 0.0
        %697 = vmatpush1.msra.mxu0 0.0
        %698 = vmatprep.subr.mxu0 0.0
        %699 = vmatpush1.msra.mxu0 0.0
        %700 = vmatprep.subr.mxu0 0.0
        %701 = vmatpush1.msra.mxu0 0.0
        %702 = vmatprep.subr.mxu0 0.0
        %703 = vmatpush1.msra.mxu0 0.0
        %704 = vmatprep.mubr.f32.mxu0 0.0
        %705 = vmatmul.mubr.f32.gmra.mrb[0].mxu0 %v638
        %v706 = vpop.f32.mrb[0].mxu0
        %v707 = vadd.f32 0.0, %v706
        %v708 = vpop.f32.mrb[0].mxu0
        %709 = vdwg.mxu0
        %vm710 = vcmask 130048
        %v712 = vsel %vm710, %v634, 0
        %714 = vmatprep.subr.mxu0 0.0
        %715 = vmatpush1.msra.mxu0 %v577
        %716 = vmatprep.subr.mxu0 0.0
        %717 = vmatpush1.msra.mxu0 %v578
        %718 = vmatprep.subr.mxu0 0.0
        %719 = vmatpush1.msra.mxu0 0.0
        %720 = vmatprep.subr.mxu0 0.0
        %721 = vmatpush1.msra.mxu0 0.0
        %722 = vmatprep.subr.mxu0 0.0
        %723 = vmatpush1.msra.mxu0 0.0
        %724 = vmatprep.subr.mxu0 0.0
        %725 = vmatpush1.msra.mxu0 0.0
        %726 = vmatprep.subr.mxu0 0.0
        %727 = vmatpush1.msra.mxu0 0.0
        %728 = vmatprep.subr.mxu0 0.0
        %729 = vmatpush1.msra.mxu0 0.0
        %730 = vmatprep.subr.mxu0 0.0
        %731 = vmatpush1.msra.mxu0 0.0
        %732 = vmatprep.subr.mxu0 0.0
        %733 = vmatpush1.msra.mxu0 0.0
        %734 = vmatprep.subr.mxu0 0.0
        %735 = vmatpush1.msra.mxu0 0.0
        %736 = vmatprep.subr.mxu0 0.0
        %737 = vmatpush1.msra.mxu0 0.0
        %738 = vmatprep.subr.mxu0 0.0
        %739 = vmatpush1.msra.mxu0 0.0
        %740 = vmatprep.subr.mxu0 0.0
        %741 = vmatpush1.msra.mxu0 0.0
        %742 = vmatprep.subr.mxu0 0.0
        %743 = vmatpush1.msra.mxu0 0.0
        %744 = vmatprep.subr.mxu0 0.0
        %745 = vmatpush1.msra.mxu0 0.0
        %746 = vmatprep.subr.mxu0 0.0
        %747 = vmatpush1.msra.mxu0 0.0
        %748 = vmatprep.subr.mxu0 0.0
        %749 = vmatpush1.msra.mxu0 0.0
        %750 = vmatprep.subr.mxu0 0.0
        %751 = vmatpush1.msra.mxu0 0.0
        %752 = vmatprep.subr.mxu0 0.0
        %753 = vmatpush1.msra.mxu0 0.0
        %754 = vmatprep.subr.mxu0 0.0
        %755 = vmatpush1.msra.mxu0 0.0
        %756 = vmatprep.subr.mxu0 0.0
        %757 = vmatpush1.msra.mxu0 0.0
        %758 = vmatprep.subr.mxu0 0.0
        %759 = vmatpush1.msra.mxu0 0.0
        %760 = vmatprep.subr.mxu0 0.0
        %761 = vmatpush1.msra.mxu0 0.0
        %762 = vmatprep.subr.mxu0 0.0
        %763 = vmatpush1.msra.mxu0 0.0
        %764 = vmatprep.subr.mxu0 0.0
        %765 = vmatpush1.msra.mxu0 0.0
        %766 = vmatprep.subr.mxu0 0.0
        %767 = vmatpush1.msra.mxu0 0.0
        %768 = vmatprep.subr.mxu0 0.0
        %769 = vmatpush1.msra.mxu0 0.0
        %770 = vmatprep.subr.mxu0 0.0
        %771 = vmatpush1.msra.mxu0 0.0
        %772 = vmatprep.subr.mxu0 0.0
        %773 = vmatpush1.msra.mxu0 0.0
        %774 = vmatprep.subr.mxu0 0.0
        %775 = vmatpush1.msra.mxu0 0.0
        %776 = vmatprep.subr.mxu0 0.0
        %777 = vmatpush1.msra.mxu0 0.0
        %778 = vmatprep.mubr.f32.mxu0 0.0
        %779 = vmatmul.mubr.f32.gmra.mrb[0].mxu0 %v712
        %v780 = vpop.f32.mrb[0].mxu0
        %v781 = vadd.f32 %v707, %v780
        %v782 = vpop.f32.mrb[0].mxu0
        %783 = vdwg.mxu0
        %v784 = vadd.f32 %v781, %v594
        %v785 = vtanh.pop %v784
        %786 = vmatprep.subr.mxu0 0.0
        %787 = vmatpush1.msra.mxu0 %v587
        %788 = vmatprep.subr.mxu0 0.0
        %789 = vmatpush1.msra.mxu0 %v588
        %790 = vmatprep.subr.mxu0 0.0
        %791 = vmatpush1.msra.mxu0 0.0
        %792 = vmatprep.subr.mxu0 0.0
        %793 = vmatpush1.msra.mxu0 0.0
        %794 = vmatprep.subr.mxu0 0.0
        %795 = vmatpush1.msra.mxu0 0.0
        %796 = vmatprep.subr.mxu0 0.0
        %797 = vmatpush1.msra.mxu0 0.0
        %798 = vmatprep.subr.mxu0 0.0
        %799 = vmatpush1.msra.mxu0 0.0
        %800 = vmatprep.subr.mxu0 0.0
        %801 = vmatpush1.msra.mxu0 0.0
        %802 = vmatprep.subr.mxu0 0.0
        %803 = vmatpush1.msra.mxu0 0.0
        %804 = vmatprep.subr.mxu0 0.0
        %805 = vmatpush1.msra.mxu0 0.0
        %806 = vmatprep.subr.mxu0 0.0
        %807 = vmatpush1.msra.mxu0 0.0
        %808 = vmatprep.subr.mxu0 0.0
        %809 = vmatpush1.msra.mxu0 0.0
        %810 = vmatprep.subr.mxu0 0.0
        %811 = vmatpush1.msra.mxu0 0.0
        %812 = vmatprep.subr.mxu0 0.0
        %813 = vmatpush1.msra.mxu0 0.0
        %814 = vmatprep.subr.mxu0 0.0
        %815 = vmatpush1.msra.mxu0 0.0
        %816 = vmatprep.subr.mxu0 0.0
        %817 = vmatpush1.msra.mxu0 0.0
        %818 = vmatprep.subr.mxu0 0.0
        %819 = vmatpush1.msra.mxu0 0.0
        %820 = vmatprep.subr.mxu0 0.0
        %821 = vmatpush1.msra.mxu0 0.0
        %822 = vmatprep.subr.mxu0 0.0
        %823 = vmatpush1.msra.mxu0 0.0
        %824 = vmatprep.subr.mxu0 0.0
        %825 = vmatpush1.msra.mxu0 0.0
        %826 = vmatprep.subr.mxu0 0.0
        %827 = vmatpush1.msra.mxu0 0.0
        %828 = vmatprep.subr.mxu0 0.0
        %829 = vmatpush1.msra.mxu0 0.0
        %830 = vmatprep.subr.mxu0 0.0
        %831 = vmatpush1.msra.mxu0 0.0
        %832 = vmatprep.subr.mxu0 0.0
        %833 = vmatpush1.msra.mxu0 0.0
        %834 = vmatprep.subr.mxu0 0.0
        %835 = vmatpush1.msra.mxu0 0.0
        %836 = vmatprep.subr.mxu0 0.0
        %837 = vmatpush1.msra.mxu0 0.0
        %838 = vmatprep.subr.mxu0 0.0
        %839 = vmatpush1.msra.mxu0 0.0
        %840 = vmatprep.subr.mxu0 0.0
        %841 = vmatpush1.msra.mxu0 0.0
        %842 = vmatprep.subr.mxu0 0.0
        %843 = vmatpush1.msra.mxu0 0.0
        %844 = vmatprep.subr.mxu0 0.0
        %845 = vmatpush1.msra.mxu0 0.0
        %846 = vmatprep.subr.mxu0 0.0
        %847 = vmatpush1.msra.mxu0 0.0
        %848 = vmatprep.subr.mxu0 0.0
        %849 = vmatpush1.msra.mxu0 0.0
        %850 = vmatprep.mubr.f32.mxu0 0.0
        %851 = vmatmul.mubr.f32.gmra.mrb[0].mxu0 %v712
        %v852 = vpop.f32.mrb[0].mxu0
        %v853 = vadd.f32 0.0, %v852
        %v854 = vpop.f32.mrb[0].mxu0
        %855 = vdwg.mxu0
        %v857 = vsel %vm636, %v785, 0
        %859 = vmatprep.subr.mxu0 0.0
        %860 = vmatpush1.msra.mxu0 %v583
        %861 = vmatprep.subr.mxu0 0.0
        %862 = vmatpush1.msra.mxu0 %v584
        %863 = vmatprep.subr.mxu0 0.0
        %864 = vmatpush1.msra.mxu0 %v585
        %865 = vmatprep.subr.mxu0 0.0
        %866 = vmatpush1.msra.mxu0 %v586
        %867 = vmatprep.subr.mxu0 0.0
        %868 = vmatpush1.msra.mxu0 0.0
        %869 = vmatprep.subr.mxu0 0.0
        %870 = vmatpush1.msra.mxu0 0.0
        %871 = vmatprep.subr.mxu0 0.0
        %872 = vmatpush1.msra.mxu0 0.0
        %873 = vmatprep.subr.mxu0 0.0
        %874 = vmatpush1.msra.mxu0 0.0
        %875 = vmatprep.subr.mxu0 0.0
        %876 = vmatpush1.msra.mxu0 0.0
        %877 = vmatprep.subr.mxu0 0.0
        %878 = vmatpush1.msra.mxu0 0.0
        %879 = vmatprep.subr.mxu0 0.0
        %880 = vmatpush1.msra.mxu0 0.0
        %881 = vmatprep.subr.mxu0 0.0
        %882 = vmatpush1.msra.mxu0 0.0
        %883 = vmatprep.subr.mxu0 0.0
        %884 = vmatpush1.msra.mxu0 0.0
        %885 = vmatprep.subr.mxu0 0.0
        %886 = vmatpush1.msra.mxu0 0.0
        %887 = vmatprep.subr.mxu0 0.0
        %888 = vmatpush1.msra.mxu0 0.0
        %889 = vmatprep.subr.mxu0 0.0
        %890 = vmatpush1.msra.mxu0 0.0
        %891 = vmatprep.subr.mxu0 0.0
        %892 = vmatpush1.msra.mxu0 0.0
        %893 = vmatprep.subr.mxu0 0.0
        %894 = vmatpush1.msra.mxu0 0.0
        %895 = vmatprep.subr.mxu0 0.0
        %896 = vmatpush1.msra.mxu0 0.0
        %897 = vmatprep.subr.mxu0 0.0
        %898 = vmatpush1.msra.mxu0 0.0
        %899 = vmatprep.subr.mxu0 0.0
        %900 = vmatpush1.msra.mxu0 0.0
        %901 = vmatprep.subr.mxu0 0.0
        %902 = vmatpush1.msra.mxu0 0.0
        %903 = vmatprep.subr.mxu0 0.0
        %904 = vmatpush1.msra.mxu0 0.0
        %905 = vmatprep.subr.mxu0 0.0
        %906 = vmatpush1.msra.mxu0 0.0
        %907 = vmatprep.subr.mxu0 0.0
        %908 = vmatpush1.msra.mxu0 0.0
        %909 = vmatprep.subr.mxu0 0.0
        %910 = vmatpush1.msra.mxu0 0.0
        %911 = vmatprep.subr.mxu0 0.0
        %912 = vmatpush1.msra.mxu0 0.0
        %913 = vmatprep.subr.mxu0 0.0
        %914 = vmatpush1.msra.mxu0 0.0
        %915 = vmatprep.subr.mxu0 0.0
        %916 = vmatpush1.msra.mxu0 0.0
        %917 = vmatprep.subr.mxu0 0.0
        %918 = vmatpush1.msra.mxu0 0.0
        %919 = vmatprep.subr.mxu0 0.0
        %920 = vmatpush1.msra.mxu0 0.0
        %921 = vmatprep.subr.mxu0 0.0
        %922 = vmatpush1.msra.mxu0 0.0
        %923 = vmatprep.mubr.f32.mxu0 0.0
        %924 = vmatmul.mubr.f32.gmra.mrb[0].mxu0 %v857
        %v925 = vpop.f32.mrb[0].mxu0
        %v926 = vadd.f32 %v853, %v925
        %v927 = vpop.f32.mrb[0].mxu0
        %928 = vdwg.mxu0
        %v929 = vadd.f32 %v926, %v601
        %v930 = vmax.f32 %v929, 0.0
        %v931 = vld [vmem:[%s9] sm:$0xff]
        %v932 = vld [vmem:[%s9 + $0x8] sm:$0xff]
        %v933 = vld [vmem:[%s9 + $0x10] sm:$0xff]
        %v934 = vld [vmem:[%s9 + $0x18] sm:$0xff]
        %v936 = vsel %vm636, %v930, 0
        %938 = vmatprep.subr.mxu0 0.0
        %939 = vmatpush1.msra.mxu0 %v931
        %940 = vmatprep.subr.mxu0 0.0
        %941 = vmatpush1.msra.mxu0 %v932
        %942 = vmatprep.subr.mxu0 0.0
        %943 = vmatpush1.msra.mxu0 %v933
        %944 = vmatprep.subr.mxu0 0.0
        %945 = vmatpush1.msra.mxu0 %v934
        %946 = vmatprep.subr.mxu0 0.0
        %947 = vmatpush1.msra.mxu0 0.0
        %948 = vmatprep.subr.mxu0 0.0
        %949 = vmatpush1.msra.mxu0 0.0
        %950 = vmatprep.subr.mxu0 0.0
        %951 = vmatpush1.msra.mxu0 0.0
        %952 = vmatprep.subr.mxu0 0.0
        %953 = vmatpush1.msra.mxu0 0.0
        %954 = vmatprep.subr.mxu0 0.0
        %955 = vmatpush1.msra.mxu0 0.0
        %956 = vmatprep.subr.mxu0 0.0
        %957 = vmatpush1.msra.mxu0 0.0
        %958 = vmatprep.subr.mxu0 0.0
        %959 = vmatpush1.msra.mxu0 0.0
        %960 = vmatprep.subr.mxu0 0.0
        %961 = vmatpush1.msra.mxu0 0.0
        %962 = vmatprep.subr.mxu0 0.0
        %963 = vmatpush1.msra.mxu0 0.0
        %964 = vmatprep.subr.mxu0 0.0
        %965 = vmatpush1.msra.mxu0 0.0
        %966 = vmatprep.subr.mxu0 0.0
        %967 = vmatpush1.msra.mxu0 0.0
        %968 = vmatprep.subr.mxu0 0.0
        %969 = vmatpush1.msra.mxu0 0.0
        %970 = vmatprep.subr.mxu0 0.0
        %971 = vmatpush1.msra.mxu0 0.0
        %972 = vmatprep.subr.mxu0 0.0
        %973 = vmatpush1.msra.mxu0 0.0
        %974 = vmatprep.subr.mxu0 0.0
        %975 = vmatpush1.msra.mxu0 0.0
        %976 = vmatprep.subr.mxu0 0.0
        %977 = vmatpush1.msra.mxu0 0.0
        %978 = vmatprep.subr.mxu0 0.0
        %979 = vmatpush1.msra.mxu0 0.0
        %980 = vmatprep.subr.mxu0 0.0
        %981 = vmatpush1.msra.mxu0 0.0
        %982 = vmatprep.subr.mxu0 0.0
        %983 = vmatpush1.msra.mxu0 0.0
        %984 = vmatprep.subr.mxu0 0.0
        %985 = vmatpush1.msra.mxu0 0.0
        %986 = vmatprep.subr.mxu0 0.0
        %987 = vmatpush1.msra.mxu0 0.0
        %988 = vmatprep.subr.mxu0 0.0
        %989 = vmatpush1.msra.mxu0 0.0
        %990 = vmatprep.subr.mxu0 0.0
        %991 = vmatpush1.msra.mxu0 0.0
        %992 = vmatprep.subr.mxu0 0.0
        %993 = vmatpush1.msra.mxu0 0.0
        %994 = vmatprep.subr.mxu0 0.0
        %995 = vmatpush1.msra.mxu0 0.0
        %996 = vmatprep.subr.mxu0 0.0
        %997 = vmatpush1.msra.mxu0 0.0
        %998 = vmatprep.subr.mxu0 0.0
        %999 = vmatpush1.msra.mxu0 0.0
        %1000 = vmatprep.subr.mxu0 0.0
        %1001 = vmatpush1.msra.mxu0 0.0
        %1002 = vmatprep.mubr.f32.mxu0 0.0
        %1003 = vmatmul.mubr.f32.gmra.mrb[0].mxu0 %v936
        %v1004 = vpop.f32.mrb[0].mxu0
        %v1005 = vadd.f32 %v608, %v1004
        %v1006 = vpop.f32.mrb[0].mxu0
        %1007 = vdwg.mxu0
        %v1008 = vmax.f32 %v1005, 0.0
        %v1009 = vld [vmem:[%s10] sm:$0xff]
        %v1010 = vld [vmem:[%s10 + $0x8] sm:$0xff]
        %v1011 = vld [vmem:[%s10 + $0x10] sm:$0xff]
        %v1012 = vld [vmem:[%s10 + $0x18] sm:$0xff]
        %1013 = vrot.lane.b32.xlu0 %v930, 96
        %v1014 = vpop.permute.xlu0 %1013
        %v1015 = vsel %vm636, %v1014, 0
        %1017 = vmatprep.subr.mxu0 0.0
        %1018 = vmatpush1.msra.mxu0 %v1009
        %1019 = vmatprep.subr.mxu0 0.0
        %1020 = vmatpush1.msra.mxu0 %v1010
        %1021 = vmatprep.subr.mxu0 0.0
        %1022 = vmatpush1.msra.mxu0 %v1011
        %1023 = vmatprep.subr.mxu0 0.0
        %1024 = vmatpush1.msra.mxu0 %v1012
        %1025 = vmatprep.subr.mxu0 0.0
        %1026 = vmatpush1.msra.mxu0 0.0
        %1027 = vmatprep.subr.mxu0 0.0
        %1028 = vmatpush1.msra.mxu0 0.0
        %1029 = vmatprep.subr.mxu0 0.0
        %1030 = vmatpush1.msra.mxu0 0.0
        %1031 = vmatprep.subr.mxu0 0.0
        %1032 = vmatpush1.msra.mxu0 0.0
        %1033 = vmatprep.subr.mxu0 0.0
        %1034 = vmatpush1.msra.mxu0 0.0
        %1035 = vmatprep.subr.mxu0 0.0
        %1036 = vmatpush1.msra.mxu0 0.0
        %1037 = vmatprep.subr.mxu0 0.0
        %1038 = vmatpush1.msra.mxu0 0.0
        %1039 = vmatprep.subr.mxu0 0.0
        %1040 = vmatpush1.msra.mxu0 0.0
        %1041 = vmatprep.subr.mxu0 0.0
        %1042 = vmatpush1.msra.mxu0 0.0
        %1043 = vmatprep.subr.mxu0 0.0
        %1044 = vmatpush1.msra.mxu0 0.0
        %1045 = vmatprep.subr.mxu0 0.0
        %1046 = vmatpush1.msra.mxu0 0.0
        %1047 = vmatprep.subr.mxu0 0.0
        %1048 = vmatpush1.msra.mxu0 0.0
        %1049 = vmatprep.subr.mxu0 0.0
        %1050 = vmatpush1.msra.mxu0 0.0
        %1051 = vmatprep.subr.mxu0 0.0
        %1052 = vmatpush1.msra.mxu0 0.0
        %1053 = vmatprep.subr.mxu0 0.0
        %1054 = vmatpush1.msra.mxu0 0.0
        %1055 = vmatprep.subr.mxu0 0.0
        %1056 = vmatpush1.msra.mxu0 0.0
        %1057 = vmatprep.subr.mxu0 0.0
        %1058 = vmatpush1.msra.mxu0 0.0
        %1059 = vmatprep.subr.mxu0 0.0
        %1060 = vmatpush1.msra.mxu0 0.0
        %1061 = vmatprep.subr.mxu0 0.0
        %1062 = vmatpush1.msra.mxu0 0.0
        %1063 = vmatprep.subr.mxu0 0.0
        %1064 = vmatpush1.msra.mxu0 0.0
        %1065 = vmatprep.subr.mxu0 0.0
        %1066 = vmatpush1.msra.mxu0 0.0
        %1067 = vmatprep.subr.mxu0 0.0
        %1068 = vmatpush1.msra.mxu0 0.0
        %1069 = vmatprep.subr.mxu0 0.0
        %1070 = vmatpush1.msra.mxu0 0.0
        %1071 = vmatprep.subr.mxu0 0.0
        %1072 = vmatpush1.msra.mxu0 0.0
        %1073 = vmatprep.subr.mxu0 0.0
        %1074 = vmatpush1.msra.mxu0 0.0
        %1075 = vmatprep.subr.mxu0 0.0
        %1076 = vmatpush1.msra.mxu0 0.0
        %1077 = vmatprep.subr.mxu0 0.0
        %1078 = vmatpush1.msra.mxu0 0.0
        %1079 = vmatprep.subr.mxu0 0.0
        %1080 = vmatpush1.msra.mxu0 0.0
        %1081 = vmatprep.mubr.f32.mxu0 0.0
        %1082 = vmatmul.mubr.f32.gmra.mrb[0].mxu0 %v1015
        %v1083 = vpop.f32.mrb[0].mxu0
        %v1084 = vadd.f32 %v615, %v1083
        %v1085 = vpop.f32.mrb[0].mxu0
        %1086 = vdwg.mxu0
        %v1087 = vmax.f32 %v1084, 0.0
        %v1088 = vld [vmem:[%s11] sm:$0xff]
        %v1089 = vld [vmem:[%s11 + $0x8] sm:$0xff]
        %v1090 = vld [vmem:[%s11 + $0x10] sm:$0xff]
        %v1091 = vld [vmem:[%s11 + $0x18] sm:$0xff]
        %1092 = vrot.lane.b32.xlu0 %v930, 64
        %v1093 = vpop.permute.xlu0 %1092
        %v1094 = vsel %vm636, %v1093, 0
        %1096 = vmatprep.subr.mxu0 0.0
        %1097 = vmatpush1.msra.mxu0 %v1088
        %1098 = vmatprep.subr.mxu0 0.0
        %1099 = vmatpush1.msra.mxu0 %v1089
        %1100 = vmatprep.subr.mxu0 0.0
        %1101 = vmatpush1.msra.mxu0 %v1090
        %1102 = vmatprep.subr.mxu0 0.0
        %1103 = vmatpush1.msra.mxu0 %v1091
        %1104 = vmatprep.subr.mxu0 0.0
        %1105 = vmatpush1.msra.mxu0 0.0
        %1106 = vmatprep.subr.mxu0 0.0
        %1107 = vmatpush1.msra.mxu0 0.0
        %1108 = vmatprep.subr.mxu0 0.0
        %1109 = vmatpush1.msra.mxu0 0.0
        %1110 = vmatprep.subr.mxu0 0.0
        %1111 = vmatpush1.msra.mxu0 0.0
        %1112 = vmatprep.subr.mxu0 0.0
        %1113 = vmatpush1.msra.mxu0 0.0
        %1114 = vmatprep.subr.mxu0 0.0
        %1115 = vmatpush1.msra.mxu0 0.0
        %1116 = vmatprep.subr.mxu0 0.0
        %1117 = vmatpush1.msra.mxu0 0.0
        %1118 = vmatprep.subr.mxu0 0.0
        %1119 = vmatpush1.msra.mxu0 0.0
        %1120 = vmatprep.subr.mxu0 0.0
        %1121 = vmatpush1.msra.mxu0 0.0
        %1122 = vmatprep.subr.mxu0 0.0
        %1123 = vmatpush1.msra.mxu0 0.0
        %1124 = vmatprep.subr.mxu0 0.0
        %1125 = vmatpush1.msra.mxu0 0.0
        %1126 = vmatprep.subr.mxu0 0.0
        %1127 = vmatpush1.msra.mxu0 0.0
        %1128 = vmatprep.subr.mxu0 0.0
        %1129 = vmatpush1.msra.mxu0 0.0
        %1130 = vmatprep.subr.mxu0 0.0
        %1131 = vmatpush1.msra.mxu0 0.0
        %1132 = vmatprep.subr.mxu0 0.0
        %1133 = vmatpush1.msra.mxu0 0.0
        %1134 = vmatprep.subr.mxu0 0.0
        %1135 = vmatpush1.msra.mxu0 0.0
        %1136 = vmatprep.subr.mxu0 0.0
        %1137 = vmatpush1.msra.mxu0 0.0
        %1138 = vmatprep.subr.mxu0 0.0
        %1139 = vmatpush1.msra.mxu0 0.0
        %1140 = vmatprep.subr.mxu0 0.0
        %1141 = vmatpush1.msra.mxu0 0.0
        %1142 = vmatprep.subr.mxu0 0.0
        %1143 = vmatpush1.msra.mxu0 0.0
        %1144 = vmatprep.subr.mxu0 0.0
        %1145 = vmatpush1.msra.mxu0 0.0
        %1146 = vmatprep.subr.mxu0 0.0
        %1147 = vmatpush1.msra.mxu0 0.0
        %1148 = vmatprep.subr.mxu0 0.0
        %1149 = vmatpush1.msra.mxu0 0.0
        %1150 = vmatprep.subr.mxu0 0.0
        %1151 = vmatpush1.msra.mxu0 0.0
        %1152 = vmatprep.subr.mxu0 0.0
        %1153 = vmatpush1.msra.mxu0 0.0
        %1154 = vmatprep.subr.mxu0 0.0
        %1155 = vmatpush1.msra.mxu0 0.0
        %1156 = vmatprep.subr.mxu0 0.0
        %1157 = vmatpush1.msra.mxu0 0.0
        %1158 = vmatprep.subr.mxu0 0.0
        %1159 = vmatpush1.msra.mxu0 0.0
        %1160 = vmatprep.mubr.f32.mxu0 0.0
        %1161 = vmatmul.mubr.f32.gmra.mrb[0].mxu0 %v1094
        %v1162 = vpop.f32.mrb[0].mxu0
        %v1163 = vadd.f32 %v622, %v1162
        %v1164 = vpop.f32.mrb[0].mxu0
        %1165 = vdwg.mxu0
        %v1166 = vmax.f32 %v1163, 0.0
        %v1167 = vld [vmem:[%s13] sm:$0xff]
        %v1168 = vld [vmem:[%s13 + $0x8] sm:$0xff]
        %v1169 = vld [vmem:[%s13 + $0x10] sm:$0xff]
        %v1170 = vld [vmem:[%s13 + $0x18] sm:$0xff]
        %v1171 = vld [vmem:[%s13 + $0x20] sm:$0xff]
        %v1172 = vld [vmem:[%s13 + $0x28] sm:$0xff]
        %v1173 = vld [vmem:[%s13 + $0x30] sm:$0xff]
        %v1174 = vld [vmem:[%s13 + $0x38] sm:$0xff]
        %v1175 = vld [vmem:[%s13 + $0x40] sm:$0xff]
        %v1176 = vld [vmem:[%s13 + $0x48] sm:$0xff]
        %v1177 = vld [vmem:[%s13 + $0x50] sm:$0xff]
        %v1178 = vld [vmem:[%s13 + $0x58] sm:$0xff]
        %v1179 = vld [vmem:[%s13 + $0x60] sm:$0xff]
        %v1180 = vld [vmem:[%s13 + $0x68] sm:$0xff]
        %v1181 = vld [vmem:[%s13 + $0x70] sm:$0xff]
        %v1182 = vld [vmem:[%s13 + $0x78] sm:$0xff]
        %v1183 = vld [vmem:[%s13 + $0x80] sm:$0xff]
        %v1184 = vld [vmem:[%s13 + $0x88] sm:$0xff]
        %v1185 = vld [vmem:[%s13 + $0x90] sm:$0xff]
        %v1186 = vld [vmem:[%s13 + $0x98] sm:$0xff]
        %v1187 = vld [vmem:[%s13 + $0xa0] sm:$0xff]
        %v1188 = vld [vmem:[%s13 + $0xa8] sm:$0xff]
        %v1189 = vld [vmem:[%s13 + $0xb0] sm:$0xff]
        %v1190 = vld [vmem:[%s13 + $0xb8] sm:$0xff]
        %v1191 = vld [vmem:[%s13 + $0xc0] sm:$0xff]
        %v1192 = vld [vmem:[%s13 + $0xc8] sm:$0xff]
        %v1193 = vld [vmem:[%s13 + $0xd0] sm:$0xff]
        %v1194 = vld [vmem:[%s13 + $0xd8] sm:$0xff]
        %v1195 = vld [vmem:[%s13 + $0xe0] sm:$0xff]
        %v1196 = vld [vmem:[%s13 + $0xe8] sm:$0xff]
        %v1197 = vld [vmem:[%s13 + $0xf0] sm:$0xff]
        %v1198 = vld [vmem:[%s13 + $0xf8] sm:$0xff]
        %v1199 = vld [vmem:[%s13 + $0x100] sm:$0xff]
        %v1200 = vld [vmem:[%s13 + $0x108] sm:$0xff]
        %v1201 = vld [vmem:[%s13 + $0x110] sm:$0xff]
        %v1202 = vld [vmem:[%s13 + $0x118] sm:$0xff]
        %v1203 = vld [vmem:[%s13 + $0x120] sm:$0xff]
        %v1204 = vld [vmem:[%s13 + $0x128] sm:$0xff]
        %v1205 = vld [vmem:[%s13 + $0x130] sm:$0xff]
        %v1206 = vld [vmem:[%s13 + $0x138] sm:$0xff]
        %v1207 = vld [vmem:[%s13 + $0x140] sm:$0xff]
        %v1208 = vld [vmem:[%s13 + $0x148] sm:$0xff]
        %v1209 = vld [vmem:[%s13 + $0x150] sm:$0xff]
        %v1210 = vld [vmem:[%s13 + $0x158] sm:$0xff]
        %v1211 = vld [vmem:[%s13 + $0x160] sm:$0xff]
        %v1212 = vld [vmem:[%s13 + $0x168] sm:$0xff]
        %v1213 = vld [vmem:[%s13 + $0x170] sm:$0xff]
        %v1214 = vld [vmem:[%s13 + $0x178] sm:$0xff]
        %1215 = vmatprep.subr.mxu0 0.0
        %1216 = vmatpush1.msra.mxu0 %v1167
        %1217 = vmatprep.subr.mxu0 0.0
        %1218 = vmatpush1.msra.mxu0 %v1168
        %1219 = vmatprep.subr.mxu0 0.0
        %1220 = vmatpush1.msra.mxu0 %v1169
        %1221 = vmatprep.subr.mxu0 0.0
        %1222 = vmatpush1.msra.mxu0 %v1170
        %1223 = vmatprep.subr.mxu0 0.0
        %1224 = vmatpush1.msra.mxu0 %v1171
        %1225 = vmatprep.subr.mxu0 0.0
        %1226 = vmatpush1.msra.mxu0 %v1172
        %1227 = vmatprep.subr.mxu0 0.0
        %1228 = vmatpush1.msra.mxu0 %v1173
        %1229 = vmatprep.subr.mxu0 0.0
        %1230 = vmatpush1.msra.mxu0 %v1174
        %1231 = vmatprep.subr.mxu0 0.0
        %1232 = vmatpush1.msra.mxu0 %v1175
        %1233 = vmatprep.subr.mxu0 0.0
        %1234 = vmatpush1.msra.mxu0 %v1176
        %1235 = vmatprep.subr.mxu0 0.0
        %1236 = vmatpush1.msra.mxu0 %v1177
        %1237 = vmatprep.subr.mxu0 0.0
        %1238 = vmatpush1.msra.mxu0 %v1178
        %1239 = vmatprep.subr.mxu0 0.0
        %1240 = vmatpush1.msra.mxu0 %v1179
        %1241 = vmatprep.subr.mxu0 0.0
        %1242 = vmatpush1.msra.mxu0 %v1180
        %1243 = vmatprep.subr.mxu0 0.0
        %1244 = vmatpush1.msra.mxu0 %v1181
        %1245 = vmatprep.subr.mxu0 0.0
        %1246 = vmatpush1.msra.mxu0 %v1182
        %1247 = vmatprep.subr.mxu0 0.0
        %1248 = vmatpush1.msra.mxu0 %v1183
        %1249 = vmatprep.subr.mxu0 0.0
        %1250 = vmatpush1.msra.mxu0 %v1184
        %1251 = vmatprep.subr.mxu0 0.0
        %1252 = vmatpush1.msra.mxu0 %v1185
        %1253 = vmatprep.subr.mxu0 0.0
        %1254 = vmatpush1.msra.mxu0 %v1186
        %1255 = vmatprep.subr.mxu0 0.0
        %1256 = vmatpush1.msra.mxu0 %v1187
        %1257 = vmatprep.subr.mxu0 0.0
        %1258 = vmatpush1.msra.mxu0 %v1188
        %1259 = vmatprep.subr.mxu0 0.0
        %1260 = vmatpush1.msra.mxu0 %v1189
        %1261 = vmatprep.subr.mxu0 0.0
        %1262 = vmatpush1.msra.mxu0 %v1190
        %1263 = vmatprep.subr.mxu0 0.0
        %1264 = vmatpush1.msra.mxu0 %v1191
        %1265 = vmatprep.subr.mxu0 0.0
        %1266 = vmatpush1.msra.mxu0 %v1192
        %1267 = vmatprep.subr.mxu0 0.0
        %1268 = vmatpush1.msra.mxu0 %v1193
        %1269 = vmatprep.subr.mxu0 0.0
        %1270 = vmatpush1.msra.mxu0 %v1194
        %1271 = vmatprep.subr.mxu0 0.0
        %1272 = vmatpush1.msra.mxu0 %v1195
        %1273 = vmatprep.subr.mxu0 0.0
        %1274 = vmatpush1.msra.mxu0 %v1196
        %1275 = vmatprep.subr.mxu0 0.0
        %1276 = vmatpush1.msra.mxu0 %v1197
        %1277 = vmatprep.subr.mxu0 0.0
        %1278 = vmatpush1.msra.mxu0 %v1198
        %1279 = vmatprep.mubr.f32.mxu0 %v1087
        %1280 = vmatmul.mubr.f32.gmra.mrb[0].mxu0 %v1008
        %v1281 = vpop.f32.mrb[0].mxu0
        %v1282 = vadd.f32 %v629, %v1281
        %v1283 = vpop.f32.mrb[0].mxu0
        %1284 = vdwg.mxu0
        %1285 = vmatprep.subr.mxu0 0.0
        %1286 = vmatpush1.msra.mxu0 %v1199
        %1287 = vmatprep.subr.mxu0 0.0
        %1288 = vmatpush1.msra.mxu0 %v1200
        %1289 = vmatprep.subr.mxu0 0.0
        %1290 = vmatpush1.msra.mxu0 %v1201
        %1291 = vmatprep.subr.mxu0 0.0
        %1292 = vmatpush1.msra.mxu0 %v1202
        %1293 = vmatprep.subr.mxu0 0.0
        %1294 = vmatpush1.msra.mxu0 %v1203
        %1295 = vmatprep.subr.mxu0 0.0
        %1296 = vmatpush1.msra.mxu0 %v1204
        %1297 = vmatprep.subr.mxu0 0.0
        %1298 = vmatpush1.msra.mxu0 %v1205
        %1299 = vmatprep.subr.mxu0 0.0
        %1300 = vmatpush1.msra.mxu0 %v1206
        %1301 = vmatprep.subr.mxu0 0.0
        %1302 = vmatpush1.msra.mxu0 %v1207
        %1303 = vmatprep.subr.mxu0 0.0
        %1304 = vmatpush1.msra.mxu0 %v1208
        %1305 = vmatprep.subr.mxu0 0.0
        %1306 = vmatpush1.msra.mxu0 %v1209
        %1307 = vmatprep.subr.mxu0 0.0
        %1308 = vmatpush1.msra.mxu0 %v1210
        %1309 = vmatprep.subr.mxu0 0.0
        %1310 = vmatpush1.msra.mxu0 %v1211
        %1311 = vmatprep.subr.mxu0 0.0
        %1312 = vmatpush1.msra.mxu0 %v1212
        %1313 = vmatprep.subr.mxu0 0.0
        %1314 = vmatpush1.msra.mxu0 %v1213
        %1315 = vmatprep.subr.mxu0 0.0
        %1316 = vmatpush1.msra.mxu0 %v1214
        %1317 = vmatprep.subr.mxu0 0.0
        %1318 = vmatpush1.msra.mxu0 0.0
        %1319 = vmatprep.subr.mxu0 0.0
        %1320 = vmatpush1.msra.mxu0 0.0
        %1321 = vmatprep.subr.mxu0 0.0
        %1322 = vmatpush1.msra.mxu0 0.0
        %1323 = vmatprep.subr.mxu0 0.0
        %1324 = vmatpush1.msra.mxu0 0.0
        %1325 = vmatprep.subr.mxu0 0.0
        %1326 = vmatpush1.msra.mxu0 0.0
        %1327 = vmatprep.subr.mxu0 0.0
        %1328 = vmatpush1.msra.mxu0 0.0
        %1329 = vmatprep.subr.mxu0 0.0
        %1330 = vmatpush1.msra.mxu0 0.0
        %1331 = vmatprep.subr.mxu0 0.0
        %1332 = vmatpush1.msra.mxu0 0.0
        %1333 = vmatprep.subr.mxu0 0.0
        %1334 = vmatpush1.msra.mxu0 0.0
        %1335 = vmatprep.subr.mxu0 0.0
        %1336 = vmatpush1.msra.mxu0 0.0
        %1337 = vmatprep.subr.mxu0 0.0
        %1338 = vmatpush1.msra.mxu0 0.0
        %1339 = vmatprep.subr.mxu0 0.0
        %1340 = vmatpush1.msra.mxu0 0.0
        %1341 = vmatprep.subr.mxu0 0.0
        %1342 = vmatpush1.msra.mxu0 0.0
        %1343 = vmatprep.subr.mxu0 0.0
        %1344 = vmatpush1.msra.mxu0 0.0
        %1345 = vmatprep.subr.mxu0 0.0
        %1346 = vmatpush1.msra.mxu0 0.0
        %1347 = vmatprep.subr.mxu0 0.0
        %1348 = vmatpush1.msra.mxu0 0.0
        %1349 = vmatprep.mubr.f32.mxu0 0.0
        %1350 = vmatmul.mubr.f32.gmra.mrb[0].mxu0 %v1166
        %v1351 = vpop.f32.mrb[0].mxu0
        %v1352 = vadd.f32 %v1282, %v1351
        %v1353 = vpop.f32.mrb[0].mxu0
        %1354 = vdwg.mxu0
        %v1355 = vxor.u32 %v1352, 2147483648
        %v1356 = vmul.f32 %v1355, 1.442695
        %v1357 = vpow.pop %v1356
        %v1358 = vadd.f32 %v1357, 1.0
        %v1359 = vrcp.pop %v1358
        %v1360 = vmul.f32 1.0, %v1359
        %vm1361 = vcmask 97344
        %v1362 = vsel %vm1361, %v1352, -inf
        %1363 = vmax.xlane.f32.xlu0 %v1362
        %v1364 = vpop.xlane.xlu0 %1363
        %v1365 = vsub.f32 %v1352, %v1364
        %v1366 = vmul.f32 %v1365, 1.442695
        %v1367 = vpow.pop %v1366
        %1369 = vrot.lane.b32.xlu0 %v1367, 120
        %v1370 = vpop.permute.xlu0 %1369
        %vm1372 = vcmask 31744
        %v1373 = vsel %vm1372, %v1370, 0.0
        %1374 = vadd.xlane.f32.xlu0 %v1373
        %v1375 = vpop.xlane.xlu0 %1374
        %v1376 = vrcp.pop %v1375
        %v1377 = vmul.f32 %v1367, %v1376
        %vm1378 = vcmp.lt.f32.partialorder %v635, %v1360
        %v1379 = vsel %vm1378, 1, 0
        %v1380 = vcvt.s32.f32 %v1379
        %1381 = vrot.lane.b32.xlu0 %v1367, 127
        %v1382 = vpop.permute.xlu0 %1381
        %v1384 = vadd.f32 %v1367, %v1382
        %1385 = vrot.lane.b32.xlu0 %v1367, 126
        %v1386 = vpop.permute.xlu0 %1385
        %v1388 = vadd.f32 %v1384, %v1386
        %v1389 = vmul.f32 %v635, %v1375
        %vm1390 = vcmp.ge.f32.partialorder %v1389, %v1367
        %v1391 = vsel %vm1390, 1, 0
        %vm1392 = vcmp.ge.f32.partialorder %v1389, %v1384
        %v1393 = vsel %vm1392, 1, 0
        %v1394 = vadd.s32 %v1391, %v1393
        %vm1395 = vcmp.ge.f32.partialorder %v1389, %v1388
        %v1396 = vsel %vm1395, 1, 0
        %v1397 = vadd.s32 %v1394, %v1396
        %vm1398 = vcmp.lt.s32.totalorder %v1397, 3
        %v1399 = vsel %vm1398, %v1397, 3
        %1400 = vset.pattern.permute.xlu0 8
        %1401 = vperm.xlu0 %1400, %v1399
        %v1402 = vpop.permute.xlu0 %1401
        %vm1403 = vcmp.eq.s32.totalorder %v632, %v1402
        %v1404 = vsel %vm1403, 1, 0
        %v1405 = vcvt.s32.f32 %v1404
        %1407 = vrot.lane.b32.xlu0 %v1360, 125
        %v1408 = vpop.permute.xlu0 %1407
        %vm1410 = vcmp.lt.f32.partialorder %v635, %v1408
        %v1411 = vsel %vm1410, 1, 0
        %v1412 = vcvt.s32.f32 %v1411
        %1414 = vrot.lane.b32.xlu0 %v1412, 4
        %v1415 = vpop.permute.xlu0 %1414
        %1418 = vrot.lane.b32.xlu0 %v1380, 14
        %v1419 = vpop.permute.xlu0 %1418
        %1422 = vrot.lane.b32.xlu0 %v1405, 22
        %v1423 = vpop.permute.xlu0 %1422
        %1425 = vrot.lane.b32.xlu0 %v785, 26
        %v1426 = vpop.permute.xlu0 %1425
        %vm1428 = vcmask 64512
        %v1429 = vsel %vm1428, %v1360, %v1377
        %vm1430 = vcmask 97280
        %v1431 = vsel %vm1430, %v1429, %v1360
        %vm1432 = vcmask 105472
        %v1433 = vsel %vm1432, %v1431, %v1415
        %vm1434 = vcmask 113664
        %v1435 = vsel %vm1434, %v1433, %v1419
        %vm1436 = vcmask 179200
        %v1437 = vsel %vm1436, %v1435, %v1423
        %vm1438 = vcmask 211968
        %v1439 = vsel %vm1438, %v1437, %v1426
        %vm1440 = vcmask 474112
        %v1441 = vsel %vm1440, %v1439, 0.0
        %vm1442 = vcmask 523264
        %1443 = vst.msk [vmem:[%s568] sm:$0xff] %vm1442, %v1441
        %1444 = vrot.lane.b32.xlu0 %v1380, 4
        %v1445 = vpop.permute.xlu0 %1444
        %v1447 = vsel %vm1372, %v1405, %v1445
        %v1448 = vsel %vm1430, %v1447, 0.0
        %s1449 = scalar_lea.vmem %s517, 8 [#allocation2]
        %v1450 = vld [vmem:[%s1449] sm:$0xff]
        %1451 = vmatprep.subr.mxu0 0.0
        %1452 = vmatpush1.msra.mxu0 %v579
        %1453 = vmatprep.subr.mxu0 0.0
        %1454 = vmatpush1.msra.mxu0 %v580
        %1455 = vmatprep.subr.mxu0 0.0
        %1456 = vmatpush1.msra.mxu0 %v581
        %1457 = vmatprep.subr.mxu0 0.0
        %1458 = vmatpush1.msra.mxu0 %v582
        %1459 = vmatprep.subr.mxu0 0.0
        %1460 = vmatpush1.msra.mxu0 0.0
        %1461 = vmatprep.subr.mxu0 0.0
        %1462 = vmatpush1.msra.mxu0 0.0
        %1463 = vmatprep.subr.mxu0 0.0
        %1464 = vmatpush1.msra.mxu0 0.0
        %1465 = vmatprep.subr.mxu0 0.0
        %1466 = vmatpush1.msra.mxu0 0.0
        %1467 = vmatprep.subr.mxu0 0.0
        %1468 = vmatpush1.msra.mxu0 0.0
        %1469 = vmatprep.subr.mxu0 0.0
        %1470 = vmatpush1.msra.mxu0 0.0
        %1471 = vmatprep.subr.mxu0 0.0
        %1472 = vmatpush1.msra.mxu0 0.0
        %1473 = vmatprep.subr.mxu0 0.0
        %1474 = vmatpush1.msra.mxu0 0.0
        %1475 = vmatprep.subr.mxu0 0.0
        %1476 = vmatpush1.msra.mxu0 0.0
        %1477 = vmatprep.subr.mxu0 0.0
        %1478 = vmatpush1.msra.mxu0 0.0
        %1479 = vmatprep.subr.mxu0 0.0
        %1480 = vmatpush1.msra.mxu0 0.0
        %1481 = vmatprep.subr.mxu0 0.0
        %1482 = vmatpush1.msra.mxu0 0.0
        %1483 = vmatprep.subr.mxu0 0.0
        %1484 = vmatpush1.msra.mxu0 0.0
        %1485 = vmatprep.subr.mxu0 0.0
        %1486 = vmatpush1.msra.mxu0 0.0
        %1487 = vmatprep.subr.mxu0 0.0
        %1488 = vmatpush1.msra.mxu0 0.0
        %1489 = vmatprep.subr.mxu0 0.0
        %1490 = vmatpush1.msra.mxu0 0.0
        %1491 = vmatprep.subr.mxu0 0.0
        %1492 = vmatpush1.msra.mxu0 0.0
        %1493 = vmatprep.subr.mxu0 0.0
        %1494 = vmatpush1.msra.mxu0 0.0
        %1495 = vmatprep.subr.mxu0 0.0
        %1496 = vmatpush1.msra.mxu0 0.0
        %1497 = vmatprep.subr.mxu0 0.0
        %1498 = vmatpush1.msra.mxu0 0.0
        %1499 = vmatprep.subr.mxu0 0.0
        %1500 = vmatpush1.msra.mxu0 0.0
        %1501 = vmatprep.subr.mxu0 0.0
        %1502 = vmatpush1.msra.mxu0 0.0
        %1503 = vmatprep.subr.mxu0 0.0
        %1504 = vmatpush1.msra.mxu0 0.0
        %1505 = vmatprep.subr.mxu0 0.0
        %1506 = vmatpush1.msra.mxu0 0.0
        %1507 = vmatprep.subr.mxu0 0.0
        %1508 = vmatpush1.msra.mxu0 0.0
        %1509 = vmatprep.subr.mxu0 0.0
        %1510 = vmatpush1.msra.mxu0 0.0
        %1511 = vmatprep.subr.mxu0 0.0
        %1512 = vmatpush1.msra.mxu0 0.0
        %1513 = vmatprep.subr.mxu0 0.0
        %1514 = vmatpush1.msra.mxu0 0.0
        %1515 = vmatprep.mubr.f32.mxu0 0.0
        %1516 = vmatmul.mubr.f32.gmra.mrb[0].mxu0 %v857
        %v1517 = vpop.f32.mrb[0].mxu0
        %v1518 = vadd.f32 0.0, %v1517
        %v1519 = vpop.f32.mrb[0].mxu0
        %1520 = vdwg.mxu0
        %v1522 = vsel %vm710, %v1448, 0
        %1524 = vmatprep.subr.mxu0 0.0
        %1525 = vmatpush1.msra.mxu0 %v577
        %1526 = vmatprep.subr.mxu0 0.0
        %1527 = vmatpush1.msra.mxu0 %v578
        %1528 = vmatprep.subr.mxu0 0.0
        %1529 = vmatpush1.msra.mxu0 0.0
        %1530 = vmatprep.subr.mxu0 0.0
        %1531 = vmatpush1.msra.mxu0 0.0
        %1532 = vmatprep.subr.mxu0 0.0
        %1533 = vmatpush1.msra.mxu0 0.0
        %1534 = vmatprep.subr.mxu0 0.0
        %1535 = vmatpush1.msra.mxu0 0.0
        %1536 = vmatprep.subr.mxu0 0.0
        %1537 = vmatpush1.msra.mxu0 0.0
        %1538 = vmatprep.subr.mxu0 0.0
        %1539 = vmatpush1.msra.mxu0 0.0
        %1540 = vmatprep.subr.mxu0 0.0
        %1541 = vmatpush1.msra.mxu0 0.0
        %1542 = vmatprep.subr.mxu0 0.0
        %1543 = vmatpush1.msra.mxu0 0.0
        %1544 = vmatprep.subr.mxu0 0.0
        %1545 = vmatpush1.msra.mxu0 0.0
        %1546 = vmatprep.subr.mxu0 0.0
        %1547 = vmatpush1.msra.mxu0 0.0
        %1548 = vmatprep.subr.mxu0 0.0
        %1549 = vmatpush1.msra.mxu0 0.0
        %1550 = vmatprep.subr.mxu0 0.0
        %1551 = vmatpush1.msra.mxu0 0.0
        %1552 = vmatprep.subr.mxu0 0.0
        %1553 = vmatpush1.msra.mxu0 0.0
        %1554 = vmatprep.subr.mxu0 0.0
        %1555 = vmatpush1.msra.mxu0 0.0
        %1556 = vmatprep.subr.mxu0 0.0
        %1557 = vmatpush1.msra.mxu0 0.0
        %1558 = vmatprep.subr.mxu0 0.0
        %1559 = vmatpush1.msra.mxu0 0.0
        %1560 = vmatprep.subr.mxu0 0.0
        %1561 = vmatpush1.msra.mxu0 0.0
        %1562 = vmatprep.subr.mxu0 0.0
        %1563 = vmatpush1.msra.mxu0 0.0
        %1564 = vmatprep.subr.mxu0 0.0
        %1565 = vmatpush1.msra.mxu0 0.0
        %1566 = vmatprep.subr.mxu0 0.0
        %1567 = vmatpush1.msra.mxu0 0.0
        %1568 = vmatprep.subr.mxu0 0.0
        %1569 = vmatpush1.msra.mxu0 0.0
        %1570 = vmatprep.subr.mxu0 0.0
        %1571 = vmatpush1.msra.mxu0 0.0
        %1572 = vmatprep.subr.mxu0 0.0
        %1573 = vmatpush1.msra.mxu0 0.0
        %1574 = vmatprep.subr.mxu0 0.0
        %1575 = vmatpush1.msra.mxu0 0.0
        %1576 = vmatprep.subr.mxu0 0.0
        %1577 = vmatpush1.msra.mxu0 0.0
        %1578 = vmatprep.subr.mxu0 0.0
        %1579 = vmatpush1.msra.mxu0 0.0
        %1580 = vmatprep.subr.mxu0 0.0
        %1581 = vmatpush1.msra.mxu0 0.0
        %1582 = vmatprep.subr.mxu0 0.0
        %1583 = vmatpush1.msra.mxu0 0.0
        %1584 = vmatprep.subr.mxu0 0.0
        %1585 = vmatpush1.msra.mxu0 0.0
        %1586 = vmatprep.subr.mxu0 0.0
        %1587 = vmatpush1.msra.mxu0 0.0
        %1588 = vmatprep.mubr.f32.mxu0 0.0
        %1589 = vmatmul.mubr.f32.gmra.mrb[0].mxu0 %v1522
        %v1590 = vpop.f32.mrb[0].mxu0
        %v1591 = vadd.f32 %v1518, %v1590
        %v1592 = vpop.f32.mrb[0].mxu0
        %1593 = vdwg.mxu0
        %v1594 = vadd.f32 %v1591, %v594
        %v1595 = vtanh.pop %v1594
        %1596 = vmatprep.subr.mxu0 0.0
        %1597 = vmatpush1.msra.mxu0 %v587
        %1598 = vmatprep.subr.mxu0 0.0
        %1599 = vmatpush1.msra.mxu0 %v588
        %1600 = vmatprep.subr.mxu0 0.0
        %1601 = vmatpush1.msra.mxu0 0.0
        %1602 = vmatprep.subr.mxu0 0.0
        %1603 = vmatpush1.msra.mxu0 0.0
        %1604 = vmatprep.subr.mxu0 0.0
        %1605 = vmatpush1.msra.mxu0 0.0
        %1606 = vmatprep.subr.mxu0 0.0
        %1607 = vmatpush1.msra.mxu0 0.0
        %1608 = vmatprep.subr.mxu0 0.0
        %1609 = vmatpush1.msra.mxu0 0.0
        %1610 = vmatprep.subr.mxu0 0.0
        %1611 = vmatpush1.msra.mxu0 0.0
        %1612 = vmatprep.subr.mxu0 0.0
        %1613 = vmatpush1.msra.mxu0 0.0
        %1614 = vmatprep.subr.mxu0 0.0
        %1615 = vmatpush1.msra.mxu0 0.0
        %1616 = vmatprep.subr.mxu0 0.0
        %1617 = vmatpush1.msra.mxu0 0.0
        %1618 = vmatprep.subr.mxu0 0.0
        %1619 = vmatpush1.msra.mxu0 0.0
        %1620 = vmatprep.subr.mxu0 0.0
        %1621 = vmatpush1.msra.mxu0 0.0
        %1622 = vmatprep.subr.mxu0 0.0
        %1623 = vmatpush1.msra.mxu0 0.0
        %1624 = vmatprep.subr.mxu0 0.0
        %1625 = vmatpush1.msra.mxu0 0.0
        %1626 = vmatprep.subr.mxu0 0.0
        %1627 = vmatpush1.msra.mxu0 0.0
        %1628 = vmatprep.subr.mxu0 0.0
        %1629 = vmatpush1.msra.mxu0 0.0
        %1630 = vmatprep.subr.mxu0 0.0
        %1631 = vmatpush1.msra.mxu0 0.0
        %1632 = vmatprep.subr.mxu0 0.0
        %1633 = vmatpush1.msra.mxu0 0.0
        %1634 = vmatprep.subr.mxu0 0.0
        %1635 = vmatpush1.msra.mxu0 0.0
        %1636 = vmatprep.subr.mxu0 0.0
        %1637 = vmatpush1.msra.mxu0 0.0
        %1638 = vmatprep.subr.mxu0 0.0
        %1639 = vmatpush1.msra.mxu0 0.0
        %1640 = vmatprep.subr.mxu0 0.0
        %1641 = vmatpush1.msra.mxu0 0.0
        %1642 = vmatprep.subr.mxu0 0.0
        %1643 = vmatpush1.msra.mxu0 0.0
        %1644 = vmatprep.subr.mxu0 0.0
        %1645 = vmatpush1.msra.mxu0 0.0
        %1646 = vmatprep.subr.mxu0 0.0
        %1647 = vmatpush1.msra.mxu0 0.0
        %1648 = vmatprep.subr.mxu0 0.0
        %1649 = vmatpush1.msra.mxu0 0.0
        %1650 = vmatprep.subr.mxu0 0.0
        %1651 = vmatpush1.msra.mxu0 0.0
        %1652 = vmatprep.subr.mxu0 0.0
        %1653 = vmatpush1.msra.mxu0 0.0
        %1654 = vmatprep.subr.mxu0 0.0
        %1655 = vmatpush1.msra.mxu0 0.0
        %1656 = vmatprep.subr.mxu0 0.0
        %1657 = vmatpush1.msra.mxu0 0.0
        %1658 = vmatprep.subr.mxu0 0.0
        %1659 = vmatpush1.msra.mxu0 0.0
        %1660 = vmatprep.mubr.f32.mxu0 0.0
        %1661 = vmatmul.mubr.f32.gmra.mrb[0].mxu0 %v1522
        %v1662 = vpop.f32.mrb[0].mxu0
        %v1663 = vadd.f32 0.0, %v1662
        %v1664 = vpop.f32.mrb[0].mxu0
        %1665 = vdwg.mxu0
        %v1667 = vsel %vm636, %v1595, 0
        %1669 = vmatprep.subr.mxu0 0.0
        %1670 = vmatpush1.msra.mxu0 %v583
        %1671 = vmatprep.subr.mxu0 0.0
        %1672 = vmatpush1.msra.mxu0 %v584
        %1673 = vmatprep.subr.mxu0 0.0
        %1674 = vmatpush1.msra.mxu0 %v585
        %1675 = vmatprep.subr.mxu0 0.0
        %1676 = vmatpush1.msra.mxu0 %v586
        %1677 = vmatprep.subr.mxu0 0.0
        %1678 = vmatpush1.msra.mxu0 0.0
        %1679 = vmatprep.subr.mxu0 0.0
        %1680 = vmatpush1.msra.mxu0 0.0
        %1681 = vmatprep.subr.mxu0 0.0
        %1682 = vmatpush1.msra.mxu0 0.0
        %1683 = vmatprep.subr.mxu0 0.0
        %1684 = vmatpush1.msra.mxu0 0.0
        %1685 = vmatprep.subr.mxu0 0.0
        %1686 = vmatpush1.msra.mxu0 0.0
        %1687 = vmatprep.subr.mxu0 0.0
        %1688 = vmatpush1.msra.mxu0 0.0
        %1689 = vmatprep.subr.mxu0 0.0
        %1690 = vmatpush1.msra.mxu0 0.0
        %1691 = vmatprep.subr.mxu0 0.0
        %1692 = vmatpush1.msra.mxu0 0.0
        %1693 = vmatprep.subr.mxu0 0.0
        %1694 = vmatpush1.msra.mxu0 0.0
        %1695 = vmatprep.subr.mxu0 0.0
        %1696 = vmatpush1.msra.mxu0 0.0
        %1697 = vmatprep.subr.mxu0 0.0
        %1698 = vmatpush1.msra.mxu0 0.0
        %1699 = vmatprep.subr.mxu0 0.0
        %1700 = vmatpush1.msra.mxu0 0.0
        %1701 = vmatprep.subr.mxu0 0.0
        %1702 = vmatpush1.msra.mxu0 0.0
        %1703 = vmatprep.subr.mxu0 0.0
        %1704 = vmatpush1.msra.mxu0 0.0
        %1705 = vmatprep.subr.mxu0 0.0
        %1706 = vmatpush1.msra.mxu0 0.0
        %1707 = vmatprep.subr.mxu0 0.0
        %1708 = vmatpush1.msra.mxu0 0.0
        %1709 = vmatprep.subr.mxu0 0.0
        %1710 = vmatpush1.msra.mxu0 0.0
        %1711 = vmatprep.subr.mxu0 0.0
        %1712 = vmatpush1.msra.mxu0 0.0
        %1713 = vmatprep.subr.mxu0 0.0
        %1714 = vmatpush1.msra.mxu0 0.0
        %1715 = vmatprep.subr.mxu0 0.0
        %1716 = vmatpush1.msra.mxu0 0.0
        %1717 = vmatprep.subr.mxu0 0.0
        %1718 = vmatpush1.msra.mxu0 0.0
        %1719 = vmatprep.subr.mxu0 0.0
        %1720 = vmatpush1.msra.mxu0 0.0
        %1721 = vmatprep.subr.mxu0 0.0
        %1722 = vmatpush1.msra.mxu0 0.0
        %1723 = vmatprep.subr.mxu0 0.0
        %1724 = vmatpush1.msra.mxu0 0.0
        %1725 = vmatprep.subr.mxu0 0.0
        %1726 = vmatpush1.msra.mxu0 0.0
        %1727 = vmatprep.subr.mxu0 0.0
        %1728 = vmatpush1.msra.mxu0 0.0
        %1729 = vmatprep.subr.mxu0 0.0
        %1730 = vmatpush1.msra.mxu0 0.0
        %1731 = vmatprep.subr.mxu0 0.0
        %1732 = vmatpush1.msra.mxu0 0.0
        %1733 = vmatprep.mubr.f32.mxu0 0.0
        %1734 = vmatmul.mubr.f32.gmra.mrb[0].mxu0 %v1667
        %v1735 = vpop.f32.mrb[0].mxu0
        %v1736 = vadd.f32 %v1663, %v1735
        %v1737 = vpop.f32.mrb[0].mxu0
        %1738 = vdwg.mxu0
        %v1739 = vadd.f32 %v1736, %v601
        %v1740 = vmax.f32 %v1739, 0.0
        %v1741 = vld [vmem:[%s9] sm:$0xff]
        %v1742 = vld [vmem:[%s9 + $0x8] sm:$0xff]
        %v1743 = vld [vmem:[%s9 + $0x10] sm:$0xff]
        %v1744 = vld [vmem:[%s9 + $0x18] sm:$0xff]
        %v1746 = vsel %vm636, %v1740, 0
        %1748 = vmatprep.subr.mxu0 0.0
        %1749 = vmatpush1.msra.mxu0 %v1741
        %1750 = vmatprep.subr.mxu0 0.0
        %1751 = vmatpush1.msra.mxu0 %v1742
        %1752 = vmatprep.subr.mxu0 0.0
        %1753 = vmatpush1.msra.mxu0 %v1743
        %1754 = vmatprep.subr.mxu0 0.0
        %1755 = vmatpush1.msra.mxu0 %v1744
        %1756 = vmatprep.subr.mxu0 0.0
        %1757 = vmatpush1.msra.mxu0 0.0
        %1758 = vmatprep.subr.mxu0 0.0
        %1759 = vmatpush1.msra.mxu0 0.0
        %1760 = vmatprep.subr.mxu0 0.0
        %1761 = vmatpush1.msra.mxu0 0.0
        %1762 = vmatprep.subr.mxu0 0.0
        %1763 = vmatpush1.msra.mxu0 0.0
        %1764 = vmatprep.subr.mxu0 0.0
        %1765 = vmatpush1.msra.mxu0 0.0
        %1766 = vmatprep.subr.mxu0 0.0
        %1767 = vmatpush1.msra.mxu0 0.0
        %1768 = vmatprep.subr.mxu0 0.0
        %1769 = vmatpush1.msra.mxu0 0.0
        %1770 = vmatprep.subr.mxu0 0.0
        %1771 = vmatpush1.msra.mxu0 0.0
        %1772 = vmatprep.subr.mxu0 0.0
        %1773 = vmatpush1.msra.mxu0 0.0
        %1774 = vmatprep.subr.mxu0 0.0
        %1775 = vmatpush1.msra.mxu0 0.0
        %1776 = vmatprep.subr.mxu0 0.0
        %1777 = vmatpush1.msra.mxu0 0.0
        %1778 = vmatprep.subr.mxu0 0.0
        %1779 = vmatpush1.msra.mxu0 0.0
        %1780 = vmatprep.subr.mxu0 0.0
        %1781 = vmatpush1.msra.mxu0 0.0
        %1782 = vmatprep.subr.mxu0 0.0
        %1783 = vmatpush1.msra.mxu0 0.0
        %1784 = vmatprep.subr.mxu0 0.0
        %1785 = vmatpush1.msra.mxu0 0.0
        %1786 = vmatprep.subr.mxu0 0.0
        %1787 = vmatpush1.msra.mxu0 0.0
        %1788 = vmatprep.subr.mxu0 0.0
        %1789 = vmatpush1.msra.mxu0 0.0
        %1790 = vmatprep.subr.mxu0 0.0
        %1791 = vmatpush1.msra.mxu0 0.0
        %1792 = vmatprep.subr.mxu0 0.0
        %1793 = vmatpush1.msra.mxu0 0.0
        %1794 = vmatprep.subr.mxu0 0.0
        %1795 = vmatpush1.msra.mxu0 0.0
        %1796 = vmatprep.subr.mxu0 0.0
        %1797 = vmatpush1.msra.mxu0 0.0
        %1798 = vmatprep.subr.mxu0 0.0
        %1799 = vmatpush1.msra.mxu0 0.0
        %1800 = vmatprep.subr.mxu0 0.0
        %1801 = vmatpush1.msra.mxu0 0.0
        %1802 = vmatprep.subr.mxu0 0.0
        %1803 = vmatpush1.msra.mxu0 0.0
        %1804 = vmatprep.subr.mxu0 0.0
        %1805 = vmatpush1.msra.mxu0 0.0
        %1806 = vmatprep.subr.mxu0 0.0
        %1807 = vmatpush1.msra.mxu0 0.0
        %1808 = vmatprep.subr.mxu0 0.0
        %1809 = vmatpush1.msra.mxu0 0.0
        %1810 = vmatprep.subr.mxu0 0.0
        %1811 = vmatpush1.msra.mxu0 0.0
        %1812 = vmatprep.mubr.f32.mxu0 0.0
        %1813 = vmatmul.mubr.f32.gmra.mrb[0].mxu0 %v1746
        %v1814 = vpop.f32.mrb[0].mxu0
        %v1815 = vadd.f32 %v608, %v1814
        %v1816 = vpop.f32.mrb[0].mxu0
        %1817 = vdwg.mxu0
        %v1818 = vmax.f32 %v1815, 0.0
        %v1819 = vld [vmem:[%s10] sm:$0xff]
        %v1820 = vld [vmem:[%s10 + $0x8] sm:$0xff]
        %v1821 = vld [vmem:[%s10 + $0x10] sm:$0xff]
        %v1822 = vld [vmem:[%s10 + $0x18] sm:$0xff]
        %1823 = vrot.lane.b32.xlu0 %v1740, 96
        %v1824 = vpop.permute.xlu0 %1823
        %v1825 = vsel %vm636, %v1824, 0
        %1827 = vmatprep.subr.mxu0 0.0
        %1828 = vmatpush1.msra.mxu0 %v1819
        %1829 = vmatprep.subr.mxu0 0.0
        %1830 = vmatpush1.msra.mxu0 %v1820
        %1831 = vmatprep.subr.mxu0 0.0
        %1832 = vmatpush1.msra.mxu0 %v1821
        %1833 = vmatprep.subr.mxu0 0.0
        %1834 = vmatpush1.msra.mxu0 %v1822
        %1835 = vmatprep.subr.mxu0 0.0
        %1836 = vmatpush1.msra.mxu0 0.0
        %1837 = vmatprep.subr.mxu0 0.0
        %1838 = vmatpush1.msra.mxu0 0.0
        %1839 = vmatprep.subr.mxu0 0.0
        %1840 = vmatpush1.msra.mxu0 0.0
        %1841 = vmatprep.subr.mxu0 0.0
        %1842 = vmatpush1.msra.mxu0 0.0
        %1843 = vmatprep.subr.mxu0 0.0
        %1844 = vmatpush1.msra.mxu0 0.0
        %1845 = vmatprep.subr.mxu0 0.0
        %1846 = vmatpush1.msra.mxu0 0.0
        %1847 = vmatprep.subr.mxu0 0.0
        %1848 = vmatpush1.msra.mxu0 0.0
        %1849 = vmatprep.subr.mxu0 0.0
        %1850 = vmatpush1.msra.mxu0 0.0
        %1851 = vmatprep.subr.mxu0 0.0
        %1852 = vmatpush1.msra.mxu0 0.0
        %1853 = vmatprep.subr.mxu0 0.0
        %1854 = vmatpush1.msra.mxu0 0.0
        %1855 = vmatprep.subr.mxu0 0.0
        %1856 = vmatpush1.msra.mxu0 0.0
        %1857 = vmatprep.subr.mxu0 0.0
        %1858 = vmatpush1.msra.mxu0 0.0
        %1859 = vmatprep.subr.mxu0 0.0
        %1860 = vmatpush1.msra.mxu0 0.0
        %1861 = vmatprep.subr.mxu0 0.0
        %1862 = vmatpush1.msra.mxu0 0.0
        %1863 = vmatprep.subr.mxu0 0.0
        %1864 = vmatpush1.msra.mxu0 0.0
        %1865 = vmatprep.subr.mxu0 0.0
        %1866 = vmatpush1.msra.mxu0 0.0
        %1867 = vmatprep.subr.mxu0 0.0
        %1868 = vmatpush1.msra.mxu0 0.0
        %1869 = vmatprep.subr.mxu0 0.0
        %1870 = vmatpush1.msra.mxu0 0.0
        %1871 = vmatprep.subr.mxu0 0.0
        %1872 = vmatpush1.msra.mxu0 0.0
        %1873 = vmatprep.subr.mxu0 0.0
        %1874 = vmatpush1.msra.mxu0 0.0
        %1875 = vmatprep.subr.mxu0 0.0
        %1876 = vmatpush1.msra.mxu0 0.0
        %1877 = vmatprep.subr.mxu0 0.0
        %1878 = vmatpush1.msra.mxu0 0.0
        %1879 = vmatprep.subr.mxu0 0.0
        %1880 = vmatpush1.msra.mxu0 0.0
        %1881 = vmatprep.subr.mxu0 0.0
        %1882 = vmatpush1.msra.mxu0 0.0
        %1883 = vmatprep.subr.mxu0 0.0
        %1884 = vmatpush1.msra.mxu0 0.0
        %1885 = vmatprep.subr.mxu0 0.0
        %1886 = vmatpush1.msra.mxu0 0.0
        %1887 = vmatprep.subr.mxu0 0.0
        %1888 = vmatpush1.msra.mxu0 0.0
        %1889 = vmatprep.subr.mxu0 0.0
        %1890 = vmatpush1.msra.mxu0 0.0
        %1891 = vmatprep.mubr.f32.mxu0 0.0
        %1892 = vmatmul.mubr.f32.gmra.mrb[0].mxu0 %v1825
        %v1893 = vpop.f32.mrb[0].mxu0
        %v1894 = vadd.f32 %v615, %v1893
        %v1895 = vpop.f32.mrb[0].mxu0
        %1896 = vdwg.mxu0
        %v1897 = vmax.f32 %v1894, 0.0
        %v1898 = vld [vmem:[%s11] sm:$0xff]
        %v1899 = vld [vmem:[%s11 + $0x8] sm:$0xff]
        %v1900 = vld [vmem:[%s11 + $0x10] sm:$0xff]
        %v1901 = vld [vmem:[%s11 + $0x18] sm:$0xff]
        %1902 = vrot.lane.b32.xlu0 %v1740, 64
        %v1903 = vpop.permute.xlu0 %1902
        %v1904 = vsel %vm636, %v1903, 0
        %1906 = vmatprep.subr.mxu0 0.0
        %1907 = vmatpush1.msra.mxu0 %v1898
        %1908 = vmatprep.subr.mxu0 0.0
        %1909 = vmatpush1.msra.mxu0 %v1899
        %1910 = vmatprep.subr.mxu0 0.0
        %1911 = vmatpush1.msra.mxu0 %v1900
        %1912 = vmatprep.subr.mxu0 0.0
        %1913 = vmatpush1.msra.mxu0 %v1901
        %1914 = vmatprep.subr.mxu0 0.0
        %1915 = vmatpush1.msra.mxu0 0.0
        %1916 = vmatprep.subr.mxu0 0.0
        %1917 = vmatpush1.msra.mxu0 0.0
        %1918 = vmatprep.subr.mxu0 0.0
        %1919 = vmatpush1.msra.mxu0 0.0
        %1920 = vmatprep.subr.mxu0 0.0
        %1921 = vmatpush1.msra.mxu0 0.0
        %1922 = vmatprep.subr.mxu0 0.0
        %1923 = vmatpush1.msra.mxu0 0.0
        %1924 = vmatprep.subr.mxu0 0.0
        %1925 = vmatpush1.msra.mxu0 0.0
        %1926 = vmatprep.subr.mxu0 0.0
        %1927 = vmatpush1.msra.mxu0 0.0
        %1928 = vmatprep.subr.mxu0 0.0
        %1929 = vmatpush1.msra.mxu0 0.0
        %1930 = vmatprep.subr.mxu0 0.0
        %1931 = vmatpush1.msra.mxu0 0.0
        %1932 = vmatprep.subr.mxu0 0.0
        %1933 = vmatpush1.msra.mxu0 0.0
        %1934 = vmatprep.subr.mxu0 0.0
        %1935 = vmatpush1.msra.mxu0 0.0
        %1936 = vmatprep.subr.mxu0 0.0
        %1937 = vmatpush1.msra.mxu0 0.0
        %1938 = vmatprep.subr.mxu0 0.0
        %1939 = vmatpush1.msra.mxu0 0.0
        %1940 = vmatprep.subr.mxu0 0.0
        %1941 = vmatpush1.msra.mxu0 0.0
        %1942 = vmatprep.subr.mxu0 0.0
        %1943 = vmatpush1.msra.mxu0 0.0
        %1944 = vmatprep.subr.mxu0 0.0
        %1945 = vmatpush1.msra.mxu0 0.0
        %1946 = vmatprep.subr.mxu0 0.0
        %1947 = vmatpush1.msra.mxu0 0.0
        %1948 = vmatprep.subr.mxu0 0.0
        %1949 = vmatpush1.msra.mxu0 0.0
        %1950 = vmatprep.subr.mxu0 0.0
        %1951 = vmatpush1.msra.mxu0 0.0
        %1952 = vmatprep.subr.mxu0 0.0
        %1953 = vmatpush1.msra.mxu0 0.0
        %1954 = vmatprep.subr.mxu0 0.0
        %1955 = vmatpush1.msra.mxu0 0.0
        %1956 = vmatprep.subr.mxu0 0.0
        %1957 = vmatpush1.msra.mxu0 0.0
        %1958 = vmatprep.subr.mxu0 0.0
        %1959 = vmatpush1.msra.mxu0 0.0
        %1960 = vmatprep.subr.mxu0 0.0
        %1961 = vmatpush1.msra.mxu0 0.0
        %1962 = vmatprep.subr.mxu0 0.0
        %1963 = vmatpush1.msra.mxu0 0.0
        %1964 = vmatprep.subr.mxu0 0.0
        %1965 = vmatpush1.msra.mxu0 0.0
        %1966 = vmatprep.subr.mxu0 0.0
        %1967 = vmatpush1.msra.mxu0 0.0
        %1968 = vmatprep.subr.mxu0 0.0
        %1969 = vmatpush1.msra.mxu0 0.0
        %1970 = vmatprep.mubr.f32.mxu0 0.0
        %1971 = vmatmul.mubr.f32.gmra.mrb[0].mxu0 %v1904
        %v1972 = vpop.f32.mrb[0].mxu0
        %v1973 = vadd.f32 %v622, %v1972
        %v1974 = vpop.f32.mrb[0].mxu0
        %1975 = vdwg.mxu0
        %v1976 = vmax.f32 %v1973, 0.0
        %v1977 = vld [vmem:[%s13] sm:$0xff]
        %v1978 = vld [vmem:[%s13 + $0x8] sm:$0xff]
        %v1979 = vld [vmem:[%s13 + $0x10] sm:$0xff]
        %v1980 = vld [vmem:[%s13 + $0x18] sm:$0xff]
        %v1981 = vld [vmem:[%s13 + $0x20] sm:$0xff]
        %v1982 = vld [vmem:[%s13 + $0x28] sm:$0xff]
        %v1983 = vld [vmem:[%s13 + $0x30] sm:$0xff]
        %v1984 = vld [vmem:[%s13 + $0x38] sm:$0xff]
        %v1985 = vld [vmem:[%s13 + $0x40] sm:$0xff]
        %v1986 = vld [vmem:[%s13 + $0x48] sm:$0xff]
        %v1987 = vld [vmem:[%s13 + $0x50] sm:$0xff]
        %v1988 = vld [vmem:[%s13 + $0x58] sm:$0xff]
        %v1989 = vld [vmem:[%s13 + $0x60] sm:$0xff]
        %v1990 = vld [vmem:[%s13 + $0x68] sm:$0xff]
        %v1991 = vld [vmem:[%s13 + $0x70] sm:$0xff]
        %v1992 = vld [vmem:[%s13 + $0x78] sm:$0xff]
        %v1993 = vld [vmem:[%s13 + $0x80] sm:$0xff]
        %v1994 = vld [vmem:[%s13 + $0x88] sm:$0xff]
        %v1995 = vld [vmem:[%s13 + $0x90] sm:$0xff]
        %v1996 = vld [vmem:[%s13 + $0x98] sm:$0xff]
        %v1997 = vld [vmem:[%s13 + $0xa0] sm:$0xff]
        %v1998 = vld [vmem:[%s13 + $0xa8] sm:$0xff]
        %v1999 = vld [vmem:[%s13 + $0xb0] sm:$0xff]
        %v2000 = vld [vmem:[%s13 + $0xb8] sm:$0xff]
        %v2001 = vld [vmem:[%s13 + $0xc0] sm:$0xff]
        %v2002 = vld [vmem:[%s13 + $0xc8] sm:$0xff]
        %v2003 = vld [vmem:[%s13 + $0xd0] sm:$0xff]
        %v2004 = vld [vmem:[%s13 + $0xd8] sm:$0xff]
        %v2005 = vld [vmem:[%s13 + $0xe0] sm:$0xff]
        %v2006 = vld [vmem:[%s13 + $0xe8] sm:$0xff]
        %v2007 = vld [vmem:[%s13 + $0xf0] sm:$0xff]
        %v2008 = vld [vmem:[%s13 + $0xf8] sm:$0xff]
        %v2009 = vld [vmem:[%s13 + $0x100] sm:$0xff]
        %v2010 = vld [vmem:[%s13 + $0x108] sm:$0xff]
        %v2011 = vld [vmem:[%s13 + $0x110] sm:$0xff]
        %v2012 = vld [vmem:[%s13 + $0x118] sm:$0xff]
        %v2013 = vld [vmem:[%s13 + $0x120] sm:$0xff]
        %v2014 = vld [vmem:[%s13 + $0x128] sm:$0xff]
        %v2015 = vld [vmem:[%s13 + $0x130] sm:$0xff]
        %v2016 = vld [vmem:[%s13 + $0x138] sm:$0xff]
        %v2017 = vld [vmem:[%s13 + $0x140] sm:$0xff]
        %v2018 = vld [vmem:[%s13 + $0x148] sm:$0xff]
        %v2019 = vld [vmem:[%s13 + $0x150] sm:$0xff]
        %v2020 = vld [vmem:[%s13 + $0x158] sm:$0xff]
        %v2021 = vld [vmem:[%s13 + $0x160] sm:$0xff]
        %v2022 = vld [vmem:[%s13 + $0x168] sm:$0xff]
        %v2023 = vld [vmem:[%s13 + $0x170] sm:$0xff]
        %v2024 = vld [vmem:[%s13 + $0x178] sm:$0xff]
        %2025 = vmatprep.subr.mxu0 0.0
        %2026 = vmatpush1.msra.mxu0 %v1977
        %2027 = vmatprep.subr.mxu0 0.0
        %2028 = vmatpush1.msra.mxu0 %v1978
        %2029 = vmatprep.subr.mxu0 0.0
        %2030 = vmatpush1.msra.mxu0 %v1979
        %2031 = vmatprep.subr.mxu0 0.0
        %2032 = vmatpush1.msra.mxu0 %v1980
        %2033 = vmatprep.subr.mxu0 0.0
        %2034 = vmatpush1.msra.mxu0 %v1981
        %2035 = vmatprep.subr.mxu0 0.0
        %2036 = vmatpush1.msra.mxu0 %v1982
        %2037 = vmatprep.subr.mxu0 0.0
        %2038 = vmatpush1.msra.mxu0 %v1983
        %2039 = vmatprep.subr.mxu0 0.0
        %2040 = vmatpush1.msra.mxu0 %v1984
        %2041 = vmatprep.subr.mxu0 0.0
        %2042 = vmatpush1.msra.mxu0 %v1985
        %2043 = vmatprep.subr.mxu0 0.0
        %2044 = vmatpush1.msra.mxu0 %v1986
        %2045 = vmatprep.subr.mxu0 0.0
        %2046 = vmatpush1.msra.mxu0 %v1987
        %2047 = vmatprep.subr.mxu0 0.0
        %2048 = vmatpush1.msra.mxu0 %v1988
        %2049 = vmatprep.subr.mxu0 0.0
        %2050 = vmatpush1.msra.mxu0 %v1989
        %2051 = vmatprep.subr.mxu0 0.0
        %2052 = vmatpush1.msra.mxu0 %v1990
        %2053 = vmatprep.subr.mxu0 0.0
        %2054 = vmatpush1.msra.mxu0 %v1991
        %2055 = vmatprep.subr.mxu0 0.0
        %2056 = vmatpush1.msra.mxu0 %v1992
        %2057 = vmatprep.subr.mxu0 0.0
        %2058 = vmatpush1.msra.mxu0 %v1993
        %2059 = vmatprep.subr.mxu0 0.0
        %2060 = vmatpush1.msra.mxu0 %v1994
        %2061 = vmatprep.subr.mxu0 0.0
        %2062 = vmatpush1.msra.mxu0 %v1995
        %2063 = vmatprep.subr.mxu0 0.0
        %2064 = vmatpush1.msra.mxu0 %v1996
        %2065 = vmatprep.subr.mxu0 0.0
        %2066 = vmatpush1.msra.mxu0 %v1997
        %2067 = vmatprep.subr.mxu0 0.0
        %2068 = vmatpush1.msra.mxu0 %v1998
        %2069 = vmatprep.subr.mxu0 0.0
        %2070 = vmatpush1.msra.mxu0 %v1999
        %2071 = vmatprep.subr.mxu0 0.0
        %2072 = vmatpush1.msra.mxu0 %v2000
        %2073 = vmatprep.subr.mxu0 0.0
        %2074 = vmatpush1.msra.mxu0 %v2001
        %2075 = vmatprep.subr.mxu0 0.0
        %2076 = vmatpush1.msra.mxu0 %v2002
        %2077 = vmatprep.subr.mxu0 0.0
        %2078 = vmatpush1.msra.mxu0 %v2003
        %2079 = vmatprep.subr.mxu0 0.0
        %2080 = vmatpush1.msra.mxu0 %v2004
        %2081 = vmatprep.subr.mxu0 0.0
        %2082 = vmatpush1.msra.mxu0 %v2005
        %2083 = vmatprep.subr.mxu0 0.0
        %2084 = vmatpush1.msra.mxu0 %v2006
        %2085 = vmatprep.subr.mxu0 0.0
        %2086 = vmatpush1.msra.mxu0 %v2007
        %2087 = vmatprep.subr.mxu0 0.0
        %2088 = vmatpush1.msra.mxu0 %v2008
        %2089 = vmatprep.mubr.f32.mxu0 %v1897
        %2090 = vmatmul.mubr.f32.gmra.mrb[0].mxu0 %v1818
        %v2091 = vpop.f32.mrb[0].mxu0
        %v2092 = vadd.f32 %v629, %v2091
        %v2093 = vpop.f32.mrb[0].mxu0
        %2094 = vdwg.mxu0
        %2095 = vmatprep.subr.mxu0 0.0
        %2096 = vmatpush1.msra.mxu0 %v2009
        %2097 = vmatprep.subr.mxu0 0.0
        %2098 = vmatpush1.msra.mxu0 %v2010
        %2099 = vmatprep.subr.mxu0 0.0
        %2100 = vmatpush1.msra.mxu0 %v2011
        %2101 = vmatprep.subr.mxu0 0.0
        %2102 = vmatpush1.msra.mxu0 %v2012
        %2103 = vmatprep.subr.mxu0 0.0
        %2104 = vmatpush1.msra.mxu0 %v2013
        %2105 = vmatprep.subr.mxu0 0.0
        %2106 = vmatpush1.msra.mxu0 %v2014
        %2107 = vmatprep.subr.mxu0 0.0
        %2108 = vmatpush1.msra.mxu0 %v2015
        %2109 = vmatprep.subr.mxu0 0.0
        %2110 = vmatpush1.msra.mxu0 %v2016
        %2111 = vmatprep.subr.mxu0 0.0
        %2112 = vmatpush1.msra.mxu0 %v2017
        %2113 = vmatprep.subr.mxu0 0.0
        %2114 = vmatpush1.msra.mxu0 %v2018
        %2115 = vmatprep.subr.mxu0 0.0
        %2116 = vmatpush1.msra.mxu0 %v2019
        %2117 = vmatprep.subr.mxu0 0.0
        %2118 = vmatpush1.msra.mxu0 %v2020
        %2119 = vmatprep.subr.mxu0 0.0
        %2120 = vmatpush1.msra.mxu0 %v2021
        %2121 = vmatprep.subr.mxu0 0.0
        %2122 = vmatpush1.msra.mxu0 %v2022
        %2123 = vmatprep.subr.mxu0 0.0
        %2124 = vmatpush1.msra.mxu0 %v2023
        %2125 = vmatprep.subr.mxu0 0.0
        %2126 = vmatpush1.msra.mxu0 %v2024
        %2127 = vmatprep.subr.mxu0 0.0
        %2128 = vmatpush1.msra.mxu0 0.0
        %2129 = vmatprep.subr.mxu0 0.0
        %2130 = vmatpush1.msra.mxu0 0.0
        %2131 = vmatprep.subr.mxu0 0.0
        %2132 = vmatpush1.msra.mxu0 0.0
        %2133 = vmatprep.subr.mxu0 0.0
        %2134 = vmatpush1.msra.mxu0 0.0
        %2135 = vmatprep.subr.mxu0 0.0
        %2136 = vmatpush1.msra.mxu0 0.0
        %2137 = vmatprep.subr.mxu0 0.0
        %2138 = vmatpush1.msra.mxu0 0.0
        %2139 = vmatprep.subr.mxu0 0.0
        %2140 = vmatpush1.msra.mxu0 0.0
        %2141 = vmatprep.subr.mxu0 0.0
        %2142 = vmatpush1.msra.mxu0 0.0
        %2143 = vmatprep.subr.mxu0 0.0
        %2144 = vmatpush1.msra.mxu0 0.0
        %2145 = vmatprep.subr.mxu0 0.0
        %2146 = vmatpush1.msra.mxu0 0.0
        %2147 = vmatprep.subr.mxu0 0.0
        %2148 = vmatpush1.msra.mxu0 0.0
        %2149 = vmatprep.subr.mxu0 0.0
        %2150 = vmatpush1.msra.mxu0 0.0
        %2151 = vmatprep.subr.mxu0 0.0
        %2152 = vmatpush1.msra.mxu0 0.0
        %2153 = vmatprep.subr.mxu0 0.0
        %2154 = vmatpush1.msra.mxu0 0.0
        %2155 = vmatprep.subr.mxu0 0.0
        %2156 = vmatpush1.msra.mxu0 0.0
        %2157 = vmatprep.subr.mxu0 0.0
        %2158 = vmatpush1.msra.mxu0 0.0
        %2159 = vmatprep.mubr.f32.mxu0 0.0
        %2160 = vmatmul.mubr.f32.gmra.mrb[0].mxu0 %v1976
        %v2161 = vpop.f32.mrb[0].mxu0
        %v2162 = vadd.f32 %v2092, %v2161
        %v2163 = vpop.f32.mrb[0].mxu0
        %2164 = vdwg.mxu0
        %v2165 = vxor.u32 %v2162, 2147483648
        %v2166 = vmul.f32 %v2165, 1.442695
        %v2167 = vpow.pop %v2166
        %v2168 = vadd.f32 %v2167, 1.0
        %v2169 = vrcp.pop %v2168
        %v2170 = vmul.f32 1.0, %v2169
        %v2171 = vsel %vm1361, %v2162, -inf
        %2172 = vmax.xlane.f32.xlu0 %v2171
        %v2173 = vpop.xlane.xlu0 %2172
        %v2174 = vsub.f32 %v2162, %v2173
        %v2175 = vmul.f32 %v2174, 1.442695
        %v2176 = vpow.pop %v2175
        %2178 = vrot.lane.b32.xlu0 %v2176, 120
        %v2179 = vpop.permute.xlu0 %2178
        %v2181 = vsel %vm1372, %v2179, 0.0
        %2182 = vadd.xlane.f32.xlu0 %v2181
        %v2183 = vpop.xlane.xlu0 %2182
        %v2184 = vrcp.pop %v2183
        %v2185 = vmul.f32 %v2176, %v2184
        %vm2186 = vcmp.lt.f32.partialorder %v1450, %v2170
        %v2187 = vsel %vm2186, 1, 0
        %v2188 = vcvt.s32.f32 %v2187
        %2189 = vrot.lane.b32.xlu0 %v2176, 127
        %v2190 = vpop.permute.xlu0 %2189
        %v2192 = vadd.f32 %v2176, %v2190
        %2193 = vrot.lane.b32.xlu0 %v2176, 126
        %v2194 = vpop.permute.xlu0 %2193
        %v2196 = vadd.f32 %v2192, %v2194
        %v2197 = vmul.f32 %v1450, %v2183
        %vm2198 = vcmp.ge.f32.partialorder %v2197, %v2176
        %v2199 = vsel %vm2198, 1, 0
        %vm2200 = vcmp.ge.f32.partialorder %v2197, %v2192
        %v2201 = vsel %vm2200, 1, 0
        %v2202 = vadd.s32 %v2199, %v2201
        %vm2203 = vcmp.ge.f32.partialorder %v2197, %v2196
        %v2204 = vsel %vm2203, 1, 0
        %v2205 = vadd.s32 %v2202, %v2204
        %vm2206 = vcmp.lt.s32.totalorder %v2205, 3
        %v2207 = vsel %vm2206, %v2205, 3
        %2208 = vset.pattern.permute.xlu0 8
        %2209 = vperm.xlu0 %2208, %v2207
        %v2210 = vpop.permute.xlu0 %2209
        %vm2211 = vcmp.eq.s32.totalorder %v632, %v2210
        %v2212 = vsel %vm2211, 1, 0
        %v2213 = vcvt.s32.f32 %v2212
        %2215 = vrot.lane.b32.xlu0 %v2170, 125
        %v2216 = vpop.permute.xlu0 %2215
        %vm2218 = vcmp.lt.f32.partialorder %v1450, %v2216
        %v2219 = vsel %vm2218, 1, 0
        %v2220 = vcvt.s32.f32 %v2219
        %2222 = vrot.lane.b32.xlu0 %v2220, 4
        %v2223 = vpop.permute.xlu0 %2222
        %2226 = vrot.lane.b32.xlu0 %v2188, 14
        %v2227 = vpop.permute.xlu0 %2226
        %2230 = vrot.lane.b32.xlu0 %v2213, 22
        %v2231 = vpop.permute.xlu0 %2230
        %2233 = vrot.lane.b32.xlu0 %v1595, 26
        %v2234 = vpop.permute.xlu0 %2233
        %v2236 = vsel %vm1428, %v2170, %v2185
        %v2237 = vsel %vm1430, %v2236, %v2170
        %v2238 = vsel %vm1432, %v2237, %v2223
        %v2239 = vsel %vm1434, %v2238, %v2227
        %v2240 = vsel %vm1436, %v2239, %v2231
        %v2241 = vsel %vm1438, %v2240, %v2234
        %v2242 = vsel %vm1440, %v2241, 0.0
        %s2243 = scalar_lea.vmem %s568, 8 [#allocation3]
        %2244 = vst.msk [vmem:[%s2243] sm:$0xff] %vm1442, %v2242
        %2245 = vrot.lane.b32.xlu0 %v2188, 4
        %v2246 = vpop.permute.xlu0 %2245
        %v2248 = vsel %vm1372, %v2213, %v2246
        %v2249 = vsel %vm1430, %v2248, 0.0
        %s2250 = scalar_lea.vmem %s517, 16 [#allocation2]
        %v2251 = vld [vmem:[%s2250] sm:$0xff]
        %2252 = vmatprep.subr.mxu0 0.0
        %2253 = vmatpush1.msra.mxu0 %v579
        %2254 = vmatprep.subr.mxu0 0.0
        %2255 = vmatpush1.msra.mxu0 %v580
        %2256 = vmatprep.subr.mxu0 0.0
        %2257 = vmatpush1.msra.mxu0 %v581
        %2258 = vmatprep.subr.mxu0 0.0
        %2259 = vmatpush1.msra.mxu0 %v582
        %2260 = vmatprep.subr.mxu0 0.0
        %2261 = vmatpush1.msra.mxu0 0.0
        %2262 = vmatprep.subr.mxu0 0.0
        %2263 = vmatpush1.msra.mxu0 0.0
        %2264 = vmatprep.subr.mxu0 0.0
        %2265 = vmatpush1.msra.mxu0 0.0
        %2266 = vmatprep.subr.mxu0 0.0
        %2267 = vmatpush1.msra.mxu0 0.0
        %2268 = vmatprep.subr.mxu0 0.0
        %2269 = vmatpush1.msra.mxu0 0.0
        %2270 = vmatprep.subr.mxu0 0.0
        %2271 = vmatpush1.msra.mxu0 0.0
        %2272 = vmatprep.subr.mxu0 0.0
        %2273 = vmatpush1.msra.mxu0 0.0
        %2274 = vmatprep.subr.mxu0 0.0
        %2275 = vmatpush1.msra.mxu0 0.0
        %2276 = vmatprep.subr.mxu0 0.0
        %2277 = vmatpush1.msra.mxu0 0.0
        %2278 = vmatprep.subr.mxu0 0.0
        %2279 = vmatpush1.msra.mxu0 0.0
        %2280 = vmatprep.subr.mxu0 0.0
        %2281 = vmatpush1.msra.mxu0 0.0
        %2282 = vmatprep.subr.mxu0 0.0
        %2283 = vmatpush1.msra.mxu0 0.0
        %2284 = vmatprep.subr.mxu0 0.0
        %2285 = vmatpush1.msra.mxu0 0.0
        %2286 = vmatprep.subr.mxu0 0.0
        %2287 = vmatpush1.msra.mxu0 0.0
        %2288 = vmatprep.subr.mxu0 0.0
        %2289 = vmatpush1.msra.mxu0 0.0
        %2290 = vmatprep.subr.mxu0 0.0
        %2291 = vmatpush1.msra.mxu0 0.0
        %2292 = vmatprep.subr.mxu0 0.0
        %2293 = vmatpush1.msra.mxu0 0.0
        %2294 = vmatprep.subr.mxu0 0.0
        %2295 = vmatpush1.msra.mxu0 0.0
        %2296 = vmatprep.subr.mxu0 0.0
        %2297 = vmatpush1.msra.mxu0 0.0
        %2298 = vmatprep.subr.mxu0 0.0
        %2299 = vmatpush1.msra.mxu0 0.0
        %2300 = vmatprep.subr.mxu0 0.0
        %2301 = vmatpush1.msra.mxu0 0.0
        %2302 = vmatprep.subr.mxu0 0.0
        %2303 = vmatpush1.msra.mxu0 0.0
        %2304 = vmatprep.subr.mxu0 0.0
        %2305 = vmatpush1.msra.mxu0 0.0
        %2306 = vmatprep.subr.mxu0 0.0
        %2307 = vmatpush1.msra.mxu0 0.0
        %2308 = vmatprep.subr.mxu0 0.0
        %2309 = vmatpush1.msra.mxu0 0.0
        %2310 = vmatprep.subr.mxu0 0.0
        %2311 = vmatpush1.msra.mxu0 0.0
        %2312 = vmatprep.subr.mxu0 0.0
        %2313 = vmatpush1.msra.mxu0 0.0
        %2314 = vmatprep.subr.mxu0 0.0
        %2315 = vmatpush1.msra.mxu0 0.0
        %2316 = vmatprep.mubr.f32.mxu0 0.0
        %2317 = vmatmul.mubr.f32.gmra.mrb[0].mxu0 %v1667
        %v2318 = vpop.f32.mrb[0].mxu0
        %v2319 = vadd.f32 0.0, %v2318
        %v2320 = vpop.f32.mrb[0].mxu0
        %2321 = vdwg.mxu0
        %v2323 = vsel %vm710, %v2249, 0
        %2325 = vmatprep.subr.mxu0 0.0
        %2326 = vmatpush1.msra.mxu0 %v577
        %2327 = vmatprep.subr.mxu0 0.0
        %2328 = vmatpush1.msra.mxu0 %v578
        %2329 = vmatprep.subr.mxu0 0.0
        %2330 = vmatpush1.msra.mxu0 0.0
        %2331 = vmatprep.subr.mxu0 0.0
        %2332 = vmatpush1.msra.mxu0 0.0
        %2333 = vmatprep.subr.mxu0 0.0
        %2334 = vmatpush1.msra.mxu0 0.0
        %2335 = vmatprep.subr.mxu0 0.0
        %2336 = vmatpush1.msra.mxu0 0.0
        %2337 = vmatprep.subr.mxu0 0.0
        %2338 = vmatpush1.msra.mxu0 0.0
        %2339 = vmatprep.subr.mxu0 0.0
        %2340 = vmatpush1.msra.mxu0 0.0
        %2341 = vmatprep.subr.mxu0 0.0
        %2342 = vmatpush1.msra.mxu0 0.0
        %2343 = vmatprep.subr.mxu0 0.0
        %2344 = vmatpush1.msra.mxu0 0.0
        %2345 = vmatprep.subr.mxu0 0.0
        %2346 = vmatpush1.msra.mxu0 0.0
        %2347 = vmatprep.subr.mxu0 0.0
        %2348 = vmatpush1.msra.mxu0 0.0
        %2349 = vmatprep.subr.mxu0 0.0
        %2350 = vmatpush1.msra.mxu0 0.0
        %2351 = vmatprep.subr.mxu0 0.0
        %2352 = vmatpush1.msra.mxu0 0.0
        %2353 = vmatprep.subr.mxu0 0.0
        %2354 = vmatpush1.msra.mxu0 0.0
        %2355 = vmatprep.subr.mxu0 0.0
        %2356 = vmatpush1.msra.mxu0 0.0
        %2357 = vmatprep.subr.mxu0 0.0
        %2358 = vmatpush1.msra.mxu0 0.0
        %2359 = vmatprep.subr.mxu0 0.0
        %2360 = vmatpush1.msra.mxu0 0.0
        %2361 = vmatprep.subr.mxu0 0.0
        %2362 = vmatpush1.msra.mxu0 0.0
        %2363 = vmatprep.subr.mxu0 0.0
        %2364 = vmatpush1.msra.mxu0 0.0
        %2365 = vmatprep.subr.mxu0 0.0
        %2366 = vmatpush1.msra.mxu0 0.0
        %2367 = vmatprep.subr.mxu0 0.0
        %2368 = vmatpush1.msra.mxu0 0.0
        %2369 = vmatprep.subr.mxu0 0.0
        %2370 = vmatpush1.msra.mxu0 0.0
        %2371 = vmatprep.subr.mxu0 0.0
        %2372 = vmatpush1.msra.mxu0 0.0
        %2373 = vmatprep.subr.mxu0 0.0
        %2374 = vmatpush1.msra.mxu0 0.0
        %2375 = vmatprep.subr.mxu0 0.0
        %2376 = vmatpush1.msra.mxu0 0.0
        %2377 = vmatprep.subr.mxu0 0.0
        %2378 = vmatpush1.msra.mxu0 0.0
        %2379 = vmatprep.subr.mxu0 0.0
        %2380 = vmatpush1.msra.mxu0 0.0
        %2381 = vmatprep.subr.mxu0 0.0
        %2382 = vmatpush1.msra.mxu0 0.0
        %2383 = vmatprep.subr.mxu0 0.0
        %2384 = vmatpush1.msra.mxu0 0.0
        %2385 = vmatprep.subr.mxu0 0.0
        %2386 = vmatpush1.msra.mxu0 0.0
        %2387 = vmatprep.subr.mxu0 0.0
        %2388 = vmatpush1.msra.mxu0 0.0
        %2389 = vmatprep.mubr.f32.mxu0 0.0
        %2390 = vmatmul.mubr.f32.gmra.mrb[0].mxu0 %v2323
        %v2391 = vpop.f32.mrb[0].mxu0
        %v2392 = vadd.f32 %v2319, %v2391
        %v2393 = vpop.f32.mrb[0].mxu0
        %2394 = vdwg.mxu0
        %v2395 = vadd.f32 %v2392, %v594
        %v2396 = vtanh.pop %v2395
        %2397 = vmatprep.subr.mxu0 0.0
        %2398 = vmatpush1.msra.mxu0 %v587
        %2399 = vmatprep.subr.mxu0 0.0
        %2400 = vmatpush1.msra.mxu0 %v588
        %2401 = vmatprep.subr.mxu0 0.0
        %2402 = vmatpush1.msra.mxu0 0.0
        %2403 = vmatprep.subr.mxu0 0.0
        %2404 = vmatpush1.msra.mxu0 0.0
        %2405 = vmatprep.subr.mxu0 0.0
        %2406 = vmatpush1.msra.mxu0 0.0
        %2407 = vmatprep.subr.mxu0 0.0
        %2408 = vmatpush1.msra.mxu0 0.0
        %2409 = vmatprep.subr.mxu0 0.0
        %2410 = vmatpush1.msra.mxu0 0.0
        %2411 = vmatprep.subr.mxu0 0.0
        %2412 = vmatpush1.msra.mxu0 0.0
        %2413 = vmatprep.subr.mxu0 0.0
        %2414 = vmatpush1.msra.mxu0 0.0
        %2415 = vmatprep.subr.mxu0 0.0
        %2416 = vmatpush1.msra.mxu0 0.0
        %2417 = vmatprep.subr.mxu0 0.0
        %2418 = vmatpush1.msra.mxu0 0.0
        %2419 = vmatprep.subr.mxu0 0.0
        %2420 = vmatpush1.msra.mxu0 0.0
        %2421 = vmatprep.subr.mxu0 0.0
        %2422 = vmatpush1.msra.mxu0 0.0
        %2423 = vmatprep.subr.mxu0 0.0
        %2424 = vmatpush1.msra.mxu0 0.0
        %2425 = vmatprep.subr.mxu0 0.0
        %2426 = vmatpush1.msra.mxu0 0.0
        %2427 = vmatprep.subr.mxu0 0.0
        %2428 = vmatpush1.msra.mxu0 0.0
        %2429 = vmatprep.subr.mxu0 0.0
        %2430 = vmatpush1.msra.mxu0 0.0
        %2431 = vmatprep.subr.mxu0 0.0
        %2432 = vmatpush1.msra.mxu0 0.0
        %2433 = vmatprep.subr.mxu0 0.0
        %2434 = vmatpush1.msra.mxu0 0.0
        %2435 = vmatprep.subr.mxu0 0.0
        %2436 = vmatpush1.msra.mxu0 0.0
        %2437 = vmatprep.subr.mxu0 0.0
        %2438 = vmatpush1.msra.mxu0 0.0
        %2439 = vmatprep.subr.mxu0 0.0
        %2440 = vmatpush1.msra.mxu0 0.0
        %2441 = vmatprep.subr.mxu0 0.0
        %2442 = vmatpush1.msra.mxu0 0.0
        %2443 = vmatprep.subr.mxu0 0.0
        %2444 = vmatpush1.msra.mxu0 0.0
        %2445 = vmatprep.subr.mxu0 0.0
        %2446 = vmatpush1.msra.mxu0 0.0
        %2447 = vmatprep.subr.mxu0 0.0
        %2448 = vmatpush1.msra.mxu0 0.0
        %2449 = vmatprep.subr.mxu0 0.0
        %2450 = vmatpush1.msra.mxu0 0.0
        %2451 = vmatprep.subr.mxu0 0.0
        %2452 = vmatpush1.msra.mxu0 0.0
        %2453 = vmatprep.subr.mxu0 0.0
        %2454 = vmatpush1.msra.mxu0 0.0
        %2455 = vmatprep.subr.mxu0 0.0
        %2456 = vmatpush1.msra.mxu0 0.0
        %2457 = vmatprep.subr.mxu0 0.0
        %2458 = vmatpush1.msra.mxu0 0.0
        %2459 = vmatprep.subr.mxu0 0.0
        %2460 = vmatpush1.msra.mxu0 0.0
        %2461 = vmatprep.mubr.f32.mxu0 0.0
        %2462 = vmatmul.mubr.f32.gmra.mrb[0].mxu0 %v2323
        %v2463 = vpop.f32.mrb[0].mxu0
        %v2464 = vadd.f32 0.0, %v2463
        %v2465 = vpop.f32.mrb[0].mxu0
        %2466 = vdwg.mxu0
        %v2468 = vsel %vm636, %v2396, 0
        %2470 = vmatprep.subr.mxu0 0.0
        %2471 = vmatpush1.msra.mxu0 %v583
        %2472 = vmatprep.subr.mxu0 0.0
        %2473 = vmatpush1.msra.mxu0 %v584
        %2474 = vmatprep.subr.mxu0 0.0
        %2475 = vmatpush1.msra.mxu0 %v585
        %2476 = vmatprep.subr.mxu0 0.0
        %2477 = vmatpush1.msra.mxu0 %v586
        %2478 = vmatprep.subr.mxu0 0.0
        %2479 = vmatpush1.msra.mxu0 0.0
        %2480 = vmatprep.subr.mxu0 0.0
        %2481 = vmatpush1.msra.mxu0 0.0
        %2482 = vmatprep.subr.mxu0 0.0
        %2483 = vmatpush1.msra.mxu0 0.0
        %2484 = vmatprep.subr.mxu0 0.0
        %2485 = vmatpush1.msra.mxu0 0.0
        %2486 = vmatprep.subr.mxu0 0.0
        %2487 = vmatpush1.msra.mxu0 0.0
        %2488 = vmatprep.subr.mxu0 0.0
        %2489 = vmatpush1.msra.mxu0 0.0
        %2490 = vmatprep.subr.mxu0 0.0
        %2491 = vmatpush1.msra.mxu0 0.0
        %2492 = vmatprep.subr.mxu0 0.0
        %2493 = vmatpush1.msra.mxu0 0.0
        %2494 = vmatprep.subr.mxu0 0.0
        %2495 = vmatpush1.msra.mxu0 0.0
        %2496 = vmatprep.subr.mxu0 0.0
        %2497 = vmatpush1.msra.mxu0 0.0
        %2498 = vmatprep.subr.mxu0 0.0
        %2499 = vmatpush1.msra.mxu0 0.0
        %2500 = vmatprep.subr.mxu0 0.0
        %2501 = vmatpush1.msra.mxu0 0.0
        %2502 = vmatprep.subr.mxu0 0.0
        %2503 = vmatpush1.msra.mxu0 0.0
        %2504 = vmatprep.subr.mxu0 0.0
        %2505 = vmatpush1.msra.mxu0 0.0
        %2506 = vmatprep.subr.mxu0 0.0
        %2507 = vmatpush1.msra.mxu0 0.0
        %2508 = vmatprep.subr.mxu0 0.0
        %2509 = vmatpush1.msra.mxu0 0.0
        %2510 = vmatprep.subr.mxu0 0.0
        %2511 = vmatpush1.msra.mxu0 0.0
        %2512 = vmatprep.subr.mxu0 0.0
        %2513 = vmatpush1.msra.mxu0 0.0
        %2514 = vmatprep.subr.mxu0 0.0
        %2515 = vmatpush1.msra.mxu0 0.0
        %2516 = vmatprep.subr.mxu0 0.0
        %2517 = vmatpush1.msra.mxu0 0.0
        %2518 = vmatprep.subr.mxu0 0.0
        %2519 = vmatpush1.msra.mxu0 0.0
        %2520 = vmatprep.subr.mxu0 0.0
        %2521 = vmatpush1.msra.mxu0 0.0
        %2522 = vmatprep.subr.mxu0 0.0
        %2523 = vmatpush1.msra.mxu0 0.0
        %2524 = vmatprep.subr.mxu0 0.0
        %2525 = vmatpush1.msra.mxu0 0.0
        %2526 = vmatprep.subr.mxu0 0.0
        %2527 = vmatpush1.msra.mxu0 0.0
        %2528 = vmatprep.subr.mxu0 0.0
        %2529 = vmatpush1.msra.mxu0 0.0
        %2530 = vmatprep.subr.mxu0 0.0
        %2531 = vmatpush1.msra.mxu0 0.0
        %2532 = vmatprep.subr.mxu0 0.0
        %2533 = vmatpush1.msra.mxu0 0.0
        %2534 = vmatprep.mubr.f32.mxu0 0.0
        %2535 = vmatmul.mubr.f32.gmra.mrb[0].mxu0 %v2468
        %v2536 = vpop.f32.mrb[0].mxu0
        %v2537 = vadd.f32 %v2464, %v2536
        %v2538 = vpop.f32.mrb[0].mxu0
        %2539 = vdwg.mxu0
        %v2540 = vadd.f32 %v2537, %v601
        %v2541 = vmax.f32 %v2540, 0.0
        %v2542 = vld [vmem:[%s9] sm:$0xff]
        %v2543 = vld [vmem:[%s9 + $0x8] sm:$0xff]
        %v2544 = vld [vmem:[%s9 + $0x10] sm:$0xff]
        %v2545 = vld [vmem:[%s9 + $0x18] sm:$0xff]
        %v2547 = vsel %vm636, %v2541, 0
        %2549 = vmatprep.subr.mxu0 0.0
        %2550 = vmatpush1.msra.mxu0 %v2542
        %2551 = vmatprep.subr.mxu0 0.0
        %2552 = vmatpush1.msra.mxu0 %v2543
        %2553 = vmatprep.subr.mxu0 0.0
        %2554 = vmatpush1.msra.mxu0 %v2544
        %2555 = vmatprep.subr.mxu0 0.0
        %2556 = vmatpush1.msra.mxu0 %v2545
        %2557 = vmatprep.subr.mxu0 0.0
        %2558 = vmatpush1.msra.mxu0 0.0
        %2559 = vmatprep.subr.mxu0 0.0
        %2560 = vmatpush1.msra.mxu0 0.0
        %2561 = vmatprep.subr.mxu0 0.0
        %2562 = vmatpush1.msra.mxu0 0.0
        %2563 = vmatprep.subr.mxu0 0.0
        %2564 = vmatpush1.msra.mxu0 0.0
        %2565 = vmatprep.subr.mxu0 0.0
        %2566 = vmatpush1.msra.mxu0 0.0
        %2567 = vmatprep.subr.mxu0 0.0
        %2568 = vmatpush1.msra.mxu0 0.0
        %2569 = vmatprep.subr.mxu0 0.0
        %2570 = vmatpush1.msra.mxu0 0.0
        %2571 = vmatprep.subr.mxu0 0.0
        %2572 = vmatpush1.msra.mxu0 0.0
        %2573 = vmatprep.subr.mxu0 0.0
        %2574 = vmatpush1.msra.mxu0 0.0
        %2575 = vmatprep.subr.mxu0 0.0
        %2576 = vmatpush1.msra.mxu0 0.0
        %2577 = vmatprep.subr.mxu0 0.0
        %2578 = vmatpush1.msra.mxu0 0.0
        %2579 = vmatprep.subr.mxu0 0.0
        %2580 = vmatpush1.msra.mxu0 0.0
        %2581 = vmatprep.subr.mxu0 0.0
        %2582 = vmatpush1.msra.mxu0 0.0
        %2583 = vmatprep.subr.mxu0 0.0
        %2584 = vmatpush1.msra.mxu0 0.0
        %2585 = vmatprep.subr.mxu0 0.0
        %2586 = vmatpush1.msra.mxu0 0.0
        %2587 = vmatprep.subr.mxu0 0.0
        %2588 = vmatpush1.msra.mxu0 0.0
        %2589 = vmatprep.subr.mxu0 0.0
        %2590 = vmatpush1.msra.mxu0 0.0
        %2591 = vmatprep.subr.mxu0 0.0
        %2592 = vmatpush1.msra.mxu0 0.0
        %2593 = vmatprep.subr.mxu0 0.0
        %2594 = vmatpush1.msra.mxu0 0.0
        %2595 = vmatprep.subr.mxu0 0.0
        %2596 = vmatpush1.msra.mxu0 0.0
        %2597 = vmatprep.subr.mxu0 0.0
        %2598 = vmatpush1.msra.mxu0 0.0
        %2599 = vmatprep.subr.mxu0 0.0
        %2600 = vmatpush1.msra.mxu0 0.0
        %2601 = vmatprep.subr.mxu0 0.0
        %2602 = vmatpush1.msra.mxu0 0.0
        %2603 = vmatprep.subr.mxu0 0.0
        %2604 = vmatpush1.msra.mxu0 0.0
        %2605 = vmatprep.subr.mxu0 0.0
        %2606 = vmatpush1.msra.mxu0 0.0
        %2607 = vmatprep.subr.mxu0 0.0
        %2608 = vmatpush1.msra.mxu0 0.0
        %2609 = vmatprep.subr.mxu0 0.0
        %2610 = vmatpush1.msra.mxu0 0.0
        %2611 = vmatprep.subr.mxu0 0.0
        %2612 = vmatpush1.msra.mxu0 0.0
        %2613 = vmatprep.mubr.f32.mxu0 0.0
        %2614 = vmatmul.mubr.f32.gmra.mrb[0].mxu0 %v2547
        %v2615 = vpop.f32.mrb[0].mxu0
        %v2616 = vadd.f32 %v608, %v2615
        %v2617 = vpop.f32.mrb[0].mxu0
        %2618 = vdwg.mxu0
        %v2619 = vmax.f32 %v2616, 0.0
        %v2620 = vld [vmem:[%s10] sm:$0xff]
        %v2621 = vld [vmem:[%s10 + $0x8] sm:$0xff]
        %v2622 = vld [vmem:[%s10 + $0x10] sm:$0xff]
        %v2623 = vld [vmem:[%s10 + $0x18] sm:$0xff]
        %2624 = vrot.lane.b32.xlu0 %v2541, 96
        %v2625 = vpop.permute.xlu0 %2624
        %v2626 = vsel %vm636, %v2625, 0
        %2628 = vmatprep.subr.mxu0 0.0
        %2629 = vmatpush1.msra.mxu0 %v2620
        %2630 = vmatprep.subr.mxu0 0.0
        %2631 = vmatpush1.msra.mxu0 %v2621
        %2632 = vmatprep.subr.mxu0 0.0
        %2633 = vmatpush1.msra.mxu0 %v2622
        %2634 = vmatprep.subr.mxu0 0.0
        %2635 = vmatpush1.msra.mxu0 %v2623
        %2636 = vmatprep.subr.mxu0 0.0
        %2637 = vmatpush1.msra.mxu0 0.0
        %2638 = vmatprep.subr.mxu0 0.0
        %2639 = vmatpush1.msra.mxu0 0.0
        %2640 = vmatprep.subr.mxu0 0.0
        %2641 = vmatpush1.msra.mxu0 0.0
        %2642 = vmatprep.subr.mxu0 0.0
        %2643 = vmatpush1.msra.mxu0 0.0
        %2644 = vmatprep.subr.mxu0 0.0
        %2645 = vmatpush1.msra.mxu0 0.0
        %2646 = vmatprep.subr.mxu0 0.0
        %2647 = vmatpush1.msra.mxu0 0.0
        %2648 = vmatprep.subr.mxu0 0.0
        %2649 = vmatpush1.msra.mxu0 0.0
        %2650 = vmatprep.subr.mxu0 0.0
        %2651 = vmatpush1.msra.mxu0 0.0
        %2652 = vmatprep.subr.mxu0 0.0
        %2653 = vmatpush1.msra.mxu0 0.0
        %2654 = vmatprep.subr.mxu0 0.0
        %2655 = vmatpush1.msra.mxu0 0.0
        %2656 = vmatprep.subr.mxu0 0.0
        %2657 = vmatpush1.msra.mxu0 0.0
        %2658 = vmatprep.subr.mxu0 0.0
        %2659 = vmatpush1.msra.mxu0 0.0
        %2660 = vmatprep.subr.mxu0 0.0
        %2661 = vmatpush1.msra.mxu0 0.0
        %2662 = vmatprep.subr.mxu0 0.0
        %2663 = vmatpush1.msra.mxu0 0.0
        %2664 = vmatprep.subr.mxu0 0.0
        %2665 = vmatpush1.msra.mxu0 0.0
        %2666 = vmatprep.subr.mxu0 0.0
        %2667 = vmatpush1.msra.mxu0 0.0
        %2668 = vmatprep.subr.mxu0 0.0
        %2669 = vmatpush1.msra.mxu0 0.0
        %2670 = vmatprep.subr.mxu0 0.0
        %2671 = vmatpush1.msra.mxu0 0.0
        %2672 = vmatprep.subr.mxu0 0.0
        %2673 = vmatpush1.msra.mxu0 0.0
        %2674 = vmatprep.subr.mxu0 0.0
        %2675 = vmatpush1.msra.mxu0 0.0
        %2676 = vmatprep.subr.mxu0 0.0
        %2677 = vmatpush1.msra.mxu0 0.0
        %2678 = vmatprep.subr.mxu0 0.0
        %2679 = vmatpush1.msra.mxu0 0.0
        %2680 = vmatprep.subr.mxu0 0.0
        %2681 = vmatpush1.msra.mxu0 0.0
        %2682 = vmatprep.subr.mxu0 0.0
        %2683 = vmatpush1.msra.mxu0 0.0
        %2684 = vmatprep.subr.mxu0 0.0
        %2685 = vmatpush1.msra.mxu0 0.0
        %2686 = vmatprep.subr.mxu0 0.0
        %2687 = vmatpush1.msra.mxu0 0.0
        %2688 = vmatprep.subr.mxu0 0.0
        %2689 = vmatpush1.msra.mxu0 0.0
        %2690 = vmatprep.subr.mxu0 0.0
        %2691 = vmatpush1.msra.mxu0 0.0
        %2692 = vmatprep.mubr.f32.mxu0 0.0
        %2693 = vmatmul.mubr.f32.gmra.mrb[0].mxu0 %v2626
        %v2694 = vpop.f32.mrb[0].mxu0
        %v2695 = vadd.f32 %v615, %v2694
        %v2696 = vpop.f32.mrb[0].mxu0
        %2697 = vdwg.mxu0
        %v2698 = vmax.f32 %v2695, 0.0
        %v2699 = vld [vmem:[%s11] sm:$0xff]
        %v2700 = vld [vmem:[%s11 + $0x8] sm:$0xff]
        %v2701 = vld [vmem:[%s11 + $0x10] sm:$0xff]
        %v2702 = vld [vmem:[%s11 + $0x18] sm:$0xff]
        %2703 = vrot.lane.b32.xlu0 %v2541, 64
        %v2704 = vpop.permute.xlu0 %2703
        %v2705 = vsel %vm636, %v2704, 0
        %2707 = vmatprep.subr.mxu0 0.0
        %2708 = vmatpush1.msra.mxu0 %v2699
        %2709 = vmatprep.subr.mxu0 0.0
        %2710 = vmatpush1.msra.mxu0 %v2700
        %2711 = vmatprep.subr.mxu0 0.0
        %2712 = vmatpush1.msra.mxu0 %v2701
        %2713 = vmatprep.subr.mxu0 0.0
        %2714 = vmatpush1.msra.mxu0 %v2702
        %2715 = vmatprep.subr.mxu0 0.0
        %2716 = vmatpush1.msra.mxu0 0.0
        %2717 = vmatprep.subr.mxu0 0.0
        %2718 = vmatpush1.msra.mxu0 0.0
        %2719 = vmatprep.subr.mxu0 0.0
        %2720 = vmatpush1.msra.mxu0 0.0
        %2721 = vmatprep.subr.mxu0 0.0
        %2722 = vmatpush1.msra.mxu0 0.0
        %2723 = vmatprep.subr.mxu0 0.0
        %2724 = vmatpush1.msra.mxu0 0.0
        %2725 = vmatprep.subr.mxu0 0.0
        %2726 = vmatpush1.msra.mxu0 0.0
        %2727 = vmatprep.subr.mxu0 0.0
        %2728 = vmatpush1.msra.mxu0 0.0
        %2729 = vmatprep.subr.mxu0 0.0
        %2730 = vmatpush1.msra.mxu0 0.0
        %2731 = vmatprep.subr.mxu0 0.0
        %2732 = vmatpush1.msra.mxu0 0.0
        %2733 = vmatprep.subr.mxu0 0.0
        %2734 = vmatpush1.msra.mxu0 0.0
        %2735 = vmatprep.subr.mxu0 0.0
        %2736 = vmatpush1.msra.mxu0 0.0
        %2737 = vmatprep.subr.mxu0 0.0
        %2738 = vmatpush1.msra.mxu0 0.0
        %2739 = vmatprep.subr.mxu0 0.0
        %2740 = vmatpush1.msra.mxu0 0.0
        %2741 = vmatprep.subr.mxu0 0.0
        %2742 = vmatpush1.msra.mxu0 0.0
        %2743 = vmatprep.subr.mxu0 0.0
        %2744 = vmatpush1.msra.mxu0 0.0
        %2745 = vmatprep.subr.mxu0 0.0
        %2746 = vmatpush1.msra.mxu0 0.0
        %2747 = vmatprep.subr.mxu0 0.0
        %2748 = vmatpush1.msra.mxu0 0.0
        %2749 = vmatprep.subr.mxu0 0.0
        %2750 = vmatpush1.msra.mxu0 0.0
        %2751 = vmatprep.subr.mxu0 0.0
        %2752 = vmatpush1.msra.mxu0 0.0
        %2753 = vmatprep.subr.mxu0 0.0
        %2754 = vmatpush1.msra.mxu0 0.0
        %2755 = vmatprep.subr.mxu0 0.0
        %2756 = vmatpush1.msra.mxu0 0.0
        %2757 = vmatprep.subr.mxu0 0.0
        %2758 = vmatpush1.msra.mxu0 0.0
        %2759 = vmatprep.subr.mxu0 0.0
        %2760 = vmatpush1.msra.mxu0 0.0
        %2761 = vmatprep.subr.mxu0 0.0
        %2762 = vmatpush1.msra.mxu0 0.0
        %2763 = vmatprep.subr.mxu0 0.0
        %2764 = vmatpush1.msra.mxu0 0.0
        %2765 = vmatprep.subr.mxu0 0.0
        %2766 = vmatpush1.msra.mxu0 0.0
        %2767 = vmatprep.subr.mxu0 0.0
        %2768 = vmatpush1.msra.mxu0 0.0
        %2769 = vmatprep.subr.mxu0 0.0
        %2770 = vmatpush1.msra.mxu0 0.0
        %2771 = vmatprep.mubr.f32.mxu0 0.0
        %2772 = vmatmul.mubr.f32.gmra.mrb[0].mxu0 %v2705
        %v2773 = vpop.f32.mrb[0].mxu0
        %v2774 = vadd.f32 %v622, %v2773
        %v2775 = vpop.f32.mrb[0].mxu0
        %2776 = vdwg.mxu0
        %v2777 = vmax.f32 %v2774, 0.0
        %v2778 = vld [vmem:[%s13] sm:$0xff]
        %v2779 = vld [vmem:[%s13 + $0x8] sm:$0xff]
        %v2780 = vld [vmem:[%s13 + $0x10] sm:$0xff]
        %v2781 = vld [vmem:[%s13 + $0x18] sm:$0xff]
        %v2782 = vld [vmem:[%s13 + $0x20] sm:$0xff]
        %v2783 = vld [vmem:[%s13 + $0x28] sm:$0xff]
        %v2784 = vld [vmem:[%s13 + $0x30] sm:$0xff]
        %v2785 = vld [vmem:[%s13 + $0x38] sm:$0xff]
        %v2786 = vld [vmem:[%s13 + $0x40] sm:$0xff]
        %v2787 = vld [vmem:[%s13 + $0x48] sm:$0xff]
        %v2788 = vld [vmem:[%s13 + $0x50] sm:$0xff]
        %v2789 = vld [vmem:[%s13 + $0x58] sm:$0xff]
        %v2790 = vld [vmem:[%s13 + $0x60] sm:$0xff]
        %v2791 = vld [vmem:[%s13 + $0x68] sm:$0xff]
        %v2792 = vld [vmem:[%s13 + $0x70] sm:$0xff]
        %v2793 = vld [vmem:[%s13 + $0x78] sm:$0xff]
        %v2794 = vld [vmem:[%s13 + $0x80] sm:$0xff]
        %v2795 = vld [vmem:[%s13 + $0x88] sm:$0xff]
        %v2796 = vld [vmem:[%s13 + $0x90] sm:$0xff]
        %v2797 = vld [vmem:[%s13 + $0x98] sm:$0xff]
        %v2798 = vld [vmem:[%s13 + $0xa0] sm:$0xff]
        %v2799 = vld [vmem:[%s13 + $0xa8] sm:$0xff]
        %v2800 = vld [vmem:[%s13 + $0xb0] sm:$0xff]
        %v2801 = vld [vmem:[%s13 + $0xb8] sm:$0xff]
        %v2802 = vld [vmem:[%s13 + $0xc0] sm:$0xff]
        %v2803 = vld [vmem:[%s13 + $0xc8] sm:$0xff]
        %v2804 = vld [vmem:[%s13 + $0xd0] sm:$0xff]
        %v2805 = vld [vmem:[%s13 + $0xd8] sm:$0xff]
        %v2806 = vld [vmem:[%s13 + $0xe0] sm:$0xff]
        %v2807 = vld [vmem:[%s13 + $0xe8] sm:$0xff]
        %v2808 = vld [vmem:[%s13 + $0xf0] sm:$0xff]
        %v2809 = vld [vmem:[%s13 + $0xf8] sm:$0xff]
        %v2810 = vld [vmem:[%s13 + $0x100] sm:$0xff]
        %v2811 = vld [vmem:[%s13 + $0x108] sm:$0xff]
        %v2812 = vld [vmem:[%s13 + $0x110] sm:$0xff]
        %v2813 = vld [vmem:[%s13 + $0x118] sm:$0xff]
        %v2814 = vld [vmem:[%s13 + $0x120] sm:$0xff]
        %v2815 = vld [vmem:[%s13 + $0x128] sm:$0xff]
        %v2816 = vld [vmem:[%s13 + $0x130] sm:$0xff]
        %v2817 = vld [vmem:[%s13 + $0x138] sm:$0xff]
        %v2818 = vld [vmem:[%s13 + $0x140] sm:$0xff]
        %v2819 = vld [vmem:[%s13 + $0x148] sm:$0xff]
        %v2820 = vld [vmem:[%s13 + $0x150] sm:$0xff]
        %v2821 = vld [vmem:[%s13 + $0x158] sm:$0xff]
        %v2822 = vld [vmem:[%s13 + $0x160] sm:$0xff]
        %v2823 = vld [vmem:[%s13 + $0x168] sm:$0xff]
        %v2824 = vld [vmem:[%s13 + $0x170] sm:$0xff]
        %v2825 = vld [vmem:[%s13 + $0x178] sm:$0xff]
        %2826 = vmatprep.subr.mxu0 0.0
        %2827 = vmatpush1.msra.mxu0 %v2778
        %2828 = vmatprep.subr.mxu0 0.0
        %2829 = vmatpush1.msra.mxu0 %v2779
        %2830 = vmatprep.subr.mxu0 0.0
        %2831 = vmatpush1.msra.mxu0 %v2780
        %2832 = vmatprep.subr.mxu0 0.0
        %2833 = vmatpush1.msra.mxu0 %v2781
        %2834 = vmatprep.subr.mxu0 0.0
        %2835 = vmatpush1.msra.mxu0 %v2782
        %2836 = vmatprep.subr.mxu0 0.0
        %2837 = vmatpush1.msra.mxu0 %v2783
        %2838 = vmatprep.subr.mxu0 0.0
        %2839 = vmatpush1.msra.mxu0 %v2784
        %2840 = vmatprep.subr.mxu0 0.0
        %2841 = vmatpush1.msra.mxu0 %v2785
        %2842 = vmatprep.subr.mxu0 0.0
        %2843 = vmatpush1.msra.mxu0 %v2786
        %2844 = vmatprep.subr.mxu0 0.0
        %2845 = vmatpush1.msra.mxu0 %v2787
        %2846 = vmatprep.subr.mxu0 0.0
        %2847 = vmatpush1.msra.mxu0 %v2788
        %2848 = vmatprep.subr.mxu0 0.0
        %2849 = vmatpush1.msra.mxu0 %v2789
        %2850 = vmatprep.subr.mxu0 0.0
        %2851 = vmatpush1.msra.mxu0 %v2790
        %2852 = vmatprep.subr.mxu0 0.0
        %2853 = vmatpush1.msra.mxu0 %v2791
        %2854 = vmatprep.subr.mxu0 0.0
        %2855 = vmatpush1.msra.mxu0 %v2792
        %2856 = vmatprep.subr.mxu0 0.0
        %2857 = vmatpush1.msra.mxu0 %v2793
        %2858 = vmatprep.subr.mxu0 0.0
        %2859 = vmatpush1.msra.mxu0 %v2794
        %2860 = vmatprep.subr.mxu0 0.0
        %2861 = vmatpush1.msra.mxu0 %v2795
        %2862 = vmatprep.subr.mxu0 0.0
        %2863 = vmatpush1.msra.mxu0 %v2796
        %2864 = vmatprep.subr.mxu0 0.0
        %2865 = vmatpush1.msra.mxu0 %v2797
        %2866 = vmatprep.subr.mxu0 0.0
        %2867 = vmatpush1.msra.mxu0 %v2798
        %2868 = vmatprep.subr.mxu0 0.0
        %2869 = vmatpush1.msra.mxu0 %v2799
        %2870 = vmatprep.subr.mxu0 0.0
        %2871 = vmatpush1.msra.mxu0 %v2800
        %2872 = vmatprep.subr.mxu0 0.0
        %2873 = vmatpush1.msra.mxu0 %v2801
        %2874 = vmatprep.subr.mxu0 0.0
        %2875 = vmatpush1.msra.mxu0 %v2802
        %2876 = vmatprep.subr.mxu0 0.0
        %2877 = vmatpush1.msra.mxu0 %v2803
        %2878 = vmatprep.subr.mxu0 0.0
        %2879 = vmatpush1.msra.mxu0 %v2804
        %2880 = vmatprep.subr.mxu0 0.0
        %2881 = vmatpush1.msra.mxu0 %v2805
        %2882 = vmatprep.subr.mxu0 0.0
        %2883 = vmatpush1.msra.mxu0 %v2806
        %2884 = vmatprep.subr.mxu0 0.0
        %2885 = vmatpush1.msra.mxu0 %v2807
        %2886 = vmatprep.subr.mxu0 0.0
        %2887 = vmatpush1.msra.mxu0 %v2808
        %2888 = vmatprep.subr.mxu0 0.0
        %2889 = vmatpush1.msra.mxu0 %v2809
        %2890 = vmatprep.mubr.f32.mxu0 %v2698
        %2891 = vmatmul.mubr.f32.gmra.mrb[0].mxu0 %v2619
        %v2892 = vpop.f32.mrb[0].mxu0
        %v2893 = vadd.f32 %v629, %v2892
        %v2894 = vpop.f32.mrb[0].mxu0
        %2895 = vdwg.mxu0
        %2896 = vmatprep.subr.mxu0 0.0
        %2897 = vmatpush1.msra.mxu0 %v2810
        %2898 = vmatprep.subr.mxu0 0.0
        %2899 = vmatpush1.msra.mxu0 %v2811
        %2900 = vmatprep.subr.mxu0 0.0
        %2901 = vmatpush1.msra.mxu0 %v2812
        %2902 = vmatprep.subr.mxu0 0.0
        %2903 = vmatpush1.msra.mxu0 %v2813
        %2904 = vmatprep.subr.mxu0 0.0
        %2905 = vmatpush1.msra.mxu0 %v2814
        %2906 = vmatprep.subr.mxu0 0.0
        %2907 = vmatpush1.msra.mxu0 %v2815
        %2908 = vmatprep.subr.mxu0 0.0
        %2909 = vmatpush1.msra.mxu0 %v2816
        %2910 = vmatprep.subr.mxu0 0.0
        %2911 = vmatpush1.msra.mxu0 %v2817
        %2912 = vmatprep.subr.mxu0 0.0
        %2913 = vmatpush1.msra.mxu0 %v2818
        %2914 = vmatprep.subr.mxu0 0.0
        %2915 = vmatpush1.msra.mxu0 %v2819
        %2916 = vmatprep.subr.mxu0 0.0
        %2917 = vmatpush1.msra.mxu0 %v2820
        %2918 = vmatprep.subr.mxu0 0.0
        %2919 = vmatpush1.msra.mxu0 %v2821
        %2920 = vmatprep.subr.mxu0 0.0
        %2921 = vmatpush1.msra.mxu0 %v2822
        %2922 = vmatprep.subr.mxu0 0.0
        %2923 = vmatpush1.msra.mxu0 %v2823
        %2924 = vmatprep.subr.mxu0 0.0
        %2925 = vmatpush1.msra.mxu0 %v2824
        %2926 = vmatprep.subr.mxu0 0.0
        %2927 = vmatpush1.msra.mxu0 %v2825
        %2928 = vmatprep.subr.mxu0 0.0
        %2929 = vmatpush1.msra.mxu0 0.0
        %2930 = vmatprep.subr.mxu0 0.0
        %2931 = vmatpush1.msra.mxu0 0.0
        %2932 = vmatprep.subr.mxu0 0.0
        %2933 = vmatpush1.msra.mxu0 0.0
        %2934 = vmatprep.subr.mxu0 0.0
        %2935 = vmatpush1.msra.mxu0 0.0
        %2936 = vmatprep.subr.mxu0 0.0
        %2937 = vmatpush1.msra.mxu0 0.0
        %2938 = vmatprep.subr.mxu0 0.0
        %2939 = vmatpush1.msra.mxu0 0.0
        %2940 = vmatprep.subr.mxu0 0.0
        %2941 = vmatpush1.msra.mxu0 0.0
        %2942 = vmatprep.subr.mxu0 0.0
        %2943 = vmatpush1.msra.mxu0 0.0
        %2944 = vmatprep.subr.mxu0 0.0
        %2945 = vmatpush1.msra.mxu0 0.0
        %2946 = vmatprep.subr.mxu0 0.0
        %2947 = vmatpush1.msra.mxu0 0.0
        %2948 = vmatprep.subr.mxu0 0.0
        %2949 = vmatpush1.msra.mxu0 0.0
        %2950 = vmatprep.subr.mxu0 0.0
        %2951 = vmatpush1.msra.mxu0 0.0
        %2952 = vmatprep.subr.mxu0 0.0
        %2953 = vmatpush1.msra.mxu0 0.0
        %2954 = vmatprep.subr.mxu0 0.0
        %2955 = vmatpush1.msra.mxu0 0.0
        %2956 = vmatprep.subr.mxu0 0.0
        %2957 = vmatpush1.msra.mxu0 0.0
        %2958 = vmatprep.subr.mxu0 0.0
        %2959 = vmatpush1.msra.mxu0 0.0
        %2960 = vmatprep.mubr.f32.mxu0 0.0
        %2961 = vmatmul.mubr.f32.gmra.mrb[0].mxu0 %v2777
        %v2962 = vpop.f32.mrb[0].mxu0
        %v2963 = vadd.f32 %v2893, %v2962
        %v2964 = vpop.f32.mrb[0].mxu0
        %2965 = vdwg.mxu0
        %v2966 = vxor.u32 %v2963, 2147483648
        %v2967 = vmul.f32 %v2966, 1.442695
        %v2968 = vpow.pop %v2967
        %v2969 = vadd.f32 %v2968, 1.0
        %v2970 = vrcp.pop %v2969
        %v2971 = vmul.f32 1.0, %v2970
        %v2972 = vsel %vm1361, %v2963, -inf
        %2973 = vmax.xlane.f32.xlu0 %v2972
        %v2974 = vpop.xlane.xlu0 %2973
        %v2975 = vsub.f32 %v2963, %v2974
        %v2976 = vmul.f32 %v2975, 1.442695
        %v2977 = vpow.pop %v2976
        %2979 = vrot.lane.b32.xlu0 %v2977, 120
        %v2980 = vpop.permute.xlu0 %2979
        %v2982 = vsel %vm1372, %v2980, 0.0
        %2983 = vadd.xlane.f32.xlu0 %v2982
        %v2984 = vpop.xlane.xlu0 %2983
        %v2985 = vrcp.pop %v2984
        %v2986 = vmul.f32 %v2977, %v2985
        %vm2987 = vcmp.lt.f32.partialorder %v2251, %v2971
        %v2988 = vsel %vm2987, 1, 0
        %v2989 = vcvt.s32.f32 %v2988
        %2990 = vrot.lane.b32.xlu0 %v2977, 127
        %v2991 = vpop.permute.xlu0 %2990
        %v2993 = vadd.f32 %v2977, %v2991
        %2994 = vrot.lane.b32.xlu0 %v2977, 126
        %v2995 = vpop.permute.xlu0 %2994
        %v2997 = vadd.f32 %v2993, %v2995
        %v2998 = vmul.f32 %v2251, %v2984
        %vm2999 = vcmp.ge.f32.partialorder %v2998, %v2977
        %v3000 = vsel %vm2999, 1, 0
        %vm3001 = vcmp.ge.f32.partialorder %v2998, %v2993
        %v3002 = vsel %vm3001, 1, 0
        %v3003 = vadd.s32 %v3000, %v3002
        %vm3004 = vcmp.ge.f32.partialorder %v2998, %v2997
        %v3005 = vsel %vm3004, 1, 0
        %v3006 = vadd.s32 %v3003, %v3005
        %vm3007 = vcmp.lt.s32.totalorder %v3006, 3
        %v3008 = vsel %vm3007, %v3006, 3
        %3009 = vset.pattern.permute.xlu0 8
        %3010 = vperm.xlu0 %3009, %v3008
        %v3011 = vpop.permute.xlu0 %3010
        %vm3012 = vcmp.eq.s32.totalorder %v632, %v3011
        %v3013 = vsel %vm3012, 1, 0
        %v3014 = vcvt.s32.f32 %v3013
        %3016 = vrot.lane.b32.xlu0 %v2971, 125
        %v3017 = vpop.permute.xlu0 %3016
        %vm3019 = vcmp.lt.f32.partialorder %v2251, %v3017
        %v3020 = vsel %vm3019, 1, 0
        %v3021 = vcvt.s32.f32 %v3020
        %3023 = vrot.lane.b32.xlu0 %v3021, 4
        %v3024 = vpop.permute.xlu0 %3023
        %3027 = vrot.lane.b32.xlu0 %v2989, 14
        %v3028 = vpop.permute.xlu0 %3027
        %3031 = vrot.lane.b32.xlu0 %v3014, 22
        %v3032 = vpop.permute.xlu0 %3031
        %3034 = vrot.lane.b32.xlu0 %v2396, 26
        %v3035 = vpop.permute.xlu0 %3034
        %v3037 = vsel %vm1428, %v2971, %v2986
        %v3038 = vsel %vm1430, %v3037, %v2971
        %v3039 = vsel %vm1432, %v3038, %v3024
        %v3040 = vsel %vm1434, %v3039, %v3028
        %v3041 = vsel %vm1436, %v3040, %v3032
        %v3042 = vsel %vm1438, %v3041, %v3035
        %v3043 = vsel %vm1440, %v3042, 0.0
        %s3044 = scalar_lea.vmem %s568, 16 [#allocation3]
        %3045 = vst.msk [vmem:[%s3044] sm:$0xff] %vm1442, %v3043
        %3046 = vrot.lane.b32.xlu0 %v2989, 4
        %v3047 = vpop.permute.xlu0 %3046
        %v3049 = vsel %vm1372, %v3014, %v3047
        %v3050 = vsel %vm1430, %v3049, 0.0
        %s3051 = scalar_lea.vmem %s517, 24 [#allocation2]
        %v3052 = vld [vmem:[%s3051] sm:$0xff]
        %3053 = vmatprep.subr.mxu0 0.0
        %3054 = vmatpush1.msra.mxu0 %v579
        %3055 = vmatprep.subr.mxu0 0.0
        %3056 = vmatpush1.msra.mxu0 %v580
        %3057 = vmatprep.subr.mxu0 0.0
        %3058 = vmatpush1.msra.mxu0 %v581
        %3059 = vmatprep.subr.mxu0 0.0
        %3060 = vmatpush1.msra.mxu0 %v582
        %3061 = vmatprep.subr.mxu0 0.0
        %3062 = vmatpush1.msra.mxu0 0.0
        %3063 = vmatprep.subr.mxu0 0.0
        %3064 = vmatpush1.msra.mxu0 0.0
        %3065 = vmatprep.subr.mxu0 0.0
        %3066 = vmatpush1.msra.mxu0 0.0
        %3067 = vmatprep.subr.mxu0 0.0
        %3068 = vmatpush1.msra.mxu0 0.0
        %3069 = vmatprep.subr.mxu0 0.0
        %3070 = vmatpush1.msra.mxu0 0.0
        %3071 = vmatprep.subr.mxu0 0.0
        %3072 = vmatpush1.msra.mxu0 0.0
        %3073 = vmatprep.subr.mxu0 0.0
        %3074 = vmatpush1.msra.mxu0 0.0
        %3075 = vmatprep.subr.mxu0 0.0
        %3076 = vmatpush1.msra.mxu0 0.0
        %3077 = vmatprep.subr.mxu0 0.0
        %3078 = vmatpush1.msra.mxu0 0.0
        %3079 = vmatprep.subr.mxu0 0.0
        %3080 = vmatpush1.msra.mxu0 0.0
        %3081 = vmatprep.subr.mxu0 0.0
        %3082 = vmatpush1.msra.mxu0 0.0
        %3083 = vmatprep.subr.mxu0 0.0
        %3084 = vmatpush1.msra.mxu0 0.0
        %3085 = vmatprep.subr.mxu0 0.0
        %3086 = vmatpush1.msra.mxu0 0.0
        %3087 = vmatprep.subr.mxu0 0.0
        %3088 = vmatpush1.msra.mxu0 0.0
        %3089 = vmatprep.subr.mxu0 0.0
        %3090 = vmatpush1.msra.mxu0 0.0
        %3091 = vmatprep.subr.mxu0 0.0
        %3092 = vmatpush1.msra.mxu0 0.0
        %3093 = vmatprep.subr.mxu0 0.0
        %3094 = vmatpush1.msra.mxu0 0.0
        %3095 = vmatprep.subr.mxu0 0.0
        %3096 = vmatpush1.msra.mxu0 0.0
        %3097 = vmatprep.subr.mxu0 0.0
        %3098 = vmatpush1.msra.mxu0 0.0
        %3099 = vmatprep.subr.mxu0 0.0
        %3100 = vmatpush1.msra.mxu0 0.0
        %3101 = vmatprep.subr.mxu0 0.0
        %3102 = vmatpush1.msra.mxu0 0.0
        %3103 = vmatprep.subr.mxu0 0.0
        %3104 = vmatpush1.msra.mxu0 0.0
        %3105 = vmatprep.subr.mxu0 0.0
        %3106 = vmatpush1.msra.mxu0 0.0
        %3107 = vmatprep.subr.mxu0 0.0
        %3108 = vmatpush1.msra.mxu0 0.0
        %3109 = vmatprep.subr.mxu0 0.0
        %3110 = vmatpush1.msra.mxu0 0.0
        %3111 = vmatprep.subr.mxu0 0.0
        %3112 = vmatpush1.msra.mxu0 0.0
        %3113 = vmatprep.subr.mxu0 0.0
        %3114 = vmatpush1.msra.mxu0 0.0
        %3115 = vmatprep.subr.mxu0 0.0
        %3116 = vmatpush1.msra.mxu0 0.0
        %3117 = vmatprep.mubr.f32.mxu0 0.0
        %3118 = vmatmul.mubr.f32.gmra.mrb[0].mxu0 %v2468
        %v3119 = vpop.f32.mrb[0].mxu0
        %v3120 = vadd.f32 0.0, %v3119
        %v3121 = vpop.f32.mrb[0].mxu0
        %3122 = vdwg.mxu0
        %v3124 = vsel %vm710, %v3050, 0
        %3126 = vmatprep.subr.mxu0 0.0
        %3127 = vmatpush1.msra.mxu0 %v577
        %3128 = vmatprep.subr.mxu0 0.0
        %3129 = vmatpush1.msra.mxu0 %v578
        %3130 = vmatprep.subr.mxu0 0.0
        %3131 = vmatpush1.msra.mxu0 0.0
        %3132 = vmatprep.subr.mxu0 0.0
        %3133 = vmatpush1.msra.mxu0 0.0
        %3134 = vmatprep.subr.mxu0 0.0
        %3135 = vmatpush1.msra.mxu0 0.0
        %3136 = vmatprep.subr.mxu0 0.0
        %3137 = vmatpush1.msra.mxu0 0.0
        %3138 = vmatprep.subr.mxu0 0.0
        %3139 = vmatpush1.msra.mxu0 0.0
        %3140 = vmatprep.subr.mxu0 0.0
        %3141 = vmatpush1.msra.mxu0 0.0
        %3142 = vmatprep.subr.mxu0 0.0
        %3143 = vmatpush1.msra.mxu0 0.0
        %3144 = vmatprep.subr.mxu0 0.0
        %3145 = vmatpush1.msra.mxu0 0.0
        %3146 = vmatprep.subr.mxu0 0.0
        %3147 = vmatpush1.msra.mxu0 0.0
        %3148 = vmatprep.subr.mxu0 0.0
        %3149 = vmatpush1.msra.mxu0 0.0
        %3150 = vmatprep.subr.mxu0 0.0
        %3151 = vmatpush1.msra.mxu0 0.0
        %3152 = vmatprep.subr.mxu0 0.0
        %3153 = vmatpush1.msra.mxu0 0.0
        %3154 = vmatprep.subr.mxu0 0.0
        %3155 = vmatpush1.msra.mxu0 0.0
        %3156 = vmatprep.subr.mxu0 0.0
        %3157 = vmatpush1.msra.mxu0 0.0
        %3158 = vmatprep.subr.mxu0 0.0
        %3159 = vmatpush1.msra.mxu0 0.0
        %3160 = vmatprep.subr.mxu0 0.0
        %3161 = vmatpush1.msra.mxu0 0.0
        %3162 = vmatprep.subr.mxu0 0.0
        %3163 = vmatpush1.msra.mxu0 0.0
        %3164 = vmatprep.subr.mxu0 0.0
        %3165 = vmatpush1.msra.mxu0 0.0
        %3166 = vmatprep.subr.mxu0 0.0
        %3167 = vmatpush1.msra.mxu0 0.0
        %3168 = vmatprep.subr.mxu0 0.0
        %3169 = vmatpush1.msra.mxu0 0.0
        %3170 = vmatprep.subr.mxu0 0.0
        %3171 = vmatpush1.msra.mxu0 0.0
        %3172 = vmatprep.subr.mxu0 0.0
        %3173 = vmatpush1.msra.mxu0 0.0
        %3174 = vmatprep.subr.mxu0 0.0
        %3175 = vmatpush1.msra.mxu0 0.0
        %3176 = vmatprep.subr.mxu0 0.0
        %3177 = vmatpush1.msra.mxu0 0.0
        %3178 = vmatprep.subr.mxu0 0.0
        %3179 = vmatpush1.msra.mxu0 0.0
        %3180 = vmatprep.subr.mxu0 0.0
        %3181 = vmatpush1.msra.mxu0 0.0
        %3182 = vmatprep.subr.mxu0 0.0
        %3183 = vmatpush1.msra.mxu0 0.0
        %3184 = vmatprep.subr.mxu0 0.0
        %3185 = vmatpush1.msra.mxu0 0.0
        %3186 = vmatprep.subr.mxu0 0.0
        %3187 = vmatpush1.msra.mxu0 0.0
        %3188 = vmatprep.subr.mxu0 0.0
        %3189 = vmatpush1.msra.mxu0 0.0
        %3190 = vmatprep.mubr.f32.mxu0 0.0
        %3191 = vmatmul.mubr.f32.gmra.mrb[0].mxu0 %v3124
        %v3192 = vpop.f32.mrb[0].mxu0
        %v3193 = vadd.f32 %v3120, %v3192
        %v3194 = vpop.f32.mrb[0].mxu0
        %3195 = vdwg.mxu0
        %v3196 = vadd.f32 %v3193, %v594
        %v3197 = vtanh.pop %v3196
        %3198 = vmatprep.subr.mxu0 0.0
        %3199 = vmatpush1.msra.mxu0 %v587
        %3200 = vmatprep.subr.mxu0 0.0
        %3201 = vmatpush1.msra.mxu0 %v588
        %3202 = vmatprep.subr.mxu0 0.0
        %3203 = vmatpush1.msra.mxu0 0.0
        %3204 = vmatprep.subr.mxu0 0.0
        %3205 = vmatpush1.msra.mxu0 0.0
        %3206 = vmatprep.subr.mxu0 0.0
        %3207 = vmatpush1.msra.mxu0 0.0
        %3208 = vmatprep.subr.mxu0 0.0
        %3209 = vmatpush1.msra.mxu0 0.0
        %3210 = vmatprep.subr.mxu0 0.0
        %3211 = vmatpush1.msra.mxu0 0.0
        %3212 = vmatprep.subr.mxu0 0.0
        %3213 = vmatpush1.msra.mxu0 0.0
        %3214 = vmatprep.subr.mxu0 0.0
        %3215 = vmatpush1.msra.mxu0 0.0
        %3216 = vmatprep.subr.mxu0 0.0
        %3217 = vmatpush1.msra.mxu0 0.0
        %3218 = vmatprep.subr.mxu0 0.0
        %3219 = vmatpush1.msra.mxu0 0.0
        %3220 = vmatprep.subr.mxu0 0.0
        %3221 = vmatpush1.msra.mxu0 0.0
        %3222 = vmatprep.subr.mxu0 0.0
        %3223 = vmatpush1.msra.mxu0 0.0
        %3224 = vmatprep.subr.mxu0 0.0
        %3225 = vmatpush1.msra.mxu0 0.0
        %3226 = vmatprep.subr.mxu0 0.0
        %3227 = vmatpush1.msra.mxu0 0.0
        %3228 = vmatprep.subr.mxu0 0.0
        %3229 = vmatpush1.msra.mxu0 0.0
        %3230 = vmatprep.subr.mxu0 0.0
        %3231 = vmatpush1.msra.mxu0 0.0
        %3232 = vmatprep.subr.mxu0 0.0
        %3233 = vmatpush1.msra.mxu0 0.0
        %3234 = vmatprep.subr.mxu0 0.0
        %3235 = vmatpush1.msra.mxu0 0.0
        %3236 = vmatprep.subr.mxu0 0.0
        %3237 = vmatpush1.msra.mxu0 0.0
        %3238 = vmatprep.subr.mxu0 0.0
        %3239 = vmatpush1.msra.mxu0 0.0
        %3240 = vmatprep.subr.mxu0 0.0
        %3241 = vmatpush1.msra.mxu0 0.0
        %3242 = vmatprep.subr.mxu0 0.0
        %3243 = vmatpush1.msra.mxu0 0.0
        %3244 = vmatprep.subr.mxu0 0.0
        %3245 = vmatpush1.msra.mxu0 0.0
        %3246 = vmatprep.subr.mxu0 0.0
        %3247 = vmatpush1.msra.mxu0 0.0
        %3248 = vmatprep.subr.mxu0 0.0
        %3249 = vmatpush1.msra.mxu0 0.0
        %3250 = vmatprep.subr.mxu0 0.0
        %3251 = vmatpush1.msra.mxu0 0.0
        %3252 = vmatprep.subr.mxu0 0.0
        %3253 = vmatpush1.msra.mxu0 0.0
        %3254 = vmatprep.subr.mxu0 0.0
        %3255 = vmatpush1.msra.mxu0 0.0
        %3256 = vmatprep.subr.mxu0 0.0
        %3257 = vmatpush1.msra.mxu0 0.0
        %3258 = vmatprep.subr.mxu0 0.0
        %3259 = vmatpush1.msra.mxu0 0.0
        %3260 = vmatprep.subr.mxu0 0.0
        %3261 = vmatpush1.msra.mxu0 0.0
        %3262 = vmatprep.mubr.f32.mxu0 0.0
        %3263 = vmatmul.mubr.f32.gmra.mrb[0].mxu0 %v3124
        %v3264 = vpop.f32.mrb[0].mxu0
        %v3265 = vadd.f32 0.0, %v3264
        %v3266 = vpop.f32.mrb[0].mxu0
        %3267 = vdwg.mxu0
        %v3269 = vsel %vm636, %v3197, 0
        %3271 = vmatprep.subr.mxu0 0.0
        %3272 = vmatpush1.msra.mxu0 %v583
        %3273 = vmatprep.subr.mxu0 0.0
        %3274 = vmatpush1.msra.mxu0 %v584
        %3275 = vmatprep.subr.mxu0 0.0
        %3276 = vmatpush1.msra.mxu0 %v585
        %3277 = vmatprep.subr.mxu0 0.0
        %3278 = vmatpush1.msra.mxu0 %v586
        %3279 = vmatprep.subr.mxu0 0.0
        %3280 = vmatpush1.msra.mxu0 0.0
        %3281 = vmatprep.subr.mxu0 0.0
        %3282 = vmatpush1.msra.mxu0 0.0
        %3283 = vmatprep.subr.mxu0 0.0
        %3284 = vmatpush1.msra.mxu0 0.0
        %3285 = vmatprep.subr.mxu0 0.0
        %3286 = vmatpush1.msra.mxu0 0.0
        %3287 = vmatprep.subr.mxu0 0.0
        %3288 = vmatpush1.msra.mxu0 0.0
        %3289 = vmatprep.subr.mxu0 0.0
        %3290 = vmatpush1.msra.mxu0 0.0
        %3291 = vmatprep.subr.mxu0 0.0
        %3292 = vmatpush1.msra.mxu0 0.0
        %3293 = vmatprep.subr.mxu0 0.0
        %3294 = vmatpush1.msra.mxu0 0.0
        %3295 = vmatprep.subr.mxu0 0.0
        %3296 = vmatpush1.msra.mxu0 0.0
        %3297 = vmatprep.subr.mxu0 0.0
        %3298 = vmatpush1.msra.mxu0 0.0
        %3299 = vmatprep.subr.mxu0 0.0
        %3300 = vmatpush1.msra.mxu0 0.0
        %3301 = vmatprep.subr.mxu0 0.0
        %3302 = vmatpush1.msra.mxu0 0.0
        %3303 = vmatprep.subr.mxu0 0.0
        %3304 = vmatpush1.msra.mxu0 0.0
        %3305 = vmatprep.subr.mxu0 0.0
        %3306 = vmatpush1.msra.mxu0 0.0
        %3307 = vmatprep.subr.mxu0 0.0
        %3308 = vmatpush1.msra.mxu0 0.0
        %3309 = vmatprep.subr.mxu0 0.0
        %3310 = vmatpush1.msra.mxu0 0.0
        %3311 = vmatprep.subr.mxu0 0.0
        %3312 = vmatpush1.msra.mxu0 0.0
        %3313 = vmatprep.subr.mxu0 0.0
        %3314 = vmatpush1.msra.mxu0 0.0
        %3315 = vmatprep.subr.mxu0 0.0
        %3316 = vmatpush1.msra.mxu0 0.0
        %3317 = vmatprep.subr.mxu0 0.0
        %3318 = vmatpush1.msra.mxu0 0.0
        %3319 = vmatprep.subr.mxu0 0.0
        %3320 = vmatpush1.msra.mxu0 0.0
        %3321 = vmatprep.subr.mxu0 0.0
        %3322 = vmatpush1.msra.mxu0 0.0
        %3323 = vmatprep.subr.mxu0 0.0
        %3324 = vmatpush1.msra.mxu0 0.0
        %3325 = vmatprep.subr.mxu0 0.0
        %3326 = vmatpush1.msra.mxu0 0.0
        %3327 = vmatprep.subr.mxu0 0.0
        %3328 = vmatpush1.msra.mxu0 0.0
        %3329 = vmatprep.subr.mxu0 0.0
        %3330 = vmatpush1.msra.mxu0 0.0
        %3331 = vmatprep.subr.mxu0 0.0
        %3332 = vmatpush1.msra.mxu0 0.0
        %3333 = vmatprep.subr.mxu0 0.0
        %3334 = vmatpush1.msra.mxu0 0.0
        %3335 = vmatprep.mubr.f32.mxu0 0.0
        %3336 = vmatmul.mubr.f32.gmra.mrb[0].mxu0 %v3269
        %v3337 = vpop.f32.mrb[0].mxu0
        %v3338 = vadd.f32 %v3265, %v3337
        %v3339 = vpop.f32.mrb[0].mxu0
        %3340 = vdwg.mxu0
        %v3341 = vadd.f32 %v3338, %v601
        %v3342 = vmax.f32 %v3341, 0.0
        %v3343 = vld [vmem:[%s9] sm:$0xff]
        %v3344 = vld [vmem:[%s9 + $0x8] sm:$0xff]
        %v3345 = vld [vmem:[%s9 + $0x10] sm:$0xff]
        %v3346 = vld [vmem:[%s9 + $0x18] sm:$0xff]
        %v3348 = vsel %vm636, %v3342, 0
        %3350 = vmatprep.subr.mxu0 0.0
        %3351 = vmatpush1.msra.mxu0 %v3343
        %3352 = vmatprep.subr.mxu0 0.0
        %3353 = vmatpush1.msra.mxu0 %v3344
        %3354 = vmatprep.subr.mxu0 0.0
        %3355 = vmatpush1.msra.mxu0 %v3345
        %3356 = vmatprep.subr.mxu0 0.0
        %3357 = vmatpush1.msra.mxu0 %v3346
        %3358 = vmatprep.subr.mxu0 0.0
        %3359 = vmatpush1.msra.mxu0 0.0
        %3360 = vmatprep.subr.mxu0 0.0
        %3361 = vmatpush1.msra.mxu0 0.0
        %3362 = vmatprep.subr.mxu0 0.0
        %3363 = vmatpush1.msra.mxu0 0.0
        %3364 = vmatprep.subr.mxu0 0.0
        %3365 = vmatpush1.msra.mxu0 0.0
        %3366 = vmatprep.subr.mxu0 0.0
        %3367 = vmatpush1.msra.mxu0 0.0
        %3368 = vmatprep.subr.mxu0 0.0
        %3369 = vmatpush1.msra.mxu0 0.0
        %3370 = vmatprep.subr.mxu0 0.0
        %3371 = vmatpush1.msra.mxu0 0.0
        %3372 = vmatprep.subr.mxu0 0.0
        %3373 = vmatpush1.msra.mxu0 0.0
        %3374 = vmatprep.subr.mxu0 0.0
        %3375 = vmatpush1.msra.mxu0 0.0
        %3376 = vmatprep.subr.mxu0 0.0
        %3377 = vmatpush1.msra.mxu0 0.0
        %3378 = vmatprep.subr.mxu0 0.0
        %3379 = vmatpush1.msra.mxu0 0.0
        %3380 = vmatprep.subr.mxu0 0.0
        %3381 = vmatpush1.msra.mxu0 0.0
        %3382 = vmatprep.subr.mxu0 0.0
        %3383 = vmatpush1.msra.mxu0 0.0
        %3384 = vmatprep.subr.mxu0 0.0
        %3385 = vmatpush1.msra.mxu0 0.0
        %3386 = vmatprep.subr.mxu0 0.0
        %3387 = vmatpush1.msra.mxu0 0.0
        %3388 = vmatprep.subr.mxu0 0.0
        %3389 = vmatpush1.msra.mxu0 0.0
        %3390 = vmatprep.subr.mxu0 0.0
        %3391 = vmatpush1.msra.mxu0 0.0
        %3392 = vmatprep.subr.mxu0 0.0
        %3393 = vmatpush1.msra.mxu0 0.0
        %3394 = vmatprep.subr.mxu0 0.0
        %3395 = vmatpush1.msra.mxu0 0.0
        %3396 = vmatprep.subr.mxu0 0.0
        %3397 = vmatpush1.msra.mxu0 0.0
        %3398 = vmatprep.subr.mxu0 0.0
        %3399 = vmatpush1.msra.mxu0 0.0
        %3400 = vmatprep.subr.mxu0 0.0
        %3401 = vmatpush1.msra.mxu0 0.0
        %3402 = vmatprep.subr.mxu0 0.0
        %3403 = vmatpush1.msra.mxu0 0.0
        %3404 = vmatprep.subr.mxu0 0.0
        %3405 = vmatpush1.msra.mxu0 0.0
        %3406 = vmatprep.subr.mxu0 0.0
        %3407 = vmatpush1.msra.mxu0 0.0
        %3408 = vmatprep.subr.mxu0 0.0
        %3409 = vmatpush1.msra.mxu0 0.0
        %3410 = vmatprep.subr.mxu0 0.0
        %3411 = vmatpush1.msra.mxu0 0.0
        %3412 = vmatprep.subr.mxu0 0.0
        %3413 = vmatpush1.msra.mxu0 0.0
        %3414 = vmatprep.mubr.f32.mxu0 0.0
        %3415 = vmatmul.mubr.f32.gmra.mrb[0].mxu0 %v3348
        %v3416 = vpop.f32.mrb[0].mxu0
        %v3417 = vadd.f32 %v608, %v3416
        %v3418 = vpop.f32.mrb[0].mxu0
        %3419 = vdwg.mxu0
        %v3420 = vmax.f32 %v3417, 0.0
        %v3421 = vld [vmem:[%s10] sm:$0xff]
        %v3422 = vld [vmem:[%s10 + $0x8] sm:$0xff]
        %v3423 = vld [vmem:[%s10 + $0x10] sm:$0xff]
        %v3424 = vld [vmem:[%s10 + $0x18] sm:$0xff]
        %3425 = vrot.lane.b32.xlu0 %v3342, 96
        %v3426 = vpop.permute.xlu0 %3425
        %v3427 = vsel %vm636, %v3426, 0
        %3429 = vmatprep.subr.mxu0 0.0
        %3430 = vmatpush1.msra.mxu0 %v3421
        %3431 = vmatprep.subr.mxu0 0.0
        %3432 = vmatpush1.msra.mxu0 %v3422
        %3433 = vmatprep.subr.mxu0 0.0
        %3434 = vmatpush1.msra.mxu0 %v3423
        %3435 = vmatprep.subr.mxu0 0.0
        %3436 = vmatpush1.msra.mxu0 %v3424
        %3437 = vmatprep.subr.mxu0 0.0
        %3438 = vmatpush1.msra.mxu0 0.0
        %3439 = vmatprep.subr.mxu0 0.0
        %3440 = vmatpush1.msra.mxu0 0.0
        %3441 = vmatprep.subr.mxu0 0.0
        %3442 = vmatpush1.msra.mxu0 0.0
        %3443 = vmatprep.subr.mxu0 0.0
        %3444 = vmatpush1.msra.mxu0 0.0
        %3445 = vmatprep.subr.mxu0 0.0
        %3446 = vmatpush1.msra.mxu0 0.0
        %3447 = vmatprep.subr.mxu0 0.0
        %3448 = vmatpush1.msra.mxu0 0.0
        %3449 = vmatprep.subr.mxu0 0.0
        %3450 = vmatpush1.msra.mxu0 0.0
        %3451 = vmatprep.subr.mxu0 0.0
        %3452 = vmatpush1.msra.mxu0 0.0
        %3453 = vmatprep.subr.mxu0 0.0
        %3454 = vmatpush1.msra.mxu0 0.0
        %3455 = vmatprep.subr.mxu0 0.0
        %3456 = vmatpush1.msra.mxu0 0.0
        %3457 = vmatprep.subr.mxu0 0.0
        %3458 = vmatpush1.msra.mxu0 0.0
        %3459 = vmatprep.subr.mxu0 0.0
        %3460 = vmatpush1.msra.mxu0 0.0
        %3461 = vmatprep.subr.mxu0 0.0
        %3462 = vmatpush1.msra.mxu0 0.0
        %3463 = vmatprep.subr.mxu0 0.0
        %3464 = vmatpush1.msra.mxu0 0.0
        %3465 = vmatprep.subr.mxu0 0.0
        %3466 = vmatpush1.msra.mxu0 0.0
        %3467 = vmatprep.subr.mxu0 0.0
        %3468 = vmatpush1.msra.mxu0 0.0
        %3469 = vmatprep.subr.mxu0 0.0
        %3470 = vmatpush1.msra.mxu0 0.0
        %3471 = vmatprep.subr.mxu0 0.0
        %3472 = vmatpush1.msra.mxu0 0.0
        %3473 = vmatprep.subr.mxu0 0.0
        %3474 = vmatpush1.msra.mxu0 0.0
        %3475 = vmatprep.subr.mxu0 0.0
        %3476 = vmatpush1.msra.mxu0 0.0
        %3477 = vmatprep.subr.mxu0 0.0
        %3478 = vmatpush1.msra.mxu0 0.0
        %3479 = vmatprep.subr.mxu0 0.0
        %3480 = vmatpush1.msra.mxu0 0.0
        %3481 = vmatprep.subr.mxu0 0.0
        %3482 = vmatpush1.msra.mxu0 0.0
        %3483 = vmatprep.subr.mxu0 0.0
        %3484 = vmatpush1.msra.mxu0 0.0
        %3485 = vmatprep.subr.mxu0 0.0
        %3486 = vmatpush1.msra.mxu0 0.0
        %3487 = vmatprep.subr.mxu0 0.0
        %3488 = vmatpush1.msra.mxu0 0.0
        %3489 = vmatprep.subr.mxu0 0.0
        %3490 = vmatpush1.msra.mxu0 0.0
        %3491 = vmatprep.subr.mxu0 0.0
        %3492 = vmatpush1.msra.mxu0 0.0
        %3493 = vmatprep.mubr.f32.mxu0 0.0
        %3494 = vmatmul.mubr.f32.gmra.mrb[0].mxu0 %v3427
        %v3495 = vpop.f32.mrb[0].mxu0
        %v3496 = vadd.f32 %v615, %v3495
        %v3497 = vpop.f32.mrb[0].mxu0
        %3498 = vdwg.mxu0
        %v3499 = vmax.f32 %v3496, 0.0
        %v3500 = vld [vmem:[%s11] sm:$0xff]
        %v3501 = vld [vmem:[%s11 + $0x8] sm:$0xff]
        %v3502 = vld [vmem:[%s11 + $0x10] sm:$0xff]
        %v3503 = vld [vmem:[%s11 + $0x18] sm:$0xff]
        %3504 = vrot.lane.b32.xlu0 %v3342, 64
        %v3505 = vpop.permute.xlu0 %3504
        %v3506 = vsel %vm636, %v3505, 0
        %3508 = vmatprep.subr.mxu0 0.0
        %3509 = vmatpush1.msra.mxu0 %v3500
        %3510 = vmatprep.subr.mxu0 0.0
        %3511 = vmatpush1.msra.mxu0 %v3501
        %3512 = vmatprep.subr.mxu0 0.0
        %3513 = vmatpush1.msra.mxu0 %v3502
        %3514 = vmatprep.subr.mxu0 0.0
        %3515 = vmatpush1.msra.mxu0 %v3503
        %3516 = vmatprep.subr.mxu0 0.0
        %3517 = vmatpush1.msra.mxu0 0.0
        %3518 = vmatprep.subr.mxu0 0.0
        %3519 = vmatpush1.msra.mxu0 0.0
        %3520 = vmatprep.subr.mxu0 0.0
        %3521 = vmatpush1.msra.mxu0 0.0
        %3522 = vmatprep.subr.mxu0 0.0
        %3523 = vmatpush1.msra.mxu0 0.0
        %3524 = vmatprep.subr.mxu0 0.0
        %3525 = vmatpush1.msra.mxu0 0.0
        %3526 = vmatprep.subr.mxu0 0.0
        %3527 = vmatpush1.msra.mxu0 0.0
        %3528 = vmatprep.subr.mxu0 0.0
        %3529 = vmatpush1.msra.mxu0 0.0
        %3530 = vmatprep.subr.mxu0 0.0
        %3531 = vmatpush1.msra.mxu0 0.0
        %3532 = vmatprep.subr.mxu0 0.0
        %3533 = vmatpush1.msra.mxu0 0.0
        %3534 = vmatprep.subr.mxu0 0.0
        %3535 = vmatpush1.msra.mxu0 0.0
        %3536 = vmatprep.subr.mxu0 0.0
        %3537 = vmatpush1.msra.mxu0 0.0
        %3538 = vmatprep.subr.mxu0 0.0
        %3539 = vmatpush1.msra.mxu0 0.0
        %3540 = vmatprep.subr.mxu0 0.0
        %3541 = vmatpush1.msra.mxu0 0.0
        %3542 = vmatprep.subr.mxu0 0.0
        %3543 = vmatpush1.msra.mxu0 0.0
        %3544 = vmatprep.subr.mxu0 0.0
        %3545 = vmatpush1.msra.mxu0 0.0
        %3546 = vmatprep.subr.mxu0 0.0
        %3547 = vmatpush1.msra.mxu0 0.0
        %3548 = vmatprep.subr.mxu0 0.0
        %3549 = vmatpush1.msra.mxu0 0.0
        %3550 = vmatprep.subr.mxu0 0.0
        %3551 = vmatpush1.msra.mxu0 0.0
        %3552 = vmatprep.subr.mxu0 0.0
        %3553 = vmatpush1.msra.mxu0 0.0
        %3554 = vmatprep.subr.mxu0 0.0
        %3555 = vmatpush1.msra.mxu0 0.0
        %3556 = vmatprep.subr.mxu0 0.0
        %3557 = vmatpush1.msra.mxu0 0.0
        %3558 = vmatprep.subr.mxu0 0.0
        %3559 = vmatpush1.msra.mxu0 0.0
        %3560 = vmatprep.subr.mxu0 0.0
        %3561 = vmatpush1.msra.mxu0 0.0
        %3562 = vmatprep.subr.mxu0 0.0
        %3563 = vmatpush1.msra.mxu0 0.0
        %3564 = vmatprep.subr.mxu0 0.0
        %3565 = vmatpush1.msra.mxu0 0.0
        %3566 = vmatprep.subr.mxu0 0.0
        %3567 = vmatpush1.msra.mxu0 0.0
        %3568 = vmatprep.subr.mxu0 0.0
        %3569 = vmatpush1.msra.mxu0 0.0
        %3570 = vmatprep.subr.mxu0 0.0
        %3571 = vmatpush1.msra.mxu0 0.0
        %3572 = vmatprep.mubr.f32.mxu0 0.0
        %3573 = vmatmul.mubr.f32.gmra.mrb[0].mxu0 %v3506
        %v3574 = vpop.f32.mrb[0].mxu0
        %v3575 = vadd.f32 %v622, %v3574
        %v3576 = vpop.f32.mrb[0].mxu0
        %3577 = vdwg.mxu0
        %v3578 = vmax.f32 %v3575, 0.0
        %v3579 = vld [vmem:[%s13] sm:$0xff]
        %v3580 = vld [vmem:[%s13 + $0x8] sm:$0xff]
        %v3581 = vld [vmem:[%s13 + $0x10] sm:$0xff]
        %v3582 = vld [vmem:[%s13 + $0x18] sm:$0xff]
        %v3583 = vld [vmem:[%s13 + $0x20] sm:$0xff]
        %v3584 = vld [vmem:[%s13 + $0x28] sm:$0xff]
        %v3585 = vld [vmem:[%s13 + $0x30] sm:$0xff]
        %v3586 = vld [vmem:[%s13 + $0x38] sm:$0xff]
        %v3587 = vld [vmem:[%s13 + $0x40] sm:$0xff]
        %v3588 = vld [vmem:[%s13 + $0x48] sm:$0xff]
        %v3589 = vld [vmem:[%s13 + $0x50] sm:$0xff]
        %v3590 = vld [vmem:[%s13 + $0x58] sm:$0xff]
        %v3591 = vld [vmem:[%s13 + $0x60] sm:$0xff]
        %v3592 = vld [vmem:[%s13 + $0x68] sm:$0xff]
        %v3593 = vld [vmem:[%s13 + $0x70] sm:$0xff]
        %v3594 = vld [vmem:[%s13 + $0x78] sm:$0xff]
        %v3595 = vld [vmem:[%s13 + $0x80] sm:$0xff]
        %v3596 = vld [vmem:[%s13 + $0x88] sm:$0xff]
        %v3597 = vld [vmem:[%s13 + $0x90] sm:$0xff]
        %v3598 = vld [vmem:[%s13 + $0x98] sm:$0xff]
        %v3599 = vld [vmem:[%s13 + $0xa0] sm:$0xff]
        %v3600 = vld [vmem:[%s13 + $0xa8] sm:$0xff]
        %v3601 = vld [vmem:[%s13 + $0xb0] sm:$0xff]
        %v3602 = vld [vmem:[%s13 + $0xb8] sm:$0xff]
        %v3603 = vld [vmem:[%s13 + $0xc0] sm:$0xff]
        %v3604 = vld [vmem:[%s13 + $0xc8] sm:$0xff]
        %v3605 = vld [vmem:[%s13 + $0xd0] sm:$0xff]
        %v3606 = vld [vmem:[%s13 + $0xd8] sm:$0xff]
        %v3607 = vld [vmem:[%s13 + $0xe0] sm:$0xff]
        %v3608 = vld [vmem:[%s13 + $0xe8] sm:$0xff]
        %v3609 = vld [vmem:[%s13 + $0xf0] sm:$0xff]
        %v3610 = vld [vmem:[%s13 + $0xf8] sm:$0xff]
        %v3611 = vld [vmem:[%s13 + $0x100] sm:$0xff]
        %v3612 = vld [vmem:[%s13 + $0x108] sm:$0xff]
        %v3613 = vld [vmem:[%s13 + $0x110] sm:$0xff]
        %v3614 = vld [vmem:[%s13 + $0x118] sm:$0xff]
        %v3615 = vld [vmem:[%s13 + $0x120] sm:$0xff]
        %v3616 = vld [vmem:[%s13 + $0x128] sm:$0xff]
        %v3617 = vld [vmem:[%s13 + $0x130] sm:$0xff]
        %v3618 = vld [vmem:[%s13 + $0x138] sm:$0xff]
        %v3619 = vld [vmem:[%s13 + $0x140] sm:$0xff]
        %v3620 = vld [vmem:[%s13 + $0x148] sm:$0xff]
        %v3621 = vld [vmem:[%s13 + $0x150] sm:$0xff]
        %v3622 = vld [vmem:[%s13 + $0x158] sm:$0xff]
        %v3623 = vld [vmem:[%s13 + $0x160] sm:$0xff]
        %v3624 = vld [vmem:[%s13 + $0x168] sm:$0xff]
        %v3625 = vld [vmem:[%s13 + $0x170] sm:$0xff]
        %v3626 = vld [vmem:[%s13 + $0x178] sm:$0xff]
        %3627 = vmatprep.subr.mxu0 0.0
        %3628 = vmatpush1.msra.mxu0 %v3579
        %3629 = vmatprep.subr.mxu0 0.0
        %3630 = vmatpush1.msra.mxu0 %v3580
        %3631 = vmatprep.subr.mxu0 0.0
        %3632 = vmatpush1.msra.mxu0 %v3581
        %3633 = vmatprep.subr.mxu0 0.0
        %3634 = vmatpush1.msra.mxu0 %v3582
        %3635 = vmatprep.subr.mxu0 0.0
        %3636 = vmatpush1.msra.mxu0 %v3583
        %3637 = vmatprep.subr.mxu0 0.0
        %3638 = vmatpush1.msra.mxu0 %v3584
        %3639 = vmatprep.subr.mxu0 0.0
        %3640 = vmatpush1.msra.mxu0 %v3585
        %3641 = vmatprep.subr.mxu0 0.0
        %3642 = vmatpush1.msra.mxu0 %v3586
        %3643 = vmatprep.subr.mxu0 0.0
        %3644 = vmatpush1.msra.mxu0 %v3587
        %3645 = vmatprep.subr.mxu0 0.0
        %3646 = vmatpush1.msra.mxu0 %v3588
        %3647 = vmatprep.subr.mxu0 0.0
        %3648 = vmatpush1.msra.mxu0 %v3589
        %3649 = vmatprep.subr.mxu0 0.0
        %3650 = vmatpush1.msra.mxu0 %v3590
        %3651 = vmatprep.subr.mxu0 0.0
        %3652 = vmatpush1.msra.mxu0 %v3591
        %3653 = vmatprep.subr.mxu0 0.0
        %3654 = vmatpush1.msra.mxu0 %v3592
        %3655 = vmatprep.subr.mxu0 0.0
        %3656 = vmatpush1.msra.mxu0 %v3593
        %3657 = vmatprep.subr.mxu0 0.0
        %3658 = vmatpush1.msra.mxu0 %v3594
        %3659 = vmatprep.subr.mxu0 0.0
        %3660 = vmatpush1.msra.mxu0 %v3595
        %3661 = vmatprep.subr.mxu0 0.0
        %3662 = vmatpush1.msra.mxu0 %v3596
        %3663 = vmatprep.subr.mxu0 0.0
        %3664 = vmatpush1.msra.mxu0 %v3597
        %3665 = vmatprep.subr.mxu0 0.0
        %3666 = vmatpush1.msra.mxu0 %v3598
        %3667 = vmatprep.subr.mxu0 0.0
        %3668 = vmatpush1.msra.mxu0 %v3599
        %3669 = vmatprep.subr.mxu0 0.0
        %3670 = vmatpush1.msra.mxu0 %v3600
        %3671 = vmatprep.subr.mxu0 0.0
        %3672 = vmatpush1.msra.mxu0 %v3601
        %3673 = vmatprep.subr.mxu0 0.0
        %3674 = vmatpush1.msra.mxu0 %v3602
        %3675 = vmatprep.subr.mxu0 0.0
        %3676 = vmatpush1.msra.mxu0 %v3603
        %3677 = vmatprep.subr.mxu0 0.0
        %3678 = vmatpush1.msra.mxu0 %v3604
        %3679 = vmatprep.subr.mxu0 0.0
        %3680 = vmatpush1.msra.mxu0 %v3605
        %3681 = vmatprep.subr.mxu0 0.0
        %3682 = vmatpush1.msra.mxu0 %v3606
        %3683 = vmatprep.subr.mxu0 0.0
        %3684 = vmatpush1.msra.mxu0 %v3607
        %3685 = vmatprep.subr.mxu0 0.0
        %3686 = vmatpush1.msra.mxu0 %v3608
        %3687 = vmatprep.subr.mxu0 0.0
        %3688 = vmatpush1.msra.mxu0 %v3609
        %3689 = vmatprep.subr.mxu0 0.0
        %3690 = vmatpush1.msra.mxu0 %v3610
        %3691 = vmatprep.mubr.f32.mxu0 %v3499
        %3692 = vmatmul.mubr.f32.gmra.mrb[0].mxu0 %v3420
        %v3693 = vpop.f32.mrb[0].mxu0
        %v3694 = vadd.f32 %v629, %v3693
        %v3695 = vpop.f32.mrb[0].mxu0
        %3696 = vdwg.mxu0
        %3697 = vmatprep.subr.mxu0 0.0
        %3698 = vmatpush1.msra.mxu0 %v3611
        %3699 = vmatprep.subr.mxu0 0.0
        %3700 = vmatpush1.msra.mxu0 %v3612
        %3701 = vmatprep.subr.mxu0 0.0
        %3702 = vmatpush1.msra.mxu0 %v3613
        %3703 = vmatprep.subr.mxu0 0.0
        %3704 = vmatpush1.msra.mxu0 %v3614
        %3705 = vmatprep.subr.mxu0 0.0
        %3706 = vmatpush1.msra.mxu0 %v3615
        %3707 = vmatprep.subr.mxu0 0.0
        %3708 = vmatpush1.msra.mxu0 %v3616
        %3709 = vmatprep.subr.mxu0 0.0
        %3710 = vmatpush1.msra.mxu0 %v3617
        %3711 = vmatprep.subr.mxu0 0.0
        %3712 = vmatpush1.msra.mxu0 %v3618
        %3713 = vmatprep.subr.mxu0 0.0
        %3714 = vmatpush1.msra.mxu0 %v3619
        %3715 = vmatprep.subr.mxu0 0.0
        %3716 = vmatpush1.msra.mxu0 %v3620
        %3717 = vmatprep.subr.mxu0 0.0
        %3718 = vmatpush1.msra.mxu0 %v3621
        %3719 = vmatprep.subr.mxu0 0.0
        %3720 = vmatpush1.msra.mxu0 %v3622
        %3721 = vmatprep.subr.mxu0 0.0
        %3722 = vmatpush1.msra.mxu0 %v3623
        %3723 = vmatprep.subr.mxu0 0.0
        %3724 = vmatpush1.msra.mxu0 %v3624
        %3725 = vmatprep.subr.mxu0 0.0
        %3726 = vmatpush1.msra.mxu0 %v3625
        %3727 = vmatprep.subr.mxu0 0.0
        %3728 = vmatpush1.msra.mxu0 %v3626
        %3729 = vmatprep.subr.mxu0 0.0
        %3730 = vmatpush1.msra.mxu0 0.0
        %3731 = vmatprep.subr.mxu0 0.0
        %3732 = vmatpush1.msra.mxu0 0.0
        %3733 = vmatprep.subr.mxu0 0.0
        %3734 = vmatpush1.msra.mxu0 0.0
        %3735 = vmatprep.subr.mxu0 0.0
        %3736 = vmatpush1.msra.mxu0 0.0
        %3737 = vmatprep.subr.mxu0 0.0
        %3738 = vmatpush1.msra.mxu0 0.0
        %3739 = vmatprep.subr.mxu0 0.0
        %3740 = vmatpush1.msra.mxu0 0.0
        %3741 = vmatprep.subr.mxu0 0.0
        %3742 = vmatpush1.msra.mxu0 0.0
        %3743 = vmatprep.subr.mxu0 0.0
        %3744 = vmatpush1.msra.mxu0 0.0
        %3745 = vmatprep.subr.mxu0 0.0
        %3746 = vmatpush1.msra.mxu0 0.0
        %3747 = vmatprep.subr.mxu0 0.0
        %3748 = vmatpush1.msra.mxu0 0.0
        %3749 = vmatprep.subr.mxu0 0.0
        %3750 = vmatpush1.msra.mxu0 0.0
        %3751 = vmatprep.subr.mxu0 0.0
        %3752 = vmatpush1.msra.mxu0 0.0
        %3753 = vmatprep.subr.mxu0 0.0
        %3754 = vmatpush1.msra.mxu0 0.0
        %3755 = vmatprep.subr.mxu0 0.0
        %3756 = vmatpush1.msra.mxu0 0.0
        %3757 = vmatprep.subr.mxu0 0.0
        %3758 = vmatpush1.msra.mxu0 0.0
        %3759 = vmatprep.subr.mxu0 0.0
        %3760 = vmatpush1.msra.mxu0 0.0
        %3761 = vmatprep.mubr.f32.mxu0 0.0
        %3762 = vmatmul.mubr.f32.gmra.mrb[0].mxu0 %v3578
        %v3763 = vpop.f32.mrb[0].mxu0
        %v3764 = vadd.f32 %v3694, %v3763
        %v3765 = vpop.f32.mrb[0].mxu0
        %3766 = vdwg.mxu0
        %v3767 = vxor.u32 %v3764, 2147483648
        %v3768 = vmul.f32 %v3767, 1.442695
        %v3769 = vpow.pop %v3768
        %v3770 = vadd.f32 %v3769, 1.0
        %v3771 = vrcp.pop %v3770
        %v3772 = vmul.f32 1.0, %v3771
        %v3773 = vsel %vm1361, %v3764, -inf
        %3774 = vmax.xlane.f32.xlu0 %v3773
        %v3775 = vpop.xlane.xlu0 %3774
        %v3776 = vsub.f32 %v3764, %v3775
        %v3777 = vmul.f32 %v3776, 1.442695
        %v3778 = vpow.pop %v3777
        %3780 = vrot.lane.b32.xlu0 %v3778, 120
        %v3781 = vpop.permute.xlu0 %3780
        %v3783 = vsel %vm1372, %v3781, 0.0
        %3784 = vadd.xlane.f32.xlu0 %v3783
        %v3785 = vpop.xlane.xlu0 %3784
        %v3786 = vrcp.pop %v3785
        %v3787 = vmul.f32 %v3778, %v3786
        %vm3788 = vcmp.lt.f32.partialorder %v3052, %v3772
        %v3789 = vsel %vm3788, 1, 0
        %v3790 = vcvt.s32.f32 %v3789
        %3791 = vrot.lane.b32.xlu0 %v3778, 127
        %v3792 = vpop.permute.xlu0 %3791
        %v3794 = vadd.f32 %v3778, %v3792
        %3795 = vrot.lane.b32.xlu0 %v3778, 126
        %v3796 = vpop.permute.xlu0 %3795
        %v3798 = vadd.f32 %v3794, %v3796
        %v3799 = vmul.f32 %v3052, %v3785
        %vm3800 = vcmp.ge.f32.partialorder %v3799, %v3778
        %v3801 = vsel %vm3800, 1, 0
        %vm3802 = vcmp.ge.f32.partialorder %v3799, %v3794
        %v3803 = vsel %vm3802, 1, 0
        %v3804 = vadd.s32 %v3801, %v3803
        %vm3805 = vcmp.ge.f32.partialorder %v3799, %v3798
        %v3806 = vsel %vm3805, 1, 0
        %v3807 = vadd.s32 %v3804, %v3806
        %vm3808 = vcmp.lt.s32.totalorder %v3807, 3
        %v3809 = vsel %vm3808, %v3807, 3
        %3810 = vset.pattern.permute.xlu0 8
        %3811 = vperm.xlu0 %3810, %v3809
        %v3812 = vpop.permute.xlu0 %3811
        %vm3813 = vcmp.eq.s32.totalorder %v632, %v3812
        %v3814 = vsel %vm3813, 1, 0
        %v3815 = vcvt.s32.f32 %v3814
        %3817 = vrot.lane.b32.xlu0 %v3772, 125
        %v3818 = vpop.permute.xlu0 %3817
        %vm3820 = vcmp.lt.f32.partialorder %v3052, %v3818
        %v3821 = vsel %vm3820, 1, 0
        %v3822 = vcvt.s32.f32 %v3821
        %3824 = vrot.lane.b32.xlu0 %v3822, 4
        %v3825 = vpop.permute.xlu0 %3824
        %3828 = vrot.lane.b32.xlu0 %v3790, 14
        %v3829 = vpop.permute.xlu0 %3828
        %3832 = vrot.lane.b32.xlu0 %v3815, 22
        %v3833 = vpop.permute.xlu0 %3832
        %3835 = vrot.lane.b32.xlu0 %v3197, 26
        %v3836 = vpop.permute.xlu0 %3835
        %v3838 = vsel %vm1428, %v3772, %v3787
        %v3839 = vsel %vm1430, %v3838, %v3772
        %v3840 = vsel %vm1432, %v3839, %v3825
        %v3841 = vsel %vm1434, %v3840, %v3829
        %v3842 = vsel %vm1436, %v3841, %v3833
        %v3843 = vsel %vm1438, %v3842, %v3836
        %v3844 = vsel %vm1440, %v3843, 0.0
        %s3845 = scalar_lea.vmem %s568, 24 [#allocation3]
        %3846 = vst.msk [vmem:[%s3845] sm:$0xff] %vm1442, %v3844
        %3847 = vrot.lane.b32.xlu0 %v3790, 4
        %v3848 = vpop.permute.xlu0 %3847
        %v3850 = vsel %vm1372, %v3815, %v3848
        %v3851 = vsel %vm1430, %v3850, 0.0
        %s3852 = scalar_lea.vmem %s517, 32 [#allocation2]
        %v3853 = vld [vmem:[%s3852] sm:$0xff]
        %3854 = vmatprep.subr.mxu0 0.0
        %3855 = vmatpush1.msra.mxu0 %v579
        %3856 = vmatprep.subr.mxu0 0.0
        %3857 = vmatpush1.msra.mxu0 %v580
        %3858 = vmatprep.subr.mxu0 0.0
        %3859 = vmatpush1.msra.mxu0 %v581
        %3860 = vmatprep.subr.mxu0 0.0
        %3861 = vmatpush1.msra.mxu0 %v582
        %3862 = vmatprep.subr.mxu0 0.0
        %3863 = vmatpush1.msra.mxu0 0.0
        %3864 = vmatprep.subr.mxu0 0.0
        %3865 = vmatpush1.msra.mxu0 0.0
        %3866 = vmatprep.subr.mxu0 0.0
        %3867 = vmatpush1.msra.mxu0 0.0
        %3868 = vmatprep.subr.mxu0 0.0
        %3869 = vmatpush1.msra.mxu0 0.0
        %3870 = vmatprep.subr.mxu0 0.0
        %3871 = vmatpush1.msra.mxu0 0.0
        %3872 = vmatprep.subr.mxu0 0.0
        %3873 = vmatpush1.msra.mxu0 0.0
        %3874 = vmatprep.subr.mxu0 0.0
        %3875 = vmatpush1.msra.mxu0 0.0
        %3876 = vmatprep.subr.mxu0 0.0
        %3877 = vmatpush1.msra.mxu0 0.0
        %3878 = vmatprep.subr.mxu0 0.0
        %3879 = vmatpush1.msra.mxu0 0.0
        %3880 = vmatprep.subr.mxu0 0.0
        %3881 = vmatpush1.msra.mxu0 0.0
        %3882 = vmatprep.subr.mxu0 0.0
        %3883 = vmatpush1.msra.mxu0 0.0
        %3884 = vmatprep.subr.mxu0 0.0
        %3885 = vmatpush1.msra.mxu0 0.0
        %3886 = vmatprep.subr.mxu0 0.0
        %3887 = vmatpush1.msra.mxu0 0.0
        %3888 = vmatprep.subr.mxu0 0.0
        %3889 = vmatpush1.msra.mxu0 0.0
        %3890 = vmatprep.subr.mxu0 0.0
        %3891 = vmatpush1.msra.mxu0 0.0
        %3892 = vmatprep.subr.mxu0 0.0
        %3893 = vmatpush1.msra.mxu0 0.0
        %3894 = vmatprep.subr.mxu0 0.0
        %3895 = vmatpush1.msra.mxu0 0.0
        %3896 = vmatprep.subr.mxu0 0.0
        %3897 = vmatpush1.msra.mxu0 0.0
        %3898 = vmatprep.subr.mxu0 0.0
        %3899 = vmatpush1.msra.mxu0 0.0
        %3900 = vmatprep.subr.mxu0 0.0
        %3901 = vmatpush1.msra.mxu0 0.0
        %3902 = vmatprep.subr.mxu0 0.0
        %3903 = vmatpush1.msra.mxu0 0.0
        %3904 = vmatprep.subr.mxu0 0.0
        %3905 = vmatpush1.msra.mxu0 0.0
        %3906 = vmatprep.subr.mxu0 0.0
        %3907 = vmatpush1.msra.mxu0 0.0
        %3908 = vmatprep.subr.mxu0 0.0
        %3909 = vmatpush1.msra.mxu0 0.0
        %3910 = vmatprep.subr.mxu0 0.0
        %3911 = vmatpush1.msra.mxu0 0.0
        %3912 = vmatprep.subr.mxu0 0.0
        %3913 = vmatpush1.msra.mxu0 0.0
        %3914 = vmatprep.subr.mxu0 0.0
        %3915 = vmatpush1.msra.mxu0 0.0
        %3916 = vmatprep.subr.mxu0 0.0
        %3917 = vmatpush1.msra.mxu0 0.0
        %3918 = vmatprep.mubr.f32.mxu0 0.0
        %3919 = vmatmul.mubr.f32.gmra.mrb[0].mxu0 %v3269
        %v3920 = vpop.f32.mrb[0].mxu0
        %v3921 = vadd.f32 0.0, %v3920
        %v3922 = vpop.f32.mrb[0].mxu0
        %3923 = vdwg.mxu0
        %v3925 = vsel %vm710, %v3851, 0
        %3927 = vmatprep.subr.mxu0 0.0
        %3928 = vmatpush1.msra.mxu0 %v577
        %3929 = vmatprep.subr.mxu0 0.0
        %3930 = vmatpush1.msra.mxu0 %v578
        %3931 = vmatprep.subr.mxu0 0.0
        %3932 = vmatpush1.msra.mxu0 0.0
        %3933 = vmatprep.subr.mxu0 0.0
        %3934 = vmatpush1.msra.mxu0 0.0
        %3935 = vmatprep.subr.mxu0 0.0
        %3936 = vmatpush1.msra.mxu0 0.0
        %3937 = vmatprep.subr.mxu0 0.0
        %3938 = vmatpush1.msra.mxu0 0.0
        %3939 = vmatprep.subr.mxu0 0.0
        %3940 = vmatpush1.msra.mxu0 0.0
        %3941 = vmatprep.subr.mxu0 0.0
        %3942 = vmatpush1.msra.mxu0 0.0
        %3943 = vmatprep.subr.mxu0 0.0
        %3944 = vmatpush1.msra.mxu0 0.0
        %3945 = vmatprep.subr.mxu0 0.0
        %3946 = vmatpush1.msra.mxu0 0.0
        %3947 = vmatprep.subr.mxu0 0.0
        %3948 = vmatpush1.msra.mxu0 0.0
        %3949 = vmatprep.subr.mxu0 0.0
        %3950 = vmatpush1.msra.mxu0 0.0
        %3951 = vmatprep.subr.mxu0 0.0
        %3952 = vmatpush1.msra.mxu0 0.0
        %3953 = vmatprep.subr.mxu0 0.0
        %3954 = vmatpush1.msra.mxu0 0.0
        %3955 = vmatprep.subr.mxu0 0.0
        %3956 = vmatpush1.msra.mxu0 0.0
        %3957 = vmatprep.subr.mxu0 0.0
        %3958 = vmatpush1.msra.mxu0 0.0
        %3959 = vmatprep.subr.mxu0 0.0
        %3960 = vmatpush1.msra.mxu0 0.0
        %3961 = vmatprep.subr.mxu0 0.0
        %3962 = vmatpush1.msra.mxu0 0.0
        %3963 = vmatprep.subr.mxu0 0.0
        %3964 = vmatpush1.msra.mxu0 0.0
        %3965 = vmatprep.subr.mxu0 0.0
        %3966 = vmatpush1.msra.mxu0 0.0
        %3967 = vmatprep.subr.mxu0 0.0
        %3968 = vmatpush1.msra.mxu0 0.0
        %3969 = vmatprep.subr.mxu0 0.0
        %3970 = vmatpush1.msra.mxu0 0.0
        %3971 = vmatprep.subr.mxu0 0.0
        %3972 = vmatpush1.msra.mxu0 0.0
        %3973 = vmatprep.subr.mxu0 0.0
        %3974 = vmatpush1.msra.mxu0 0.0
        %3975 = vmatprep.subr.mxu0 0.0
        %3976 = vmatpush1.msra.mxu0 0.0
        %3977 = vmatprep.subr.mxu0 0.0
        %3978 = vmatpush1.msra.mxu0 0.0
        %3979 = vmatprep.subr.mxu0 0.0
        %3980 = vmatpush1.msra.mxu0 0.0
        %3981 = vmatprep.subr.mxu0 0.0
        %3982 = vmatpush1.msra.mxu0 0.0
        %3983 = vmatprep.subr.mxu0 0.0
        %3984 = vmatpush1.msra.mxu0 0.0
        %3985 = vmatprep.subr.mxu0 0.0
        %3986 = vmatpush1.msra.mxu0 0.0
        %3987 = vmatprep.subr.mxu0 0.0
        %3988 = vmatpush1.msra.mxu0 0.0
        %3989 = vmatprep.subr.mxu0 0.0
        %3990 = vmatpush1.msra.mxu0 0.0
        %3991 = vmatprep.mubr.f32.mxu0 0.0
        %3992 = vmatmul.mubr.f32.gmra.mrb[0].mxu0 %v3925
        %v3993 = vpop.f32.mrb[0].mxu0
        %v3994 = vadd.f32 %v3921, %v3993
        %v3995 = vpop.f32.mrb[0].mxu0
        %3996 = vdwg.mxu0
        %v3997 = vadd.f32 %v3994, %v594
        %v3998 = vtanh.pop %v3997
        %3999 = vmatprep.subr.mxu0 0.0
        %4000 = vmatpush1.msra.mxu0 %v587
        %4001 = vmatprep.subr.mxu0 0.0
        %4002 = vmatpush1.msra.mxu0 %v588
        %4003 = vmatprep.subr.mxu0 0.0
        %4004 = vmatpush1.msra.mxu0 0.0
        %4005 = vmatprep.subr.mxu0 0.0
        %4006 = vmatpush1.msra.mxu0 0.0
        %4007 = vmatprep.subr.mxu0 0.0
        %4008 = vmatpush1.msra.mxu0 0.0
        %4009 = vmatprep.subr.mxu0 0.0
        %4010 = vmatpush1.msra.mxu0 0.0
        %4011 = vmatprep.subr.mxu0 0.0
        %4012 = vmatpush1.msra.mxu0 0.0
        %4013 = vmatprep.subr.mxu0 0.0
        %4014 = vmatpush1.msra.mxu0 0.0
        %4015 = vmatprep.subr.mxu0 0.0
        %4016 = vmatpush1.msra.mxu0 0.0
        %4017 = vmatprep.subr.mxu0 0.0
        %4018 = vmatpush1.msra.mxu0 0.0
        %4019 = vmatprep.subr.mxu0 0.0
        %4020 = vmatpush1.msra.mxu0 0.0
        %4021 = vmatprep.subr.mxu0 0.0
        %4022 = vmatpush1.msra.mxu0 0.0
        %4023 = vmatprep.subr.mxu0 0.0
        %4024 = vmatpush1.msra.mxu0 0.0
        %4025 = vmatprep.subr.mxu0 0.0
        %4026 = vmatpush1.msra.mxu0 0.0
        %4027 = vmatprep.subr.mxu0 0.0
        %4028 = vmatpush1.msra.mxu0 0.0
        %4029 = vmatprep.subr.mxu0 0.0
        %4030 = vmatpush1.msra.mxu0 0.0
        %4031 = vmatprep.subr.mxu0 0.0
        %4032 = vmatpush1.msra.mxu0 0.0
        %4033 = vmatprep.subr.mxu0 0.0
        %4034 = vmatpush1.msra.mxu0 0.0
        %4035 = vmatprep.subr.mxu0 0.0
        %4036 = vmatpush1.msra.mxu0 0.0
        %4037 = vmatprep.subr.mxu0 0.0
        %4038 = vmatpush1.msra.mxu0 0.0
        %4039 = vmatprep.subr.mxu0 0.0
        %4040 = vmatpush1.msra.mxu0 0.0
        %4041 = vmatprep.subr.mxu0 0.0
        %4042 = vmatpush1.msra.mxu0 0.0
        %4043 = vmatprep.subr.mxu0 0.0
        %4044 = vmatpush1.msra.mxu0 0.0
        %4045 = vmatprep.subr.mxu0 0.0
        %4046 = vmatpush1.msra.mxu0 0.0
        %4047 = vmatprep.subr.mxu0 0.0
        %4048 = vmatpush1.msra.mxu0 0.0
        %4049 = vmatprep.subr.mxu0 0.0
        %4050 = vmatpush1.msra.mxu0 0.0
        %4051 = vmatprep.subr.mxu0 0.0
        %4052 = vmatpush1.msra.mxu0 0.0
        %4053 = vmatprep.subr.mxu0 0.0
        %4054 = vmatpush1.msra.mxu0 0.0
        %4055 = vmatprep.subr.mxu0 0.0
        %4056 = vmatpush1.msra.mxu0 0.0
        %4057 = vmatprep.subr.mxu0 0.0
        %4058 = vmatpush1.msra.mxu0 0.0
        %4059 = vmatprep.subr.mxu0 0.0
        %4060 = vmatpush1.msra.mxu0 0.0
        %4061 = vmatprep.subr.mxu0 0.0
        %4062 = vmatpush1.msra.mxu0 0.0
        %4063 = vmatprep.mubr.f32.mxu0 0.0
        %4064 = vmatmul.mubr.f32.gmra.mrb[0].mxu0 %v3925
        %v4065 = vpop.f32.mrb[0].mxu0
        %v4066 = vadd.f32 0.0, %v4065
        %v4067 = vpop.f32.mrb[0].mxu0
        %4068 = vdwg.mxu0
        %v4070 = vsel %vm636, %v3998, 0
        %4072 = vmatprep.subr.mxu0 0.0
        %4073 = vmatpush1.msra.mxu0 %v583
        %4074 = vmatprep.subr.mxu0 0.0
        %4075 = vmatpush1.msra.mxu0 %v584
        %4076 = vmatprep.subr.mxu0 0.0
        %4077 = vmatpush1.msra.mxu0 %v585
        %4078 = vmatprep.subr.mxu0 0.0
        %4079 = vmatpush1.msra.mxu0 %v586
        %4080 = vmatprep.subr.mxu0 0.0
        %4081 = vmatpush1.msra.mxu0 0.0
        %4082 = vmatprep.subr.mxu0 0.0
        %4083 = vmatpush1.msra.mxu0 0.0
        %4084 = vmatprep.subr.mxu0 0.0
        %4085 = vmatpush1.msra.mxu0 0.0
        %4086 = vmatprep.subr.mxu0 0.0
        %4087 = vmatpush1.msra.mxu0 0.0
        %4088 = vmatprep.subr.mxu0 0.0
        %4089 = vmatpush1.msra.mxu0 0.0
        %4090 = vmatprep.subr.mxu0 0.0
        %4091 = vmatpush1.msra.mxu0 0.0
        %4092 = vmatprep.subr.mxu0 0.0
        %4093 = vmatpush1.msra.mxu0 0.0
        %4094 = vmatprep.subr.mxu0 0.0
        %4095 = vmatpush1.msra.mxu0 0.0
        %4096 = vmatprep.subr.mxu0 0.0
        %4097 = vmatpush1.msra.mxu0 0.0
        %4098 = vmatprep.subr.mxu0 0.0
        %4099 = vmatpush1.msra.mxu0 0.0
        %4100 = vmatprep.subr.mxu0 0.0
        %4101 = vmatpush1.msra.mxu0 0.0
        %4102 = vmatprep.subr.mxu0 0.0
        %4103 = vmatpush1.msra.mxu0 0.0
        %4104 = vmatprep.subr.mxu0 0.0
        %4105 = vmatpush1.msra.mxu0 0.0
        %4106 = vmatprep.subr.mxu0 0.0
        %4107 = vmatpush1.msra.mxu0 0.0
        %4108 = vmatprep.subr.mxu0 0.0
        %4109 = vmatpush1.msra.mxu0 0.0
        %4110 = vmatprep.subr.mxu0 0.0
        %4111 = vmatpush1.msra.mxu0 0.0
        %4112 = vmatprep.subr.mxu0 0.0
        %4113 = vmatpush1.msra.mxu0 0.0
        %4114 = vmatprep.subr.mxu0 0.0
        %4115 = vmatpush1.msra.mxu0 0.0
        %4116 = vmatprep.subr.mxu0 0.0
        %4117 = vmatpush1.msra.mxu0 0.0
        %4118 = vmatprep.subr.mxu0 0.0
        %4119 = vmatpush1.msra.mxu0 0.0
        %4120 = vmatprep.subr.mxu0 0.0
        %4121 = vmatpush1.msra.mxu0 0.0
        %4122 = vmatprep.subr.mxu0 0.0
        %4123 = vmatpush1.msra.mxu0 0.0
        %4124 = vmatprep.subr.mxu0 0.0
        %4125 = vmatpush1.msra.mxu0 0.0
        %4126 = vmatprep.subr.mxu0 0.0
        %4127 = vmatpush1.msra.mxu0 0.0
        %4128 = vmatprep.subr.mxu0 0.0
        %4129 = vmatpush1.msra.mxu0 0.0
        %4130 = vmatprep.subr.mxu0 0.0
        %4131 = vmatpush1.msra.mxu0 0.0
        %4132 = vmatprep.subr.mxu0 0.0
        %4133 = vmatpush1.msra.mxu0 0.0
        %4134 = vmatprep.subr.mxu0 0.0
        %4135 = vmatpush1.msra.mxu0 0.0
        %4136 = vmatprep.mubr.f32.mxu0 0.0
        %4137 = vmatmul.mubr.f32.gmra.mrb[0].mxu0 %v4070
        %v4138 = vpop.f32.mrb[0].mxu0
        %v4139 = vadd.f32 %v4066, %v4138
        %v4140 = vpop.f32.mrb[0].mxu0
        %4141 = vdwg.mxu0
        %v4142 = vadd.f32 %v4139, %v601
        %v4143 = vmax.f32 %v4142, 0.0
        %v4144 = vld [vmem:[%s9] sm:$0xff]
        %v4145 = vld [vmem:[%s9 + $0x8] sm:$0xff]
        %v4146 = vld [vmem:[%s9 + $0x10] sm:$0xff]
        %v4147 = vld [vmem:[%s9 + $0x18] sm:$0xff]
        %v4149 = vsel %vm636, %v4143, 0
        %4151 = vmatprep.subr.mxu0 0.0
        %4152 = vmatpush1.msra.mxu0 %v4144
        %4153 = vmatprep.subr.mxu0 0.0
        %4154 = vmatpush1.msra.mxu0 %v4145
        %4155 = vmatprep.subr.mxu0 0.0
        %4156 = vmatpush1.msra.mxu0 %v4146
        %4157 = vmatprep.subr.mxu0 0.0
        %4158 = vmatpush1.msra.mxu0 %v4147
        %4159 = vmatprep.subr.mxu0 0.0
        %4160 = vmatpush1.msra.mxu0 0.0
        %4161 = vmatprep.subr.mxu0 0.0
        %4162 = vmatpush1.msra.mxu0 0.0
        %4163 = vmatprep.subr.mxu0 0.0
        %4164 = vmatpush1.msra.mxu0 0.0
        %4165 = vmatprep.subr.mxu0 0.0
        %4166 = vmatpush1.msra.mxu0 0.0
        %4167 = vmatprep.subr.mxu0 0.0
        %4168 = vmatpush1.msra.mxu0 0.0
        %4169 = vmatprep.subr.mxu0 0.0
        %4170 = vmatpush1.msra.mxu0 0.0
        %4171 = vmatprep.subr.mxu0 0.0
        %4172 = vmatpush1.msra.mxu0 0.0
        %4173 = vmatprep.subr.mxu0 0.0
        %4174 = vmatpush1.msra.mxu0 0.0
        %4175 = vmatprep.subr.mxu0 0.0
        %4176 = vmatpush1.msra.mxu0 0.0
        %4177 = vmatprep.subr.mxu0 0.0
        %4178 = vmatpush1.msra.mxu0 0.0
        %4179 = vmatprep.subr.mxu0 0.0
        %4180 = vmatpush1.msra.mxu0 0.0
        %4181 = vmatprep.subr.mxu0 0.0
        %4182 = vmatpush1.msra.mxu0 0.0
        %4183 = vmatprep.subr.mxu0 0.0
        %4184 = vmatpush1.msra.mxu0 0.0
        %4185 = vmatprep.subr.mxu0 0.0
        %4186 = vmatpush1.msra.mxu0 0.0
        %4187 = vmatprep.subr.mxu0 0.0
        %4188 = vmatpush1.msra.mxu0 0.0
        %4189 = vmatprep.subr.mxu0 0.0
        %4190 = vmatpush1.msra.mxu0 0.0
        %4191 = vmatprep.subr.mxu0 0.0
        %4192 = vmatpush1.msra.mxu0 0.0
        %4193 = vmatprep.subr.mxu0 0.0
        %4194 = vmatpush1.msra.mxu0 0.0
        %4195 = vmatprep.subr.mxu0 0.0
        %4196 = vmatpush1.msra.mxu0 0.0
        %4197 = vmatprep.subr.mxu0 0.0
        %4198 = vmatpush1.msra.mxu0 0.0
        %4199 = vmatprep.subr.mxu0 0.0
        %4200 = vmatpush1.msra.mxu0 0.0
        %4201 = vmatprep.subr.mxu0 0.0
        %4202 = vmatpush1.msra.mxu0 0.0
        %4203 = vmatprep.subr.mxu0 0.0
        %4204 = vmatpush1.msra.mxu0 0.0
        %4205 = vmatprep.subr.mxu0 0.0
        %4206 = vmatpush1.msra.mxu0 0.0
        %4207 = vmatprep.subr.mxu0 0.0
        %4208 = vmatpush1.msra.mxu0 0.0
        %4209 = vmatprep.subr.mxu0 0.0
        %4210 = vmatpush1.msra.mxu0 0.0
        %4211 = vmatprep.subr.mxu0 0.0
        %4212 = vmatpush1.msra.mxu0 0.0
        %4213 = vmatprep.subr.mxu0 0.0
        %4214 = vmatpush1.msra.mxu0 0.0
        %4215 = vmatprep.mubr.f32.mxu0 0.0
        %4216 = vmatmul.mubr.f32.gmra.mrb[0].mxu0 %v4149
        %v4217 = vpop.f32.mrb[0].mxu0
        %v4218 = vadd.f32 %v608, %v4217
        %v4219 = vpop.f32.mrb[0].mxu0
        %4220 = vdwg.mxu0
        %v4221 = vmax.f32 %v4218, 0.0
        %v4222 = vld [vmem:[%s10] sm:$0xff]
        %v4223 = vld [vmem:[%s10 + $0x8] sm:$0xff]
        %v4224 = vld [vmem:[%s10 + $0x10] sm:$0xff]
        %v4225 = vld [vmem:[%s10 + $0x18] sm:$0xff]
        %4226 = vrot.lane.b32.xlu0 %v4143, 96
        %v4227 = vpop.permute.xlu0 %4226
        %v4228 = vsel %vm636, %v4227, 0
        %4230 = vmatprep.subr.mxu0 0.0
        %4231 = vmatpush1.msra.mxu0 %v4222
        %4232 = vmatprep.subr.mxu0 0.0
        %4233 = vmatpush1.msra.mxu0 %v4223
        %4234 = vmatprep.subr.mxu0 0.0
        %4235 = vmatpush1.msra.mxu0 %v4224
        %4236 = vmatprep.subr.mxu0 0.0
        %4237 = vmatpush1.msra.mxu0 %v4225
        %4238 = vmatprep.subr.mxu0 0.0
        %4239 = vmatpush1.msra.mxu0 0.0
        %4240 = vmatprep.subr.mxu0 0.0
        %4241 = vmatpush1.msra.mxu0 0.0
        %4242 = vmatprep.subr.mxu0 0.0
        %4243 = vmatpush1.msra.mxu0 0.0
        %4244 = vmatprep.subr.mxu0 0.0
        %4245 = vmatpush1.msra.mxu0 0.0
        %4246 = vmatprep.subr.mxu0 0.0
        %4247 = vmatpush1.msra.mxu0 0.0
        %4248 = vmatprep.subr.mxu0 0.0
        %4249 = vmatpush1.msra.mxu0 0.0
        %4250 = vmatprep.subr.mxu0 0.0
        %4251 = vmatpush1.msra.mxu0 0.0
        %4252 = vmatprep.subr.mxu0 0.0
        %4253 = vmatpush1.msra.mxu0 0.0
        %4254 = vmatprep.subr.mxu0 0.0
        %4255 = vmatpush1.msra.mxu0 0.0
        %4256 = vmatprep.subr.mxu0 0.0
        %4257 = vmatpush1.msra.mxu0 0.0
        %4258 = vmatprep.subr.mxu0 0.0
        %4259 = vmatpush1.msra.mxu0 0.0
        %4260 = vmatprep.subr.mxu0 0.0
        %4261 = vmatpush1.msra.mxu0 0.0
        %4262 = vmatprep.subr.mxu0 0.0
        %4263 = vmatpush1.msra.mxu0 0.0
        %4264 = vmatprep.subr.mxu0 0.0
        %4265 = vmatpush1.msra.mxu0 0.0
        %4266 = vmatprep.subr.mxu0 0.0
        %4267 = vmatpush1.msra.mxu0 0.0
        %4268 = vmatprep.subr.mxu0 0.0
        %4269 = vmatpush1.msra.mxu0 0.0
        %4270 = vmatprep.subr.mxu0 0.0
        %4271 = vmatpush1.msra.mxu0 0.0
        %4272 = vmatprep.subr.mxu0 0.0
        %4273 = vmatpush1.msra.mxu0 0.0
        %4274 = vmatprep.subr.mxu0 0.0
        %4275 = vmatpush1.msra.mxu0 0.0
        %4276 = vmatprep.subr.mxu0 0.0
        %4277 = vmatpush1.msra.mxu0 0.0
        %4278 = vmatprep.subr.mxu0 0.0
        %4279 = vmatpush1.msra.mxu0 0.0
        %4280 = vmatprep.subr.mxu0 0.0
        %4281 = vmatpush1.msra.mxu0 0.0
        %4282 = vmatprep.subr.mxu0 0.0
        %4283 = vmatpush1.msra.mxu0 0.0
        %4284 = vmatprep.subr.mxu0 0.0
        %4285 = vmatpush1.msra.mxu0 0.0
        %4286 = vmatprep.subr.mxu0 0.0
        %4287 = vmatpush1.msra.mxu0 0.0
        %4288 = vmatprep.subr.mxu0 0.0
        %4289 = vmatpush1.msra.mxu0 0.0
        %4290 = vmatprep.subr.mxu0 0.0
        %4291 = vmatpush1.msra.mxu0 0.0
        %4292 = vmatprep.subr.mxu0 0.0
        %4293 = vmatpush1.msra.mxu0 0.0
        %4294 = vmatprep.mubr.f32.mxu0 0.0
        %4295 = vmatmul.mubr.f32.gmra.mrb[0].mxu0 %v4228
        %v4296 = vpop.f32.mrb[0].mxu0
        %v4297 = vadd.f32 %v615, %v4296
        %v4298 = vpop.f32.mrb[0].mxu0
        %4299 = vdwg.mxu0
        %v4300 = vmax.f32 %v4297, 0.0
        %v4301 = vld [vmem:[%s11] sm:$0xff]
        %v4302 = vld [vmem:[%s11 + $0x8] sm:$0xff]
        %v4303 = vld [vmem:[%s11 + $0x10] sm:$0xff]
        %v4304 = vld [vmem:[%s11 + $0x18] sm:$0xff]
        %4305 = vrot.lane.b32.xlu0 %v4143, 64
        %v4306 = vpop.permute.xlu0 %4305
        %v4307 = vsel %vm636, %v4306, 0
        %4309 = vmatprep.subr.mxu0 0.0
        %4310 = vmatpush1.msra.mxu0 %v4301
        %4311 = vmatprep.subr.mxu0 0.0
        %4312 = vmatpush1.msra.mxu0 %v4302
        %4313 = vmatprep.subr.mxu0 0.0
        %4314 = vmatpush1.msra.mxu0 %v4303
        %4315 = vmatprep.subr.mxu0 0.0
        %4316 = vmatpush1.msra.mxu0 %v4304
        %4317 = vmatprep.subr.mxu0 0.0
        %4318 = vmatpush1.msra.mxu0 0.0
        %4319 = vmatprep.subr.mxu0 0.0
        %4320 = vmatpush1.msra.mxu0 0.0
        %4321 = vmatprep.subr.mxu0 0.0
        %4322 = vmatpush1.msra.mxu0 0.0
        %4323 = vmatprep.subr.mxu0 0.0
        %4324 = vmatpush1.msra.mxu0 0.0
        %4325 = vmatprep.subr.mxu0 0.0
        %4326 = vmatpush1.msra.mxu0 0.0
        %4327 = vmatprep.subr.mxu0 0.0
        %4328 = vmatpush1.msra.mxu0 0.0
        %4329 = vmatprep.subr.mxu0 0.0
        %4330 = vmatpush1.msra.mxu0 0.0
        %4331 = vmatprep.subr.mxu0 0.0
        %4332 = vmatpush1.msra.mxu0 0.0
        %4333 = vmatprep.subr.mxu0 0.0
        %4334 = vmatpush1.msra.mxu0 0.0
        %4335 = vmatprep.subr.mxu0 0.0
        %4336 = vmatpush1.msra.mxu0 0.0
        %4337 = vmatprep.subr.mxu0 0.0
        %4338 = vmatpush1.msra.mxu0 0.0
        %4339 = vmatprep.subr.mxu0 0.0
        %4340 = vmatpush1.msra.mxu0 0.0
        %4341 = vmatprep.subr.mxu0 0.0
        %4342 = vmatpush1.msra.mxu0 0.0
        %4343 = vmatprep.subr.mxu0 0.0
        %4344 = vmatpush1.msra.mxu0 0.0
        %4345 = vmatprep.subr.mxu0 0.0
        %4346 = vmatpush1.msra.mxu0 0.0
        %4347 = vmatprep.subr.mxu0 0.0
        %4348 = vmatpush1.msra.mxu0 0.0
        %4349 = vmatprep.subr.mxu0 0.0
        %4350 = vmatpush1.msra.mxu0 0.0
        %4351 = vmatprep.subr.mxu0 0.0
        %4352 = vmatpush1.msra.mxu0 0.0
        %4353 = vmatprep.subr.mxu0 0.0
        %4354 = vmatpush1.msra.mxu0 0.0
        %4355 = vmatprep.subr.mxu0 0.0
        %4356 = vmatpush1.msra.mxu0 0.0
        %4357 = vmatprep.subr.mxu0 0.0
        %4358 = vmatpush1.msra.mxu0 0.0
        %4359 = vmatprep.subr.mxu0 0.0
        %4360 = vmatpush1.msra.mxu0 0.0
        %4361 = vmatprep.subr.mxu0 0.0
        %4362 = vmatpush1.msra.mxu0 0.0
        %4363 = vmatprep.subr.mxu0 0.0
        %4364 = vmatpush1.msra.mxu0 0.0
        %4365 = vmatprep.subr.mxu0 0.0
        %4366 = vmatpush1.msra.mxu0 0.0
        %4367 = vmatprep.subr.mxu0 0.0
        %4368 = vmatpush1.msra.mxu0 0.0
        %4369 = vmatprep.subr.mxu0 0.0
        %4370 = vmatpush1.msra.mxu0 0.0
        %4371 = vmatprep.subr.mxu0 0.0
        %4372 = vmatpush1.msra.mxu0 0.0
        %4373 = vmatprep.mubr.f32.mxu0 0.0
        %4374 = vmatmul.mubr.f32.gmra.mrb[0].mxu0 %v4307
        %v4375 = vpop.f32.mrb[0].mxu0
        %v4376 = vadd.f32 %v622, %v4375
        %v4377 = vpop.f32.mrb[0].mxu0
        %4378 = vdwg.mxu0
        %v4379 = vmax.f32 %v4376, 0.0
        %v4380 = vld [vmem:[%s13] sm:$0xff]
        %v4381 = vld [vmem:[%s13 + $0x8] sm:$0xff]
        %v4382 = vld [vmem:[%s13 + $0x10] sm:$0xff]
        %v4383 = vld [vmem:[%s13 + $0x18] sm:$0xff]
        %v4384 = vld [vmem:[%s13 + $0x20] sm:$0xff]
        %v4385 = vld [vmem:[%s13 + $0x28] sm:$0xff]
        %v4386 = vld [vmem:[%s13 + $0x30] sm:$0xff]
        %v4387 = vld [vmem:[%s13 + $0x38] sm:$0xff]
        %v4388 = vld [vmem:[%s13 + $0x40] sm:$0xff]
        %v4389 = vld [vmem:[%s13 + $0x48] sm:$0xff]
        %v4390 = vld [vmem:[%s13 + $0x50] sm:$0xff]
        %v4391 = vld [vmem:[%s13 + $0x58] sm:$0xff]
        %v4392 = vld [vmem:[%s13 + $0x60] sm:$0xff]
        %v4393 = vld [vmem:[%s13 + $0x68] sm:$0xff]
        %v4394 = vld [vmem:[%s13 + $0x70] sm:$0xff]
        %v4395 = vld [vmem:[%s13 + $0x78] sm:$0xff]
        %v4396 = vld [vmem:[%s13 + $0x80] sm:$0xff]
        %v4397 = vld [vmem:[%s13 + $0x88] sm:$0xff]
        %v4398 = vld [vmem:[%s13 + $0x90] sm:$0xff]
        %v4399 = vld [vmem:[%s13 + $0x98] sm:$0xff]
        %v4400 = vld [vmem:[%s13 + $0xa0] sm:$0xff]
        %v4401 = vld [vmem:[%s13 + $0xa8] sm:$0xff]
        %v4402 = vld [vmem:[%s13 + $0xb0] sm:$0xff]
        %v4403 = vld [vmem:[%s13 + $0xb8] sm:$0xff]
        %v4404 = vld [vmem:[%s13 + $0xc0] sm:$0xff]
        %v4405 = vld [vmem:[%s13 + $0xc8] sm:$0xff]
        %v4406 = vld [vmem:[%s13 + $0xd0] sm:$0xff]
        %v4407 = vld [vmem:[%s13 + $0xd8] sm:$0xff]
        %v4408 = vld [vmem:[%s13 + $0xe0] sm:$0xff]
        %v4409 = vld [vmem:[%s13 + $0xe8] sm:$0xff]
        %v4410 = vld [vmem:[%s13 + $0xf0] sm:$0xff]
        %v4411 = vld [vmem:[%s13 + $0xf8] sm:$0xff]
        %v4412 = vld [vmem:[%s13 + $0x100] sm:$0xff]
        %v4413 = vld [vmem:[%s13 + $0x108] sm:$0xff]
        %v4414 = vld [vmem:[%s13 + $0x110] sm:$0xff]
        %v4415 = vld [vmem:[%s13 + $0x118] sm:$0xff]
        %v4416 = vld [vmem:[%s13 + $0x120] sm:$0xff]
        %v4417 = vld [vmem:[%s13 + $0x128] sm:$0xff]
        %v4418 = vld [vmem:[%s13 + $0x130] sm:$0xff]
        %v4419 = vld [vmem:[%s13 + $0x138] sm:$0xff]
        %v4420 = vld [vmem:[%s13 + $0x140] sm:$0xff]
        %v4421 = vld [vmem:[%s13 + $0x148] sm:$0xff]
        %v4422 = vld [vmem:[%s13 + $0x150] sm:$0xff]
        %v4423 = vld [vmem:[%s13 + $0x158] sm:$0xff]
        %v4424 = vld [vmem:[%s13 + $0x160] sm:$0xff]
        %v4425 = vld [vmem:[%s13 + $0x168] sm:$0xff]
        %v4426 = vld [vmem:[%s13 + $0x170] sm:$0xff]
        %v4427 = vld [vmem:[%s13 + $0x178] sm:$0xff]
        %4428 = vmatprep.subr.mxu0 0.0
        %4429 = vmatpush1.msra.mxu0 %v4380
        %4430 = vmatprep.subr.mxu0 0.0
        %4431 = vmatpush1.msra.mxu0 %v4381
        %4432 = vmatprep.subr.mxu0 0.0
        %4433 = vmatpush1.msra.mxu0 %v4382
        %4434 = vmatprep.subr.mxu0 0.0
        %4435 = vmatpush1.msra.mxu0 %v4383
        %4436 = vmatprep.subr.mxu0 0.0
        %4437 = vmatpush1.msra.mxu0 %v4384
        %4438 = vmatprep.subr.mxu0 0.0
        %4439 = vmatpush1.msra.mxu0 %v4385
        %4440 = vmatprep.subr.mxu0 0.0
        %4441 = vmatpush1.msra.mxu0 %v4386
        %4442 = vmatprep.subr.mxu0 0.0
        %4443 = vmatpush1.msra.mxu0 %v4387
        %4444 = vmatprep.subr.mxu0 0.0
        %4445 = vmatpush1.msra.mxu0 %v4388
        %4446 = vmatprep.subr.mxu0 0.0
        %4447 = vmatpush1.msra.mxu0 %v4389
        %4448 = vmatprep.subr.mxu0 0.0
        %4449 = vmatpush1.msra.mxu0 %v4390
        %4450 = vmatprep.subr.mxu0 0.0
        %4451 = vmatpush1.msra.mxu0 %v4391
        %4452 = vmatprep.subr.mxu0 0.0
        %4453 = vmatpush1.msra.mxu0 %v4392
        %4454 = vmatprep.subr.mxu0 0.0
        %4455 = vmatpush1.msra.mxu0 %v4393
        %4456 = vmatprep.subr.mxu0 0.0
        %4457 = vmatpush1.msra.mxu0 %v4394
        %4458 = vmatprep.subr.mxu0 0.0
        %4459 = vmatpush1.msra.mxu0 %v4395
        %4460 = vmatprep.subr.mxu0 0.0
        %4461 = vmatpush1.msra.mxu0 %v4396
        %4462 = vmatprep.subr.mxu0 0.0
        %4463 = vmatpush1.msra.mxu0 %v4397
        %4464 = vmatprep.subr.mxu0 0.0
        %4465 = vmatpush1.msra.mxu0 %v4398
        %4466 = vmatprep.subr.mxu0 0.0
        %4467 = vmatpush1.msra.mxu0 %v4399
        %4468 = vmatprep.subr.mxu0 0.0
        %4469 = vmatpush1.msra.mxu0 %v4400
        %4470 = vmatprep.subr.mxu0 0.0
        %4471 = vmatpush1.msra.mxu0 %v4401
        %4472 = vmatprep.subr.mxu0 0.0
        %4473 = vmatpush1.msra.mxu0 %v4402
        %4474 = vmatprep.subr.mxu0 0.0
        %4475 = vmatpush1.msra.mxu0 %v4403
        %4476 = vmatprep.subr.mxu0 0.0
        %4477 = vmatpush1.msra.mxu0 %v4404
        %4478 = vmatprep.subr.mxu0 0.0
        %4479 = vmatpush1.msra.mxu0 %v4405
        %4480 = vmatprep.subr.mxu0 0.0
        %4481 = vmatpush1.msra.mxu0 %v4406
        %4482 = vmatprep.subr.mxu0 0.0
        %4483 = vmatpush1.msra.mxu0 %v4407
        %4484 = vmatprep.subr.mxu0 0.0
        %4485 = vmatpush1.msra.mxu0 %v4408
        %4486 = vmatprep.subr.mxu0 0.0
        %4487 = vmatpush1.msra.mxu0 %v4409
        %4488 = vmatprep.subr.mxu0 0.0
        %4489 = vmatpush1.msra.mxu0 %v4410
        %4490 = vmatprep.subr.mxu0 0.0
        %4491 = vmatpush1.msra.mxu0 %v4411
        %4492 = vmatprep.mubr.f32.mxu0 %v4300
        %4493 = vmatmul.mubr.f32.gmra.mrb[0].mxu0 %v4221
        %v4494 = vpop.f32.mrb[0].mxu0
        %v4495 = vadd.f32 %v629, %v4494
        %v4496 = vpop.f32.mrb[0].mxu0
        %4497 = vdwg.mxu0
        %4498 = vmatprep.subr.mxu0 0.0
        %4499 = vmatpush1.msra.mxu0 %v4412
        %4500 = vmatprep.subr.mxu0 0.0
        %4501 = vmatpush1.msra.mxu0 %v4413
        %4502 = vmatprep.subr.mxu0 0.0
        %4503 = vmatpush1.msra.mxu0 %v4414
        %4504 = vmatprep.subr.mxu0 0.0
        %4505 = vmatpush1.msra.mxu0 %v4415
        %4506 = vmatprep.subr.mxu0 0.0
        %4507 = vmatpush1.msra.mxu0 %v4416
        %4508 = vmatprep.subr.mxu0 0.0
        %4509 = vmatpush1.msra.mxu0 %v4417
        %4510 = vmatprep.subr.mxu0 0.0
        %4511 = vmatpush1.msra.mxu0 %v4418
        %4512 = vmatprep.subr.mxu0 0.0
        %4513 = vmatpush1.msra.mxu0 %v4419
        %4514 = vmatprep.subr.mxu0 0.0
        %4515 = vmatpush1.msra.mxu0 %v4420
        %4516 = vmatprep.subr.mxu0 0.0
        %4517 = vmatpush1.msra.mxu0 %v4421
        %4518 = vmatprep.subr.mxu0 0.0
        %4519 = vmatpush1.msra.mxu0 %v4422
        %4520 = vmatprep.subr.mxu0 0.0
        %4521 = vmatpush1.msra.mxu0 %v4423
        %4522 = vmatprep.subr.mxu0 0.0
        %4523 = vmatpush1.msra.mxu0 %v4424
        %4524 = vmatprep.subr.mxu0 0.0
        %4525 = vmatpush1.msra.mxu0 %v4425
        %4526 = vmatprep.subr.mxu0 0.0
        %4527 = vmatpush1.msra.mxu0 %v4426
        %4528 = vmatprep.subr.mxu0 0.0
        %4529 = vmatpush1.msra.mxu0 %v4427
        %4530 = vmatprep.subr.mxu0 0.0
        %4531 = vmatpush1.msra.mxu0 0.0
        %4532 = vmatprep.subr.mxu0 0.0
        %4533 = vmatpush1.msra.mxu0 0.0
        %4534 = vmatprep.subr.mxu0 0.0
        %4535 = vmatpush1.msra.mxu0 0.0
        %4536 = vmatprep.subr.mxu0 0.0
        %4537 = vmatpush1.msra.mxu0 0.0
        %4538 = vmatprep.subr.mxu0 0.0
        %4539 = vmatpush1.msra.mxu0 0.0
        %4540 = vmatprep.subr.mxu0 0.0
        %4541 = vmatpush1.msra.mxu0 0.0
        %4542 = vmatprep.subr.mxu0 0.0
        %4543 = vmatpush1.msra.mxu0 0.0
        %4544 = vmatprep.subr.mxu0 0.0
        %4545 = vmatpush1.msra.mxu0 0.0
        %4546 = vmatprep.subr.mxu0 0.0
        %4547 = vmatpush1.msra.mxu0 0.0
        %4548 = vmatprep.subr.mxu0 0.0
        %4549 = vmatpush1.msra.mxu0 0.0
        %4550 = vmatprep.subr.mxu0 0.0
        %4551 = vmatpush1.msra.mxu0 0.0
        %4552 = vmatprep.subr.mxu0 0.0
        %4553 = vmatpush1.msra.mxu0 0.0
        %4554 = vmatprep.subr.mxu0 0.0
        %4555 = vmatpush1.msra.mxu0 0.0
        %4556 = vmatprep.subr.mxu0 0.0
        %4557 = vmatpush1.msra.mxu0 0.0
        %4558 = vmatprep.subr.mxu0 0.0
        %4559 = vmatpush1.msra.mxu0 0.0
        %4560 = vmatprep.subr.mxu0 0.0
        %4561 = vmatpush1.msra.mxu0 0.0
        %4562 = vmatprep.mubr.f32.mxu0 0.0
        %4563 = vmatmul.mubr.f32.gmra.mrb[0].mxu0 %v4379
        %v4564 = vpop.f32.mrb[0].mxu0
        %v4565 = vadd.f32 %v4495, %v4564
        %v4566 = vpop.f32.mrb[0].mxu0
        %4567 = vdwg.mxu0
        %v4568 = vxor.u32 %v4565, 2147483648
        %v4569 = vmul.f32 %v4568, 1.442695
        %v4570 = vpow.pop %v4569
        %v4571 = vadd.f32 %v4570, 1.0
        %v4572 = vrcp.pop %v4571
        %v4573 = vmul.f32 1.0, %v4572
        %v4574 = vsel %vm1361, %v4565, -inf
        %4575 = vmax.xlane.f32.xlu0 %v4574
        %v4576 = vpop.xlane.xlu0 %4575
        %v4577 = vsub.f32 %v4565, %v4576
        %v4578 = vmul.f32 %v4577, 1.442695
        %v4579 = vpow.pop %v4578
        %4581 = vrot.lane.b32.xlu0 %v4579, 120
        %v4582 = vpop.permute.xlu0 %4581
        %v4584 = vsel %vm1372, %v4582, 0.0
        %4585 = vadd.xlane.f32.xlu0 %v4584
        %v4586 = vpop.xlane.xlu0 %4585
        %v4587 = vrcp.pop %v4586
        %v4588 = vmul.f32 %v4579, %v4587
        %vm4589 = vcmp.lt.f32.partialorder %v3853, %v4573
        %v4590 = vsel %vm4589, 1, 0
        %v4591 = vcvt.s32.f32 %v4590
        %4592 = vrot.lane.b32.xlu0 %v4579, 127
        %v4593 = vpop.permute.xlu0 %4592
        %v4595 = vadd.f32 %v4579, %v4593
        %4596 = vrot.lane.b32.xlu0 %v4579, 126
        %v4597 = vpop.permute.xlu0 %4596
        %v4599 = vadd.f32 %v4595, %v4597
        %v4600 = vmul.f32 %v3853, %v4586
        %vm4601 = vcmp.ge.f32.partialorder %v4600, %v4579
        %v4602 = vsel %vm4601, 1, 0
        %vm4603 = vcmp.ge.f32.partialorder %v4600, %v4595
        %v4604 = vsel %vm4603, 1, 0
        %v4605 = vadd.s32 %v4602, %v4604
        %vm4606 = vcmp.ge.f32.partialorder %v4600, %v4599
        %v4607 = vsel %vm4606, 1, 0
        %v4608 = vadd.s32 %v4605, %v4607
        %vm4609 = vcmp.lt.s32.totalorder %v4608, 3
        %v4610 = vsel %vm4609, %v4608, 3
        %4611 = vset.pattern.permute.xlu0 8
        %4612 = vperm.xlu0 %4611, %v4610
        %v4613 = vpop.permute.xlu0 %4612
        %vm4614 = vcmp.eq.s32.totalorder %v632, %v4613
        %v4615 = vsel %vm4614, 1, 0
        %v4616 = vcvt.s32.f32 %v4615
        %4618 = vrot.lane.b32.xlu0 %v4573, 125
        %v4619 = vpop.permute.xlu0 %4618
        %vm4621 = vcmp.lt.f32.partialorder %v3853, %v4619
        %v4622 = vsel %vm4621, 1, 0
        %v4623 = vcvt.s32.f32 %v4622
        %4625 = vrot.lane.b32.xlu0 %v4623, 4
        %v4626 = vpop.permute.xlu0 %4625
        %4629 = vrot.lane.b32.xlu0 %v4591, 14
        %v4630 = vpop.permute.xlu0 %4629
        %4633 = vrot.lane.b32.xlu0 %v4616, 22
        %v4634 = vpop.permute.xlu0 %4633
        %4636 = vrot.lane.b32.xlu0 %v3998, 26
        %v4637 = vpop.permute.xlu0 %4636
        %v4639 = vsel %vm1428, %v4573, %v4588
        %v4640 = vsel %vm1430, %v4639, %v4573
        %v4641 = vsel %vm1432, %v4640, %v4626
        %v4642 = vsel %vm1434, %v4641, %v4630
        %v4643 = vsel %vm1436, %v4642, %v4634
        %v4644 = vsel %vm1438, %v4643, %v4637
        %v4645 = vsel %vm1440, %v4644, 0.0
        %s4646 = scalar_lea.vmem %s568, 32 [#allocation3]
        %4647 = vst.msk [vmem:[%s4646] sm:$0xff] %vm1442, %v4645
        %4648 = vrot.lane.b32.xlu0 %v4591, 4
        %v4649 = vpop.permute.xlu0 %4648
        %v4651 = vsel %vm1372, %v4616, %v4649
        %v4652 = vsel %vm1430, %v4651, 0.0
        %s4653 = scalar_lea.vmem %s517, 40 [#allocation2]
        %v4654 = vld [vmem:[%s4653] sm:$0xff]
        %4655 = vmatprep.subr.mxu0 0.0
        %4656 = vmatpush1.msra.mxu0 %v579
        %4657 = vmatprep.subr.mxu0 0.0
        %4658 = vmatpush1.msra.mxu0 %v580
        %4659 = vmatprep.subr.mxu0 0.0
        %4660 = vmatpush1.msra.mxu0 %v581
        %4661 = vmatprep.subr.mxu0 0.0
        %4662 = vmatpush1.msra.mxu0 %v582
        %4663 = vmatprep.subr.mxu0 0.0
        %4664 = vmatpush1.msra.mxu0 0.0
        %4665 = vmatprep.subr.mxu0 0.0
        %4666 = vmatpush1.msra.mxu0 0.0
        %4667 = vmatprep.subr.mxu0 0.0
        %4668 = vmatpush1.msra.mxu0 0.0
        %4669 = vmatprep.subr.mxu0 0.0
        %4670 = vmatpush1.msra.mxu0 0.0
        %4671 = vmatprep.subr.mxu0 0.0
        %4672 = vmatpush1.msra.mxu0 0.0
        %4673 = vmatprep.subr.mxu0 0.0
        %4674 = vmatpush1.msra.mxu0 0.0
        %4675 = vmatprep.subr.mxu0 0.0
        %4676 = vmatpush1.msra.mxu0 0.0
        %4677 = vmatprep.subr.mxu0 0.0
        %4678 = vmatpush1.msra.mxu0 0.0
        %4679 = vmatprep.subr.mxu0 0.0
        %4680 = vmatpush1.msra.mxu0 0.0
        %4681 = vmatprep.subr.mxu0 0.0
        %4682 = vmatpush1.msra.mxu0 0.0
        %4683 = vmatprep.subr.mxu0 0.0
        %4684 = vmatpush1.msra.mxu0 0.0
        %4685 = vmatprep.subr.mxu0 0.0
        %4686 = vmatpush1.msra.mxu0 0.0
        %4687 = vmatprep.subr.mxu0 0.0
        %4688 = vmatpush1.msra.mxu0 0.0
        %4689 = vmatprep.subr.mxu0 0.0
        %4690 = vmatpush1.msra.mxu0 0.0
        %4691 = vmatprep.subr.mxu0 0.0
        %4692 = vmatpush1.msra.mxu0 0.0
        %4693 = vmatprep.subr.mxu0 0.0
        %4694 = vmatpush1.msra.mxu0 0.0
        %4695 = vmatprep.subr.mxu0 0.0
        %4696 = vmatpush1.msra.mxu0 0.0
        %4697 = vmatprep.subr.mxu0 0.0
        %4698 = vmatpush1.msra.mxu0 0.0
        %4699 = vmatprep.subr.mxu0 0.0
        %4700 = vmatpush1.msra.mxu0 0.0
        %4701 = vmatprep.subr.mxu0 0.0
        %4702 = vmatpush1.msra.mxu0 0.0
        %4703 = vmatprep.subr.mxu0 0.0
        %4704 = vmatpush1.msra.mxu0 0.0
        %4705 = vmatprep.subr.mxu0 0.0
        %4706 = vmatpush1.msra.mxu0 0.0
        %4707 = vmatprep.subr.mxu0 0.0
        %4708 = vmatpush1.msra.mxu0 0.0
        %4709 = vmatprep.subr.mxu0 0.0
        %4710 = vmatpush1.msra.mxu0 0.0
        %4711 = vmatprep.subr.mxu0 0.0
        %4712 = vmatpush1.msra.mxu0 0.0
        %4713 = vmatprep.subr.mxu0 0.0
        %4714 = vmatpush1.msra.mxu0 0.0
        %4715 = vmatprep.subr.mxu0 0.0
        %4716 = vmatpush1.msra.mxu0 0.0
        %4717 = vmatprep.subr.mxu0 0.0
        %4718 = vmatpush1.msra.mxu0 0.0
        %4719 = vmatprep.mubr.f32.mxu0 0.0
        %4720 = vmatmul.mubr.f32.gmra.mrb[0].mxu0 %v4070
        %v4721 = vpop.f32.mrb[0].mxu0
        %v4722 = vadd.f32 0.0, %v4721
        %v4723 = vpop.f32.mrb[0].mxu0
        %4724 = vdwg.mxu0
        %v4726 = vsel %vm710, %v4652, 0
        %4728 = vmatprep.subr.mxu0 0.0
        %4729 = vmatpush1.msra.mxu0 %v577
        %4730 = vmatprep.subr.mxu0 0.0
        %4731 = vmatpush1.msra.mxu0 %v578
        %4732 = vmatprep.subr.mxu0 0.0
        %4733 = vmatpush1.msra.mxu0 0.0
        %4734 = vmatprep.subr.mxu0 0.0
        %4735 = vmatpush1.msra.mxu0 0.0
        %4736 = vmatprep.subr.mxu0 0.0
        %4737 = vmatpush1.msra.mxu0 0.0
        %4738 = vmatprep.subr.mxu0 0.0
        %4739 = vmatpush1.msra.mxu0 0.0
        %4740 = vmatprep.subr.mxu0 0.0
        %4741 = vmatpush1.msra.mxu0 0.0
        %4742 = vmatprep.subr.mxu0 0.0
        %4743 = vmatpush1.msra.mxu0 0.0
        %4744 = vmatprep.subr.mxu0 0.0
        %4745 = vmatpush1.msra.mxu0 0.0
        %4746 = vmatprep.subr.mxu0 0.0
        %4747 = vmatpush1.msra.mxu0 0.0
        %4748 = vmatprep.subr.mxu0 0.0
        %4749 = vmatpush1.msra.mxu0 0.0
        %4750 = vmatprep.subr.mxu0 0.0
        %4751 = vmatpush1.msra.mxu0 0.0
        %4752 = vmatprep.subr.mxu0 0.0
        %4753 = vmatpush1.msra.mxu0 0.0
        %4754 = vmatprep.subr.mxu0 0.0
        %4755 = vmatpush1.msra.mxu0 0.0
        %4756 = vmatprep.subr.mxu0 0.0
        %4757 = vmatpush1.msra.mxu0 0.0
        %4758 = vmatprep.subr.mxu0 0.0
        %4759 = vmatpush1.msra.mxu0 0.0
        %4760 = vmatprep.subr.mxu0 0.0
        %4761 = vmatpush1.msra.mxu0 0.0
        %4762 = vmatprep.subr.mxu0 0.0
        %4763 = vmatpush1.msra.mxu0 0.0
        %4764 = vmatprep.subr.mxu0 0.0
        %4765 = vmatpush1.msra.mxu0 0.0
        %4766 = vmatprep.subr.mxu0 0.0
        %4767 = vmatpush1.msra.mxu0 0.0
        %4768 = vmatprep.subr.mxu0 0.0
        %4769 = vmatpush1.msra.mxu0 0.0
        %4770 = vmatprep.subr.mxu0 0.0
        %4771 = vmatpush1.msra.mxu0 0.0
        %4772 = vmatprep.subr.mxu0 0.0
        %4773 = vmatpush1.msra.mxu0 0.0
        %4774 = vmatprep.subr.mxu0 0.0
        %4775 = vmatpush1.msra.mxu0 0.0
        %4776 = vmatprep.subr.mxu0 0.0
        %4777 = vmatpush1.msra.mxu0 0.0
        %4778 = vmatprep.subr.mxu0 0.0
        %4779 = vmatpush1.msra.mxu0 0.0
        %4780 = vmatprep.subr.mxu0 0.0
        %4781 = vmatpush1.msra.mxu0 0.0
        %4782 = vmatprep.subr.mxu0 0.0
        %4783 = vmatpush1.msra.mxu0 0.0
        %4784 = vmatprep.subr.mxu0 0.0
        %4785 = vmatpush1.msra.mxu0 0.0
        %4786 = vmatprep.subr.mxu0 0.0
        %4787 = vmatpush1.msra.mxu0 0.0
        %4788 = vmatprep.subr.mxu0 0.0
        %4789 = vmatpush1.msra.mxu0 0.0
        %4790 = vmatprep.subr.mxu0 0.0
        %4791 = vmatpush1.msra.mxu0 0.0
        %4792 = vmatprep.mubr.f32.mxu0 0.0
        %4793 = vmatmul.mubr.f32.gmra.mrb[0].mxu0 %v4726
        %v4794 = vpop.f32.mrb[0].mxu0
        %v4795 = vadd.f32 %v4722, %v4794
        %v4796 = vpop.f32.mrb[0].mxu0
        %4797 = vdwg.mxu0
        %v4798 = vadd.f32 %v4795, %v594
        %v4799 = vtanh.pop %v4798
        %4800 = vmatprep.subr.mxu0 0.0
        %4801 = vmatpush1.msra.mxu0 %v587
        %4802 = vmatprep.subr.mxu0 0.0
        %4803 = vmatpush1.msra.mxu0 %v588
        %4804 = vmatprep.subr.mxu0 0.0
        %4805 = vmatpush1.msra.mxu0 0.0
        %4806 = vmatprep.subr.mxu0 0.0
        %4807 = vmatpush1.msra.mxu0 0.0
        %4808 = vmatprep.subr.mxu0 0.0
        %4809 = vmatpush1.msra.mxu0 0.0
        %4810 = vmatprep.subr.mxu0 0.0
        %4811 = vmatpush1.msra.mxu0 0.0
        %4812 = vmatprep.subr.mxu0 0.0
        %4813 = vmatpush1.msra.mxu0 0.0
        %4814 = vmatprep.subr.mxu0 0.0
        %4815 = vmatpush1.msra.mxu0 0.0
        %4816 = vmatprep.subr.mxu0 0.0
        %4817 = vmatpush1.msra.mxu0 0.0
        %4818 = vmatprep.subr.mxu0 0.0
        %4819 = vmatpush1.msra.mxu0 0.0
        %4820 = vmatprep.subr.mxu0 0.0
        %4821 = vmatpush1.msra.mxu0 0.0
        %4822 = vmatprep.subr.mxu0 0.0
        %4823 = vmatpush1.msra.mxu0 0.0
        %4824 = vmatprep.subr.mxu0 0.0
        %4825 = vmatpush1.msra.mxu0 0.0
        %4826 = vmatprep.subr.mxu0 0.0
        %4827 = vmatpush1.msra.mxu0 0.0
        %4828 = vmatprep.subr.mxu0 0.0
        %4829 = vmatpush1.msra.mxu0 0.0
        %4830 = vmatprep.subr.mxu0 0.0
        %4831 = vmatpush1.msra.mxu0 0.0
        %4832 = vmatprep.subr.mxu0 0.0
        %4833 = vmatpush1.msra.mxu0 0.0
        %4834 = vmatprep.subr.mxu0 0.0
        %4835 = vmatpush1.msra.mxu0 0.0
        %4836 = vmatprep.subr.mxu0 0.0
        %4837 = vmatpush1.msra.mxu0 0.0
        %4838 = vmatprep.subr.mxu0 0.0
        %4839 = vmatpush1.msra.mxu0 0.0
        %4840 = vmatprep.subr.mxu0 0.0
        %4841 = vmatpush1.msra.mxu0 0.0
        %4842 = vmatprep.subr.mxu0 0.0
        %4843 = vmatpush1.msra.mxu0 0.0
        %4844 = vmatprep.subr.mxu0 0.0
        %4845 = vmatpush1.msra.mxu0 0.0
        %4846 = vmatprep.subr.mxu0 0.0
        %4847 = vmatpush1.msra.mxu0 0.0
        %4848 = vmatprep.subr.mxu0 0.0
        %4849 = vmatpush1.msra.mxu0 0.0
        %4850 = vmatprep.subr.mxu0 0.0
        %4851 = vmatpush1.msra.mxu0 0.0
        %4852 = vmatprep.subr.mxu0 0.0
        %4853 = vmatpush1.msra.mxu0 0.0
        %4854 = vmatprep.subr.mxu0 0.0
        %4855 = vmatpush1.msra.mxu0 0.0
        %4856 = vmatprep.subr.mxu0 0.0
        %4857 = vmatpush1.msra.mxu0 0.0
        %4858 = vmatprep.subr.mxu0 0.0
        %4859 = vmatpush1.msra.mxu0 0.0
        %4860 = vmatprep.subr.mxu0 0.0
        %4861 = vmatpush1.msra.mxu0 0.0
        %4862 = vmatprep.subr.mxu0 0.0
        %4863 = vmatpush1.msra.mxu0 0.0
        %4864 = vmatprep.mubr.f32.mxu0 0.0
        %4865 = vmatmul.mubr.f32.gmra.mrb[0].mxu0 %v4726
        %v4866 = vpop.f32.mrb[0].mxu0
        %v4867 = vadd.f32 0.0, %v4866
        %v4868 = vpop.f32.mrb[0].mxu0
        %4869 = vdwg.mxu0
        %v4871 = vsel %vm636, %v4799, 0
        %4873 = vmatprep.subr.mxu0 0.0
        %4874 = vmatpush1.msra.mxu0 %v583
        %4875 = vmatprep.subr.mxu0 0.0
        %4876 = vmatpush1.msra.mxu0 %v584
        %4877 = vmatprep.subr.mxu0 0.0
        %4878 = vmatpush1.msra.mxu0 %v585
        %4879 = vmatprep.subr.mxu0 0.0
        %4880 = vmatpush1.msra.mxu0 %v586
        %4881 = vmatprep.subr.mxu0 0.0
        %4882 = vmatpush1.msra.mxu0 0.0
        %4883 = vmatprep.subr.mxu0 0.0
        %4884 = vmatpush1.msra.mxu0 0.0
        %4885 = vmatprep.subr.mxu0 0.0
        %4886 = vmatpush1.msra.mxu0 0.0
        %4887 = vmatprep.subr.mxu0 0.0
        %4888 = vmatpush1.msra.mxu0 0.0
        %4889 = vmatprep.subr.mxu0 0.0
        %4890 = vmatpush1.msra.mxu0 0.0
        %4891 = vmatprep.subr.mxu0 0.0
        %4892 = vmatpush1.msra.mxu0 0.0
        %4893 = vmatprep.subr.mxu0 0.0
        %4894 = vmatpush1.msra.mxu0 0.0
        %4895 = vmatprep.subr.mxu0 0.0
        %4896 = vmatpush1.msra.mxu0 0.0
        %4897 = vmatprep.subr.mxu0 0.0
        %4898 = vmatpush1.msra.mxu0 0.0
        %4899 = vmatprep.subr.mxu0 0.0
        %4900 = vmatpush1.msra.mxu0 0.0
        %4901 = vmatprep.subr.mxu0 0.0
        %4902 = vmatpush1.msra.mxu0 0.0
        %4903 = vmatprep.subr.mxu0 0.0
        %4904 = vmatpush1.msra.mxu0 0.0
        %4905 = vmatprep.subr.mxu0 0.0
        %4906 = vmatpush1.msra.mxu0 0.0
        %4907 = vmatprep.subr.mxu0 0.0
        %4908 = vmatpush1.msra.mxu0 0.0
        %4909 = vmatprep.subr.mxu0 0.0
        %4910 = vmatpush1.msra.mxu0 0.0
        %4911 = vmatprep.subr.mxu0 0.0
        %4912 = vmatpush1.msra.mxu0 0.0
        %4913 = vmatprep.subr.mxu0 0.0
        %4914 = vmatpush1.msra.mxu0 0.0
        %4915 = vmatprep.subr.mxu0 0.0
        %4916 = vmatpush1.msra.mxu0 0.0
        %4917 = vmatprep.subr.mxu0 0.0
        %4918 = vmatpush1.msra.mxu0 0.0
        %4919 = vmatprep.subr.mxu0 0.0
        %4920 = vmatpush1.msra.mxu0 0.0
        %4921 = vmatprep.subr.mxu0 0.0
        %4922 = vmatpush1.msra.mxu0 0.0
        %4923 = vmatprep.subr.mxu0 0.0
        %4924 = vmatpush1.msra.mxu0 0.0
        %4925 = vmatprep.subr.mxu0 0.0
        %4926 = vmatpush1.msra.mxu0 0.0
        %4927 = vmatprep.subr.mxu0 0.0
        %4928 = vmatpush1.msra.mxu0 0.0
        %4929 = vmatprep.subr.mxu0 0.0
        %4930 = vmatpush1.msra.mxu0 0.0
        %4931 = vmatprep.subr.mxu0 0.0
        %4932 = vmatpush1.msra.mxu0 0.0
        %4933 = vmatprep.subr.mxu0 0.0
        %4934 = vmatpush1.msra.mxu0 0.0
        %4935 = vmatprep.subr.mxu0 0.0
        %4936 = vmatpush1.msra.mxu0 0.0
        %4937 = vmatprep.mubr.f32.mxu0 0.0
        %4938 = vmatmul.mubr.f32.gmra.mrb[0].mxu0 %v4871
        %v4939 = vpop.f32.mrb[0].mxu0
        %v4940 = vadd.f32 %v4867, %v4939
        %v4941 = vpop.f32.mrb[0].mxu0
        %4942 = vdwg.mxu0
        %v4943 = vadd.f32 %v4940, %v601
        %v4944 = vmax.f32 %v4943, 0.0
        %v4945 = vld [vmem:[%s9] sm:$0xff]
        %v4946 = vld [vmem:[%s9 + $0x8] sm:$0xff]
        %v4947 = vld [vmem:[%s9 + $0x10] sm:$0xff]
        %v4948 = vld [vmem:[%s9 + $0x18] sm:$0xff]
        %v4950 = vsel %vm636, %v4944, 0
        %4952 = vmatprep.subr.mxu0 0.0
        %4953 = vmatpush1.msra.mxu0 %v4945
        %4954 = vmatprep.subr.mxu0 0.0
        %4955 = vmatpush1.msra.mxu0 %v4946
        %4956 = vmatprep.subr.mxu0 0.0
        %4957 = vmatpush1.msra.mxu0 %v4947
        %4958 = vmatprep.subr.mxu0 0.0
        %4959 = vmatpush1.msra.mxu0 %v4948
        %4960 = vmatprep.subr.mxu0 0.0
        %4961 = vmatpush1.msra.mxu0 0.0
        %4962 = vmatprep.subr.mxu0 0.0
        %4963 = vmatpush1.msra.mxu0 0.0
        %4964 = vmatprep.subr.mxu0 0.0
        %4965 = vmatpush1.msra.mxu0 0.0
        %4966 = vmatprep.subr.mxu0 0.0
        %4967 = vmatpush1.msra.mxu0 0.0
        %4968 = vmatprep.subr.mxu0 0.0
        %4969 = vmatpush1.msra.mxu0 0.0
        %4970 = vmatprep.subr.mxu0 0.0
        %4971 = vmatpush1.msra.mxu0 0.0
        %4972 = vmatprep.subr.mxu0 0.0
        %4973 = vmatpush1.msra.mxu0 0.0
        %4974 = vmatprep.subr.mxu0 0.0
        %4975 = vmatpush1.msra.mxu0 0.0
        %4976 = vmatprep.subr.mxu0 0.0
        %4977 = vmatpush1.msra.mxu0 0.0
        %4978 = vmatprep.subr.mxu0 0.0
        %4979 = vmatpush1.msra.mxu0 0.0
        %4980 = vmatprep.subr.mxu0 0.0
        %4981 = vmatpush1.msra.mxu0 0.0
        %4982 = vmatprep.subr.mxu0 0.0
        %4983 = vmatpush1.msra.mxu0 0.0
        %4984 = vmatprep.subr.mxu0 0.0
        %4985 = vmatpush1.msra.mxu0 0.0
        %4986 = vmatprep.subr.mxu0 0.0
        %4987 = vmatpush1.msra.mxu0 0.0
        %4988 = vmatprep.subr.mxu0 0.0
        %4989 = vmatpush1.msra.mxu0 0.0
        %4990 = vmatprep.subr.mxu0 0.0
        %4991 = vmatpush1.msra.mxu0 0.0
        %4992 = vmatprep.subr.mxu0 0.0
        %4993 = vmatpush1.msra.mxu0 0.0
        %4994 = vmatprep.subr.mxu0 0.0
        %4995 = vmatpush1.msra.mxu0 0.0
        %4996 = vmatprep.subr.mxu0 0.0
        %4997 = vmatpush1.msra.mxu0 0.0
        %4998 = vmatprep.subr.mxu0 0.0
        %4999 = vmatpush1.msra.mxu0 0.0
        %5000 = vmatprep.subr.mxu0 0.0
        %5001 = vmatpush1.msra.mxu0 0.0
        %5002 = vmatprep.subr.mxu0 0.0
        %5003 = vmatpush1.msra.mxu0 0.0
        %5004 = vmatprep.subr.mxu0 0.0
        %5005 = vmatpush1.msra.mxu0 0.0
        %5006 = vmatprep.subr.mxu0 0.0
        %5007 = vmatpush1.msra.mxu0 0.0
        %5008 = vmatprep.subr.mxu0 0.0
        %5009 = vmatpush1.msra.mxu0 0.0
        %5010 = vmatprep.subr.mxu0 0.0
        %5011 = vmatpush1.msra.mxu0 0.0
        %5012 = vmatprep.subr.mxu0 0.0
        %5013 = vmatpush1.msra.mxu0 0.0
        %5014 = vmatprep.subr.mxu0 0.0
        %5015 = vmatpush1.msra.mxu0 0.0
        %5016 = vmatprep.mubr.f32.mxu0 0.0
        %5017 = vmatmul.mubr.f32.gmra.mrb[0].mxu0 %v4950
        %v5018 = vpop.f32.mrb[0].mxu0
        %v5019 = vadd.f32 %v608, %v5018
        %v5020 = vpop.f32.mrb[0].mxu0
        %5021 = vdwg.mxu0
        %v5022 = vmax.f32 %v5019, 0.0
        %v5023 = vld [vmem:[%s10] sm:$0xff]
        %v5024 = vld [vmem:[%s10 + $0x8] sm:$0xff]
        %v5025 = vld [vmem:[%s10 + $0x10] sm:$0xff]
        %v5026 = vld [vmem:[%s10 + $0x18] sm:$0xff]
        %5027 = vrot.lane.b32.xlu0 %v4944, 96
        %v5028 = vpop.permute.xlu0 %5027
        %v5029 = vsel %vm636, %v5028, 0
        %5031 = vmatprep.subr.mxu0 0.0
        %5032 = vmatpush1.msra.mxu0 %v5023
        %5033 = vmatprep.subr.mxu0 0.0
        %5034 = vmatpush1.msra.mxu0 %v5024
        %5035 = vmatprep.subr.mxu0 0.0
        %5036 = vmatpush1.msra.mxu0 %v5025
        %5037 = vmatprep.subr.mxu0 0.0
        %5038 = vmatpush1.msra.mxu0 %v5026
        %5039 = vmatprep.subr.mxu0 0.0
        %5040 = vmatpush1.msra.mxu0 0.0
        %5041 = vmatprep.subr.mxu0 0.0
        %5042 = vmatpush1.msra.mxu0 0.0
        %5043 = vmatprep.subr.mxu0 0.0
        %5044 = vmatpush1.msra.mxu0 0.0
        %5045 = vmatprep.subr.mxu0 0.0
        %5046 = vmatpush1.msra.mxu0 0.0
        %5047 = vmatprep.subr.mxu0 0.0
        %5048 = vmatpush1.msra.mxu0 0.0
        %5049 = vmatprep.subr.mxu0 0.0
        %5050 = vmatpush1.msra.mxu0 0.0
        %5051 = vmatprep.subr.mxu0 0.0
        %5052 = vmatpush1.msra.mxu0 0.0
        %5053 = vmatprep.subr.mxu0 0.0
        %5054 = vmatpush1.msra.mxu0 0.0
        %5055 = vmatprep.subr.mxu0 0.0
        %5056 = vmatpush1.msra.mxu0 0.0
        %5057 = vmatprep.subr.mxu0 0.0
        %5058 = vmatpush1.msra.mxu0 0.0
        %5059 = vmatprep.subr.mxu0 0.0
        %5060 = vmatpush1.msra.mxu0 0.0
        %5061 = vmatprep.subr.mxu0 0.0
        %5062 = vmatpush1.msra.mxu0 0.0
        %5063 = vmatprep.subr.mxu0 0.0
        %5064 = vmatpush1.msra.mxu0 0.0
        %5065 = vmatprep.subr.mxu0 0.0
        %5066 = vmatpush1.msra.mxu0 0.0
        %5067 = vmatprep.subr.mxu0 0.0
        %5068 = vmatpush1.msra.mxu0 0.0
        %5069 = vmatprep.subr.mxu0 0.0
        %5070 = vmatpush1.msra.mxu0 0.0
        %5071 = vmatprep.subr.mxu0 0.0
        %5072 = vmatpush1.msra.mxu0 0.0
        %5073 = vmatprep.subr.mxu0 0.0
        %5074 = vmatpush1.msra.mxu0 0.0
        %5075 = vmatprep.subr.mxu0 0.0
        %5076 = vmatpush1.msra.mxu0 0.0
        %5077 = vmatprep.subr.mxu0 0.0
        %5078 = vmatpush1.msra.mxu0 0.0
        %5079 = vmatprep.subr.mxu0 0.0
        %5080 = vmatpush1.msra.mxu0 0.0
        %5081 = vmatprep.subr.mxu0 0.0
        %5082 = vmatpush1.msra.mxu0 0.0
        %5083 = vmatprep.subr.mxu0 0.0
        %5084 = vmatpush1.msra.mxu0 0.0
        %5085 = vmatprep.subr.mxu0 0.0
        %5086 = vmatpush1.msra.mxu0 0.0
        %5087 = vmatprep.subr.mxu0 0.0
        %5088 = vmatpush1.msra.mxu0 0.0
        %5089 = vmatprep.subr.mxu0 0.0
        %5090 = vmatpush1.msra.mxu0 0.0
        %5091 = vmatprep.subr.mxu0 0.0
        %5092 = vmatpush1.msra.mxu0 0.0
        %5093 = vmatprep.subr.mxu0 0.0
        %5094 = vmatpush1.msra.mxu0 0.0
        %5095 = vmatprep.mubr.f32.mxu0 0.0
        %5096 = vmatmul.mubr.f32.gmra.mrb[0].mxu0 %v5029
        %v5097 = vpop.f32.mrb[0].mxu0
        %v5098 = vadd.f32 %v615, %v5097
        %v5099 = vpop.f32.mrb[0].mxu0
        %5100 = vdwg.mxu0
        %v5101 = vmax.f32 %v5098, 0.0
        %v5102 = vld [vmem:[%s11] sm:$0xff]
        %v5103 = vld [vmem:[%s11 + $0x8] sm:$0xff]
        %v5104 = vld [vmem:[%s11 + $0x10] sm:$0xff]
        %v5105 = vld [vmem:[%s11 + $0x18] sm:$0xff]
        %5106 = vrot.lane.b32.xlu0 %v4944, 64
        %v5107 = vpop.permute.xlu0 %5106
        %v5108 = vsel %vm636, %v5107, 0
        %5110 = vmatprep.subr.mxu0 0.0
        %5111 = vmatpush1.msra.mxu0 %v5102
        %5112 = vmatprep.subr.mxu0 0.0
        %5113 = vmatpush1.msra.mxu0 %v5103
        %5114 = vmatprep.subr.mxu0 0.0
        %5115 = vmatpush1.msra.mxu0 %v5104
        %5116 = vmatprep.subr.mxu0 0.0
        %5117 = vmatpush1.msra.mxu0 %v5105
        %5118 = vmatprep.subr.mxu0 0.0
        %5119 = vmatpush1.msra.mxu0 0.0
        %5120 = vmatprep.subr.mxu0 0.0
        %5121 = vmatpush1.msra.mxu0 0.0
        %5122 = vmatprep.subr.mxu0 0.0
        %5123 = vmatpush1.msra.mxu0 0.0
        %5124 = vmatprep.subr.mxu0 0.0
        %5125 = vmatpush1.msra.mxu0 0.0
        %5126 = vmatprep.subr.mxu0 0.0
        %5127 = vmatpush1.msra.mxu0 0.0
        %5128 = vmatprep.subr.mxu0 0.0
        %5129 = vmatpush1.msra.mxu0 0.0
        %5130 = vmatprep.subr.mxu0 0.0
        %5131 = vmatpush1.msra.mxu0 0.0
        %5132 = vmatprep.subr.mxu0 0.0
        %5133 = vmatpush1.msra.mxu0 0.0
        %5134 = vmatprep.subr.mxu0 0.0
        %5135 = vmatpush1.msra.mxu0 0.0
        %5136 = vmatprep.subr.mxu0 0.0
        %5137 = vmatpush1.msra.mxu0 0.0
        %5138 = vmatprep.subr.mxu0 0.0
        %5139 = vmatpush1.msra.mxu0 0.0
        %5140 = vmatprep.subr.mxu0 0.0
        %5141 = vmatpush1.msra.mxu0 0.0
        %5142 = vmatprep.subr.mxu0 0.0
        %5143 = vmatpush1.msra.mxu0 0.0
        %5144 = vmatprep.subr.mxu0 0.0
        %5145 = vmatpush1.msra.mxu0 0.0
        %5146 = vmatprep.subr.mxu0 0.0
        %5147 = vmatpush1.msra.mxu0 0.0
        %5148 = vmatprep.subr.mxu0 0.0
        %5149 = vmatpush1.msra.mxu0 0.0
        %5150 = vmatprep.subr.mxu0 0.0
        %5151 = vmatpush1.msra.mxu0 0.0
        %5152 = vmatprep.subr.mxu0 0.0
        %5153 = vmatpush1.msra.mxu0 0.0
        %5154 = vmatprep.subr.mxu0 0.0
        %5155 = vmatpush1.msra.mxu0 0.0
        %5156 = vmatprep.subr.mxu0 0.0
        %5157 = vmatpush1.msra.mxu0 0.0
        %5158 = vmatprep.subr.mxu0 0.0
        %5159 = vmatpush1.msra.mxu0 0.0
        %5160 = vmatprep.subr.mxu0 0.0
        %5161 = vmatpush1.msra.mxu0 0.0
        %5162 = vmatprep.subr.mxu0 0.0
        %5163 = vmatpush1.msra.mxu0 0.0
        %5164 = vmatprep.subr.mxu0 0.0
        %5165 = vmatpush1.msra.mxu0 0.0
        %5166 = vmatprep.subr.mxu0 0.0
        %5167 = vmatpush1.msra.mxu0 0.0
        %5168 = vmatprep.subr.mxu0 0.0
        %5169 = vmatpush1.msra.mxu0 0.0
        %5170 = vmatprep.subr.mxu0 0.0
        %5171 = vmatpush1.msra.mxu0 0.0
        %5172 = vmatprep.subr.mxu0 0.0
        %5173 = vmatpush1.msra.mxu0 0.0
        %5174 = vmatprep.mubr.f32.mxu0 0.0
        %5175 = vmatmul.mubr.f32.gmra.mrb[0].mxu0 %v5108
        %v5176 = vpop.f32.mrb[0].mxu0
        %v5177 = vadd.f32 %v622, %v5176
        %v5178 = vpop.f32.mrb[0].mxu0
        %5179 = vdwg.mxu0
        %v5180 = vmax.f32 %v5177, 0.0
        %v5181 = vld [vmem:[%s13] sm:$0xff]
        %v5182 = vld [vmem:[%s13 + $0x8] sm:$0xff]
        %v5183 = vld [vmem:[%s13 + $0x10] sm:$0xff]
        %v5184 = vld [vmem:[%s13 + $0x18] sm:$0xff]
        %v5185 = vld [vmem:[%s13 + $0x20] sm:$0xff]
        %v5186 = vld [vmem:[%s13 + $0x28] sm:$0xff]
        %v5187 = vld [vmem:[%s13 + $0x30] sm:$0xff]
        %v5188 = vld [vmem:[%s13 + $0x38] sm:$0xff]
        %v5189 = vld [vmem:[%s13 + $0x40] sm:$0xff]
        %v5190 = vld [vmem:[%s13 + $0x48] sm:$0xff]
        %v5191 = vld [vmem:[%s13 + $0x50] sm:$0xff]
        %v5192 = vld [vmem:[%s13 + $0x58] sm:$0xff]
        %v5193 = vld [vmem:[%s13 + $0x60] sm:$0xff]
        %v5194 = vld [vmem:[%s13 + $0x68] sm:$0xff]
        %v5195 = vld [vmem:[%s13 + $0x70] sm:$0xff]
        %v5196 = vld [vmem:[%s13 + $0x78] sm:$0xff]
        %v5197 = vld [vmem:[%s13 + $0x80] sm:$0xff]
        %v5198 = vld [vmem:[%s13 + $0x88] sm:$0xff]
        %v5199 = vld [vmem:[%s13 + $0x90] sm:$0xff]
        %v5200 = vld [vmem:[%s13 + $0x98] sm:$0xff]
        %v5201 = vld [vmem:[%s13 + $0xa0] sm:$0xff]
        %v5202 = vld [vmem:[%s13 + $0xa8] sm:$0xff]
        %v5203 = vld [vmem:[%s13 + $0xb0] sm:$0xff]
        %v5204 = vld [vmem:[%s13 + $0xb8] sm:$0xff]
        %v5205 = vld [vmem:[%s13 + $0xc0] sm:$0xff]
        %v5206 = vld [vmem:[%s13 + $0xc8] sm:$0xff]
        %v5207 = vld [vmem:[%s13 + $0xd0] sm:$0xff]
        %v5208 = vld [vmem:[%s13 + $0xd8] sm:$0xff]
        %v5209 = vld [vmem:[%s13 + $0xe0] sm:$0xff]
        %v5210 = vld [vmem:[%s13 + $0xe8] sm:$0xff]
        %v5211 = vld [vmem:[%s13 + $0xf0] sm:$0xff]
        %v5212 = vld [vmem:[%s13 + $0xf8] sm:$0xff]
        %v5213 = vld [vmem:[%s13 + $0x100] sm:$0xff]
        %v5214 = vld [vmem:[%s13 + $0x108] sm:$0xff]
        %v5215 = vld [vmem:[%s13 + $0x110] sm:$0xff]
        %v5216 = vld [vmem:[%s13 + $0x118] sm:$0xff]
        %v5217 = vld [vmem:[%s13 + $0x120] sm:$0xff]
        %v5218 = vld [vmem:[%s13 + $0x128] sm:$0xff]
        %v5219 = vld [vmem:[%s13 + $0x130] sm:$0xff]
        %v5220 = vld [vmem:[%s13 + $0x138] sm:$0xff]
        %v5221 = vld [vmem:[%s13 + $0x140] sm:$0xff]
        %v5222 = vld [vmem:[%s13 + $0x148] sm:$0xff]
        %v5223 = vld [vmem:[%s13 + $0x150] sm:$0xff]
        %v5224 = vld [vmem:[%s13 + $0x158] sm:$0xff]
        %v5225 = vld [vmem:[%s13 + $0x160] sm:$0xff]
        %v5226 = vld [vmem:[%s13 + $0x168] sm:$0xff]
        %v5227 = vld [vmem:[%s13 + $0x170] sm:$0xff]
        %v5228 = vld [vmem:[%s13 + $0x178] sm:$0xff]
        %5229 = vmatprep.subr.mxu0 0.0
        %5230 = vmatpush1.msra.mxu0 %v5181
        %5231 = vmatprep.subr.mxu0 0.0
        %5232 = vmatpush1.msra.mxu0 %v5182
        %5233 = vmatprep.subr.mxu0 0.0
        %5234 = vmatpush1.msra.mxu0 %v5183
        %5235 = vmatprep.subr.mxu0 0.0
        %5236 = vmatpush1.msra.mxu0 %v5184
        %5237 = vmatprep.subr.mxu0 0.0
        %5238 = vmatpush1.msra.mxu0 %v5185
        %5239 = vmatprep.subr.mxu0 0.0
        %5240 = vmatpush1.msra.mxu0 %v5186
        %5241 = vmatprep.subr.mxu0 0.0
        %5242 = vmatpush1.msra.mxu0 %v5187
        %5243 = vmatprep.subr.mxu0 0.0
        %5244 = vmatpush1.msra.mxu0 %v5188
        %5245 = vmatprep.subr.mxu0 0.0
        %5246 = vmatpush1.msra.mxu0 %v5189
        %5247 = vmatprep.subr.mxu0 0.0
        %5248 = vmatpush1.msra.mxu0 %v5190
        %5249 = vmatprep.subr.mxu0 0.0
        %5250 = vmatpush1.msra.mxu0 %v5191
        %5251 = vmatprep.subr.mxu0 0.0
        %5252 = vmatpush1.msra.mxu0 %v5192
        %5253 = vmatprep.subr.mxu0 0.0
        %5254 = vmatpush1.msra.mxu0 %v5193
        %5255 = vmatprep.subr.mxu0 0.0
        %5256 = vmatpush1.msra.mxu0 %v5194
        %5257 = vmatprep.subr.mxu0 0.0
        %5258 = vmatpush1.msra.mxu0 %v5195
        %5259 = vmatprep.subr.mxu0 0.0
        %5260 = vmatpush1.msra.mxu0 %v5196
        %5261 = vmatprep.subr.mxu0 0.0
        %5262 = vmatpush1.msra.mxu0 %v5197
        %5263 = vmatprep.subr.mxu0 0.0
        %5264 = vmatpush1.msra.mxu0 %v5198
        %5265 = vmatprep.subr.mxu0 0.0
        %5266 = vmatpush1.msra.mxu0 %v5199
        %5267 = vmatprep.subr.mxu0 0.0
        %5268 = vmatpush1.msra.mxu0 %v5200
        %5269 = vmatprep.subr.mxu0 0.0
        %5270 = vmatpush1.msra.mxu0 %v5201
        %5271 = vmatprep.subr.mxu0 0.0
        %5272 = vmatpush1.msra.mxu0 %v5202
        %5273 = vmatprep.subr.mxu0 0.0
        %5274 = vmatpush1.msra.mxu0 %v5203
        %5275 = vmatprep.subr.mxu0 0.0
        %5276 = vmatpush1.msra.mxu0 %v5204
        %5277 = vmatprep.subr.mxu0 0.0
        %5278 = vmatpush1.msra.mxu0 %v5205
        %5279 = vmatprep.subr.mxu0 0.0
        %5280 = vmatpush1.msra.mxu0 %v5206
        %5281 = vmatprep.subr.mxu0 0.0
        %5282 = vmatpush1.msra.mxu0 %v5207
        %5283 = vmatprep.subr.mxu0 0.0
        %5284 = vmatpush1.msra.mxu0 %v5208
        %5285 = vmatprep.subr.mxu0 0.0
        %5286 = vmatpush1.msra.mxu0 %v5209
        %5287 = vmatprep.subr.mxu0 0.0
        %5288 = vmatpush1.msra.mxu0 %v5210
        %5289 = vmatprep.subr.mxu0 0.0
        %5290 = vmatpush1.msra.mxu0 %v5211
        %5291 = vmatprep.subr.mxu0 0.0
        %5292 = vmatpush1.msra.mxu0 %v5212
        %5293 = vmatprep.mubr.f32.mxu0 %v5101
        %5294 = vmatmul.mubr.f32.gmra.mrb[0].mxu0 %v5022
        %v5295 = vpop.f32.mrb[0].mxu0
        %v5296 = vadd.f32 %v629, %v5295
        %v5297 = vpop.f32.mrb[0].mxu0
        %5298 = vdwg.mxu0
        %5299 = vmatprep.subr.mxu0 0.0
        %5300 = vmatpush1.msra.mxu0 %v5213
        %5301 = vmatprep.subr.mxu0 0.0
        %5302 = vmatpush1.msra.mxu0 %v5214
        %5303 = vmatprep.subr.mxu0 0.0
        %5304 = vmatpush1.msra.mxu0 %v5215
        %5305 = vmatprep.subr.mxu0 0.0
        %5306 = vmatpush1.msra.mxu0 %v5216
        %5307 = vmatprep.subr.mxu0 0.0
        %5308 = vmatpush1.msra.mxu0 %v5217
        %5309 = vmatprep.subr.mxu0 0.0
        %5310 = vmatpush1.msra.mxu0 %v5218
        %5311 = vmatprep.subr.mxu0 0.0
        %5312 = vmatpush1.msra.mxu0 %v5219
        %5313 = vmatprep.subr.mxu0 0.0
        %5314 = vmatpush1.msra.mxu0 %v5220
        %5315 = vmatprep.subr.mxu0 0.0
        %5316 = vmatpush1.msra.mxu0 %v5221
        %5317 = vmatprep.subr.mxu0 0.0
        %5318 = vmatpush1.msra.mxu0 %v5222
        %5319 = vmatprep.subr.mxu0 0.0
        %5320 = vmatpush1.msra.mxu0 %v5223
        %5321 = vmatprep.subr.mxu0 0.0
        %5322 = vmatpush1.msra.mxu0 %v5224
        %5323 = vmatprep.subr.mxu0 0.0
        %5324 = vmatpush1.msra.mxu0 %v5225
        %5325 = vmatprep.subr.mxu0 0.0
        %5326 = vmatpush1.msra.mxu0 %v5226
        %5327 = vmatprep.subr.mxu0 0.0
        %5328 = vmatpush1.msra.mxu0 %v5227
        %5329 = vmatprep.subr.mxu0 0.0
        %5330 = vmatpush1.msra.mxu0 %v5228
        %5331 = vmatprep.subr.mxu0 0.0
        %5332 = vmatpush1.msra.mxu0 0.0
        %5333 = vmatprep.subr.mxu0 0.0
        %5334 = vmatpush1.msra.mxu0 0.0
        %5335 = vmatprep.subr.mxu0 0.0
        %5336 = vmatpush1.msra.mxu0 0.0
        %5337 = vmatprep.subr.mxu0 0.0
        %5338 = vmatpush1.msra.mxu0 0.0
        %5339 = vmatprep.subr.mxu0 0.0
        %5340 = vmatpush1.msra.mxu0 0.0
        %5341 = vmatprep.subr.mxu0 0.0
        %5342 = vmatpush1.msra.mxu0 0.0
        %5343 = vmatprep.subr.mxu0 0.0
        %5344 = vmatpush1.msra.mxu0 0.0
        %5345 = vmatprep.subr.mxu0 0.0
        %5346 = vmatpush1.msra.mxu0 0.0
        %5347 = vmatprep.subr.mxu0 0.0
        %5348 = vmatpush1.msra.mxu0 0.0
        %5349 = vmatprep.subr.mxu0 0.0
        %5350 = vmatpush1.msra.mxu0 0.0
        %5351 = vmatprep.subr.mxu0 0.0
        %5352 = vmatpush1.msra.mxu0 0.0
        %5353 = vmatprep.subr.mxu0 0.0
        %5354 = vmatpush1.msra.mxu0 0.0
        %5355 = vmatprep.subr.mxu0 0.0
        %5356 = vmatpush1.msra.mxu0 0.0
        %5357 = vmatprep.subr.mxu0 0.0
        %5358 = vmatpush1.msra.mxu0 0.0
        %5359 = vmatprep.subr.mxu0 0.0
        %5360 = vmatpush1.msra.mxu0 0.0
        %5361 = vmatprep.subr.mxu0 0.0
        %5362 = vmatpush1.msra.mxu0 0.0
        %5363 = vmatprep.mubr.f32.mxu0 0.0
        %5364 = vmatmul.mubr.f32.gmra.mrb[0].mxu0 %v5180
        %v5365 = vpop.f32.mrb[0].mxu0
        %v5366 = vadd.f32 %v5296, %v5365
        %v5367 = vpop.f32.mrb[0].mxu0
        %5368 = vdwg.mxu0
        %v5369 = vxor.u32 %v5366, 2147483648
        %v5370 = vmul.f32 %v5369, 1.442695
        %v5371 = vpow.pop %v5370
        %v5372 = vadd.f32 %v5371, 1.0
        %v5373 = vrcp.pop %v5372
        %v5374 = vmul.f32 1.0, %v5373
        %v5375 = vsel %vm1361, %v5366, -inf
        %5376 = vmax.xlane.f32.xlu0 %v5375
        %v5377 = vpop.xlane.xlu0 %5376
        %v5378 = vsub.f32 %v5366, %v5377
        %v5379 = vmul.f32 %v5378, 1.442695
        %v5380 = vpow.pop %v5379
        %5382 = vrot.lane.b32.xlu0 %v5380, 120
        %v5383 = vpop.permute.xlu0 %5382
        %v5385 = vsel %vm1372, %v5383, 0.0
        %5386 = vadd.xlane.f32.xlu0 %v5385
        %v5387 = vpop.xlane.xlu0 %5386
        %v5388 = vrcp.pop %v5387
        %v5389 = vmul.f32 %v5380, %v5388
        %vm5390 = vcmp.lt.f32.partialorder %v4654, %v5374
        %v5391 = vsel %vm5390, 1, 0
        %v5392 = vcvt.s32.f32 %v5391
        %5393 = vrot.lane.b32.xlu0 %v5380, 127
        %v5394 = vpop.permute.xlu0 %5393
        %v5396 = vadd.f32 %v5380, %v5394
        %5397 = vrot.lane.b32.xlu0 %v5380, 126
        %v5398 = vpop.permute.xlu0 %5397
        %v5400 = vadd.f32 %v5396, %v5398
        %v5401 = vmul.f32 %v4654, %v5387
        %vm5402 = vcmp.ge.f32.partialorder %v5401, %v5380
        %v5403 = vsel %vm5402, 1, 0
        %vm5404 = vcmp.ge.f32.partialorder %v5401, %v5396
        %v5405 = vsel %vm5404, 1, 0
        %v5406 = vadd.s32 %v5403, %v5405
        %vm5407 = vcmp.ge.f32.partialorder %v5401, %v5400
        %v5408 = vsel %vm5407, 1, 0
        %v5409 = vadd.s32 %v5406, %v5408
        %vm5410 = vcmp.lt.s32.totalorder %v5409, 3
        %v5411 = vsel %vm5410, %v5409, 3
        %5412 = vset.pattern.permute.xlu0 8
        %5413 = vperm.xlu0 %5412, %v5411
        %v5414 = vpop.permute.xlu0 %5413
        %vm5415 = vcmp.eq.s32.totalorder %v632, %v5414
        %v5416 = vsel %vm5415, 1, 0
        %v5417 = vcvt.s32.f32 %v5416
        %5419 = vrot.lane.b32.xlu0 %v5374, 125
        %v5420 = vpop.permute.xlu0 %5419
        %vm5422 = vcmp.lt.f32.partialorder %v4654, %v5420
        %v5423 = vsel %vm5422, 1, 0
        %v5424 = vcvt.s32.f32 %v5423
        %5426 = vrot.lane.b32.xlu0 %v5424, 4
        %v5427 = vpop.permute.xlu0 %5426
        %5430 = vrot.lane.b32.xlu0 %v5392, 14
        %v5431 = vpop.permute.xlu0 %5430
        %5434 = vrot.lane.b32.xlu0 %v5417, 22
        %v5435 = vpop.permute.xlu0 %5434
        %5437 = vrot.lane.b32.xlu0 %v4799, 26
        %v5438 = vpop.permute.xlu0 %5437
        %v5440 = vsel %vm1428, %v5374, %v5389
        %v5441 = vsel %vm1430, %v5440, %v5374
        %v5442 = vsel %vm1432, %v5441, %v5427
        %v5443 = vsel %vm1434, %v5442, %v5431
        %v5444 = vsel %vm1436, %v5443, %v5435
        %v5445 = vsel %vm1438, %v5444, %v5438
        %v5446 = vsel %vm1440, %v5445, 0.0
        %s5447 = scalar_lea.vmem %s568, 40 [#allocation3]
        %5448 = vst.msk [vmem:[%s5447] sm:$0xff] %vm1442, %v5446
        %s5449 = sand.u32 %s364, 1
        %s5450 = sand.u32 %s364, 1
        %s5451 = smul.addr %s5450, 48
        %s5452 = scalar_lea.vmem [#allocation3], %s5451
        // Predicated region
        $region119: #{ar_graphrnn_generate.1} parent=113 // pred_check
          %p5453 = pneg %p374
        $region120: #{ar_graphrnn_generate.1} parent=113 // pred_check_branch
          %5455 = sbr.rel (%p5453) target = $region122
        $region121: #{ar_graphrnn_generate.1} parent=113 // pred_region
          %s5456 = smul.addr %s26, 8
          %s5457 = scalar_lea.vmem %s15, %s5456
          // Predicated region
          $region123: #{ar_graphrnn_generate.1} parent=121 // pred_check
            _
          $region124: #{ar_graphrnn_generate.1} parent=121 // pred_check_branch
            %5459 = sbr.rel (0) target = $region126
          $region125: #{ar_graphrnn_generate.1} parent=121 // pred_region
            // Predicated region
            $region127: #{ar_graphrnn_generate.1} parent=125 // pred_check
              _
            $region128: #{ar_graphrnn_generate.1} parent=125 // pred_check_branch
              %5461 = sbr.rel (0) target = $region130
            $region129: #{ar_graphrnn_generate.1} parent=125 // pred_region
              // Predicated region
              $region142: #{ar_graphrnn_generate.1} parent=129 // pred_check
                _
              $region143: #{ar_graphrnn_generate.1} parent=129 // pred_check_branch
                %5486 = sbr.rel (0) target = $region145
              $region144: #{ar_graphrnn_generate.1} parent=129 // pred_region
                loop: start=0, step=1, limit=1
                $region146: #{ar_graphrnn_generate.1} parent=144 // loop_pre_header
                  _
                $region147: #{ar_graphrnn_generate.1} parent=144 // loop_header
                  %s5488 = sphi 0, %s5492
                  %p5489 = scmp.ge.s32.totalorder %s5488, 1
                  %s5493 = sphi %s5452, %s5452
                  %s5494 = sphi %s5457, %s5457
                $region148: #{ar_graphrnn_generate.1} parent=144 // loop_header_branch
                  %5491 = sbr.rel (%p5489) target = $region152
                $region149: #{ar_graphrnn_generate.1} parent=144 // loop_body
                  %v5495 = vld [vmem:[%s5493] sm:$0xff]
                  %5496 = vst [vmem:[%s5494] sm:$0xff] %v5495
                  %v5497 = vld [vmem:[%s5493 + $0x8] sm:$0xff]
                  %5498 = vst [vmem:[%s5494 + $0x10] sm:$0xff] %v5497
                  %v5499 = vld [vmem:[%s5493 + $0x10] sm:$0xff]
                  %5500 = vst [vmem:[%s5494 + $0x20] sm:$0xff] %v5499
                  %v5501 = vld [vmem:[%s5493 + $0x18] sm:$0xff]
                  %5502 = vst [vmem:[%s5494 + $0x30] sm:$0xff] %v5501
                  %v5503 = vld [vmem:[%s5493 + $0x20] sm:$0xff]
                  %5504 = vst [vmem:[%s5494 + $0x40] sm:$0xff] %v5503
                  %v5505 = vld [vmem:[%s5493 + $0x28] sm:$0xff]
                  %5506 = vst [vmem:[%s5494 + $0x50] sm:$0xff] %v5505
                $region150: #{ar_graphrnn_generate.1} parent=144 // loop_footer
                  %s5492 = sadd.s32 1, %s5488
                $region151: #{ar_graphrnn_generate.1} parent=144 // loop_footer_branch
                  %5487 = sbr.rel target = $region147
                $region152: #{ar_graphrnn_generate.1} parent=144 // loop_exit
                  _
              $region145: #{ar_graphrnn_generate.1} parent=129 // pred_fallthru
                _
              // Predicated region
              $region153: #{ar_graphrnn_generate.1} parent=129 // pred_check
                _
              $region154: #{ar_graphrnn_generate.1} parent=129 // pred_check_branch
                %5508 = sbr.rel target = $region156
              $region155: #{ar_graphrnn_generate.1} parent=129 // pred_region
                _
              $region156: #{ar_graphrnn_generate.1} parent=129 // pred_fallthru
                _
            $region130: #{ar_graphrnn_generate.1} parent=125 // pred_fallthru
              _
            // Predicated region
            $region131: #{ar_graphrnn_generate.1} parent=125 // pred_check
              _
            $region132: #{ar_graphrnn_generate.1} parent=125 // pred_check_branch
              %5463 = sbr.rel target = $region134
            $region133: #{ar_graphrnn_generate.1} parent=125 // pred_region
              loop: start=0, step=1, limit=1
              $region135: #{ar_graphrnn_generate.1} parent=133 // loop_pre_header
                _
              $region136: #{ar_graphrnn_generate.1} parent=133 // loop_header
                %s5466 = sphi 0, %s5470
                %p5467 = scmp.ge.s32.totalorder %s5466, 1
                %s5471 = sphi %s5452, %s5452
                %s5472 = sphi %s5457, %s5457
              $region137: #{ar_graphrnn_generate.1} parent=133 // loop_header_branch
                %5469 = sbr.rel (%p5467) target = $region141
              $region138: #{ar_graphrnn_generate.1} parent=133 // loop_body
                %v5473 = vld [vmem:[%s5471] sm:$0xff]
                %5474 = vst [vmem:[%s5472] sm:$0xff] %v5473
                %v5475 = vld [vmem:[%s5471 + $0x8] sm:$0xff]
                %5476 = vst [vmem:[%s5472 + $0x10] sm:$0xff] %v5475
                %v5477 = vld [vmem:[%s5471 + $0x10] sm:$0xff]
                %5478 = vst [vmem:[%s5472 + $0x20] sm:$0xff] %v5477
                %v5479 = vld [vmem:[%s5471 + $0x18] sm:$0xff]
                %5480 = vst [vmem:[%s5472 + $0x30] sm:$0xff] %v5479
                %v5481 = vld [vmem:[%s5471 + $0x20] sm:$0xff]
                %5482 = vst [vmem:[%s5472 + $0x40] sm:$0xff] %v5481
                %v5483 = vld [vmem:[%s5471 + $0x28] sm:$0xff]
                %5484 = vst [vmem:[%s5472 + $0x50] sm:$0xff] %v5483
              $region139: #{ar_graphrnn_generate.1} parent=133 // loop_footer
                %s5470 = sadd.s32 1, %s5466
              $region140: #{ar_graphrnn_generate.1} parent=133 // loop_footer_branch
                %5465 = sbr.rel target = $region136
              $region141: #{ar_graphrnn_generate.1} parent=133 // loop_exit
                _
            $region134: #{ar_graphrnn_generate.1} parent=125 // pred_fallthru
              _
          $region126: #{ar_graphrnn_generate.1} parent=121 // pred_fallthru
            _
          %5509 = vnop
        $region122: #{ar_graphrnn_generate.1} parent=113 // pred_fallthru
          _
      $region114: #{ar_graphrnn_generate.1} parent=5 // pred_fallthru
        _
      %p5510 = scmp.le.s32.totalorder 2, %s21
      // Predicated region
      $region157: #{ar_graphrnn_generate.1} parent=5 // pred_check
        %p5511 = pneg %p5510
      $region158: #{ar_graphrnn_generate.1} parent=5 // pred_check_branch
        %5513 = sbr.rel (%p5511) target = $region160
      $region159: #{ar_graphrnn_generate.1} parent=5 // pred_region
        %s5514 = ssub.s32 %s21, 2
        // Predicated region
        $region161: #{ar_graphrnn_generate.1} parent=159 // pred_check
          %p5515 = pneg %p380
        $region162: #{ar_graphrnn_generate.1} parent=159 // pred_check_branch
          %5517 = sbr.rel (%p5515) target = $region164
        $region163: #{ar_graphrnn_generate.1} parent=159 // pred_region
          %s5518 = sand.u32 %s365, 1
          %s5519 = sand.u32 %s365, 1
          %s5520 = smul.addr %s5519, 48
          %s5521 = scalar_lea.vmem [#allocation3], %s5520
        $region164: #{ar_graphrnn_generate.1} parent=159 // pred_fallthru
          _
      $region160: #{ar_graphrnn_generate.1} parent=5 // pred_fallthru
        _
    $region6: #{ar_graphrnn_generate.1} parent=1 // loop_footer
      %s25 = sadd.s32 1, %s21
    $region7: #{ar_graphrnn_generate.1} parent=1 // loop_footer_branch
      %20 = sbr.rel target = $region3
    $region8: #{ar_graphrnn_generate.1} parent=1 // loop_exit
      _

</llo_original>
